<compile_context>
chip_gen: v7x
topology: tpu7x:2x2x1
jax: 0.10.0
libtpu: 0.0.40
codegen_flags: <defaults>
</compile_context>

<pallas_src>
import functools

import jax
import jax.numpy as jnp
from jax.experimental import pallas as pl
from jax.experimental.pallas import tpu as pltpu


def _round_up(x, m):
    return ((x + m - 1) // m) * m


# Largest flat-spatial (lane) extent handled as a single grid step.  Every
# activation of this model at the demo resolution fits below it, so each layer
# runs as one lane-dense tile (best for 1-TC v5e/v6e); bigger images tile the
# output M axis with the activation staying resident in VMEM.
_SINGLE_TILE_M = 4096


# ----------------------------------------------------------------------------
# Pallas kernel: gated conv as kh*kw shifted matmuls + bias + gating (+ tanh)
#   w_ref  : (taps, 2*Coutp, C) bf16   per-tap fused feature/gate weights
#   b_ref  : (2*Coutp, 1)       f32    fused bias
#   x_ref  : (C, Mext)          bf16   zero-padded activation, flat N*Hp*Wp on lanes
#   o_ref  : (Coutp, TM)        bf16   gated output tile (lane-dense store)
#   acc_ref: (2*Coutp, TM)      f32    accumulator scratch
# ----------------------------------------------------------------------------
def _gated_conv_kernel(w_ref, b_ref, x_ref, o_ref, acc_ref, *,
                       coutp, offs, tm, act, final_tanh, n_tiles):
    if n_tiles == 1:
        def window(off):                         # fully static slice
            return x_ref[:, off:off + tm]
    else:
        base = pl.multiple_of(pl.program_id(0) * tm, tm)

        def window(off):                         # dynamic tile base + static tap offset
            return x_ref[:, pl.ds(base + off, tm)]

    acc_ref[...] = jnp.zeros_like(acc_ref)
    for t, off in enumerate(offs):               # kh*kw shifted matmuls, f32 acc
        acc_ref[...] += jnp.dot(w_ref[t], window(off),
                                preferred_element_type=jnp.float32)

    feat = acc_ref[:coutp, :] + b_ref[:coutp, :]
    gate = acc_ref[coutp:, :] + b_ref[coutp:, :]
    if act == 'lrelu':                           # nn.LeakyReLU(0.2)
        feat = jnp.where(feat >= 0.0, feat, 0.2 * feat)
    elif act == 'relu':
        feat = jnp.maximum(feat, 0.0)
    # sigmoid via EUP exp + approx reciprocal (keeps VALU / store slots free)
    out = feat * pl.reciprocal(1.0 + jnp.exp(-gate), approx=True)
    if final_tanh:                               # trailing nn.Tanh() of the Sequential
        out = jnp.tanh(out)
    o_ref[...] = out.astype(o_ref.dtype)


def gated_conv_flat(x_flat, w, b, cout, offs, act, final_tanh):
    """x_flat: (C, Mp) bf16 zero-padded flat activation; returns (cout, Mp) bf16."""
    C, mp = x_flat.shape
    taps, two_coutp, _ = w.shape
    coutp = two_coutp // 2
    max_off = max(offs)

    mp128 = _round_up(mp, 128)
    if mp128 <= _SINGLE_TILE_M:
        tm, n_tiles = mp128, 1
    else:
        tm = _SINGLE_TILE_M
        n_tiles = (mp + tm - 1) // tm
    mext = n_tiles * tm + max_off                # every tap read stays in bounds
    x_ext = jnp.pad(x_flat, ((0, 0), (0, mext - mp)))

    kernel = functools.partial(_gated_conv_kernel, coutp=coutp,
                               offs=tuple(offs), tm=tm, act=act,
                               final_tanh=final_tanh, n_tiles=n_tiles)
    out = pl.pallas_call(
        kernel,
        out_shape=jax.ShapeDtypeStruct((coutp, n_tiles * tm), jnp.bfloat16),
        grid=(n_tiles,),
        in_specs=[
            pl.BlockSpec((taps, two_coutp, C), lambda i: (0, 0, 0)),  # weights
            pl.BlockSpec((two_coutp, 1), lambda i: (0, 0)),           # bias
            pl.BlockSpec((C, mext), lambda i: (0, 0)),                # activation (VMEM resident)
        ],
        out_specs=pl.BlockSpec((coutp, tm), lambda i: (0, i)),
        scratch_shapes=[pltpu.VMEM((two_coutp, tm), jnp.float32)],
        compiler_params=pltpu.CompilerParams(
            dimension_semantics=("parallel",)),
    )(w, b, x_ext)
    return out[:cout, :mp]


# ----------------------------------------------------------------------------
# JAX glue: zero-pad, flatten, valid-region extraction, nearest resize/upsample
# (activations live in channel-planar (C, N, H, W) layout, bf16)
# ----------------------------------------------------------------------------
def gated_conv2d(x, layer_params, spec):
    """x: (C, N, H, W) bf16.  GatedConv2d with pad_type='zero'."""
    _kind, _cin, cout, k, stride, pad, dil, act, ftanh = spec
    C, N, H, W = x.shape
    xp = jnp.pad(x, ((0, 0), (0, 0), (pad, pad), (pad, pad)))
    Hp, Wp = H + 2 * pad, W + 2 * pad
    span = dil * (k - 1)
    hvalid, wvalid = Hp - span, Wp - span        # stride-1 output extents
    offs = [ki * dil * Wp + kj * dil for ki in range(k) for kj in range(k)]
    y = gated_conv_flat(xp.reshape(C, N * Hp * Wp), layer_params['w'],
                        layer_params['b'], cout, offs, act, ftanh)
    y = y.reshape(cout, N, Hp, Wp)
    return y[:, :, 0:hvalid:stride, 0:wvalid:stride]   # (cout, N, Hout, Wout)


def interpolate_nearest(x, size):
    """F.interpolate(mode='nearest') on the (.., H, W) trailing axes."""
    H, W = x.shape[2], x.shape[3]
    oh, ow = size
    ih = (jnp.arange(oh) * H) // oh
    iw = (jnp.arange(ow) * W) // ow
    x = jnp.take(x, ih, axis=2)
    return jnp.take(x, iw, axis=3)


def upsample2x_nearest(x):
    return jnp.repeat(jnp.repeat(x, 2, axis=2), 2, axis=3)


# ----------------------------------------------------------------------------
# Architecture (vanilla GatedGenerator) and parameters
# ----------------------------------------------------------------------------
def coarse_specs(cin, cout, c):
    # (kind, cin, cout, k, stride, pad, dilation, activation, final_tanh)
    return [
        ('gc', cin, c,       5, 1, 2, 1,  'lrelu', False),
        ('gc', c,   2 * c,   3, 2, 1, 1,  'lrelu', False),
        ('gc', 2 * c, 2 * c, 3, 1, 1, 1,  'lrelu', False),
        ('gc', 2 * c, 4 * c, 3, 2, 1, 1,  'lrelu', False),
        ('gc', 4 * c, 4 * c, 3, 1, 1, 1,  'lrelu', False),
        ('gc', 4 * c, 4 * c, 3, 1, 1, 1,  'lrelu', False),
        ('gc', 4 * c, 4 * c, 3, 1, 2, 2,  'lrelu', False),
        ('gc', 4 * c, 4 * c, 3, 1, 4, 4,  'lrelu', False),
        ('gc', 4 * c, 4 * c, 3, 1, 8, 8,  'lrelu', False),
        ('gc', 4 * c, 4 * c, 3, 1, 16, 16, 'lrelu', False),
        ('gc', 4 * c, 4 * c, 3, 1, 1, 1,  'lrelu', False),
        ('gc', 4 * c, 4 * c, 3, 1, 1, 1,  'lrelu', False),
        ('tgc', 4 * c, 2 * c, 3, 1, 1, 1, 'lrelu', False),
        ('gc', 2 * c, 2 * c, 3, 1, 1, 1,  'lrelu', False),
        ('tgc', 2 * c, c,    3, 1, 1, 1,  'lrelu', False),
        ('gc', c, c // 2,    3, 1, 1, 1,  'lrelu', False),
        ('gc', c // 2, cout, 3, 1, 1, 1,  'none', True),    # + nn.Tanh()
    ]


def refine_conv_specs_vanilla(cin, c):
    return [
        ('gc', cin, c,       5, 1, 2, 1,  'lrelu', False),
        ('gc', c, c,         3, 2, 1, 1,  'lrelu', False),
        ('gc', c, 2 * c,     3, 1, 1, 1,  'lrelu', False),
        ('gc', 2 * c, 2 * c, 3, 2, 1, 1,  'lrelu', False),
        ('gc', 2 * c, 4 * c, 3, 1, 1, 1,  'lrelu', False),
        ('gc', 4 * c, 4 * c, 3, 1, 1, 1,  'lrelu', False),
        ('gc', 4 * c, 4 * c, 3, 1, 2, 2,  'lrelu', False),
        ('gc', 4 * c, 4 * c, 3, 1, 4, 4,  'lrelu', False),
        ('gc', 4 * c, 4 * c, 3, 1, 8, 8,  'lrelu', False),
        ('gc', 4 * c, 4 * c, 3, 1, 16, 16, 'lrelu', False),
    ]


def refine_combine_specs_vanilla(cout, c):
    return [
        ('gc', 4 * c, 4 * c, 3, 1, 1, 1,  'lrelu', False),
        ('gc', 4 * c, 4 * c, 3, 1, 1, 1,  'lrelu', False),
        ('tgc', 4 * c, 2 * c, 3, 1, 1, 1, 'lrelu', False),
        ('gc', 2 * c, 2 * c, 3, 1, 1, 1,  'lrelu', False),
        ('tgc', 2 * c, c,    3, 1, 1, 1,  'lrelu', False),
        ('gc', c, c // 2,    3, 1, 1, 1,  'lrelu', False),
        ('gc', c // 2, cout, 3, 1, 1, 1,  'none', True),    # + nn.Tanh()
    ]


def fuse_layer_params(wf, wg, bf, bg):
    """PyTorch-shaped (cout, cin, k, k) feature/gate convs -> fused kernel operands."""
    cout, cin, k, _ = wf.shape
    coutp = _round_up(cout, 16)          # multiple of 16: full bf16 sublane packing

    def prep_w(w):
        wt = jnp.transpose(w, (2, 3, 0, 1)).reshape(k * k, cout, cin)
        return jnp.pad(wt, ((0, 0), (0, coutp - cout), (0, 0)))

    w = jnp.concatenate([prep_w(wf), prep_w(wg)], axis=1).astype(jnp.bfloat16)
    b = jnp.concatenate([jnp.pad(bf, (0, coutp - cout)),
                         jnp.pad(bg, (0, coutp - cout))])
    b = b.reshape(2 * coutp, 1).astype(jnp.float32)
    return {'w': w, 'b': b}             # w: (k*k, 2*coutp, cin), b: (2*coutp, 1)


def _rand_raw_layer(key, cin, cout, k):
    k1, k2, k3, k4 = jax.random.split(key, 4)
    scale = 1.0 / float(cin * k * k) ** 0.5

    def r(kk, shape, s):
        v = jax.random.normal(kk, shape, jnp.float32) * s
        return v.astype(jnp.bfloat16).astype(jnp.float32)   # bf16-representable

    return (r(k1, (cout, cin, k, k), scale), r(k2, (cout, cin, k, k), scale),
            r(k3, (cout,), 0.01), r(k4, (cout,), 0.01))


def init_layer_params(key, cin, cout, k):
    return fuse_layer_params(*_rand_raw_layer(key, cin, cout, k))


def init_sequential(key, specs):
    keys = jax.random.split(key, len(specs))
    return [init_layer_params(kk, s[1], s[2], s[3]) for kk, s in zip(keys, specs)]


def build_model(key, in_channels, out_channels, cnum):
    specs = {
        'coarse': coarse_specs(in_channels, out_channels, cnum),
        'refine_conv': refine_conv_specs_vanilla(in_channels, cnum),
        'refine_combine': refine_combine_specs_vanilla(out_channels, cnum),
    }
    k1, k2, k3 = jax.random.split(key, 3)
    params = {
        'coarse': init_sequential(k1, specs['coarse']),
        'refine_conv': init_sequential(k2, specs['refine_conv']),
        'refine_combine': init_sequential(k3, specs['refine_combine']),
    }
    return specs, params


def run_sequential(x, specs, layer_params):
    for spec, p in zip(specs, layer_params):
        if spec[0] == 'tgc':                     # TransposeGatedConv2d
            x = upsample2x_nearest(x)
        x = gated_conv2d(x, p, spec)
    return x


def gated_generator_forward(x_cnhw, params, specs, out_hw):
    """x_cnhw: (C, N, H, W) bf16. Returns (first_out, second_out) in CNHW."""
    H, W = out_hw
    first_out = run_sequential(x_cnhw, specs['coarse'], params['coarse'])
    first_out = interpolate_nearest(first_out, (H, W))
    refine = run_sequential(first_out, specs['refine_conv'], params['refine_conv'])
    # vanilla path: second_out = refine_conv output (no self-attention branch)
    second_out = run_sequential(refine, specs['refine_combine'],
                                params['refine_combine'])
    second_out = interpolate_nearest(second_out, (H, W))
    return first_out, second_out


# ----------------------------------------------------------------------------
# Pure-JAX reference (lax.conv) for a single gated conv — used as a self-check
# ----------------------------------------------------------------------------
def _reference_gated_conv(x_cnhw, wf, wg, bf, bg, spec):
    _kind, _cin, _cout, k, stride, pad, dil, act, ftanh = spec
    x = jnp.transpose(x_cnhw, (1, 0, 2, 3)).astype(jnp.float32)      # NCHW
    dn = jax.lax.conv_dimension_numbers(x.shape, wf.shape, ('NCHW', 'OIHW', 'NCHW'))

    def conv(w, b):
        y = jax.lax.conv_general_dilated(x, w, (stride, stride),
                                         [(pad, pad), (pad, pad)],
                                         rhs_dilation=(dil, dil),
                                         dimension_numbers=dn)
        return y + b.reshape(1, -1, 1, 1)

    feat, gate = conv(wf, bf), conv(wg, bg)
    if act == 'lrelu':
        feat = jnp.where(feat >= 0.0, feat, 0.2 * feat)
    elif act == 'relu':
        feat = jnp.maximum(feat, 0.0)
    out = feat * jax.nn.sigmoid(gate)
    if ftanh:
        out = jnp.tanh(out)
    return jnp.transpose(out, (1, 0, 2, 3))                          # back to CNHW


if __name__ == "__main__":
    key = jax.random.PRNGKey(0)
    k_img, k_model, k_chk = jax.random.split(key, 3)

    batch, in_channels, out_channels, cnum, H, W = 2, 4, 4, 8, 16, 16
    img = jax.random.normal(k_img, (batch, in_channels, H, W), jnp.float32)

    # --- self-check of the flat-shift gated-conv kernel vs lax.conv ---------
    chk_specs = [('gc', 4, 8, 5, 1, 2, 1, 'lrelu', False),   # 5x5, stride 1
                 ('gc', 8, 16, 3, 2, 1, 1, 'lrelu', False),  # 3x3, stride 2
                 ('gc', 8, 8, 3, 1, 4, 4, 'none', True)]     # dilated + tanh
    for n, spec in enumerate(chk_specs):
        ka, kb = jax.random.split(jax.random.fold_in(k_chk, n))
        cin, cout, ksz = spec[1], spec[2], spec[3]
        xc = jax.random.normal(ka, (cin, 2, 12, 12), jnp.float32).astype(jnp.bfloat16)
        raw = _rand_raw_layer(kb, cin, cout, ksz)
        got = gated_conv2d(xc, fuse_layer_params(*raw), spec).astype(jnp.float32)
        want = _reference_gated_conv(xc, *raw, spec)
        assert got.shape == want.shape, (got.shape, want.shape)
        err = float(jnp.max(jnp.abs(got - want)))
        assert err < 0.08, f"gated-conv self-check {n} failed: max|err|={err}"

    # --- full GatedGenerator forward -----------------------------------------
    specs, params = build_model(k_model, in_channels, out_channels, cnum)

    @jax.jit
    def forward(img_nchw, prms):
        # NCHW -> channel-planar (C, N, H, W) bf16 once at the boundary
        x = img_nchw.transpose(1, 0, 2, 3).astype(jnp.bfloat16)
        f, s = gated_generator_forward(x, prms, specs, (H, W))
        return (f.transpose(1, 0, 2, 3).astype(jnp.float32),
                s.transpose(1, 0, 2, 3).astype(jnp.float32))

    first_out, second_out = forward(img, params)
    jax.block_until_ready((first_out, second_out))

    assert first_out.shape == (batch, out_channels, H, W), first_out.shape
    assert second_out.shape == (batch, out_channels, H, W), second_out.shape
    assert bool(jnp.all(jnp.isfinite(first_out)))
    assert bool(jnp.all(jnp.isfinite(second_out)))
    # outputs of the final Tanh must lie in [-1, 1]
    assert float(jnp.max(jnp.abs(first_out))) <= 1.0 + 1e-5
    assert float(jnp.max(jnp.abs(second_out))) <= 1.0 + 1e-5

    print("KERNEL_OK")
</pallas_src>

<mosaic_0001>
module attributes {stable_mosaic.version = 11 : i64} {
  func.func @_gated_conv_kernel(%arg0: i32, %arg1: memref<25x32x4xbf16, #tpu.memory_space<vmem>>, %arg2: memref<32x1xf32, #tpu.memory_space<vmem>>, %arg3: memref<4x580xbf16, #tpu.memory_space<vmem>>, %arg4: memref<16x512xbf16, #tpu.memory_space<vmem>>, %arg5: memref<32x512xf32, #tpu.memory_space<vmem>>) attributes {dimension_semantics = [#tpu.dimension_semantics<parallel>], iteration_bounds = array<i64: 1>, scalar_prefetch = 0 : i64, scratch_operands = 1 : i64, tpu.core_type = #tpu.core_type<tc>, window_params = [{pipeline_mode = #tpu.pipeline_mode<synchronous>, transform_indices = @transform_0, window_bounds = array<i64: 25, 32, 4>}, {pipeline_mode = #tpu.pipeline_mode<synchronous>, transform_indices = @transform_1, window_bounds = array<i64: 32, 1>}, {pipeline_mode = #tpu.pipeline_mode<synchronous>, transform_indices = @transform_2, window_bounds = array<i64: 4, 580>}, {transform_indices = @transform_3, window_bounds = array<i64: 16, 512>}]} {
    %cst = arith.constant 0.000000e+00 : f32
    %0 = vector.broadcast %cst : f32 to vector<32x512xf32>
    %c0 = arith.constant 0 : index
    %c0_0 = arith.constant 0 : index
    %1 = vector.load %arg5[%c0, %c0_0] : memref<32x512xf32, #tpu.memory_space<vmem>>, vector<32x512xf32>
    tpu.vector_store %arg5[%c0, %c0_0], %0 {strides = array<i32>} : memref<32x512xf32, #tpu.memory_space<vmem>>, vector<32x512xf32>,
    %c0_1 = arith.constant 0 : index
    %c0_2 = arith.constant 0 : index
    %2 = vector.load %arg5[%c0_1, %c0_2] : memref<32x512xf32, #tpu.memory_space<vmem>>, vector<32x512xf32>
    %c0_3 = arith.constant 0 : index
    %c0_4 = arith.constant 0 : index
    %c0_5 = arith.constant 0 : index
    %3 = vector.load %arg1[%c0_3, %c0_4, %c0_5] : memref<25x32x4xbf16, #tpu.memory_space<vmem>>, vector<1x32x4xbf16>
    %4 = vector.shape_cast %3 : vector<1x32x4xbf16> to vector<32x4xbf16>
    %c0_6 = arith.constant 0 : index
    %c0_7 = arith.constant 0 : index
    %5 = vector.load %arg3[%c0_6, %c0_7] : memref<4x580xbf16, #tpu.memory_space<vmem>>, vector<4x512xbf16>
    %cst_8 = arith.constant dense<0.000000e+00> : vector<32x512xf32>
    %6 = tpu.matmul %4, %5, %cst_8 {dimension_numbers = #tpu.dot_dimension_numbers<[1], [0], [0], [1], [0, 0, 1, 1], [], []>} : vector<32x4xbf16>, vector<4x512xbf16>, vector<32x512xf32> -> vector<32x512xf32>
    %7 = arith.addf %2, %6 : vector<32x512xf32>
    %c0_9 = arith.constant 0 : index
    %c0_10 = arith.constant 0 : index
    %8 = vector.load %arg5[%c0_9, %c0_10] : memref<32x512xf32, #tpu.memory_space<vmem>>, vector<32x512xf32>
    tpu.vector_store %arg5[%c0_9, %c0_10], %7 {strides = array<i32>} : memref<32x512xf32, #tpu.memory_space<vmem>>, vector<32x512xf32>,
    %c0_11 = arith.constant 0 : index
    %c0_12 = arith.constant 0 : index
    %9 = vector.load %arg5[%c0_11, %c0_12] : memref<32x512xf32, #tpu.memory_space<vmem>>, vector<32x512xf32>
    %c1 = arith.constant 1 : index
    %c0_13 = arith.constant 0 : index
    %c0_14 = arith.constant 0 : index
    %10 = vector.load %arg1[%c1, %c0_13, %c0_14] : memref<25x32x4xbf16, #tpu.memory_space<vmem>>, vector<1x32x4xbf16>
    %11 = vector.shape_cast %10 : vector<1x32x4xbf16> to vector<32x4xbf16>
    %c0_15 = arith.constant 0 : index
    %c1_16 = arith.constant 1 : index
    %12 = vector.load %arg3[%c0_15, %c1_16] : memref<4x580xbf16, #tpu.memory_space<vmem>>, vector<4x512xbf16>
    %cst_17 = arith.constant dense<0.000000e+00> : vector<32x512xf32>
    %13 = tpu.matmul %11, %12, %cst_17 {dimension_numbers = #tpu.dot_dimension_numbers<[1], [0], [0], [1], [0, 0, 1, 1], [], []>} : vector<32x4xbf16>, vector<4x512xbf16>, vector<32x512xf32> -> vector<32x512xf32>
    %14 = arith.addf %9, %13 : vector<32x512xf32>
    %c0_18 = arith.constant 0 : index
    %c0_19 = arith.constant 0 : index
    %15 = vector.load %arg5[%c0_18, %c0_19] : memref<32x512xf32, #tpu.memory_space<vmem>>, vector<32x512xf32>
    tpu.vector_store %arg5[%c0_18, %c0_19], %14 {strides = array<i32>} : memref<32x512xf32, #tpu.memory_space<vmem>>, vector<32x512xf32>,
    %c0_20 = arith.constant 0 : index
    %c0_21 = arith.constant 0 : index
    %16 = vector.load %arg5[%c0_20, %c0_21] : memref<32x512xf32, #tpu.memory_space<vmem>>, vector<32x512xf32>
    %c2 = arith.constant 2 : index
    %c0_22 = arith.constant 0 : index
    %c0_23 = arith.constant 0 : index
    %17 = vector.load %arg1[%c2, %c0_22, %c0_23] : memref<25x32x4xbf16, #tpu.memory_space<vmem>>, vector<1x32x4xbf16>
    %18 = vector.shape_cast %17 : vector<1x32x4xbf16> to vector<32x4xbf16>
    %c0_24 = arith.constant 0 : index
    %c2_25 = arith.constant 2 : index
    %19 = vector.load %arg3[%c0_24, %c2_25] : memref<4x580xbf16, #tpu.memory_space<vmem>>, vector<4x512xbf16>
    %cst_26 = arith.constant dense<0.000000e+00> : vector<32x512xf32>
    %20 = tpu.matmul %18, %19, %cst_26 {dimension_numbers = #tpu.dot_dimension_numbers<[1], [0], [0], [1], [0, 0, 1, 1], [], []>} : vector<32x4xbf16>, vector<4x512xbf16>, vector<32x512xf32> -> vector<32x512xf32>
    %21 = arith.addf %16, %20 : vector<32x512xf32>
    %c0_27 = arith.constant 0 : index
    %c0_28 = arith.constant 0 : index
    %22 = vector.load %arg5[%c0_27, %c0_28] : memref<32x512xf32, #tpu.memory_space<vmem>>, vector<32x512xf32>
    tpu.vector_store %arg5[%c0_27, %c0_28], %21 {strides = array<i32>} : memref<32x512xf32, #tpu.memory_space<vmem>>, vector<32x512xf32>,
    %c0_29 = arith.constant 0 : index
    %c0_30 = arith.constant 0 : index
    %23 = vector.load %arg5[%c0_29, %c0_30] : memref<32x512xf32, #tpu.memory_space<vmem>>, vector<32x512xf32>
    %c3 = arith.constant 3 : index
    %c0_31 = arith.constant 0 : index
    %c0_32 = arith.constant 0 : index
    %24 = vector.load %arg1[%c3, %c0_31, %c0_32] : memref<25x32x4xbf16, #tpu.memory_space<vmem>>, vector<1x32x4xbf16>
    %25 = vector.shape_cast %24 : vector<1x32x4xbf16> to vector<32x4xbf16>
    %c0_33 = arith.constant 0 : index
    %c3_34 = arith.constant 3 : index
    %26 = vector.load %arg3[%c0_33, %c3_34] : memref<4x580xbf16, #tpu.memory_space<vmem>>, vector<4x512xbf16>
    %cst_35 = arith.constant dense<0.000000e+00> : vector<32x512xf32>
    %27 = tpu.matmul %25, %26, %cst_35 {dimension_numbers = #tpu.dot_dimension_numbers<[1], [0], [0], [1], [0, 0, 1, 1], [], []>} : vector<32x4xbf16>, vector<4x512xbf16>, vector<32x512xf32> -> vector<32x512xf32>
    %28 = arith.addf %23, %27 : vector<32x512xf32>
    %c0_36 = arith.constant 0 : index
    %c0_37 = arith.constant 0 : index
    %29 = vector.load %arg5[%c0_36, %c0_37] : memref<32x512xf32, #tpu.memory_space<vmem>>, vector<32x512xf32>
    tpu.vector_store %arg5[%c0_36, %c0_37], %28 {strides = array<i32>} : memref<32x512xf32, #tpu.memory_space<vmem>>, vector<32x512xf32>,
    %c0_38 = arith.constant 0 : index
    %c0_39 = arith.constant 0 : index
    %30 = vector.load %arg5[%c0_38, %c0_39] : memref<32x512xf32, #tpu.memory_space<vmem>>, vector<32x512xf32>
    %c4 = arith.constant 4 : index
    %c0_40 = arith.constant 0 : index
    %c0_41 = arith.constant 0 : index
    %31 = vector.load %arg1[%c4, %c0_40, %c0_41] : memref<25x32x4xbf16, #tpu.memory_space<vmem>>, vector<1x32x4xbf16>
    %32 = vector.shape_cast %31 : vector<1x32x4xbf16> to vector<32x4xbf16>
    %c0_42 = arith.constant 0 : index
    %c4_43 = arith.constant 4 : index
    %33 = vector.load %arg3[%c0_42, %c4_43] : memref<4x580xbf16, #tpu.memory_space<vmem>>, vector<4x512xbf16>
    %cst_44 = arith.constant dense<0.000000e+00> : vector<32x512xf32>
    %34 = tpu.matmul %32, %33, %cst_44 {dimension_numbers = #tpu.dot_dimension_numbers<[1], [0], [0], [1], [0, 0, 1, 1], [], []>} : vector<32x4xbf16>, vector<4x512xbf16>, vector<32x512xf32> -> vector<32x512xf32>
    %35 = arith.addf %30, %34 : vector<32x512xf32>
    %c0_45 = arith.constant 0 : index
    %c0_46 = arith.constant 0 : index
    %36 = vector.load %arg5[%c0_45, %c0_46] : memref<32x512xf32, #tpu.memory_space<vmem>>, vector<32x512xf32>
    tpu.vector_store %arg5[%c0_45, %c0_46], %35 {strides = array<i32>} : memref<32x512xf32, #tpu.memory_space<vmem>>, vector<32x512xf32>,
    %c0_47 = arith.constant 0 : index
    %c0_48 = arith.constant 0 : index
    %37 = vector.load %arg5[%c0_47, %c0_48] : memref<32x512xf32, #tpu.memory_space<vmem>>, vector<32x512xf32>
    %c5 = arith.constant 5 : index
    %c0_49 = arith.constant 0 : index
    %c0_50 = arith.constant 0 : index
    %38 = vector.load %arg1[%c5, %c0_49, %c0_50] : memref<25x32x4xbf16, #tpu.memory_space<vmem>>, vector<1x32x4xbf16>
    %39 = vector.shape_cast %38 : vector<1x32x4xbf16> to vector<32x4xbf16>
    %c0_51 = arith.constant 0 : index
    %c16 = arith.constant 16 : index
    %40 = vector.load %arg3[%c0_51, %c16] : memref<4x580xbf16, #tpu.memory_space<vmem>>, vector<4x512xbf16>
    %cst_52 = arith.constant dense<0.000000e+00> : vector<32x512xf32>
    %41 = tpu.matmul %39, %40, %cst_52 {dimension_numbers = #tpu.dot_dimension_numbers<[1], [0], [0], [1], [0, 0, 1, 1], [], []>} : vector<32x4xbf16>, vector<4x512xbf16>, vector<32x512xf32> -> vector<32x512xf32>
    %42 = arith.addf %37, %41 : vector<32x512xf32>
    %c0_53 = arith.constant 0 : index
    %c0_54 = arith.constant 0 : index
    %43 = vector.load %arg5[%c0_53, %c0_54] : memref<32x512xf32, #tpu.memory_space<vmem>>, vector<32x512xf32>
    tpu.vector_store %arg5[%c0_53, %c0_54], %42 {strides = array<i32>} : memref<32x512xf32, #tpu.memory_space<vmem>>, vector<32x512xf32>,
    %c0_55 = arith.constant 0 : index
    %c0_56 = arith.constant 0 : index
    %44 = vector.load %arg5[%c0_55, %c0_56] : memref<32x512xf32, #tpu.memory_space<vmem>>, vector<32x512xf32>
    %c6 = arith.constant 6 : index
    %c0_57 = arith.constant 0 : index
    %c0_58 = arith.constant 0 : index
    %45 = vector.load %arg1[%c6, %c0_57, %c0_58] : memref<25x32x4xbf16, #tpu.memory_space<vmem>>, vector<1x32x4xbf16>
    %46 = vector.shape_cast %45 : vector<1x32x4xbf16> to vector<32x4xbf16>
    %c0_59 = arith.constant 0 : index
    %c17 = arith.constant 17 : index
    %47 = vector.load %arg3[%c0_59, %c17] : memref<4x580xbf16, #tpu.memory_space<vmem>>, vector<4x512xbf16>
    %cst_60 = arith.constant dense<0.000000e+00> : vector<32x512xf32>
    %48 = tpu.matmul %46, %47, %cst_60 {dimension_numbers = #tpu.dot_dimension_numbers<[1], [0], [0], [1], [0, 0, 1, 1], [], []>} : vector<32x4xbf16>, vector<4x512xbf16>, vector<32x512xf32> -> vector<32x512xf32>
    %49 = arith.addf %44, %48 : vector<32x512xf32>
    %c0_61 = arith.constant 0 : index
    %c0_62 = arith.constant 0 : index
    %50 = vector.load %arg5[%c0_61, %c0_62] : memref<32x512xf32, #tpu.memory_space<vmem>>, vector<32x512xf32>
    tpu.vector_store %arg5[%c0_61, %c0_62], %49 {strides = array<i32>} : memref<32x512xf32, #tpu.memory_space<vmem>>, vector<32x512xf32>,
    %c0_63 = arith.constant 0 : index
    %c0_64 = arith.constant 0 : index
    %51 = vector.load %arg5[%c0_63, %c0_64] : memref<32x512xf32, #tpu.memory_space<vmem>>, vector<32x512xf32>
    %c7 = arith.constant 7 : index
    %c0_65 = arith.constant 0 : index
    %c0_66 = arith.constant 0 : index
    %52 = vector.load %arg1[%c7, %c0_65, %c0_66] : memref<25x32x4xbf16, #tpu.memory_space<vmem>>, vector<1x32x4xbf16>
    %53 = vector.shape_cast %52 : vector<1x32x4xbf16> to vector<32x4xbf16>
    %c0_67 = arith.constant 0 : index
    %c18 = arith.constant 18 : index
    %54 = vector.load %arg3[%c0_67, %c18] : memref<4x580xbf16, #tpu.memory_space<vmem>>, vector<4x512xbf16>
    %cst_68 = arith.constant dense<0.000000e+00> : vector<32x512xf32>
    %55 = tpu.matmul %53, %54, %cst_68 {dimension_numbers = #tpu.dot_dimension_numbers<[1], [0], [0], [1], [0, 0, 1, 1], [], []>} : vector<32x4xbf16>, vector<4x512xbf16>, vector<32x512xf32> -> vector<32x512xf32>
    %56 = arith.addf %51, %55 : vector<32x512xf32>
    %c0_69 = arith.constant 0 : index
    %c0_70 = arith.constant 0 : index
    %57 = vector.load %arg5[%c0_69, %c0_70] : memref<32x512xf32, #tpu.memory_space<vmem>>, vector<32x512xf32>
    tpu.vector_store %arg5[%c0_69, %c0_70], %56 {strides = array<i32>} : memref<32x512xf32, #tpu.memory_space<vmem>>, vector<32x512xf32>,
    %c0_71 = arith.constant 0 : index
    %c0_72 = arith.constant 0 : index
    %58 = vector.load %arg5[%c0_71, %c0_72] : memref<32x512xf32, #tpu.memory_space<vmem>>, vector<32x512xf32>
    %c8 = arith.constant 8 : index
    %c0_73 = arith.constant 0 : index
    %c0_74 = arith.constant 0 : index
    %59 = vector.load %arg1[%c8, %c0_73, %c0_74] : memref<25x32x4xbf16, #tpu.memory_space<vmem>>, vector<1x32x4xbf16>
    %60 = vector.shape_cast %59 : vector<1x32x4xbf16> to vector<32x4xbf16>
    %c0_75 = arith.constant 0 : index
    %c19 = arith.constant 19 : index
    %61 = vector.load %arg3[%c0_75, %c19] : memref<4x580xbf16, #tpu.memory_space<vmem>>, vector<4x512xbf16>
    %cst_76 = arith.constant dense<0.000000e+00> : vector<32x512xf32>
    %62 = tpu.matmul %60, %61, %cst_76 {dimension_numbers = #tpu.dot_dimension_numbers<[1], [0], [0], [1], [0, 0, 1, 1], [], []>} : vector<32x4xbf16>, vector<4x512xbf16>, vector<32x512xf32> -> vector<32x512xf32>
    %63 = arith.addf %58, %62 : vector<32x512xf32>
    %c0_77 = arith.constant 0 : index
    %c0_78 = arith.constant 0 : index
    %64 = vector.load %arg5[%c0_77, %c0_78] : memref<32x512xf32, #tpu.memory_space<vmem>>, vector<32x512xf32>
    tpu.vector_store %arg5[%c0_77, %c0_78], %63 {strides = array<i32>} : memref<32x512xf32, #tpu.memory_space<vmem>>, vector<32x512xf32>,
    %c0_79 = arith.constant 0 : index
    %c0_80 = arith.constant 0 : index
    %65 = vector.load %arg5[%c0_79, %c0_80] : memref<32x512xf32, #tpu.memory_space<vmem>>, vector<32x512xf32>
    %c9 = arith.constant 9 : index
    %c0_81 = arith.constant 0 : index
    %c0_82 = arith.constant 0 : index
    %66 = vector.load %arg1[%c9, %c0_81, %c0_82] : memref<25x32x4xbf16, #tpu.memory_space<vmem>>, vector<1x32x4xbf16>
    %67 = vector.shape_cast %66 : vector<1x32x4xbf16> to vector<32x4xbf16>
    %c0_83 = arith.constant 0 : index
    %c20 = arith.constant 20 : index
    %68 = vector.load %arg3[%c0_83, %c20] : memref<4x580xbf16, #tpu.memory_space<vmem>>, vector<4x512xbf16>
    %cst_84 = arith.constant dense<0.000000e+00> : vector<32x512xf32>
    %69 = tpu.matmul %67, %68, %cst_84 {dimension_numbers = #tpu.dot_dimension_numbers<[1], [0], [0], [1], [0, 0, 1, 1], [], []>} : vector<32x4xbf16>, vector<4x512xbf16>, vector<32x512xf32> -> vector<32x512xf32>
    %70 = arith.addf %65, %69 : vector<32x512xf32>
    %c0_85 = arith.constant 0 : index
    %c0_86 = arith.constant 0 : index
    %71 = vector.load %arg5[%c0_85, %c0_86] : memref<32x512xf32, #tpu.memory_space<vmem>>, vector<32x512xf32>
    tpu.vector_store %arg5[%c0_85, %c0_86], %70 {strides = array<i32>} : memref<32x512xf32, #tpu.memory_space<vmem>>, vector<32x512xf32>,
    %c0_87 = arith.constant 0 : index
    %c0_88 = arith.constant 0 : index
    %72 = vector.load %arg5[%c0_87, %c0_88] : memref<32x512xf32, #tpu.memory_space<vmem>>, vector<32x512xf32>
    %c10 = arith.constant 10 : index
    %c0_89 = arith.constant 0 : index
    %c0_90 = arith.constant 0 : index
    %73 = vector.load %arg1[%c10, %c0_89, %c0_90] : memref<25x32x4xbf16, #tpu.memory_space<vmem>>, vector<1x32x4xbf16>
    %74 = vector.shape_cast %73 : vector<1x32x4xbf16> to vector<32x4xbf16>
    %c0_91 = arith.constant 0 : index
    %c32 = arith.constant 32 : index
    %75 = vector.load %arg3[%c0_91, %c32] : memref<4x580xbf16, #tpu.memory_space<vmem>>, vector<4x512xbf16>
    %cst_92 = arith.constant dense<0.000000e+00> : vector<32x512xf32>
    %76 = tpu.matmul %74, %75, %cst_92 {dimension_numbers = #tpu.dot_dimension_numbers<[1], [0], [0], [1], [0, 0, 1, 1], [], []>} : vector<32x4xbf16>, vector<4x512xbf16>, vector<32x512xf32> -> vector<32x512xf32>
    %77 = arith.addf %72, %76 : vector<32x512xf32>
    %c0_93 = arith.constant 0 : index
    %c0_94 = arith.constant 0 : index
    %78 = vector.load %arg5[%c0_93, %c0_94] : memref<32x512xf32, #tpu.memory_space<vmem>>, vector<32x512xf32>
    tpu.vector_store %arg5[%c0_93, %c0_94], %77 {strides = array<i32>} : memref<32x512xf32, #tpu.memory_space<vmem>>, vector<32x512xf32>,
    %c0_95 = arith.constant 0 : index
    %c0_96 = arith.constant 0 : index
    %79 = vector.load %arg5[%c0_95, %c0_96] : memref<32x512xf32, #tpu.memory_space<vmem>>, vector<32x512xf32>
    %c11 = arith.constant 11 : index
    %c0_97 = arith.constant 0 : index
    %c0_98 = arith.constant 0 : index
    %80 = vector.load %arg1[%c11, %c0_97, %c0_98] : memref<25x32x4xbf16, #tpu.memory_space<vmem>>, vector<1x32x4xbf16>
    %81 = vector.shape_cast %80 : vector<1x32x4xbf16> to vector<32x4xbf16>
    %c0_99 = arith.constant 0 : index
    %c33 = arith.constant 33 : index
    %82 = vector.load %arg3[%c0_99, %c33] : memref<4x580xbf16, #tpu.memory_space<vmem>>, vector<4x512xbf16>
    %cst_100 = arith.constant dense<0.000000e+00> : vector<32x512xf32>
    %83 = tpu.matmul %81, %82, %cst_100 {dimension_numbers = #tpu.dot_dimension_numbers<[1], [0], [0], [1], [0, 0, 1, 1], [], []>} : vector<32x4xbf16>, vector<4x512xbf16>, vector<32x512xf32> -> vector<32x512xf32>
    %84 = arith.addf %79, %83 : vector<32x512xf32>
    %c0_101 = arith.constant 0 : index
    %c0_102 = arith.constant 0 : index
    %85 = vector.load %arg5[%c0_101, %c0_102] : memref<32x512xf32, #tpu.memory_space<vmem>>, vector<32x512xf32>
    tpu.vector_store %arg5[%c0_101, %c0_102], %84 {strides = array<i32>} : memref<32x512xf32, #tpu.memory_space<vmem>>, vector<32x512xf32>,
    %c0_103 = arith.constant 0 : index
    %c0_104 = arith.constant 0 : index
    %86 = vector.load %arg5[%c0_103, %c0_104] : memref<32x512xf32, #tpu.memory_space<vmem>>, vector<32x512xf32>
    %c12 = arith.constant 12 : index
    %c0_105 = arith.constant 0 : index
    %c0_106 = arith.constant 0 : index
    %87 = vector.load %arg1[%c12, %c0_105, %c0_106] : memref<25x32x4xbf16, #tpu.memory_space<vmem>>, vector<1x32x4xbf16>
    %88 = vector.shape_cast %87 : vector<1x32x4xbf16> to vector<32x4xbf16>
    %c0_107 = arith.constant 0 : index
    %c34 = arith.constant 34 : index
    %89 = vector.load %arg3[%c0_107, %c34] : memref<4x580xbf16, #tpu.memory_space<vmem>>, vector<4x512xbf16>
    %cst_108 = arith.constant dense<0.000000e+00> : vector<32x512xf32>
    %90 = tpu.matmul %88, %89, %cst_108 {dimension_numbers = #tpu.dot_dimension_numbers<[1], [0], [0], [1], [0, 0, 1, 1], [], []>} : vector<32x4xbf16>, vector<4x512xbf16>, vector<32x512xf32> -> vector<32x512xf32>
    %91 = arith.addf %86, %90 : vector<32x512xf32>
    %c0_109 = arith.constant 0 : index
    %c0_110 = arith.constant 0 : index
    %92 = vector.load %arg5[%c0_109, %c0_110] : memref<32x512xf32, #tpu.memory_space<vmem>>, vector<32x512xf32>
    tpu.vector_store %arg5[%c0_109, %c0_110], %91 {strides = array<i32>} : memref<32x512xf32, #tpu.memory_space<vmem>>, vector<32x512xf32>,
    %c0_111 = arith.constant 0 : index
    %c0_112 = arith.constant 0 : index
    %93 = vector.load %arg5[%c0_111, %c0_112] : memref<32x512xf32, #tpu.memory_space<vmem>>, vector<32x512xf32>
    %c13 = arith.constant 13 : index
    %c0_113 = arith.constant 0 : index
    %c0_114 = arith.constant 0 : index
    %94 = vector.load %arg1[%c13, %c0_113, %c0_114] : memref<25x32x4xbf16, #tpu.memory_space<vmem>>, vector<1x32x4xbf16>
    %95 = vector.shape_cast %94 : vector<1x32x4xbf16> to vector<32x4xbf16>
    %c0_115 = arith.constant 0 : index
    %c35 = arith.constant 35 : index
    %96 = vector.load %arg3[%c0_115, %c35] : memref<4x580xbf16, #tpu.memory_space<vmem>>, vector<4x512xbf16>
    %cst_116 = arith.constant dense<0.000000e+00> : vector<32x512xf32>
    %97 = tpu.matmul %95, %96, %cst_116 {dimension_numbers = #tpu.dot_dimension_numbers<[1], [0], [0], [1], [0, 0, 1, 1], [], []>} : vector<32x4xbf16>, vector<4x512xbf16>, vector<32x512xf32> -> vector<32x512xf32>
    %98 = arith.addf %93, %97 : vector<32x512xf32>
    %c0_117 = arith.constant 0 : index
    %c0_118 = arith.constant 0 : index
    %99 = vector.load %arg5[%c0_117, %c0_118] : memref<32x512xf32, #tpu.memory_space<vmem>>, vector<32x512xf32>
    tpu.vector_store %arg5[%c0_117, %c0_118], %98 {strides = array<i32>} : memref<32x512xf32, #tpu.memory_space<vmem>>, vector<32x512xf32>,
    %c0_119 = arith.constant 0 : index
    %c0_120 = arith.constant 0 : index
    %100 = vector.load %arg5[%c0_119, %c0_120] : memref<32x512xf32, #tpu.memory_space<vmem>>, vector<32x512xf32>
    %c14 = arith.constant 14 : index
    %c0_121 = arith.constant 0 : index
    %c0_122 = arith.constant 0 : index
    %101 = vector.load %arg1[%c14, %c0_121, %c0_122] : memref<25x32x4xbf16, #tpu.memory_space<vmem>>, vector<1x32x4xbf16>
    %102 = vector.shape_cast %101 : vector<1x32x4xbf16> to vector<32x4xbf16>
    %c0_123 = arith.constant 0 : index
    %c36 = arith.constant 36 : index
    %103 = vector.load %arg3[%c0_123, %c36] : memref<4x580xbf16, #tpu.memory_space<vmem>>, vector<4x512xbf16>
    %cst_124 = arith.constant dense<0.000000e+00> : vector<32x512xf32>
    %104 = tpu.matmul %102, %103, %cst_124 {dimension_numbers = #tpu.dot_dimension_numbers<[1], [0], [0], [1], [0, 0, 1, 1], [], []>} : vector<32x4xbf16>, vector<4x512xbf16>, vector<32x512xf32> -> vector<32x512xf32>
    %105 = arith.addf %100, %104 : vector<32x512xf32>
    %c0_125 = arith.constant 0 : index
    %c0_126 = arith.constant 0 : index
    %106 = vector.load %arg5[%c0_125, %c0_126] : memref<32x512xf32, #tpu.memory_space<vmem>>, vector<32x512xf32>
    tpu.vector_store %arg5[%c0_125, %c0_126], %105 {strides = array<i32>} : memref<32x512xf32, #tpu.memory_space<vmem>>, vector<32x512xf32>,
    %c0_127 = arith.constant 0 : index
    %c0_128 = arith.constant 0 : index
    %107 = vector.load %arg5[%c0_127, %c0_128] : memref<32x512xf32, #tpu.memory_space<vmem>>, vector<32x512xf32>
    %c15 = arith.constant 15 : index
    %c0_129 = arith.constant 0 : index
    %c0_130 = arith.constant 0 : index
    %108 = vector.load %arg1[%c15, %c0_129, %c0_130] : memref<25x32x4xbf16, #tpu.memory_space<vmem>>, vector<1x32x4xbf16>
    %109 = vector.shape_cast %108 : vector<1x32x4xbf16> to vector<32x4xbf16>
    %c0_131 = arith.constant 0 : index
    %c48 = arith.constant 48 : index
    %110 = vector.load %arg3[%c0_131, %c48] : memref<4x580xbf16, #tpu.memory_space<vmem>>, vector<4x512xbf16>
    %cst_132 = arith.constant dense<0.000000e+00> : vector<32x512xf32>
    %111 = tpu.matmul %109, %110, %cst_132 {dimension_numbers = #tpu.dot_dimension_numbers<[1], [0], [0], [1], [0, 0, 1, 1], [], []>} : vector<32x4xbf16>, vector<4x512xbf16>, vector<32x512xf32> -> vector<32x512xf32>
    %112 = arith.addf %107, %111 : vector<32x512xf32>
    %c0_133 = arith.constant 0 : index
    %c0_134 = arith.constant 0 : index
    %113 = vector.load %arg5[%c0_133, %c0_134] : memref<32x512xf32, #tpu.memory_space<vmem>>, vector<32x512xf32>
    tpu.vector_store %arg5[%c0_133, %c0_134], %112 {strides = array<i32>} : memref<32x512xf32, #tpu.memory_space<vmem>>, vector<32x512xf32>,
    %c0_135 = arith.constant 0 : index
    %c0_136 = arith.constant 0 : index
    %114 = vector.load %arg5[%c0_135, %c0_136] : memref<32x512xf32, #tpu.memory_space<vmem>>, vector<32x512xf32>
    %c16_137 = arith.constant 16 : index
    %c0_138 = arith.constant 0 : index
    %c0_139 = arith.constant 0 : index
    %115 = vector.load %arg1[%c16_137, %c0_138, %c0_139] : memref<25x32x4xbf16, #tpu.memory_space<vmem>>, vector<1x32x4xbf16>
    %116 = vector.shape_cast %115 : vector<1x32x4xbf16> to vector<32x4xbf16>
    %c0_140 = arith.constant 0 : index
    %c49 = arith.constant 49 : index
    %117 = vector.load %arg3[%c0_140, %c49] : memref<4x580xbf16, #tpu.memory_space<vmem>>, vector<4x512xbf16>
    %cst_141 = arith.constant dense<0.000000e+00> : vector<32x512xf32>
    %118 = tpu.matmul %116, %117, %cst_141 {dimension_numbers = #tpu.dot_dimension_numbers<[1], [0], [0], [1], [0, 0, 1, 1], [], []>} : vector<32x4xbf16>, vector<4x512xbf16>, vector<32x512xf32> -> vector<32x512xf32>
    %119 = arith.addf %114, %118 : vector<32x512xf32>
    %c0_142 = arith.constant 0 : index
    %c0_143 = arith.constant 0 : index
    %120 = vector.load %arg5[%c0_142, %c0_143] : memref<32x512xf32, #tpu.memory_space<vmem>>, vector<32x512xf32>
    tpu.vector_store %arg5[%c0_142, %c0_143], %119 {strides = array<i32>} : memref<32x512xf32, #tpu.memory_space<vmem>>, vector<32x512xf32>,
    %c0_144 = arith.constant 0 : index
    %c0_145 = arith.constant 0 : index
    %121 = vector.load %arg5[%c0_144, %c0_145] : memref<32x512xf32, #tpu.memory_space<vmem>>, vector<32x512xf32>
    %c17_146 = arith.constant 17 : index
    %c0_147 = arith.constant 0 : index
    %c0_148 = arith.constant 0 : index
    %122 = vector.load %arg1[%c17_146, %c0_147, %c0_148] : memref<25x32x4xbf16, #tpu.memory_space<vmem>>, vector<1x32x4xbf16>
    %123 = vector.shape_cast %122 : vector<1x32x4xbf16> to vector<32x4xbf16>
    %c0_149 = arith.constant 0 : index
    %c50 = arith.constant 50 : index
    %124 = vector.load %arg3[%c0_149, %c50] : memref<4x580xbf16, #tpu.memory_space<vmem>>, vector<4x512xbf16>
    %cst_150 = arith.constant dense<0.000000e+00> : vector<32x512xf32>
    %125 = tpu.matmul %123, %124, %cst_150 {dimension_numbers = #tpu.dot_dimension_numbers<[1], [0], [0], [1], [0, 0, 1, 1], [], []>} : vector<32x4xbf16>, vector<4x512xbf16>, vector<32x512xf32> -> vector<32x512xf32>
    %126 = arith.addf %121, %125 : vector<32x512xf32>
    %c0_151 = arith.constant 0 : index
    %c0_152 = arith.constant 0 : index
    %127 = vector.load %arg5[%c0_151, %c0_152] : memref<32x512xf32, #tpu.memory_space<vmem>>, vector<32x512xf32>
    tpu.vector_store %arg5[%c0_151, %c0_152], %126 {strides = array<i32>} : memref<32x512xf32, #tpu.memory_space<vmem>>, vector<32x512xf32>,
    %c0_153 = arith.constant 0 : index
    %c0_154 = arith.constant 0 : index
    %128 = vector.load %arg5[%c0_153, %c0_154] : memref<32x512xf32, #tpu.memory_space<vmem>>, vector<32x512xf32>
    %c18_155 = arith.constant 18 : index
    %c0_156 = arith.constant 0 : index
    %c0_157 = arith.constant 0 : index
    %129 = vector.load %arg1[%c18_155, %c0_156, %c0_157] : memref<25x32x4xbf16, #tpu.memory_space<vmem>>, vector<1x32x4xbf16>
    %130 = vector.shape_cast %129 : vector<1x32x4xbf16> to vector<32x4xbf16>
    %c0_158 = arith.constant 0 : index
    %c51 = arith.constant 51 : index
    %131 = vector.load %arg3[%c0_158, %c51] : memref<4x580xbf16, #tpu.memory_space<vmem>>, vector<4x512xbf16>
    %cst_159 = arith.constant dense<0.000000e+00> : vector<32x512xf32>
    %132 = tpu.matmul %130, %131, %cst_159 {dimension_numbers = #tpu.dot_dimension_numbers<[1], [0], [0], [1], [0, 0, 1, 1], [], []>} : vector<32x4xbf16>, vector<4x512xbf16>, vector<32x512xf32> -> vector<32x512xf32>
    %133 = arith.addf %128, %132 : vector<32x512xf32>
    %c0_160 = arith.constant 0 : index
    %c0_161 = arith.constant 0 : index
    %134 = vector.load %arg5[%c0_160, %c0_161] : memref<32x512xf32, #tpu.memory_space<vmem>>, vector<32x512xf32>
    tpu.vector_store %arg5[%c0_160, %c0_161], %133 {strides = array<i32>} : memref<32x512xf32, #tpu.memory_space<vmem>>, vector<32x512xf32>,
    %c0_162 = arith.constant 0 : index
    %c0_163 = arith.constant 0 : index
    %135 = vector.load %arg5[%c0_162, %c0_163] : memref<32x512xf32, #tpu.memory_space<vmem>>, vector<32x512xf32>
    %c19_164 = arith.constant 19 : index
    %c0_165 = arith.constant 0 : index
    %c0_166 = arith.constant 0 : index
    %136 = vector.load %arg1[%c19_164, %c0_165, %c0_166] : memref<25x32x4xbf16, #tpu.memory_space<vmem>>, vector<1x32x4xbf16>
    %137 = vector.shape_cast %136 : vector<1x32x4xbf16> to vector<32x4xbf16>
    %c0_167 = arith.constant 0 : index
    %c52 = arith.constant 52 : index
    %138 = vector.load %arg3[%c0_167, %c52] : memref<4x580xbf16, #tpu.memory_space<vmem>>, vector<4x512xbf16>
    %cst_168 = arith.constant dense<0.000000e+00> : vector<32x512xf32>
    %139 = tpu.matmul %137, %138, %cst_168 {dimension_numbers = #tpu.dot_dimension_numbers<[1], [0], [0], [1], [0, 0, 1, 1], [], []>} : vector<32x4xbf16>, vector<4x512xbf16>, vector<32x512xf32> -> vector<32x512xf32>
    %140 = arith.addf %135, %139 : vector<32x512xf32>
    %c0_169 = arith.constant 0 : index
    %c0_170 = arith.constant 0 : index
    %141 = vector.load %arg5[%c0_169, %c0_170] : memref<32x512xf32, #tpu.memory_space<vmem>>, vector<32x512xf32>
    tpu.vector_store %arg5[%c0_169, %c0_170], %140 {strides = array<i32>} : memref<32x512xf32, #tpu.memory_space<vmem>>, vector<32x512xf32>,
    %c0_171 = arith.constant 0 : index
    %c0_172 = arith.constant 0 : index
    %142 = vector.load %arg5[%c0_171, %c0_172] : memref<32x512xf32, #tpu.memory_space<vmem>>, vector<32x512xf32>
    %c20_173 = arith.constant 20 : index
    %c0_174 = arith.constant 0 : index
    %c0_175 = arith.constant 0 : index
    %143 = vector.load %arg1[%c20_173, %c0_174, %c0_175] : memref<25x32x4xbf16, #tpu.memory_space<vmem>>, vector<1x32x4xbf16>
    %144 = vector.shape_cast %143 : vector<1x32x4xbf16> to vector<32x4xbf16>
    %c0_176 = arith.constant 0 : index
    %c64 = arith.constant 64 : index
    %145 = vector.load %arg3[%c0_176, %c64] : memref<4x580xbf16, #tpu.memory_space<vmem>>, vector<4x512xbf16>
    %cst_177 = arith.constant dense<0.000000e+00> : vector<32x512xf32>
    %146 = tpu.matmul %144, %145, %cst_177 {dimension_numbers = #tpu.dot_dimension_numbers<[1], [0], [0], [1], [0, 0, 1, 1], [], []>} : vector<32x4xbf16>, vector<4x512xbf16>, vector<32x512xf32> -> vector<32x512xf32>
    %147 = arith.addf %142, %146 : vector<32x512xf32>
    %c0_178 = arith.constant 0 : index
    %c0_179 = arith.constant 0 : index
    %148 = vector.load %arg5[%c0_178, %c0_179] : memref<32x512xf32, #tpu.memory_space<vmem>>, vector<32x512xf32>
    tpu.vector_store %arg5[%c0_178, %c0_179], %147 {strides = array<i32>} : memref<32x512xf32, #tpu.memory_space<vmem>>, vector<32x512xf32>,
    %c0_180 = arith.constant 0 : index
    %c0_181 = arith.constant 0 : index
    %149 = vector.load %arg5[%c0_180, %c0_181] : memref<32x512xf32, #tpu.memory_space<vmem>>, vector<32x512xf32>
    %c21 = arith.constant 21 : index
    %c0_182 = arith.constant 0 : index
    %c0_183 = arith.constant 0 : index
    %150 = vector.load %arg1[%c21, %c0_182, %c0_183] : memref<25x32x4xbf16, #tpu.memory_space<vmem>>, vector<1x32x4xbf16>
    %151 = vector.shape_cast %150 : vector<1x32x4xbf16> to vector<32x4xbf16>
    %c0_184 = arith.constant 0 : index
    %c65 = arith.constant 65 : index
    %152 = vector.load %arg3[%c0_184, %c65] : memref<4x580xbf16, #tpu.memory_space<vmem>>, vector<4x512xbf16>
    %cst_185 = arith.constant dense<0.000000e+00> : vector<32x512xf32>
    %153 = tpu.matmul %151, %152, %cst_185 {dimension_numbers = #tpu.dot_dimension_numbers<[1], [0], [0], [1], [0, 0, 1, 1], [], []>} : vector<32x4xbf16>, vector<4x512xbf16>, vector<32x512xf32> -> vector<32x512xf32>
    %154 = arith.addf %149, %153 : vector<32x512xf32>
    %c0_186 = arith.constant 0 : index
    %c0_187 = arith.constant 0 : index
    %155 = vector.load %arg5[%c0_186, %c0_187] : memref<32x512xf32, #tpu.memory_space<vmem>>, vector<32x512xf32>
    tpu.vector_store %arg5[%c0_186, %c0_187], %154 {strides = array<i32>} : memref<32x512xf32, #tpu.memory_space<vmem>>, vector<32x512xf32>,
    %c0_188 = arith.constant 0 : index
    %c0_189 = arith.constant 0 : index
    %156 = vector.load %arg5[%c0_188, %c0_189] : memref<32x512xf32, #tpu.memory_space<vmem>>, vector<32x512xf32>
    %c22 = arith.constant 22 : index
    %c0_190 = arith.constant 0 : index
    %c0_191 = arith.constant 0 : index
    %157 = vector.load %arg1[%c22, %c0_190, %c0_191] : memref<25x32x4xbf16, #tpu.memory_space<vmem>>, vector<1x32x4xbf16>
    %158 = vector.shape_cast %157 : vector<1x32x4xbf16> to vector<32x4xbf16>
    %c0_192 = arith.constant 0 : index
    %c66 = arith.constant 66 : index
    %159 = vector.load %arg3[%c0_192, %c66] : memref<4x580xbf16, #tpu.memory_space<vmem>>, vector<4x512xbf16>
    %cst_193 = arith.constant dense<0.000000e+00> : vector<32x512xf32>
    %160 = tpu.matmul %158, %159, %cst_193 {dimension_numbers = #tpu.dot_dimension_numbers<[1], [0], [0], [1], [0, 0, 1, 1], [], []>} : vector<32x4xbf16>, vector<4x512xbf16>, vector<32x512xf32> -> vector<32x512xf32>
    %161 = arith.addf %156, %160 : vector<32x512xf32>
    %c0_194 = arith.constant 0 : index
    %c0_195 = arith.constant 0 : index
    %162 = vector.load %arg5[%c0_194, %c0_195] : memref<32x512xf32, #tpu.memory_space<vmem>>, vector<32x512xf32>
    tpu.vector_store %arg5[%c0_194, %c0_195], %161 {strides = array<i32>} : memref<32x512xf32, #tpu.memory_space<vmem>>, vector<32x512xf32>,
    %c0_196 = arith.constant 0 : index
    %c0_197 = arith.constant 0 : index
    %163 = vector.load %arg5[%c0_196, %c0_197] : memref<32x512xf32, #tpu.memory_space<vmem>>, vector<32x512xf32>
    %c23 = arith.constant 23 : index
    %c0_198 = arith.constant 0 : index
    %c0_199 = arith.constant 0 : index
    %164 = vector.load %arg1[%c23, %c0_198, %c0_199] : memref<25x32x4xbf16, #tpu.memory_space<vmem>>, vector<1x32x4xbf16>
    %165 = vector.shape_cast %164 : vector<1x32x4xbf16> to vector<32x4xbf16>
    %c0_200 = arith.constant 0 : index
    %c67 = arith.constant 67 : index
    %166 = vector.load %arg3[%c0_200, %c67] : memref<4x580xbf16, #tpu.memory_space<vmem>>, vector<4x512xbf16>
    %cst_201 = arith.constant dense<0.000000e+00> : vector<32x512xf32>
    %167 = tpu.matmul %165, %166, %cst_201 {dimension_numbers = #tpu.dot_dimension_numbers<[1], [0], [0], [1], [0, 0, 1, 1], [], []>} : vector<32x4xbf16>, vector<4x512xbf16>, vector<32x512xf32> -> vector<32x512xf32>
    %168 = arith.addf %163, %167 : vector<32x512xf32>
    %c0_202 = arith.constant 0 : index
    %c0_203 = arith.constant 0 : index
    %169 = vector.load %arg5[%c0_202, %c0_203] : memref<32x512xf32, #tpu.memory_space<vmem>>, vector<32x512xf32>
    tpu.vector_store %arg5[%c0_202, %c0_203], %168 {strides = array<i32>} : memref<32x512xf32, #tpu.memory_space<vmem>>, vector<32x512xf32>,
    %c0_204 = arith.constant 0 : index
    %c0_205 = arith.constant 0 : index
    %170 = vector.load %arg5[%c0_204, %c0_205] : memref<32x512xf32, #tpu.memory_space<vmem>>, vector<32x512xf32>
    %c24 = arith.constant 24 : index
    %c0_206 = arith.constant 0 : index
    %c0_207 = arith.constant 0 : index
    %171 = vector.load %arg1[%c24, %c0_206, %c0_207] : memref<25x32x4xbf16, #tpu.memory_space<vmem>>, vector<1x32x4xbf16>
    %172 = vector.shape_cast %171 : vector<1x32x4xbf16> to vector<32x4xbf16>
    %c0_208 = arith.constant 0 : index
    %c68 = arith.constant 68 : index
    %173 = vector.load %arg3[%c0_208, %c68] : memref<4x580xbf16, #tpu.memory_space<vmem>>, vector<4x512xbf16>
    %cst_209 = arith.constant dense<0.000000e+00> : vector<32x512xf32>
    %174 = tpu.matmul %172, %173, %cst_209 {dimension_numbers = #tpu.dot_dimension_numbers<[1], [0], [0], [1], [0, 0, 1, 1], [], []>} : vector<32x4xbf16>, vector<4x512xbf16>, vector<32x512xf32> -> vector<32x512xf32>
    %175 = arith.addf %170, %174 : vector<32x512xf32>
    %c0_210 = arith.constant 0 : index
    %c0_211 = arith.constant 0 : index
    %176 = vector.load %arg5[%c0_210, %c0_211] : memref<32x512xf32, #tpu.memory_space<vmem>>, vector<32x512xf32>
    tpu.vector_store %arg5[%c0_210, %c0_211], %175 {strides = array<i32>} : memref<32x512xf32, #tpu.memory_space<vmem>>, vector<32x512xf32>,
    %c0_212 = arith.constant 0 : index
    %c0_213 = arith.constant 0 : index
    %177 = vector.load %arg5[%c0_212, %c0_213] : memref<32x512xf32, #tpu.memory_space<vmem>>, vector<16x512xf32>
    %c0_214 = arith.constant 0 : index
    %c0_215 = arith.constant 0 : index
    %178 = vector.load %arg2[%c0_214, %c0_215] : memref<32x1xf32, #tpu.memory_space<vmem>>, vector<16x1xf32>
    %179 = vector.broadcast %178 : vector<16x1xf32> to vector<16x512xf32>
    %180 = arith.addf %177, %179 : vector<16x512xf32>
    %c16_216 = arith.constant 16 : index
    %c0_217 = arith.constant 0 : index
    %181 = vector.load %arg5[%c16_216, %c0_217] : memref<32x512xf32, #tpu.memory_space<vmem>>, vector<16x512xf32>
    %c16_218 = arith.constant 16 : index
    %c0_219 = arith.constant 0 : index
    %182 = vector.load %arg2[%c16_218, %c0_219] : memref<32x1xf32, #tpu.memory_space<vmem>>, vector<16x1xf32>
    %183 = vector.broadcast %182 : vector<16x1xf32> to vector<16x512xf32>
    %184 = arith.addf %181, %183 : vector<16x512xf32>
    %cst_220 = arith.constant 0.000000e+00 : f32
    %185 = vector.broadcast %cst_220 : f32 to vector<16x512xf32>
    %186 = arith.cmpf oge, %180, %185 : vector<16x512xf32>
    %cst_221 = arith.constant 2.000000e-01 : f32
    %187 = vector.broadcast %cst_221 : f32 to vector<16x512xf32>
    %188 = arith.mulf %187, %180 : vector<16x512xf32>
    %189 = arith.select %186, %180, %188 : vector<16x512xi1>, vector<16x512xf32>
    %cst_222 = arith.constant 0.000000e+00 : f32
    %190 = vector.broadcast %cst_222 : f32 to vector<16x512xf32>
    %191 = arith.subf %190, %184 : vector<16x512xf32>
    %192 = math.exp %191 : vector<16x512xf32>
    %cst_223 = arith.constant 1.000000e+00 : f32
    %193 = vector.broadcast %cst_223 : f32 to vector<16x512xf32>
    %194 = arith.addf %193, %192 : vector<16x512xf32>
    %195 = tpu.reciprocal %194 {approx = true} : vector<16x512xf32> -> vector<16x512xf32>
    %196 = arith.mulf %189, %195 : vector<16x512xf32>
    %197 = arith.truncf %196 : vector<16x512xf32> to vector<16x512xbf16>
    %c0_224 = arith.constant 0 : index
    %c0_225 = arith.constant 0 : index
    %198 = vector.load %arg4[%c0_224, %c0_225] : memref<16x512xbf16, #tpu.memory_space<vmem>>, vector<16x512xbf16>
    tpu.vector_store %arg4[%c0_224, %c0_225], %197 {strides = array<i32>} : memref<16x512xbf16, #tpu.memory_space<vmem>>, vector<16x512xbf16>,
    return
  }
  func.func @transform_0(%arg0: i32) -> (i32, i32, i32) {
    %c0_i32 = arith.constant 0 : i32
    %c0_i32_0 = arith.constant 0 : i32
    %c0_i32_1 = arith.constant 0 : i32
    %c0_i32_2 = arith.constant 0 : i32
    return %c0_i32, %c0_i32_0, %c0_i32_1 : i32, i32, i32
  }
  func.func @transform_1(%arg0: i32) -> (i32, i32) {
    %c0_i32 = arith.constant 0 : i32
    %c0_i32_0 = arith.constant 0 : i32
    %c0_i32_1 = arith.constant 0 : i32
    return %c0_i32, %c0_i32_0 : i32, i32
  }
  func.func @transform_2(%arg0: i32) -> (i32, i32) {
    %c0_i32 = arith.constant 0 : i32
    %c0_i32_0 = arith.constant 0 : i32
    %c0_i32_1 = arith.constant 0 : i32
    return %c0_i32, %c0_i32_0 : i32, i32
  }
  func.func @transform_3(%arg0: i32) -> (i32, i32) {
    %c0_i32 = arith.constant 0 : i32
    %c0_i32_0 = arith.constant 0 : i32
    return %c0_i32, %arg0 : i32, i32
  }
}

</mosaic_0001>

<llo_original>
// kernel: tpu_custom_call.1
$region0: #{tpu_custom_call.1}
  #allocation0 [shape = 'u32[]', space=smem, size = 0x4, offset = 0x4, fixed_abs, tag = 'smem constant byte address 0x4 - core index']
  #allocation1 [shape = 'u32[144,128]{1,0:T(1,128)}', space=vmem, size = 0x12000, scoped, tag = 'internal scratch']
  #allocation2 [shape = 'f32[32,512]{1,0:T(8,128)}', space=vmem, size = 0x10000, scoped, tag = 'scratch operand']
  %s0 = inlined_call_operand.vmem [shape: bf16[25,32,4], index: 0, kind: input, shape index: {}]
  %s1 = inlined_call_operand.vmem [shape: f32[32,1], index: 1, kind: input, shape index: {}]
  %s2 = inlined_call_operand.vmem [shape: bf16[4,580], index: 2, kind: input, shape index: {}]
  %s3 = inlined_call_operand.hbm [shape: bf16[16,512], index: 3, kind: output, shape index: {}]
  %s4 = sld [smem:[#allocation0]]
  $region22: #{tpu_custom_call.1} parent=0
    _
  %s6 = ssub.s32 1, %s4
  %s7 = scalar_select 0, %s6, %s4
  $region1: #{tpu_custom_call.1} parent=0
    #allocation3 [shape = 'u8[16384]{0}', space=vmem, size = 0x4000, scoped, tag = 'output window, operand 0, single buffered']
    #allocation4 [shape = 's32[1]{0}', space=sflag, size = 0x4, scoped, tag = 'scoped memory for tpu_custom_call.1']
    %8 = vsyncpa [#allocation4], 0
    // Predicated region
    $region2: #{tpu_custom_call.1} parent=1 // pred_check
      _
    $region3: #{tpu_custom_call.1} parent=1 // pred_check_branch
      %10 = sbr.rel (0) target = $region5
    $region4: #{tpu_custom_call.1} parent=1 // pred_region
      _
    $region5: #{tpu_custom_call.1} parent=1 // pred_fallthru
      _
    // Predicated region
    $region6: #{tpu_custom_call.1} parent=1 // pred_check
      _
    $region7: #{tpu_custom_call.1} parent=1 // pred_check_branch
      %12 = sbr.rel (0) target = $region9
    $region8: #{tpu_custom_call.1} parent=1 // pred_region
      _
    $region9: #{tpu_custom_call.1} parent=1 // pred_fallthru
      _
    // Predicated region
    $region10: #{tpu_custom_call.1} parent=1 // pred_check
      _
    $region11: #{tpu_custom_call.1} parent=1 // pred_check_branch
      %14 = sbr.rel (0) target = $region13
    $region12: #{tpu_custom_call.1} parent=1 // pred_region
      _
    $region13: #{tpu_custom_call.1} parent=1 // pred_fallthru
      _
    %16 = vst [vmem:[#allocation2] sm:$0xff] 0.0
    %17 = vst [vmem:[#allocation2 + $0x8] sm:$0xff] 0.0
    %18 = vst [vmem:[#allocation2 + $0x10] sm:$0xff] 0.0
    %19 = vst [vmem:[#allocation2 + $0x18] sm:$0xff] 0.0
    %20 = vst [vmem:[#allocation2 + $0x20] sm:$0xff] 0.0
    %21 = vst [vmem:[#allocation2 + $0x28] sm:$0xff] 0.0
    %22 = vst [vmem:[#allocation2 + $0x30] sm:$0xff] 0.0
    %23 = vst [vmem:[#allocation2 + $0x38] sm:$0xff] 0.0
    %24 = vst [vmem:[#allocation2 + $0x40] sm:$0xff] 0.0
    %25 = vst [vmem:[#allocation2 + $0x48] sm:$0xff] 0.0
    %26 = vst [vmem:[#allocation2 + $0x50] sm:$0xff] 0.0
    %27 = vst [vmem:[#allocation2 + $0x58] sm:$0xff] 0.0
    %28 = vst [vmem:[#allocation2 + $0x60] sm:$0xff] 0.0
    %29 = vst [vmem:[#allocation2 + $0x68] sm:$0xff] 0.0
    %30 = vst [vmem:[#allocation2 + $0x70] sm:$0xff] 0.0
    %31 = vst [vmem:[#allocation2 + $0x78] sm:$0xff] 0.0
    %v32 = vld [vmem:[#allocation2] sm:$0xff]
    %v33 = vld [vmem:[#allocation2 + $0x8] sm:$0xff]
    %v34 = vld [vmem:[#allocation2 + $0x10] sm:$0xff]
    %v35 = vld [vmem:[#allocation2 + $0x18] sm:$0xff]
    %v36 = vld [vmem:[#allocation2 + $0x20] sm:$0xff]
    %v37 = vld [vmem:[#allocation2 + $0x28] sm:$0xff]
    %v38 = vld [vmem:[#allocation2 + $0x30] sm:$0xff]
    %v39 = vld [vmem:[#allocation2 + $0x38] sm:$0xff]
    %v40 = vld [vmem:[#allocation2 + $0x40] sm:$0xff]
    %v41 = vld [vmem:[#allocation2 + $0x48] sm:$0xff]
    %v42 = vld [vmem:[#allocation2 + $0x50] sm:$0xff]
    %v43 = vld [vmem:[#allocation2 + $0x58] sm:$0xff]
    %v44 = vld [vmem:[#allocation2 + $0x60] sm:$0xff]
    %v45 = vld [vmem:[#allocation2 + $0x68] sm:$0xff]
    %v46 = vld [vmem:[#allocation2 + $0x70] sm:$0xff]
    %v47 = vld [vmem:[#allocation2 + $0x78] sm:$0xff]
    %v48 = vld [vmem:[%s0] sm:$0xf]
    %v49 = vld [vmem:[%s0 + $0x4] sm:$0xf]
    %v50 = vld [vmem:[%s0 + $0x8] sm:$0xf]
    %v51 = vld [vmem:[%s0 + $0xc] sm:$0xf]
    %v52 = vld [vmem:[%s2] sm:$0xff]
    %v57 = vunpack.c.l.b16 %v48
    %v58 = vunpack.c.l.b16 %v49
    %v59 = vunpack.c.l.b16 %v50
    %v60 = vunpack.c.l.b16 %v51
    %v61 = vpack.c.b16 %v58, %v57
    %v62 = vpack.c.b16 %v60, %v59
    %v64 = vcombine.high %v52, %v52
    %v66 = vunpack.c.l.s4 1983009808
    %v67 = vunpack.c.0.s8 %v66
    %v68 = vlaneseq
    %v69 = vshrl.u32 %v68, 7
    %v70 = vsub.s32 %v67, %v69
    %v71 = vrot.slane %v52, %v70
    %v73 = vunpack.c.l.s4 1983009808
    %v74 = vunpack.c.0.s8 %v73
    %v75 = vlaneseq
    %v76 = vshrl.u32 %v75, 7
    %v77 = vsub.s32 %v74, %v76
    %v78 = vrot.slane %v64, %v77
    %v79 = vcombine.high %v71, %v71
    %v80 = vcombine.high %v78, %v78
    %vm81 = vcmask 31744
    %v83 = vsel %vm81, %v61, 0
    %v86 = vsel %vm81, %v62, 0
    %vm88 = vcmask 1041408
    %v90 = vsel %vm88, %v71, 0
    %v93 = vsel %vm88, %v79, 0
    %v96 = vsel %vm88, %v78, 0
    %v99 = vsel %vm88, %v80, 0
    %101 = vmatprep.subr.bf16.mxu0 %v93
    %102 = vmatpush1.bf16.msra.mxu0 %v90
    %103 = vmatprep.subr.bf16.mxu0 0
    %104 = vmatpush1.bf16.msra.mxu0 0
    %105 = vmatprep.subr.bf16.mxu0 0
    %106 = vmatpush1.bf16.msra.mxu0 0
    %107 = vmatprep.subr.bf16.mxu0 0
    %108 = vmatpush1.bf16.msra.mxu0 0
    %109 = vmatprep.subr.bf16.mxu0 0
    %110 = vmatpush1.bf16.msra.mxu0 0
    %111 = vmatprep.subr.bf16.mxu0 0
    %112 = vmatpush1.bf16.msra.mxu0 0
    %113 = vmatprep.subr.bf16.mxu0 0
    %114 = vmatpush1.bf16.msra.mxu0 0
    %115 = vmatprep.subr.bf16.mxu0 0
    %116 = vmatpush1.bf16.msra.mxu0 0
    %117 = vmatprep.subr.bf16.mxu0 0
    %118 = vmatpush1.bf16.msra.mxu0 0
    %119 = vmatprep.subr.bf16.mxu0 0
    %120 = vmatpush1.bf16.msra.mxu0 0
    %121 = vmatprep.subr.bf16.mxu0 0
    %122 = vmatpush1.bf16.msra.mxu0 0
    %123 = vmatprep.subr.bf16.mxu0 0
    %124 = vmatpush1.bf16.msra.mxu0 0
    %125 = vmatprep.subr.bf16.mxu0 0
    %126 = vmatpush1.bf16.msra.mxu0 0
    %127 = vmatprep.subr.bf16.mxu0 0
    %128 = vmatpush1.bf16.msra.mxu0 0
    %129 = vmatprep.subr.bf16.mxu0 0
    %130 = vmatpush1.bf16.msra.mxu0 0
    %131 = vmatprep.subr.bf16.mxu0 0
    %132 = vmatpush1.bf16.msra.mxu0 0
    %133 = vmatprep.mubr.bf16.mxu0 0
    %134 = vmatmul.mubr.bf16.gmra.mrb[0].mxu0 %v83
    %v135 = vpop.f32.mrb[0].mxu0
    %v136 = vadd.f32 0.0, %v135
    %v137 = vpop.f32.mrb[0].mxu0
    %v138 = vadd.f32 0.0, %v137
    %v139 = vpop.f32.mrb[0].mxu0
    %v140 = vadd.f32 0.0, %v139
    %v141 = vpop.f32.mrb[0].mxu0
    %v142 = vadd.f32 0.0, %v141
    %143 = vmatprep.mubr.bf16.mxu0 0
    %144 = vmatmul.mubr.bf16.gmra.mrb[0].mxu0 %v86
    %v145 = vpop.f32.mrb[0].mxu0
    %v146 = vadd.f32 0.0, %v145
    %v147 = vpop.f32.mrb[0].mxu0
    %v148 = vadd.f32 0.0, %v147
    %v149 = vpop.f32.mrb[0].mxu0
    %v150 = vadd.f32 0.0, %v149
    %v151 = vpop.f32.mrb[0].mxu0
    %v152 = vadd.f32 0.0, %v151
    %153 = vdwg.mxu0
    %154 = vmatprep.subr.bf16.mxu0 %v99
    %155 = vmatpush1.bf16.msra.mxu0 %v96
    %156 = vmatprep.subr.bf16.mxu0 0
    %157 = vmatpush1.bf16.msra.mxu0 0
    %158 = vmatprep.subr.bf16.mxu0 0
    %159 = vmatpush1.bf16.msra.mxu0 0
    %160 = vmatprep.subr.bf16.mxu0 0
    %161 = vmatpush1.bf16.msra.mxu0 0
    %162 = vmatprep.subr.bf16.mxu0 0
    %163 = vmatpush1.bf16.msra.mxu0 0
    %164 = vmatprep.subr.bf16.mxu0 0
    %165 = vmatpush1.bf16.msra.mxu0 0
    %166 = vmatprep.subr.bf16.mxu0 0
    %167 = vmatpush1.bf16.msra.mxu0 0
    %168 = vmatprep.subr.bf16.mxu0 0
    %169 = vmatpush1.bf16.msra.mxu0 0
    %170 = vmatprep.subr.bf16.mxu0 0
    %171 = vmatpush1.bf16.msra.mxu0 0
    %172 = vmatprep.subr.bf16.mxu0 0
    %173 = vmatpush1.bf16.msra.mxu0 0
    %174 = vmatprep.subr.bf16.mxu0 0
    %175 = vmatpush1.bf16.msra.mxu0 0
    %176 = vmatprep.subr.bf16.mxu0 0
    %177 = vmatpush1.bf16.msra.mxu0 0
    %178 = vmatprep.subr.bf16.mxu0 0
    %179 = vmatpush1.bf16.msra.mxu0 0
    %180 = vmatprep.subr.bf16.mxu0 0
    %181 = vmatpush1.bf16.msra.mxu0 0
    %182 = vmatprep.subr.bf16.mxu0 0
    %183 = vmatpush1.bf16.msra.mxu0 0
    %184 = vmatprep.subr.bf16.mxu0 0
    %185 = vmatpush1.bf16.msra.mxu0 0
    %186 = vmatprep.mubr.bf16.mxu0 0
    %187 = vmatmul.mubr.bf16.gmra.mrb[0].mxu0 %v83
    %v188 = vpop.f32.mrb[0].mxu0
    %v189 = vadd.f32 0.0, %v188
    %v190 = vpop.f32.mrb[0].mxu0
    %v191 = vadd.f32 0.0, %v190
    %v192 = vpop.f32.mrb[0].mxu0
    %v193 = vadd.f32 0.0, %v192
    %v194 = vpop.f32.mrb[0].mxu0
    %v195 = vadd.f32 0.0, %v194
    %196 = vmatprep.mubr.bf16.mxu0 0
    %197 = vmatmul.mubr.bf16.gmra.mrb[0].mxu0 %v86
    %v198 = vpop.f32.mrb[0].mxu0
    %v199 = vadd.f32 0.0, %v198
    %v200 = vpop.f32.mrb[0].mxu0
    %v201 = vadd.f32 0.0, %v200
    %v202 = vpop.f32.mrb[0].mxu0
    %v203 = vadd.f32 0.0, %v202
    %v204 = vpop.f32.mrb[0].mxu0
    %v205 = vadd.f32 0.0, %v204
    %206 = vdwg.mxu0
    %v207 = vadd.f32 %v32, %v136
    %v208 = vadd.f32 %v33, %v138
    %v209 = vadd.f32 %v34, %v189
    %v210 = vadd.f32 %v35, %v191
    %v211 = vadd.f32 %v36, %v140
    %v212 = vadd.f32 %v37, %v142
    %v213 = vadd.f32 %v38, %v193
    %v214 = vadd.f32 %v39, %v195
    %v215 = vadd.f32 %v40, %v146
    %v216 = vadd.f32 %v41, %v148
    %v217 = vadd.f32 %v42, %v199
    %v218 = vadd.f32 %v43, %v201
    %v219 = vadd.f32 %v44, %v150
    %v220 = vadd.f32 %v45, %v152
    %v221 = vadd.f32 %v46, %v203
    %v222 = vadd.f32 %v47, %v205
    %223 = vst [vmem:[#allocation2] sm:$0xff] %v207
    %224 = vst [vmem:[#allocation2 + $0x8] sm:$0xff] %v208
    %225 = vst [vmem:[#allocation2 + $0x10] sm:$0xff] %v209
    %226 = vst [vmem:[#allocation2 + $0x18] sm:$0xff] %v210
    %227 = vst [vmem:[#allocation2 + $0x20] sm:$0xff] %v211
    %228 = vst [vmem:[#allocation2 + $0x28] sm:$0xff] %v212
    %229 = vst [vmem:[#allocation2 + $0x30] sm:$0xff] %v213
    %230 = vst [vmem:[#allocation2 + $0x38] sm:$0xff] %v214
    %231 = vst [vmem:[#allocation2 + $0x40] sm:$0xff] %v215
    %232 = vst [vmem:[#allocation2 + $0x48] sm:$0xff] %v216
    %233 = vst [vmem:[#allocation2 + $0x50] sm:$0xff] %v217
    %234 = vst [vmem:[#allocation2 + $0x58] sm:$0xff] %v218
    %235 = vst [vmem:[#allocation2 + $0x60] sm:$0xff] %v219
    %236 = vst [vmem:[#allocation2 + $0x68] sm:$0xff] %v220
    %237 = vst [vmem:[#allocation2 + $0x70] sm:$0xff] %v221
    %238 = vst [vmem:[#allocation2 + $0x78] sm:$0xff] %v222
    %v239 = vld [vmem:[#allocation2] sm:$0xff]
    %v240 = vld [vmem:[#allocation2 + $0x8] sm:$0xff]
    %v241 = vld [vmem:[#allocation2 + $0x10] sm:$0xff]
    %v242 = vld [vmem:[#allocation2 + $0x18] sm:$0xff]
    %v243 = vld [vmem:[#allocation2 + $0x20] sm:$0xff]
    %v244 = vld [vmem:[#allocation2 + $0x28] sm:$0xff]
    %v245 = vld [vmem:[#allocation2 + $0x30] sm:$0xff]
    %v246 = vld [vmem:[#allocation2 + $0x38] sm:$0xff]
    %v247 = vld [vmem:[#allocation2 + $0x40] sm:$0xff]
    %v248 = vld [vmem:[#allocation2 + $0x48] sm:$0xff]
    %v249 = vld [vmem:[#allocation2 + $0x50] sm:$0xff]
    %v250 = vld [vmem:[#allocation2 + $0x58] sm:$0xff]
    %v251 = vld [vmem:[#allocation2 + $0x60] sm:$0xff]
    %v252 = vld [vmem:[#allocation2 + $0x68] sm:$0xff]
    %v253 = vld [vmem:[#allocation2 + $0x70] sm:$0xff]
    %v254 = vld [vmem:[#allocation2 + $0x78] sm:$0xff]
    %s255 = scalar_lea.vmem %s0, 16
    %v256 = vld [vmem:[%s255] sm:$0xf]
    %v257 = vld [vmem:[%s255 + $0x4] sm:$0xf]
    %v258 = vld [vmem:[%s255 + $0x8] sm:$0xf]
    %v259 = vld [vmem:[%s255 + $0xc] sm:$0xf]
    %v260 = vld [vmem:[%s2] sm:$0xff]
    %v261 = vld [vmem:[%s2 + $0x8] sm:$0x3]
    %v266 = vunpack.c.l.b16 %v256
    %v267 = vunpack.c.l.b16 %v257
    %v268 = vunpack.c.l.b16 %v258
    %v269 = vunpack.c.l.b16 %v259
    %v270 = vpack.c.b16 %v267, %v266
    %v271 = vpack.c.b16 %v269, %v268
    %v274 = vcombine.high %v260, %v260
    %v276 = vunpack.c.l.s4 1983009808
    %v277 = vunpack.c.0.s8 %v276
    %v278 = vlaneseq
    %v279 = vshrl.u32 %v278, 7
    %v280 = vsub.s32 %v277, %v279
    %v281 = vrot.slane %v260, %v280
    %v283 = vunpack.c.l.s4 1983009808
    %v284 = vunpack.c.0.s8 %v283
    %v285 = vlaneseq
    %v286 = vshrl.u32 %v285, 7
    %v287 = vsub.s32 %v284, %v286
    %v288 = vrot.slane %v274, %v287
    %v289 = vcombine.high %v281, %v281
    %v290 = vcombine.high %v288, %v288
    %v292 = vunpack.c.l.s4 1983009808
    %v293 = vunpack.c.0.s8 %v292
    %v294 = vlaneseq
    %v295 = vshrl.u32 %v294, 7
    %v296 = vsub.s32 %v293, %v295
    %v297 = vrot.slane %v261, %v296
    %298 = vrot.lane.b32.xlu0 %v281, 127
    %v299 = vpop.permute.xlu0 %298
    %300 = vrot.lane.b32.xlu0 %v289, 127
    %v301 = vpop.permute.xlu0 %300
    %302 = vrot.lane.b32.xlu0 %v288, 127
    %v303 = vpop.permute.xlu0 %302
    %304 = vrot.lane.b32.xlu0 %v290, 127
    %v305 = vpop.permute.xlu0 %304
    %306 = vrot.lane.b32.xlu0 %v297, 127
    %v307 = vpop.permute.xlu0 %306
    %vm308 = vcmask 1039360
    %v309 = vsel %vm308, %v299, %v301
    %v310 = vsel %vm308, %v301, %v303
    %v311 = vsel %vm308, %v303, %v305
    %v312 = vsel %vm308, %v305, %v307
    %v314 = vsel %vm81, %v270, 0
    %v317 = vsel %vm81, %v271, 0
    %v320 = vsel %vm88, %v309, 0
    %v323 = vsel %vm88, %v310, 0
    %v326 = vsel %vm88, %v311, 0
    %v329 = vsel %vm88, %v312, 0
    %331 = vmatprep.subr.bf16.mxu0 %v323
    %332 = vmatpush1.bf16.msra.mxu0 %v320
    %333 = vmatprep.subr.bf16.mxu0 0
    %334 = vmatpush1.bf16.msra.mxu0 0
    %335 = vmatprep.subr.bf16.mxu0 0
    %336 = vmatpush1.bf16.msra.mxu0 0
    %337 = vmatprep.subr.bf16.mxu0 0
    %338 = vmatpush1.bf16.msra.mxu0 0
    %339 = vmatprep.subr.bf16.mxu0 0
    %340 = vmatpush1.bf16.msra.mxu0 0
    %341 = vmatprep.subr.bf16.mxu0 0
    %342 = vmatpush1.bf16.msra.mxu0 0
    %343 = vmatprep.subr.bf16.mxu0 0
    %344 = vmatpush1.bf16.msra.mxu0 0
    %345 = vmatprep.subr.bf16.mxu0 0
    %346 = vmatpush1.bf16.msra.mxu0 0
    %347 = vmatprep.subr.bf16.mxu0 0
    %348 = vmatpush1.bf16.msra.mxu0 0
    %349 = vmatprep.subr.bf16.mxu0 0
    %350 = vmatpush1.bf16.msra.mxu0 0
    %351 = vmatprep.subr.bf16.mxu0 0
    %352 = vmatpush1.bf16.msra.mxu0 0
    %353 = vmatprep.subr.bf16.mxu0 0
    %354 = vmatpush1.bf16.msra.mxu0 0
    %355 = vmatprep.subr.bf16.mxu0 0
    %356 = vmatpush1.bf16.msra.mxu0 0
    %357 = vmatprep.subr.bf16.mxu0 0
    %358 = vmatpush1.bf16.msra.mxu0 0
    %359 = vmatprep.subr.bf16.mxu0 0
    %360 = vmatpush1.bf16.msra.mxu0 0
    %361 = vmatprep.subr.bf16.mxu0 0
    %362 = vmatpush1.bf16.msra.mxu0 0
    %363 = vmatprep.mubr.bf16.mxu0 0
    %364 = vmatmul.mubr.bf16.gmra.mrb[0].mxu0 %v314
    %v365 = vpop.f32.mrb[0].mxu0
    %v366 = vadd.f32 0.0, %v365
    %v367 = vpop.f32.mrb[0].mxu0
    %v368 = vadd.f32 0.0, %v367
    %v369 = vpop.f32.mrb[0].mxu0
    %v370 = vadd.f32 0.0, %v369
    %v371 = vpop.f32.mrb[0].mxu0
    %v372 = vadd.f32 0.0, %v371
    %373 = vmatprep.mubr.bf16.mxu0 0
    %374 = vmatmul.mubr.bf16.gmra.mrb[0].mxu0 %v317
    %v375 = vpop.f32.mrb[0].mxu0
    %v376 = vadd.f32 0.0, %v375
    %v377 = vpop.f32.mrb[0].mxu0
    %v378 = vadd.f32 0.0, %v377
    %v379 = vpop.f32.mrb[0].mxu0
    %v380 = vadd.f32 0.0, %v379
    %v381 = vpop.f32.mrb[0].mxu0
    %v382 = vadd.f32 0.0, %v381
    %383 = vdwg.mxu0
    %384 = vmatprep.subr.bf16.mxu0 %v329
    %385 = vmatpush1.bf16.msra.mxu0 %v326
    %386 = vmatprep.subr.bf16.mxu0 0
    %387 = vmatpush1.bf16.msra.mxu0 0
    %388 = vmatprep.subr.bf16.mxu0 0
    %389 = vmatpush1.bf16.msra.mxu0 0
    %390 = vmatprep.subr.bf16.mxu0 0
    %391 = vmatpush1.bf16.msra.mxu0 0
    %392 = vmatprep.subr.bf16.mxu0 0
    %393 = vmatpush1.bf16.msra.mxu0 0
    %394 = vmatprep.subr.bf16.mxu0 0
    %395 = vmatpush1.bf16.msra.mxu0 0
    %396 = vmatprep.subr.bf16.mxu0 0
    %397 = vmatpush1.bf16.msra.mxu0 0
    %398 = vmatprep.subr.bf16.mxu0 0
    %399 = vmatpush1.bf16.msra.mxu0 0
    %400 = vmatprep.subr.bf16.mxu0 0
    %401 = vmatpush1.bf16.msra.mxu0 0
    %402 = vmatprep.subr.bf16.mxu0 0
    %403 = vmatpush1.bf16.msra.mxu0 0
    %404 = vmatprep.subr.bf16.mxu0 0
    %405 = vmatpush1.bf16.msra.mxu0 0
    %406 = vmatprep.subr.bf16.mxu0 0
    %407 = vmatpush1.bf16.msra.mxu0 0
    %408 = vmatprep.subr.bf16.mxu0 0
    %409 = vmatpush1.bf16.msra.mxu0 0
    %410 = vmatprep.subr.bf16.mxu0 0
    %411 = vmatpush1.bf16.msra.mxu0 0
    %412 = vmatprep.subr.bf16.mxu0 0
    %413 = vmatpush1.bf16.msra.mxu0 0
    %414 = vmatprep.subr.bf16.mxu0 0
    %415 = vmatpush1.bf16.msra.mxu0 0
    %416 = vmatprep.mubr.bf16.mxu0 0
    %417 = vmatmul.mubr.bf16.gmra.mrb[0].mxu0 %v314
    %v418 = vpop.f32.mrb[0].mxu0
    %v419 = vadd.f32 0.0, %v418
    %v420 = vpop.f32.mrb[0].mxu0
    %v421 = vadd.f32 0.0, %v420
    %v422 = vpop.f32.mrb[0].mxu0
    %v423 = vadd.f32 0.0, %v422
    %v424 = vpop.f32.mrb[0].mxu0
    %v425 = vadd.f32 0.0, %v424
    %426 = vmatprep.mubr.bf16.mxu0 0
    %427 = vmatmul.mubr.bf16.gmra.mrb[0].mxu0 %v317
    %v428 = vpop.f32.mrb[0].mxu0
    %v429 = vadd.f32 0.0, %v428
    %v430 = vpop.f32.mrb[0].mxu0
    %v431 = vadd.f32 0.0, %v430
    %v432 = vpop.f32.mrb[0].mxu0
    %v433 = vadd.f32 0.0, %v432
    %v434 = vpop.f32.mrb[0].mxu0
    %v435 = vadd.f32 0.0, %v434
    %436 = vdwg.mxu0
    %v437 = vadd.f32 %v239, %v366
    %v438 = vadd.f32 %v240, %v368
    %v439 = vadd.f32 %v241, %v419
    %v440 = vadd.f32 %v242, %v421
    %v441 = vadd.f32 %v243, %v370
    %v442 = vadd.f32 %v244, %v372
    %v443 = vadd.f32 %v245, %v423
    %v444 = vadd.f32 %v246, %v425
    %v445 = vadd.f32 %v247, %v376
    %v446 = vadd.f32 %v248, %v378
    %v447 = vadd.f32 %v249, %v429
    %v448 = vadd.f32 %v250, %v431
    %v449 = vadd.f32 %v251, %v380
    %v450 = vadd.f32 %v252, %v382
    %v451 = vadd.f32 %v253, %v433
    %v452 = vadd.f32 %v254, %v435
    %453 = vst [vmem:[#allocation2] sm:$0xff] %v437
    %454 = vst [vmem:[#allocation2 + $0x8] sm:$0xff] %v438
    %455 = vst [vmem:[#allocation2 + $0x10] sm:$0xff] %v439
    %456 = vst [vmem:[#allocation2 + $0x18] sm:$0xff] %v440
    %457 = vst [vmem:[#allocation2 + $0x20] sm:$0xff] %v441
    %458 = vst [vmem:[#allocation2 + $0x28] sm:$0xff] %v442
    %459 = vst [vmem:[#allocation2 + $0x30] sm:$0xff] %v443
    %460 = vst [vmem:[#allocation2 + $0x38] sm:$0xff] %v444
    %461 = vst [vmem:[#allocation2 + $0x40] sm:$0xff] %v445
    %462 = vst [vmem:[#allocation2 + $0x48] sm:$0xff] %v446
    %463 = vst [vmem:[#allocation2 + $0x50] sm:$0xff] %v447
    %464 = vst [vmem:[#allocation2 + $0x58] sm:$0xff] %v448
    %465 = vst [vmem:[#allocation2 + $0x60] sm:$0xff] %v449
    %466 = vst [vmem:[#allocation2 + $0x68] sm:$0xff] %v450
    %467 = vst [vmem:[#allocation2 + $0x70] sm:$0xff] %v451
    %468 = vst [vmem:[#allocation2 + $0x78] sm:$0xff] %v452
    %v469 = vld [vmem:[#allocation2] sm:$0xff]
    %v470 = vld [vmem:[#allocation2 + $0x8] sm:$0xff]
    %v471 = vld [vmem:[#allocation2 + $0x10] sm:$0xff]
    %v472 = vld [vmem:[#allocation2 + $0x18] sm:$0xff]
    %v473 = vld [vmem:[#allocation2 + $0x20] sm:$0xff]
    %v474 = vld [vmem:[#allocation2 + $0x28] sm:$0xff]
    %v475 = vld [vmem:[#allocation2 + $0x30] sm:$0xff]
    %v476 = vld [vmem:[#allocation2 + $0x38] sm:$0xff]
    %v477 = vld [vmem:[#allocation2 + $0x40] sm:$0xff]
    %v478 = vld [vmem:[#allocation2 + $0x48] sm:$0xff]
    %v479 = vld [vmem:[#allocation2 + $0x50] sm:$0xff]
    %v480 = vld [vmem:[#allocation2 + $0x58] sm:$0xff]
    %v481 = vld [vmem:[#allocation2 + $0x60] sm:$0xff]
    %v482 = vld [vmem:[#allocation2 + $0x68] sm:$0xff]
    %v483 = vld [vmem:[#allocation2 + $0x70] sm:$0xff]
    %v484 = vld [vmem:[#allocation2 + $0x78] sm:$0xff]
    %s485 = scalar_lea.vmem %s0, 32
    %v486 = vld [vmem:[%s485] sm:$0xf]
    %v487 = vld [vmem:[%s485 + $0x4] sm:$0xf]
    %v488 = vld [vmem:[%s485 + $0x8] sm:$0xf]
    %v489 = vld [vmem:[%s485 + $0xc] sm:$0xf]
    %v490 = vld [vmem:[%s2] sm:$0xff]
    %v491 = vld [vmem:[%s2 + $0x8] sm:$0x3]
    %v496 = vunpack.c.l.b16 %v486
    %v497 = vunpack.c.l.b16 %v487
    %v498 = vunpack.c.l.b16 %v488
    %v499 = vunpack.c.l.b16 %v489
    %v500 = vpack.c.b16 %v497, %v496
    %v501 = vpack.c.b16 %v499, %v498
    %v504 = vcombine.high %v490, %v490
    %v506 = vunpack.c.l.s4 1983009808
    %v507 = vunpack.c.0.s8 %v506
    %v508 = vlaneseq
    %v509 = vshrl.u32 %v508, 7
    %v510 = vsub.s32 %v507, %v509
    %v511 = vrot.slane %v490, %v510
    %v513 = vunpack.c.l.s4 1983009808
    %v514 = vunpack.c.0.s8 %v513
    %v515 = vlaneseq
    %v516 = vshrl.u32 %v515, 7
    %v517 = vsub.s32 %v514, %v516
    %v518 = vrot.slane %v504, %v517
    %v519 = vcombine.high %v511, %v511
    %v520 = vcombine.high %v518, %v518
    %v522 = vunpack.c.l.s4 1983009808
    %v523 = vunpack.c.0.s8 %v522
    %v524 = vlaneseq
    %v525 = vshrl.u32 %v524, 7
    %v526 = vsub.s32 %v523, %v525
    %v527 = vrot.slane %v491, %v526
    %528 = vrot.lane.b32.xlu0 %v511, 126
    %v529 = vpop.permute.xlu0 %528
    %530 = vrot.lane.b32.xlu0 %v519, 126
    %v531 = vpop.permute.xlu0 %530
    %532 = vrot.lane.b32.xlu0 %v518, 126
    %v533 = vpop.permute.xlu0 %532
    %534 = vrot.lane.b32.xlu0 %v520, 126
    %v535 = vpop.permute.xlu0 %534
    %536 = vrot.lane.b32.xlu0 %v527, 126
    %v537 = vpop.permute.xlu0 %536
    %vm538 = vcmask 1031168
    %v539 = vsel %vm538, %v529, %v531
    %v540 = vsel %vm538, %v531, %v533
    %v541 = vsel %vm538, %v533, %v535
    %v542 = vsel %vm538, %v535, %v537
    %v544 = vsel %vm81, %v500, 0
    %v547 = vsel %vm81, %v501, 0
    %v550 = vsel %vm88, %v539, 0
    %v553 = vsel %vm88, %v540, 0
    %v556 = vsel %vm88, %v541, 0
    %v559 = vsel %vm88, %v542, 0
    %561 = vmatprep.subr.bf16.mxu0 %v553
    %562 = vmatpush1.bf16.msra.mxu0 %v550
    %563 = vmatprep.subr.bf16.mxu0 0
    %564 = vmatpush1.bf16.msra.mxu0 0
    %565 = vmatprep.subr.bf16.mxu0 0
    %566 = vmatpush1.bf16.msra.mxu0 0
    %567 = vmatprep.subr.bf16.mxu0 0
    %568 = vmatpush1.bf16.msra.mxu0 0
    %569 = vmatprep.subr.bf16.mxu0 0
    %570 = vmatpush1.bf16.msra.mxu0 0
    %571 = vmatprep.subr.bf16.mxu0 0
    %572 = vmatpush1.bf16.msra.mxu0 0
    %573 = vmatprep.subr.bf16.mxu0 0
    %574 = vmatpush1.bf16.msra.mxu0 0
    %575 = vmatprep.subr.bf16.mxu0 0
    %576 = vmatpush1.bf16.msra.mxu0 0
    %577 = vmatprep.subr.bf16.mxu0 0
    %578 = vmatpush1.bf16.msra.mxu0 0
    %579 = vmatprep.subr.bf16.mxu0 0
    %580 = vmatpush1.bf16.msra.mxu0 0
    %581 = vmatprep.subr.bf16.mxu0 0
    %582 = vmatpush1.bf16.msra.mxu0 0
    %583 = vmatprep.subr.bf16.mxu0 0
    %584 = vmatpush1.bf16.msra.mxu0 0
    %585 = vmatprep.subr.bf16.mxu0 0
    %586 = vmatpush1.bf16.msra.mxu0 0
    %587 = vmatprep.subr.bf16.mxu0 0
    %588 = vmatpush1.bf16.msra.mxu0 0
    %589 = vmatprep.subr.bf16.mxu0 0
    %590 = vmatpush1.bf16.msra.mxu0 0
    %591 = vmatprep.subr.bf16.mxu0 0
    %592 = vmatpush1.bf16.msra.mxu0 0
    %593 = vmatprep.mubr.bf16.mxu0 0
    %594 = vmatmul.mubr.bf16.gmra.mrb[0].mxu0 %v544
    %v595 = vpop.f32.mrb[0].mxu0
    %v596 = vadd.f32 0.0, %v595
    %v597 = vpop.f32.mrb[0].mxu0
    %v598 = vadd.f32 0.0, %v597
    %v599 = vpop.f32.mrb[0].mxu0
    %v600 = vadd.f32 0.0, %v599
    %v601 = vpop.f32.mrb[0].mxu0
    %v602 = vadd.f32 0.0, %v601
    %603 = vmatprep.mubr.bf16.mxu0 0
    %604 = vmatmul.mubr.bf16.gmra.mrb[0].mxu0 %v547
    %v605 = vpop.f32.mrb[0].mxu0
    %v606 = vadd.f32 0.0, %v605
    %v607 = vpop.f32.mrb[0].mxu0
    %v608 = vadd.f32 0.0, %v607
    %v609 = vpop.f32.mrb[0].mxu0
    %v610 = vadd.f32 0.0, %v609
    %v611 = vpop.f32.mrb[0].mxu0
    %v612 = vadd.f32 0.0, %v611
    %613 = vdwg.mxu0
    %614 = vmatprep.subr.bf16.mxu0 %v559
    %615 = vmatpush1.bf16.msra.mxu0 %v556
    %616 = vmatprep.subr.bf16.mxu0 0
    %617 = vmatpush1.bf16.msra.mxu0 0
    %618 = vmatprep.subr.bf16.mxu0 0
    %619 = vmatpush1.bf16.msra.mxu0 0
    %620 = vmatprep.subr.bf16.mxu0 0
    %621 = vmatpush1.bf16.msra.mxu0 0
    %622 = vmatprep.subr.bf16.mxu0 0
    %623 = vmatpush1.bf16.msra.mxu0 0
    %624 = vmatprep.subr.bf16.mxu0 0
    %625 = vmatpush1.bf16.msra.mxu0 0
    %626 = vmatprep.subr.bf16.mxu0 0
    %627 = vmatpush1.bf16.msra.mxu0 0
    %628 = vmatprep.subr.bf16.mxu0 0
    %629 = vmatpush1.bf16.msra.mxu0 0
    %630 = vmatprep.subr.bf16.mxu0 0
    %631 = vmatpush1.bf16.msra.mxu0 0
    %632 = vmatprep.subr.bf16.mxu0 0
    %633 = vmatpush1.bf16.msra.mxu0 0
    %634 = vmatprep.subr.bf16.mxu0 0
    %635 = vmatpush1.bf16.msra.mxu0 0
    %636 = vmatprep.subr.bf16.mxu0 0
    %637 = vmatpush1.bf16.msra.mxu0 0
    %638 = vmatprep.subr.bf16.mxu0 0
    %639 = vmatpush1.bf16.msra.mxu0 0
    %640 = vmatprep.subr.bf16.mxu0 0
    %641 = vmatpush1.bf16.msra.mxu0 0
    %642 = vmatprep.subr.bf16.mxu0 0
    %643 = vmatpush1.bf16.msra.mxu0 0
    %644 = vmatprep.subr.bf16.mxu0 0
    %645 = vmatpush1.bf16.msra.mxu0 0
    %646 = vmatprep.mubr.bf16.mxu0 0
    %647 = vmatmul.mubr.bf16.gmra.mrb[0].mxu0 %v544
    %v648 = vpop.f32.mrb[0].mxu0
    %v649 = vadd.f32 0.0, %v648
    %v650 = vpop.f32.mrb[0].mxu0
    %v651 = vadd.f32 0.0, %v650
    %v652 = vpop.f32.mrb[0].mxu0
    %v653 = vadd.f32 0.0, %v652
    %v654 = vpop.f32.mrb[0].mxu0
    %v655 = vadd.f32 0.0, %v654
    %656 = vmatprep.mubr.bf16.mxu0 0
    %657 = vmatmul.mubr.bf16.gmra.mrb[0].mxu0 %v547
    %v658 = vpop.f32.mrb[0].mxu0
    %v659 = vadd.f32 0.0, %v658
    %v660 = vpop.f32.mrb[0].mxu0
    %v661 = vadd.f32 0.0, %v660
    %v662 = vpop.f32.mrb[0].mxu0
    %v663 = vadd.f32 0.0, %v662
    %v664 = vpop.f32.mrb[0].mxu0
    %v665 = vadd.f32 0.0, %v664
    %666 = vdwg.mxu0
    %v667 = vadd.f32 %v469, %v596
    %v668 = vadd.f32 %v470, %v598
    %v669 = vadd.f32 %v471, %v649
    %v670 = vadd.f32 %v472, %v651
    %v671 = vadd.f32 %v473, %v600
    %v672 = vadd.f32 %v474, %v602
    %v673 = vadd.f32 %v475, %v653
    %v674 = vadd.f32 %v476, %v655
    %v675 = vadd.f32 %v477, %v606
    %v676 = vadd.f32 %v478, %v608
    %v677 = vadd.f32 %v479, %v659
    %v678 = vadd.f32 %v480, %v661
    %v679 = vadd.f32 %v481, %v610
    %v680 = vadd.f32 %v482, %v612
    %v681 = vadd.f32 %v483, %v663
    %v682 = vadd.f32 %v484, %v665
    %683 = vst [vmem:[#allocation2] sm:$0xff] %v667
    %684 = vst [vmem:[#allocation2 + $0x8] sm:$0xff] %v668
    %685 = vst [vmem:[#allocation2 + $0x10] sm:$0xff] %v669
    %686 = vst [vmem:[#allocation2 + $0x18] sm:$0xff] %v670
    %687 = vst [vmem:[#allocation2 + $0x20] sm:$0xff] %v671
    %688 = vst [vmem:[#allocation2 + $0x28] sm:$0xff] %v672
    %689 = vst [vmem:[#allocation2 + $0x30] sm:$0xff] %v673
    %690 = vst [vmem:[#allocation2 + $0x38] sm:$0xff] %v674
    %691 = vst [vmem:[#allocation2 + $0x40] sm:$0xff] %v675
    %692 = vst [vmem:[#allocation2 + $0x48] sm:$0xff] %v676
    %693 = vst [vmem:[#allocation2 + $0x50] sm:$0xff] %v677
    %694 = vst [vmem:[#allocation2 + $0x58] sm:$0xff] %v678
    %695 = vst [vmem:[#allocation2 + $0x60] sm:$0xff] %v679
    %696 = vst [vmem:[#allocation2 + $0x68] sm:$0xff] %v680
    %697 = vst [vmem:[#allocation2 + $0x70] sm:$0xff] %v681
    %698 = vst [vmem:[#allocation2 + $0x78] sm:$0xff] %v682
    %v699 = vld [vmem:[#allocation2] sm:$0xff]
    %v700 = vld [vmem:[#allocation2 + $0x8] sm:$0xff]
    %v701 = vld [vmem:[#allocation2 + $0x10] sm:$0xff]
    %v702 = vld [vmem:[#allocation2 + $0x18] sm:$0xff]
    %v703 = vld [vmem:[#allocation2 + $0x20] sm:$0xff]
    %v704 = vld [vmem:[#allocation2 + $0x28] sm:$0xff]
    %v705 = vld [vmem:[#allocation2 + $0x30] sm:$0xff]
    %v706 = vld [vmem:[#allocation2 + $0x38] sm:$0xff]
    %v707 = vld [vmem:[#allocation2 + $0x40] sm:$0xff]
    %v708 = vld [vmem:[#allocation2 + $0x48] sm:$0xff]
    %v709 = vld [vmem:[#allocation2 + $0x50] sm:$0xff]
    %v710 = vld [vmem:[#allocation2 + $0x58] sm:$0xff]
    %v711 = vld [vmem:[#allocation2 + $0x60] sm:$0xff]
    %v712 = vld [vmem:[#allocation2 + $0x68] sm:$0xff]
    %v713 = vld [vmem:[#allocation2 + $0x70] sm:$0xff]
    %v714 = vld [vmem:[#allocation2 + $0x78] sm:$0xff]
    %s715 = scalar_lea.vmem %s0, 48
    %v716 = vld [vmem:[%s715] sm:$0xf]
    %v717 = vld [vmem:[%s715 + $0x4] sm:$0xf]
    %v718 = vld [vmem:[%s715 + $0x8] sm:$0xf]
    %v719 = vld [vmem:[%s715 + $0xc] sm:$0xf]
    %v720 = vld [vmem:[%s2] sm:$0xff]
    %v721 = vld [vmem:[%s2 + $0x8] sm:$0x3]
    %v726 = vunpack.c.l.b16 %v716
    %v727 = vunpack.c.l.b16 %v717
    %v728 = vunpack.c.l.b16 %v718
    %v729 = vunpack.c.l.b16 %v719
    %v730 = vpack.c.b16 %v727, %v726
    %v731 = vpack.c.b16 %v729, %v728
    %v734 = vcombine.high %v720, %v720
    %v736 = vunpack.c.l.s4 1983009808
    %v737 = vunpack.c.0.s8 %v736
    %v738 = vlaneseq
    %v739 = vshrl.u32 %v738, 7
    %v740 = vsub.s32 %v737, %v739
    %v741 = vrot.slane %v720, %v740
    %v743 = vunpack.c.l.s4 1983009808
    %v744 = vunpack.c.0.s8 %v743
    %v745 = vlaneseq
    %v746 = vshrl.u32 %v745, 7
    %v747 = vsub.s32 %v744, %v746
    %v748 = vrot.slane %v734, %v747
    %v749 = vcombine.high %v741, %v741
    %v750 = vcombine.high %v748, %v748
    %v752 = vunpack.c.l.s4 1983009808
    %v753 = vunpack.c.0.s8 %v752
    %v754 = vlaneseq
    %v755 = vshrl.u32 %v754, 7
    %v756 = vsub.s32 %v753, %v755
    %v757 = vrot.slane %v721, %v756
    %758 = vrot.lane.b32.xlu0 %v741, 125
    %v759 = vpop.permute.xlu0 %758
    %760 = vrot.lane.b32.xlu0 %v749, 125
    %v761 = vpop.permute.xlu0 %760
    %762 = vrot.lane.b32.xlu0 %v748, 125
    %v763 = vpop.permute.xlu0 %762
    %764 = vrot.lane.b32.xlu0 %v750, 125
    %v765 = vpop.permute.xlu0 %764
    %766 = vrot.lane.b32.xlu0 %v757, 125
    %v767 = vpop.permute.xlu0 %766
    %vm768 = vcmask 1022976
    %v769 = vsel %vm768, %v759, %v761
    %v770 = vsel %vm768, %v761, %v763
    %v771 = vsel %vm768, %v763, %v765
    %v772 = vsel %vm768, %v765, %v767
    %v774 = vsel %vm81, %v730, 0
    %v777 = vsel %vm81, %v731, 0
    %v780 = vsel %vm88, %v769, 0
    %v783 = vsel %vm88, %v770, 0
    %v786 = vsel %vm88, %v771, 0
    %v789 = vsel %vm88, %v772, 0
    %791 = vmatprep.subr.bf16.mxu0 %v783
    %792 = vmatpush1.bf16.msra.mxu0 %v780
    %793 = vmatprep.subr.bf16.mxu0 0
    %794 = vmatpush1.bf16.msra.mxu0 0
    %795 = vmatprep.subr.bf16.mxu0 0
    %796 = vmatpush1.bf16.msra.mxu0 0
    %797 = vmatprep.subr.bf16.mxu0 0
    %798 = vmatpush1.bf16.msra.mxu0 0
    %799 = vmatprep.subr.bf16.mxu0 0
    %800 = vmatpush1.bf16.msra.mxu0 0
    %801 = vmatprep.subr.bf16.mxu0 0
    %802 = vmatpush1.bf16.msra.mxu0 0
    %803 = vmatprep.subr.bf16.mxu0 0
    %804 = vmatpush1.bf16.msra.mxu0 0
    %805 = vmatprep.subr.bf16.mxu0 0
    %806 = vmatpush1.bf16.msra.mxu0 0
    %807 = vmatprep.subr.bf16.mxu0 0
    %808 = vmatpush1.bf16.msra.mxu0 0
    %809 = vmatprep.subr.bf16.mxu0 0
    %810 = vmatpush1.bf16.msra.mxu0 0
    %811 = vmatprep.subr.bf16.mxu0 0
    %812 = vmatpush1.bf16.msra.mxu0 0
    %813 = vmatprep.subr.bf16.mxu0 0
    %814 = vmatpush1.bf16.msra.mxu0 0
    %815 = vmatprep.subr.bf16.mxu0 0
    %816 = vmatpush1.bf16.msra.mxu0 0
    %817 = vmatprep.subr.bf16.mxu0 0
    %818 = vmatpush1.bf16.msra.mxu0 0
    %819 = vmatprep.subr.bf16.mxu0 0
    %820 = vmatpush1.bf16.msra.mxu0 0
    %821 = vmatprep.subr.bf16.mxu0 0
    %822 = vmatpush1.bf16.msra.mxu0 0
    %823 = vmatprep.mubr.bf16.mxu0 0
    %824 = vmatmul.mubr.bf16.gmra.mrb[0].mxu0 %v774
    %v825 = vpop.f32.mrb[0].mxu0
    %v826 = vadd.f32 0.0, %v825
    %v827 = vpop.f32.mrb[0].mxu0
    %v828 = vadd.f32 0.0, %v827
    %v829 = vpop.f32.mrb[0].mxu0
    %v830 = vadd.f32 0.0, %v829
    %v831 = vpop.f32.mrb[0].mxu0
    %v832 = vadd.f32 0.0, %v831
    %833 = vmatprep.mubr.bf16.mxu0 0
    %834 = vmatmul.mubr.bf16.gmra.mrb[0].mxu0 %v777
    %v835 = vpop.f32.mrb[0].mxu0
    %v836 = vadd.f32 0.0, %v835
    %v837 = vpop.f32.mrb[0].mxu0
    %v838 = vadd.f32 0.0, %v837
    %v839 = vpop.f32.mrb[0].mxu0
    %v840 = vadd.f32 0.0, %v839
    %v841 = vpop.f32.mrb[0].mxu0
    %v842 = vadd.f32 0.0, %v841
    %843 = vdwg.mxu0
    %844 = vmatprep.subr.bf16.mxu0 %v789
    %845 = vmatpush1.bf16.msra.mxu0 %v786
    %846 = vmatprep.subr.bf16.mxu0 0
    %847 = vmatpush1.bf16.msra.mxu0 0
    %848 = vmatprep.subr.bf16.mxu0 0
    %849 = vmatpush1.bf16.msra.mxu0 0
    %850 = vmatprep.subr.bf16.mxu0 0
    %851 = vmatpush1.bf16.msra.mxu0 0
    %852 = vmatprep.subr.bf16.mxu0 0
    %853 = vmatpush1.bf16.msra.mxu0 0
    %854 = vmatprep.subr.bf16.mxu0 0
    %855 = vmatpush1.bf16.msra.mxu0 0
    %856 = vmatprep.subr.bf16.mxu0 0
    %857 = vmatpush1.bf16.msra.mxu0 0
    %858 = vmatprep.subr.bf16.mxu0 0
    %859 = vmatpush1.bf16.msra.mxu0 0
    %860 = vmatprep.subr.bf16.mxu0 0
    %861 = vmatpush1.bf16.msra.mxu0 0
    %862 = vmatprep.subr.bf16.mxu0 0
    %863 = vmatpush1.bf16.msra.mxu0 0
    %864 = vmatprep.subr.bf16.mxu0 0
    %865 = vmatpush1.bf16.msra.mxu0 0
    %866 = vmatprep.subr.bf16.mxu0 0
    %867 = vmatpush1.bf16.msra.mxu0 0
    %868 = vmatprep.subr.bf16.mxu0 0
    %869 = vmatpush1.bf16.msra.mxu0 0
    %870 = vmatprep.subr.bf16.mxu0 0
    %871 = vmatpush1.bf16.msra.mxu0 0
    %872 = vmatprep.subr.bf16.mxu0 0
    %873 = vmatpush1.bf16.msra.mxu0 0
    %874 = vmatprep.subr.bf16.mxu0 0
    %875 = vmatpush1.bf16.msra.mxu0 0
    %876 = vmatprep.mubr.bf16.mxu0 0
    %877 = vmatmul.mubr.bf16.gmra.mrb[0].mxu0 %v774
    %v878 = vpop.f32.mrb[0].mxu0
    %v879 = vadd.f32 0.0, %v878
    %v880 = vpop.f32.mrb[0].mxu0
    %v881 = vadd.f32 0.0, %v880
    %v882 = vpop.f32.mrb[0].mxu0
    %v883 = vadd.f32 0.0, %v882
    %v884 = vpop.f32.mrb[0].mxu0
    %v885 = vadd.f32 0.0, %v884
    %886 = vmatprep.mubr.bf16.mxu0 0
    %887 = vmatmul.mubr.bf16.gmra.mrb[0].mxu0 %v777
    %v888 = vpop.f32.mrb[0].mxu0
    %v889 = vadd.f32 0.0, %v888
    %v890 = vpop.f32.mrb[0].mxu0
    %v891 = vadd.f32 0.0, %v890
    %v892 = vpop.f32.mrb[0].mxu0
    %v893 = vadd.f32 0.0, %v892
    %v894 = vpop.f32.mrb[0].mxu0
    %v895 = vadd.f32 0.0, %v894
    %896 = vdwg.mxu0
    %v897 = vadd.f32 %v699, %v826
    %v898 = vadd.f32 %v700, %v828
    %v899 = vadd.f32 %v701, %v879
    %v900 = vadd.f32 %v702, %v881
    %v901 = vadd.f32 %v703, %v830
    %v902 = vadd.f32 %v704, %v832
    %v903 = vadd.f32 %v705, %v883
    %v904 = vadd.f32 %v706, %v885
    %v905 = vadd.f32 %v707, %v836
    %v906 = vadd.f32 %v708, %v838
    %v907 = vadd.f32 %v709, %v889
    %v908 = vadd.f32 %v710, %v891
    %v909 = vadd.f32 %v711, %v840
    %v910 = vadd.f32 %v712, %v842
    %v911 = vadd.f32 %v713, %v893
    %v912 = vadd.f32 %v714, %v895
    %913 = vst [vmem:[#allocation2] sm:$0xff] %v897
    %914 = vst [vmem:[#allocation2 + $0x8] sm:$0xff] %v898
    %915 = vst [vmem:[#allocation2 + $0x10] sm:$0xff] %v899
    %916 = vst [vmem:[#allocation2 + $0x18] sm:$0xff] %v900
    %917 = vst [vmem:[#allocation2 + $0x20] sm:$0xff] %v901
    %918 = vst [vmem:[#allocation2 + $0x28] sm:$0xff] %v902
    %919 = vst [vmem:[#allocation2 + $0x30] sm:$0xff] %v903
    %920 = vst [vmem:[#allocation2 + $0x38] sm:$0xff] %v904
    %921 = vst [vmem:[#allocation2 + $0x40] sm:$0xff] %v905
    %922 = vst [vmem:[#allocation2 + $0x48] sm:$0xff] %v906
    %923 = vst [vmem:[#allocation2 + $0x50] sm:$0xff] %v907
    %924 = vst [vmem:[#allocation2 + $0x58] sm:$0xff] %v908
    %925 = vst [vmem:[#allocation2 + $0x60] sm:$0xff] %v909
    %926 = vst [vmem:[#allocation2 + $0x68] sm:$0xff] %v910
    %927 = vst [vmem:[#allocation2 + $0x70] sm:$0xff] %v911
    %928 = vst [vmem:[#allocation2 + $0x78] sm:$0xff] %v912
    %v929 = vld [vmem:[#allocation2] sm:$0xff]
    %v930 = vld [vmem:[#allocation2 + $0x8] sm:$0xff]
    %v931 = vld [vmem:[#allocation2 + $0x10] sm:$0xff]
    %v932 = vld [vmem:[#allocation2 + $0x18] sm:$0xff]
    %v933 = vld [vmem:[#allocation2 + $0x20] sm:$0xff]
    %v934 = vld [vmem:[#allocation2 + $0x28] sm:$0xff]
    %v935 = vld [vmem:[#allocation2 + $0x30] sm:$0xff]
    %v936 = vld [vmem:[#allocation2 + $0x38] sm:$0xff]
    %v937 = vld [vmem:[#allocation2 + $0x40] sm:$0xff]
    %v938 = vld [vmem:[#allocation2 + $0x48] sm:$0xff]
    %v939 = vld [vmem:[#allocation2 + $0x50] sm:$0xff]
    %v940 = vld [vmem:[#allocation2 + $0x58] sm:$0xff]
    %v941 = vld [vmem:[#allocation2 + $0x60] sm:$0xff]
    %v942 = vld [vmem:[#allocation2 + $0x68] sm:$0xff]
    %v943 = vld [vmem:[#allocation2 + $0x70] sm:$0xff]
    %v944 = vld [vmem:[#allocation2 + $0x78] sm:$0xff]
    %s945 = scalar_lea.vmem %s0, 64
    %v946 = vld [vmem:[%s945] sm:$0xf]
    %v947 = vld [vmem:[%s945 + $0x4] sm:$0xf]
    %v948 = vld [vmem:[%s945 + $0x8] sm:$0xf]
    %v949 = vld [vmem:[%s945 + $0xc] sm:$0xf]
    %v950 = vld [vmem:[%s2] sm:$0xff]
    %v951 = vld [vmem:[%s2 + $0x8] sm:$0x3]
    %v956 = vunpack.c.l.b16 %v946
    %v957 = vunpack.c.l.b16 %v947
    %v958 = vunpack.c.l.b16 %v948
    %v959 = vunpack.c.l.b16 %v949
    %v960 = vpack.c.b16 %v957, %v956
    %v961 = vpack.c.b16 %v959, %v958
    %v964 = vcombine.high %v950, %v950
    %v966 = vunpack.c.l.s4 1983009808
    %v967 = vunpack.c.0.s8 %v966
    %v968 = vlaneseq
    %v969 = vshrl.u32 %v968, 7
    %v970 = vsub.s32 %v967, %v969
    %v971 = vrot.slane %v950, %v970
    %v973 = vunpack.c.l.s4 1983009808
    %v974 = vunpack.c.0.s8 %v973
    %v975 = vlaneseq
    %v976 = vshrl.u32 %v975, 7
    %v977 = vsub.s32 %v974, %v976
    %v978 = vrot.slane %v964, %v977
    %v979 = vcombine.high %v971, %v971
    %v980 = vcombine.high %v978, %v978
    %v982 = vunpack.c.l.s4 1983009808
    %v983 = vunpack.c.0.s8 %v982
    %v984 = vlaneseq
    %v985 = vshrl.u32 %v984, 7
    %v986 = vsub.s32 %v983, %v985
    %v987 = vrot.slane %v951, %v986
    %988 = vrot.lane.b32.xlu0 %v971, 124
    %v989 = vpop.permute.xlu0 %988
    %990 = vrot.lane.b32.xlu0 %v979, 124
    %v991 = vpop.permute.xlu0 %990
    %992 = vrot.lane.b32.xlu0 %v978, 124
    %v993 = vpop.permute.xlu0 %992
    %994 = vrot.lane.b32.xlu0 %v980, 124
    %v995 = vpop.permute.xlu0 %994
    %996 = vrot.lane.b32.xlu0 %v987, 124
    %v997 = vpop.permute.xlu0 %996
    %vm998 = vcmask 1014784
    %v999 = vsel %vm998, %v989, %v991
    %v1000 = vsel %vm998, %v991, %v993
    %v1001 = vsel %vm998, %v993, %v995
    %v1002 = vsel %vm998, %v995, %v997
    %v1004 = vsel %vm81, %v960, 0
    %v1007 = vsel %vm81, %v961, 0
    %v1010 = vsel %vm88, %v999, 0
    %v1013 = vsel %vm88, %v1000, 0
    %v1016 = vsel %vm88, %v1001, 0
    %v1019 = vsel %vm88, %v1002, 0
    %1021 = vmatprep.subr.bf16.mxu0 %v1013
    %1022 = vmatpush1.bf16.msra.mxu0 %v1010
    %1023 = vmatprep.subr.bf16.mxu0 0
    %1024 = vmatpush1.bf16.msra.mxu0 0
    %1025 = vmatprep.subr.bf16.mxu0 0
    %1026 = vmatpush1.bf16.msra.mxu0 0
    %1027 = vmatprep.subr.bf16.mxu0 0
    %1028 = vmatpush1.bf16.msra.mxu0 0
    %1029 = vmatprep.subr.bf16.mxu0 0
    %1030 = vmatpush1.bf16.msra.mxu0 0
    %1031 = vmatprep.subr.bf16.mxu0 0
    %1032 = vmatpush1.bf16.msra.mxu0 0
    %1033 = vmatprep.subr.bf16.mxu0 0
    %1034 = vmatpush1.bf16.msra.mxu0 0
    %1035 = vmatprep.subr.bf16.mxu0 0
    %1036 = vmatpush1.bf16.msra.mxu0 0
    %1037 = vmatprep.subr.bf16.mxu0 0
    %1038 = vmatpush1.bf16.msra.mxu0 0
    %1039 = vmatprep.subr.bf16.mxu0 0
    %1040 = vmatpush1.bf16.msra.mxu0 0
    %1041 = vmatprep.subr.bf16.mxu0 0
    %1042 = vmatpush1.bf16.msra.mxu0 0
    %1043 = vmatprep.subr.bf16.mxu0 0
    %1044 = vmatpush1.bf16.msra.mxu0 0
    %1045 = vmatprep.subr.bf16.mxu0 0
    %1046 = vmatpush1.bf16.msra.mxu0 0
    %1047 = vmatprep.subr.bf16.mxu0 0
    %1048 = vmatpush1.bf16.msra.mxu0 0
    %1049 = vmatprep.subr.bf16.mxu0 0
    %1050 = vmatpush1.bf16.msra.mxu0 0
    %1051 = vmatprep.subr.bf16.mxu0 0
    %1052 = vmatpush1.bf16.msra.mxu0 0
    %1053 = vmatprep.mubr.bf16.mxu0 0
    %1054 = vmatmul.mubr.bf16.gmra.mrb[0].mxu0 %v1004
    %v1055 = vpop.f32.mrb[0].mxu0
    %v1056 = vadd.f32 0.0, %v1055
    %v1057 = vpop.f32.mrb[0].mxu0
    %v1058 = vadd.f32 0.0, %v1057
    %v1059 = vpop.f32.mrb[0].mxu0
    %v1060 = vadd.f32 0.0, %v1059
    %v1061 = vpop.f32.mrb[0].mxu0
    %v1062 = vadd.f32 0.0, %v1061
    %1063 = vmatprep.mubr.bf16.mxu0 0
    %1064 = vmatmul.mubr.bf16.gmra.mrb[0].mxu0 %v1007
    %v1065 = vpop.f32.mrb[0].mxu0
    %v1066 = vadd.f32 0.0, %v1065
    %v1067 = vpop.f32.mrb[0].mxu0
    %v1068 = vadd.f32 0.0, %v1067
    %v1069 = vpop.f32.mrb[0].mxu0
    %v1070 = vadd.f32 0.0, %v1069
    %v1071 = vpop.f32.mrb[0].mxu0
    %v1072 = vadd.f32 0.0, %v1071
    %1073 = vdwg.mxu0
    %1074 = vmatprep.subr.bf16.mxu0 %v1019
    %1075 = vmatpush1.bf16.msra.mxu0 %v1016
    %1076 = vmatprep.subr.bf16.mxu0 0
    %1077 = vmatpush1.bf16.msra.mxu0 0
    %1078 = vmatprep.subr.bf16.mxu0 0
    %1079 = vmatpush1.bf16.msra.mxu0 0
    %1080 = vmatprep.subr.bf16.mxu0 0
    %1081 = vmatpush1.bf16.msra.mxu0 0
    %1082 = vmatprep.subr.bf16.mxu0 0
    %1083 = vmatpush1.bf16.msra.mxu0 0
    %1084 = vmatprep.subr.bf16.mxu0 0
    %1085 = vmatpush1.bf16.msra.mxu0 0
    %1086 = vmatprep.subr.bf16.mxu0 0
    %1087 = vmatpush1.bf16.msra.mxu0 0
    %1088 = vmatprep.subr.bf16.mxu0 0
    %1089 = vmatpush1.bf16.msra.mxu0 0
    %1090 = vmatprep.subr.bf16.mxu0 0
    %1091 = vmatpush1.bf16.msra.mxu0 0
    %1092 = vmatprep.subr.bf16.mxu0 0
    %1093 = vmatpush1.bf16.msra.mxu0 0
    %1094 = vmatprep.subr.bf16.mxu0 0
    %1095 = vmatpush1.bf16.msra.mxu0 0
    %1096 = vmatprep.subr.bf16.mxu0 0
    %1097 = vmatpush1.bf16.msra.mxu0 0
    %1098 = vmatprep.subr.bf16.mxu0 0
    %1099 = vmatpush1.bf16.msra.mxu0 0
    %1100 = vmatprep.subr.bf16.mxu0 0
    %1101 = vmatpush1.bf16.msra.mxu0 0
    %1102 = vmatprep.subr.bf16.mxu0 0
    %1103 = vmatpush1.bf16.msra.mxu0 0
    %1104 = vmatprep.subr.bf16.mxu0 0
    %1105 = vmatpush1.bf16.msra.mxu0 0
    %1106 = vmatprep.mubr.bf16.mxu0 0
    %1107 = vmatmul.mubr.bf16.gmra.mrb[0].mxu0 %v1004
    %v1108 = vpop.f32.mrb[0].mxu0
    %v1109 = vadd.f32 0.0, %v1108
    %v1110 = vpop.f32.mrb[0].mxu0
    %v1111 = vadd.f32 0.0, %v1110
    %v1112 = vpop.f32.mrb[0].mxu0
    %v1113 = vadd.f32 0.0, %v1112
    %v1114 = vpop.f32.mrb[0].mxu0
    %v1115 = vadd.f32 0.0, %v1114
    %1116 = vmatprep.mubr.bf16.mxu0 0
    %1117 = vmatmul.mubr.bf16.gmra.mrb[0].mxu0 %v1007
    %v1118 = vpop.f32.mrb[0].mxu0
    %v1119 = vadd.f32 0.0, %v1118
    %v1120 = vpop.f32.mrb[0].mxu0
    %v1121 = vadd.f32 0.0, %v1120
    %v1122 = vpop.f32.mrb[0].mxu0
    %v1123 = vadd.f32 0.0, %v1122
    %v1124 = vpop.f32.mrb[0].mxu0
    %v1125 = vadd.f32 0.0, %v1124
    %1126 = vdwg.mxu0
    %v1127 = vadd.f32 %v929, %v1056
    %v1128 = vadd.f32 %v930, %v1058
    %v1129 = vadd.f32 %v931, %v1109
    %v1130 = vadd.f32 %v932, %v1111
    %v1131 = vadd.f32 %v933, %v1060
    %v1132 = vadd.f32 %v934, %v1062
    %v1133 = vadd.f32 %v935, %v1113
    %v1134 = vadd.f32 %v936, %v1115
    %v1135 = vadd.f32 %v937, %v1066
    %v1136 = vadd.f32 %v938, %v1068
    %v1137 = vadd.f32 %v939, %v1119
    %v1138 = vadd.f32 %v940, %v1121
    %v1139 = vadd.f32 %v941, %v1070
    %v1140 = vadd.f32 %v942, %v1072
    %v1141 = vadd.f32 %v943, %v1123
    %v1142 = vadd.f32 %v944, %v1125
    %1143 = vst [vmem:[#allocation2] sm:$0xff] %v1127
    %1144 = vst [vmem:[#allocation2 + $0x8] sm:$0xff] %v1128
    %1145 = vst [vmem:[#allocation2 + $0x10] sm:$0xff] %v1129
    %1146 = vst [vmem:[#allocation2 + $0x18] sm:$0xff] %v1130
    %1147 = vst [vmem:[#allocation2 + $0x20] sm:$0xff] %v1131
    %1148 = vst [vmem:[#allocation2 + $0x28] sm:$0xff] %v1132
    %1149 = vst [vmem:[#allocation2 + $0x30] sm:$0xff] %v1133
    %1150 = vst [vmem:[#allocation2 + $0x38] sm:$0xff] %v1134
    %1151 = vst [vmem:[#allocation2 + $0x40] sm:$0xff] %v1135
    %1152 = vst [vmem:[#allocation2 + $0x48] sm:$0xff] %v1136
    %1153 = vst [vmem:[#allocation2 + $0x50] sm:$0xff] %v1137
    %1154 = vst [vmem:[#allocation2 + $0x58] sm:$0xff] %v1138
    %1155 = vst [vmem:[#allocation2 + $0x60] sm:$0xff] %v1139
    %1156 = vst [vmem:[#allocation2 + $0x68] sm:$0xff] %v1140
    %1157 = vst [vmem:[#allocation2 + $0x70] sm:$0xff] %v1141
    %1158 = vst [vmem:[#allocation2 + $0x78] sm:$0xff] %v1142
    %v1159 = vld [vmem:[#allocation2] sm:$0xff]
    %v1160 = vld [vmem:[#allocation2 + $0x8] sm:$0xff]
    %v1161 = vld [vmem:[#allocation2 + $0x10] sm:$0xff]
    %v1162 = vld [vmem:[#allocation2 + $0x18] sm:$0xff]
    %v1163 = vld [vmem:[#allocation2 + $0x20] sm:$0xff]
    %v1164 = vld [vmem:[#allocation2 + $0x28] sm:$0xff]
    %v1165 = vld [vmem:[#allocation2 + $0x30] sm:$0xff]
    %v1166 = vld [vmem:[#allocation2 + $0x38] sm:$0xff]
    %v1167 = vld [vmem:[#allocation2 + $0x40] sm:$0xff]
    %v1168 = vld [vmem:[#allocation2 + $0x48] sm:$0xff]
    %v1169 = vld [vmem:[#allocation2 + $0x50] sm:$0xff]
    %v1170 = vld [vmem:[#allocation2 + $0x58] sm:$0xff]
    %v1171 = vld [vmem:[#allocation2 + $0x60] sm:$0xff]
    %v1172 = vld [vmem:[#allocation2 + $0x68] sm:$0xff]
    %v1173 = vld [vmem:[#allocation2 + $0x70] sm:$0xff]
    %v1174 = vld [vmem:[#allocation2 + $0x78] sm:$0xff]
    %s1175 = scalar_lea.vmem %s0, 80
    %v1176 = vld [vmem:[%s1175] sm:$0xf]
    %v1177 = vld [vmem:[%s1175 + $0x4] sm:$0xf]
    %v1178 = vld [vmem:[%s1175 + $0x8] sm:$0xf]
    %v1179 = vld [vmem:[%s1175 + $0xc] sm:$0xf]
    %v1180 = vld [vmem:[%s2] sm:$0xff]
    %v1181 = vld [vmem:[%s2 + $0x8] sm:$0x3]
    %v1186 = vunpack.c.l.b16 %v1176
    %v1187 = vunpack.c.l.b16 %v1177
    %v1188 = vunpack.c.l.b16 %v1178
    %v1189 = vunpack.c.l.b16 %v1179
    %v1190 = vpack.c.b16 %v1187, %v1186
    %v1191 = vpack.c.b16 %v1189, %v1188
    %v1194 = vcombine.high %v1180, %v1180
    %v1196 = vunpack.c.l.s4 1983009808
    %v1197 = vunpack.c.0.s8 %v1196
    %v1198 = vlaneseq
    %v1199 = vshrl.u32 %v1198, 7
    %v1200 = vsub.s32 %v1197, %v1199
    %v1201 = vrot.slane %v1180, %v1200
    %v1203 = vunpack.c.l.s4 1983009808
    %v1204 = vunpack.c.0.s8 %v1203
    %v1205 = vlaneseq
    %v1206 = vshrl.u32 %v1205, 7
    %v1207 = vsub.s32 %v1204, %v1206
    %v1208 = vrot.slane %v1194, %v1207
    %v1209 = vcombine.high %v1201, %v1201
    %v1210 = vcombine.high %v1208, %v1208
    %v1212 = vunpack.c.l.s4 1983009808
    %v1213 = vunpack.c.0.s8 %v1212
    %v1214 = vlaneseq
    %v1215 = vshrl.u32 %v1214, 7
    %v1216 = vsub.s32 %v1213, %v1215
    %v1217 = vrot.slane %v1181, %v1216
    %1218 = vrot.lane.b32.xlu0 %v1201, 112
    %v1219 = vpop.permute.xlu0 %1218
    %1220 = vrot.lane.b32.xlu0 %v1209, 112
    %v1221 = vpop.permute.xlu0 %1220
    %1222 = vrot.lane.b32.xlu0 %v1208, 112
    %v1223 = vpop.permute.xlu0 %1222
    %1224 = vrot.lane.b32.xlu0 %v1210, 112
    %v1225 = vpop.permute.xlu0 %1224
    %1226 = vrot.lane.b32.xlu0 %v1217, 112
    %v1227 = vpop.permute.xlu0 %1226
    %vm1228 = vcmask 916480
    %v1229 = vsel %vm1228, %v1219, %v1221
    %v1230 = vsel %vm1228, %v1221, %v1223
    %v1231 = vsel %vm1228, %v1223, %v1225
    %v1232 = vsel %vm1228, %v1225, %v1227
    %v1234 = vsel %vm81, %v1190, 0
    %v1237 = vsel %vm81, %v1191, 0
    %v1240 = vsel %vm88, %v1229, 0
    %v1243 = vsel %vm88, %v1230, 0
    %v1246 = vsel %vm88, %v1231, 0
    %v1249 = vsel %vm88, %v1232, 0
    %1251 = vmatprep.subr.bf16.mxu0 %v1243
    %1252 = vmatpush1.bf16.msra.mxu0 %v1240
    %1253 = vmatprep.subr.bf16.mxu0 0
    %1254 = vmatpush1.bf16.msra.mxu0 0
    %1255 = vmatprep.subr.bf16.mxu0 0
    %1256 = vmatpush1.bf16.msra.mxu0 0
    %1257 = vmatprep.subr.bf16.mxu0 0
    %1258 = vmatpush1.bf16.msra.mxu0 0
    %1259 = vmatprep.subr.bf16.mxu0 0
    %1260 = vmatpush1.bf16.msra.mxu0 0
    %1261 = vmatprep.subr.bf16.mxu0 0
    %1262 = vmatpush1.bf16.msra.mxu0 0
    %1263 = vmatprep.subr.bf16.mxu0 0
    %1264 = vmatpush1.bf16.msra.mxu0 0
    %1265 = vmatprep.subr.bf16.mxu0 0
    %1266 = vmatpush1.bf16.msra.mxu0 0
    %1267 = vmatprep.subr.bf16.mxu0 0
    %1268 = vmatpush1.bf16.msra.mxu0 0
    %1269 = vmatprep.subr.bf16.mxu0 0
    %1270 = vmatpush1.bf16.msra.mxu0 0
    %1271 = vmatprep.subr.bf16.mxu0 0
    %1272 = vmatpush1.bf16.msra.mxu0 0
    %1273 = vmatprep.subr.bf16.mxu0 0
    %1274 = vmatpush1.bf16.msra.mxu0 0
    %1275 = vmatprep.subr.bf16.mxu0 0
    %1276 = vmatpush1.bf16.msra.mxu0 0
    %1277 = vmatprep.subr.bf16.mxu0 0
    %1278 = vmatpush1.bf16.msra.mxu0 0
    %1279 = vmatprep.subr.bf16.mxu0 0
    %1280 = vmatpush1.bf16.msra.mxu0 0
    %1281 = vmatprep.subr.bf16.mxu0 0
    %1282 = vmatpush1.bf16.msra.mxu0 0
    %1283 = vmatprep.mubr.bf16.mxu0 0
    %1284 = vmatmul.mubr.bf16.gmra.mrb[0].mxu0 %v1234
    %v1285 = vpop.f32.mrb[0].mxu0
    %v1286 = vadd.f32 0.0, %v1285
    %v1287 = vpop.f32.mrb[0].mxu0
    %v1288 = vadd.f32 0.0, %v1287
    %v1289 = vpop.f32.mrb[0].mxu0
    %v1290 = vadd.f32 0.0, %v1289
    %v1291 = vpop.f32.mrb[0].mxu0
    %v1292 = vadd.f32 0.0, %v1291
    %1293 = vmatprep.mubr.bf16.mxu0 0
    %1294 = vmatmul.mubr.bf16.gmra.mrb[0].mxu0 %v1237
    %v1295 = vpop.f32.mrb[0].mxu0
    %v1296 = vadd.f32 0.0, %v1295
    %v1297 = vpop.f32.mrb[0].mxu0
    %v1298 = vadd.f32 0.0, %v1297
    %v1299 = vpop.f32.mrb[0].mxu0
    %v1300 = vadd.f32 0.0, %v1299
    %v1301 = vpop.f32.mrb[0].mxu0
    %v1302 = vadd.f32 0.0, %v1301
    %1303 = vdwg.mxu0
    %1304 = vmatprep.subr.bf16.mxu0 %v1249
    %1305 = vmatpush1.bf16.msra.mxu0 %v1246
    %1306 = vmatprep.subr.bf16.mxu0 0
    %1307 = vmatpush1.bf16.msra.mxu0 0
    %1308 = vmatprep.subr.bf16.mxu0 0
    %1309 = vmatpush1.bf16.msra.mxu0 0
    %1310 = vmatprep.subr.bf16.mxu0 0
    %1311 = vmatpush1.bf16.msra.mxu0 0
    %1312 = vmatprep.subr.bf16.mxu0 0
    %1313 = vmatpush1.bf16.msra.mxu0 0
    %1314 = vmatprep.subr.bf16.mxu0 0
    %1315 = vmatpush1.bf16.msra.mxu0 0
    %1316 = vmatprep.subr.bf16.mxu0 0
    %1317 = vmatpush1.bf16.msra.mxu0 0
    %1318 = vmatprep.subr.bf16.mxu0 0
    %1319 = vmatpush1.bf16.msra.mxu0 0
    %1320 = vmatprep.subr.bf16.mxu0 0
    %1321 = vmatpush1.bf16.msra.mxu0 0
    %1322 = vmatprep.subr.bf16.mxu0 0
    %1323 = vmatpush1.bf16.msra.mxu0 0
    %1324 = vmatprep.subr.bf16.mxu0 0
    %1325 = vmatpush1.bf16.msra.mxu0 0
    %1326 = vmatprep.subr.bf16.mxu0 0
    %1327 = vmatpush1.bf16.msra.mxu0 0
    %1328 = vmatprep.subr.bf16.mxu0 0
    %1329 = vmatpush1.bf16.msra.mxu0 0
    %1330 = vmatprep.subr.bf16.mxu0 0
    %1331 = vmatpush1.bf16.msra.mxu0 0
    %1332 = vmatprep.subr.bf16.mxu0 0
    %1333 = vmatpush1.bf16.msra.mxu0 0
    %1334 = vmatprep.subr.bf16.mxu0 0
    %1335 = vmatpush1.bf16.msra.mxu0 0
    %1336 = vmatprep.mubr.bf16.mxu0 0
    %1337 = vmatmul.mubr.bf16.gmra.mrb[0].mxu0 %v1234
    %v1338 = vpop.f32.mrb[0].mxu0
    %v1339 = vadd.f32 0.0, %v1338
    %v1340 = vpop.f32.mrb[0].mxu0
    %v1341 = vadd.f32 0.0, %v1340
    %v1342 = vpop.f32.mrb[0].mxu0
    %v1343 = vadd.f32 0.0, %v1342
    %v1344 = vpop.f32.mrb[0].mxu0
    %v1345 = vadd.f32 0.0, %v1344
    %1346 = vmatprep.mubr.bf16.mxu0 0
    %1347 = vmatmul.mubr.bf16.gmra.mrb[0].mxu0 %v1237
    %v1348 = vpop.f32.mrb[0].mxu0
    %v1349 = vadd.f32 0.0, %v1348
    %v1350 = vpop.f32.mrb[0].mxu0
    %v1351 = vadd.f32 0.0, %v1350
    %v1352 = vpop.f32.mrb[0].mxu0
    %v1353 = vadd.f32 0.0, %v1352
    %v1354 = vpop.f32.mrb[0].mxu0
    %v1355 = vadd.f32 0.0, %v1354
    %1356 = vdwg.mxu0
    %v1357 = vadd.f32 %v1159, %v1286
    %v1358 = vadd.f32 %v1160, %v1288
    %v1359 = vadd.f32 %v1161, %v1339
    %v1360 = vadd.f32 %v1162, %v1341
    %v1361 = vadd.f32 %v1163, %v1290
    %v1362 = vadd.f32 %v1164, %v1292
    %v1363 = vadd.f32 %v1165, %v1343
    %v1364 = vadd.f32 %v1166, %v1345
    %v1365 = vadd.f32 %v1167, %v1296
    %v1366 = vadd.f32 %v1168, %v1298
    %v1367 = vadd.f32 %v1169, %v1349
    %v1368 = vadd.f32 %v1170, %v1351
    %v1369 = vadd.f32 %v1171, %v1300
    %v1370 = vadd.f32 %v1172, %v1302
    %v1371 = vadd.f32 %v1173, %v1353
    %v1372 = vadd.f32 %v1174, %v1355
    %1373 = vst [vmem:[#allocation2] sm:$0xff] %v1357
    %1374 = vst [vmem:[#allocation2 + $0x8] sm:$0xff] %v1358
    %1375 = vst [vmem:[#allocation2 + $0x10] sm:$0xff] %v1359
    %1376 = vst [vmem:[#allocation2 + $0x18] sm:$0xff] %v1360
    %1377 = vst [vmem:[#allocation2 + $0x20] sm:$0xff] %v1361
    %1378 = vst [vmem:[#allocation2 + $0x28] sm:$0xff] %v1362
    %1379 = vst [vmem:[#allocation2 + $0x30] sm:$0xff] %v1363
    %1380 = vst [vmem:[#allocation2 + $0x38] sm:$0xff] %v1364
    %1381 = vst [vmem:[#allocation2 + $0x40] sm:$0xff] %v1365
    %1382 = vst [vmem:[#allocation2 + $0x48] sm:$0xff] %v1366
    %1383 = vst [vmem:[#allocation2 + $0x50] sm:$0xff] %v1367
    %1384 = vst [vmem:[#allocation2 + $0x58] sm:$0xff] %v1368
    %1385 = vst [vmem:[#allocation2 + $0x60] sm:$0xff] %v1369
    %1386 = vst [vmem:[#allocation2 + $0x68] sm:$0xff] %v1370
    %1387 = vst [vmem:[#allocation2 + $0x70] sm:$0xff] %v1371
    %1388 = vst [vmem:[#allocation2 + $0x78] sm:$0xff] %v1372
    %v1389 = vld [vmem:[#allocation2] sm:$0xff]
    %v1390 = vld [vmem:[#allocation2 + $0x8] sm:$0xff]
    %v1391 = vld [vmem:[#allocation2 + $0x10] sm:$0xff]
    %v1392 = vld [vmem:[#allocation2 + $0x18] sm:$0xff]
    %v1393 = vld [vmem:[#allocation2 + $0x20] sm:$0xff]
    %v1394 = vld [vmem:[#allocation2 + $0x28] sm:$0xff]
    %v1395 = vld [vmem:[#allocation2 + $0x30] sm:$0xff]
    %v1396 = vld [vmem:[#allocation2 + $0x38] sm:$0xff]
    %v1397 = vld [vmem:[#allocation2 + $0x40] sm:$0xff]
    %v1398 = vld [vmem:[#allocation2 + $0x48] sm:$0xff]
    %v1399 = vld [vmem:[#allocation2 + $0x50] sm:$0xff]
    %v1400 = vld [vmem:[#allocation2 + $0x58] sm:$0xff]
    %v1401 = vld [vmem:[#allocation2 + $0x60] sm:$0xff]
    %v1402 = vld [vmem:[#allocation2 + $0x68] sm:$0xff]
    %v1403 = vld [vmem:[#allocation2 + $0x70] sm:$0xff]
    %v1404 = vld [vmem:[#allocation2 + $0x78] sm:$0xff]
    %s1405 = scalar_lea.vmem %s0, 96
    %v1406 = vld [vmem:[%s1405] sm:$0xf]
    %v1407 = vld [vmem:[%s1405 + $0x4] sm:$0xf]
    %v1408 = vld [vmem:[%s1405 + $0x8] sm:$0xf]
    %v1409 = vld [vmem:[%s1405 + $0xc] sm:$0xf]
    %v1410 = vld [vmem:[%s2] sm:$0xff]
    %v1411 = vld [vmem:[%s2 + $0x8] sm:$0x3]
    %v1416 = vunpack.c.l.b16 %v1406
    %v1417 = vunpack.c.l.b16 %v1407
    %v1418 = vunpack.c.l.b16 %v1408
    %v1419 = vunpack.c.l.b16 %v1409
    %v1420 = vpack.c.b16 %v1417, %v1416
    %v1421 = vpack.c.b16 %v1419, %v1418
    %v1424 = vcombine.high %v1410, %v1410
    %v1426 = vunpack.c.l.s4 1983009808
    %v1427 = vunpack.c.0.s8 %v1426
    %v1428 = vlaneseq
    %v1429 = vshrl.u32 %v1428, 7
    %v1430 = vsub.s32 %v1427, %v1429
    %v1431 = vrot.slane %v1410, %v1430
    %v1433 = vunpack.c.l.s4 1983009808
    %v1434 = vunpack.c.0.s8 %v1433
    %v1435 = vlaneseq
    %v1436 = vshrl.u32 %v1435, 7
    %v1437 = vsub.s32 %v1434, %v1436
    %v1438 = vrot.slane %v1424, %v1437
    %v1439 = vcombine.high %v1431, %v1431
    %v1440 = vcombine.high %v1438, %v1438
    %v1442 = vunpack.c.l.s4 1983009808
    %v1443 = vunpack.c.0.s8 %v1442
    %v1444 = vlaneseq
    %v1445 = vshrl.u32 %v1444, 7
    %v1446 = vsub.s32 %v1443, %v1445
    %v1447 = vrot.slane %v1411, %v1446
    %1448 = vrot.lane.b32.xlu0 %v1431, 111
    %v1449 = vpop.permute.xlu0 %1448
    %1450 = vrot.lane.b32.xlu0 %v1439, 111
    %v1451 = vpop.permute.xlu0 %1450
    %1452 = vrot.lane.b32.xlu0 %v1438, 111
    %v1453 = vpop.permute.xlu0 %1452
    %1454 = vrot.lane.b32.xlu0 %v1440, 111
    %v1455 = vpop.permute.xlu0 %1454
    %1456 = vrot.lane.b32.xlu0 %v1447, 111
    %v1457 = vpop.permute.xlu0 %1456
    %vm1458 = vcmask 908288
    %v1459 = vsel %vm1458, %v1449, %v1451
    %v1460 = vsel %vm1458, %v1451, %v1453
    %v1461 = vsel %vm1458, %v1453, %v1455
    %v1462 = vsel %vm1458, %v1455, %v1457
    %v1464 = vsel %vm81, %v1420, 0
    %v1467 = vsel %vm81, %v1421, 0
    %v1470 = vsel %vm88, %v1459, 0
    %v1473 = vsel %vm88, %v1460, 0
    %v1476 = vsel %vm88, %v1461, 0
    %v1479 = vsel %vm88, %v1462, 0
    %1481 = vmatprep.subr.bf16.mxu0 %v1473
    %1482 = vmatpush1.bf16.msra.mxu0 %v1470
    %1483 = vmatprep.subr.bf16.mxu0 0
    %1484 = vmatpush1.bf16.msra.mxu0 0
    %1485 = vmatprep.subr.bf16.mxu0 0
    %1486 = vmatpush1.bf16.msra.mxu0 0
    %1487 = vmatprep.subr.bf16.mxu0 0
    %1488 = vmatpush1.bf16.msra.mxu0 0
    %1489 = vmatprep.subr.bf16.mxu0 0
    %1490 = vmatpush1.bf16.msra.mxu0 0
    %1491 = vmatprep.subr.bf16.mxu0 0
    %1492 = vmatpush1.bf16.msra.mxu0 0
    %1493 = vmatprep.subr.bf16.mxu0 0
    %1494 = vmatpush1.bf16.msra.mxu0 0
    %1495 = vmatprep.subr.bf16.mxu0 0
    %1496 = vmatpush1.bf16.msra.mxu0 0
    %1497 = vmatprep.subr.bf16.mxu0 0
    %1498 = vmatpush1.bf16.msra.mxu0 0
    %1499 = vmatprep.subr.bf16.mxu0 0
    %1500 = vmatpush1.bf16.msra.mxu0 0
    %1501 = vmatprep.subr.bf16.mxu0 0
    %1502 = vmatpush1.bf16.msra.mxu0 0
    %1503 = vmatprep.subr.bf16.mxu0 0
    %1504 = vmatpush1.bf16.msra.mxu0 0
    %1505 = vmatprep.subr.bf16.mxu0 0
    %1506 = vmatpush1.bf16.msra.mxu0 0
    %1507 = vmatprep.subr.bf16.mxu0 0
    %1508 = vmatpush1.bf16.msra.mxu0 0
    %1509 = vmatprep.subr.bf16.mxu0 0
    %1510 = vmatpush1.bf16.msra.mxu0 0
    %1511 = vmatprep.subr.bf16.mxu0 0
    %1512 = vmatpush1.bf16.msra.mxu0 0
    %1513 = vmatprep.mubr.bf16.mxu0 0
    %1514 = vmatmul.mubr.bf16.gmra.mrb[0].mxu0 %v1464
    %v1515 = vpop.f32.mrb[0].mxu0
    %v1516 = vadd.f32 0.0, %v1515
    %v1517 = vpop.f32.mrb[0].mxu0
    %v1518 = vadd.f32 0.0, %v1517
    %v1519 = vpop.f32.mrb[0].mxu0
    %v1520 = vadd.f32 0.0, %v1519
    %v1521 = vpop.f32.mrb[0].mxu0
    %v1522 = vadd.f32 0.0, %v1521
    %1523 = vmatprep.mubr.bf16.mxu0 0
    %1524 = vmatmul.mubr.bf16.gmra.mrb[0].mxu0 %v1467
    %v1525 = vpop.f32.mrb[0].mxu0
    %v1526 = vadd.f32 0.0, %v1525
    %v1527 = vpop.f32.mrb[0].mxu0
    %v1528 = vadd.f32 0.0, %v1527
    %v1529 = vpop.f32.mrb[0].mxu0
    %v1530 = vadd.f32 0.0, %v1529
    %v1531 = vpop.f32.mrb[0].mxu0
    %v1532 = vadd.f32 0.0, %v1531
    %1533 = vdwg.mxu0
    %1534 = vmatprep.subr.bf16.mxu0 %v1479
    %1535 = vmatpush1.bf16.msra.mxu0 %v1476
    %1536 = vmatprep.subr.bf16.mxu0 0
    %1537 = vmatpush1.bf16.msra.mxu0 0
    %1538 = vmatprep.subr.bf16.mxu0 0
    %1539 = vmatpush1.bf16.msra.mxu0 0
    %1540 = vmatprep.subr.bf16.mxu0 0
    %1541 = vmatpush1.bf16.msra.mxu0 0
    %1542 = vmatprep.subr.bf16.mxu0 0
    %1543 = vmatpush1.bf16.msra.mxu0 0
    %1544 = vmatprep.subr.bf16.mxu0 0
    %1545 = vmatpush1.bf16.msra.mxu0 0
    %1546 = vmatprep.subr.bf16.mxu0 0
    %1547 = vmatpush1.bf16.msra.mxu0 0
    %1548 = vmatprep.subr.bf16.mxu0 0
    %1549 = vmatpush1.bf16.msra.mxu0 0
    %1550 = vmatprep.subr.bf16.mxu0 0
    %1551 = vmatpush1.bf16.msra.mxu0 0
    %1552 = vmatprep.subr.bf16.mxu0 0
    %1553 = vmatpush1.bf16.msra.mxu0 0
    %1554 = vmatprep.subr.bf16.mxu0 0
    %1555 = vmatpush1.bf16.msra.mxu0 0
    %1556 = vmatprep.subr.bf16.mxu0 0
    %1557 = vmatpush1.bf16.msra.mxu0 0
    %1558 = vmatprep.subr.bf16.mxu0 0
    %1559 = vmatpush1.bf16.msra.mxu0 0
    %1560 = vmatprep.subr.bf16.mxu0 0
    %1561 = vmatpush1.bf16.msra.mxu0 0
    %1562 = vmatprep.subr.bf16.mxu0 0
    %1563 = vmatpush1.bf16.msra.mxu0 0
    %1564 = vmatprep.subr.bf16.mxu0 0
    %1565 = vmatpush1.bf16.msra.mxu0 0
    %1566 = vmatprep.mubr.bf16.mxu0 0
    %1567 = vmatmul.mubr.bf16.gmra.mrb[0].mxu0 %v1464
    %v1568 = vpop.f32.mrb[0].mxu0
    %v1569 = vadd.f32 0.0, %v1568
    %v1570 = vpop.f32.mrb[0].mxu0
    %v1571 = vadd.f32 0.0, %v1570
    %v1572 = vpop.f32.mrb[0].mxu0
    %v1573 = vadd.f32 0.0, %v1572
    %v1574 = vpop.f32.mrb[0].mxu0
    %v1575 = vadd.f32 0.0, %v1574
    %1576 = vmatprep.mubr.bf16.mxu0 0
    %1577 = vmatmul.mubr.bf16.gmra.mrb[0].mxu0 %v1467
    %v1578 = vpop.f32.mrb[0].mxu0
    %v1579 = vadd.f32 0.0, %v1578
    %v1580 = vpop.f32.mrb[0].mxu0
    %v1581 = vadd.f32 0.0, %v1580
    %v1582 = vpop.f32.mrb[0].mxu0
    %v1583 = vadd.f32 0.0, %v1582
    %v1584 = vpop.f32.mrb[0].mxu0
    %v1585 = vadd.f32 0.0, %v1584
    %1586 = vdwg.mxu0
    %v1587 = vadd.f32 %v1389, %v1516
    %v1588 = vadd.f32 %v1390, %v1518
    %v1589 = vadd.f32 %v1391, %v1569
    %v1590 = vadd.f32 %v1392, %v1571
    %v1591 = vadd.f32 %v1393, %v1520
    %v1592 = vadd.f32 %v1394, %v1522
    %v1593 = vadd.f32 %v1395, %v1573
    %v1594 = vadd.f32 %v1396, %v1575
    %v1595 = vadd.f32 %v1397, %v1526
    %v1596 = vadd.f32 %v1398, %v1528
    %v1597 = vadd.f32 %v1399, %v1579
    %v1598 = vadd.f32 %v1400, %v1581
    %v1599 = vadd.f32 %v1401, %v1530
    %v1600 = vadd.f32 %v1402, %v1532
    %v1601 = vadd.f32 %v1403, %v1583
    %v1602 = vadd.f32 %v1404, %v1585
    %1603 = vst [vmem:[#allocation2] sm:$0xff] %v1587
    %1604 = vst [vmem:[#allocation2 + $0x8] sm:$0xff] %v1588
    %1605 = vst [vmem:[#allocation2 + $0x10] sm:$0xff] %v1589
    %1606 = vst [vmem:[#allocation2 + $0x18] sm:$0xff] %v1590
    %1607 = vst [vmem:[#allocation2 + $0x20] sm:$0xff] %v1591
    %1608 = vst [vmem:[#allocation2 + $0x28] sm:$0xff] %v1592
    %1609 = vst [vmem:[#allocation2 + $0x30] sm:$0xff] %v1593
    %1610 = vst [vmem:[#allocation2 + $0x38] sm:$0xff] %v1594
    %1611 = vst [vmem:[#allocation2 + $0x40] sm:$0xff] %v1595
    %1612 = vst [vmem:[#allocation2 + $0x48] sm:$0xff] %v1596
    %1613 = vst [vmem:[#allocation2 + $0x50] sm:$0xff] %v1597
    %1614 = vst [vmem:[#allocation2 + $0x58] sm:$0xff] %v1598
    %1615 = vst [vmem:[#allocation2 + $0x60] sm:$0xff] %v1599
    %1616 = vst [vmem:[#allocation2 + $0x68] sm:$0xff] %v1600
    %1617 = vst [vmem:[#allocation2 + $0x70] sm:$0xff] %v1601
    %1618 = vst [vmem:[#allocation2 + $0x78] sm:$0xff] %v1602
    %v1619 = vld [vmem:[#allocation2] sm:$0xff]
    %v1620 = vld [vmem:[#allocation2 + $0x8] sm:$0xff]
    %v1621 = vld [vmem:[#allocation2 + $0x10] sm:$0xff]
    %v1622 = vld [vmem:[#allocation2 + $0x18] sm:$0xff]
    %v1623 = vld [vmem:[#allocation2 + $0x20] sm:$0xff]
    %v1624 = vld [vmem:[#allocation2 + $0x28] sm:$0xff]
    %v1625 = vld [vmem:[#allocation2 + $0x30] sm:$0xff]
    %v1626 = vld [vmem:[#allocation2 + $0x38] sm:$0xff]
    %v1627 = vld [vmem:[#allocation2 + $0x40] sm:$0xff]
    %v1628 = vld [vmem:[#allocation2 + $0x48] sm:$0xff]
    %v1629 = vld [vmem:[#allocation2 + $0x50] sm:$0xff]
    %v1630 = vld [vmem:[#allocation2 + $0x58] sm:$0xff]
    %v1631 = vld [vmem:[#allocation2 + $0x60] sm:$0xff]
    %v1632 = vld [vmem:[#allocation2 + $0x68] sm:$0xff]
    %v1633 = vld [vmem:[#allocation2 + $0x70] sm:$0xff]
    %v1634 = vld [vmem:[#allocation2 + $0x78] sm:$0xff]
    %s1635 = scalar_lea.vmem %s0, 112
    %v1636 = vld [vmem:[%s1635] sm:$0xf]
    %v1637 = vld [vmem:[%s1635 + $0x4] sm:$0xf]
    %v1638 = vld [vmem:[%s1635 + $0x8] sm:$0xf]
    %v1639 = vld [vmem:[%s1635 + $0xc] sm:$0xf]
    %v1640 = vld [vmem:[%s2] sm:$0xff]
    %v1641 = vld [vmem:[%s2 + $0x8] sm:$0x3]
    %v1646 = vunpack.c.l.b16 %v1636
    %v1647 = vunpack.c.l.b16 %v1637
    %v1648 = vunpack.c.l.b16 %v1638
    %v1649 = vunpack.c.l.b16 %v1639
    %v1650 = vpack.c.b16 %v1647, %v1646
    %v1651 = vpack.c.b16 %v1649, %v1648
    %v1654 = vcombine.high %v1640, %v1640
    %v1656 = vunpack.c.l.s4 1983009808
    %v1657 = vunpack.c.0.s8 %v1656
    %v1658 = vlaneseq
    %v1659 = vshrl.u32 %v1658, 7
    %v1660 = vsub.s32 %v1657, %v1659
    %v1661 = vrot.slane %v1640, %v1660
    %v1663 = vunpack.c.l.s4 1983009808
    %v1664 = vunpack.c.0.s8 %v1663
    %v1665 = vlaneseq
    %v1666 = vshrl.u32 %v1665, 7
    %v1667 = vsub.s32 %v1664, %v1666
    %v1668 = vrot.slane %v1654, %v1667
    %v1669 = vcombine.high %v1661, %v1661
    %v1670 = vcombine.high %v1668, %v1668
    %v1672 = vunpack.c.l.s4 1983009808
    %v1673 = vunpack.c.0.s8 %v1672
    %v1674 = vlaneseq
    %v1675 = vshrl.u32 %v1674, 7
    %v1676 = vsub.s32 %v1673, %v1675
    %v1677 = vrot.slane %v1641, %v1676
    %1678 = vrot.lane.b32.xlu0 %v1661, 110
    %v1679 = vpop.permute.xlu0 %1678
    %1680 = vrot.lane.b32.xlu0 %v1669, 110
    %v1681 = vpop.permute.xlu0 %1680
    %1682 = vrot.lane.b32.xlu0 %v1668, 110
    %v1683 = vpop.permute.xlu0 %1682
    %1684 = vrot.lane.b32.xlu0 %v1670, 110
    %v1685 = vpop.permute.xlu0 %1684
    %1686 = vrot.lane.b32.xlu0 %v1677, 110
    %v1687 = vpop.permute.xlu0 %1686
    %vm1688 = vcmask 900096
    %v1689 = vsel %vm1688, %v1679, %v1681
    %v1690 = vsel %vm1688, %v1681, %v1683
    %v1691 = vsel %vm1688, %v1683, %v1685
    %v1692 = vsel %vm1688, %v1685, %v1687
    %v1694 = vsel %vm81, %v1650, 0
    %v1697 = vsel %vm81, %v1651, 0
    %v1700 = vsel %vm88, %v1689, 0
    %v1703 = vsel %vm88, %v1690, 0
    %v1706 = vsel %vm88, %v1691, 0
    %v1709 = vsel %vm88, %v1692, 0
    %1711 = vmatprep.subr.bf16.mxu0 %v1703
    %1712 = vmatpush1.bf16.msra.mxu0 %v1700
    %1713 = vmatprep.subr.bf16.mxu0 0
    %1714 = vmatpush1.bf16.msra.mxu0 0
    %1715 = vmatprep.subr.bf16.mxu0 0
    %1716 = vmatpush1.bf16.msra.mxu0 0
    %1717 = vmatprep.subr.bf16.mxu0 0
    %1718 = vmatpush1.bf16.msra.mxu0 0
    %1719 = vmatprep.subr.bf16.mxu0 0
    %1720 = vmatpush1.bf16.msra.mxu0 0
    %1721 = vmatprep.subr.bf16.mxu0 0
    %1722 = vmatpush1.bf16.msra.mxu0 0
    %1723 = vmatprep.subr.bf16.mxu0 0
    %1724 = vmatpush1.bf16.msra.mxu0 0
    %1725 = vmatprep.subr.bf16.mxu0 0
    %1726 = vmatpush1.bf16.msra.mxu0 0
    %1727 = vmatprep.subr.bf16.mxu0 0
    %1728 = vmatpush1.bf16.msra.mxu0 0
    %1729 = vmatprep.subr.bf16.mxu0 0
    %1730 = vmatpush1.bf16.msra.mxu0 0
    %1731 = vmatprep.subr.bf16.mxu0 0
    %1732 = vmatpush1.bf16.msra.mxu0 0
    %1733 = vmatprep.subr.bf16.mxu0 0
    %1734 = vmatpush1.bf16.msra.mxu0 0
    %1735 = vmatprep.subr.bf16.mxu0 0
    %1736 = vmatpush1.bf16.msra.mxu0 0
    %1737 = vmatprep.subr.bf16.mxu0 0
    %1738 = vmatpush1.bf16.msra.mxu0 0
    %1739 = vmatprep.subr.bf16.mxu0 0
    %1740 = vmatpush1.bf16.msra.mxu0 0
    %1741 = vmatprep.subr.bf16.mxu0 0
    %1742 = vmatpush1.bf16.msra.mxu0 0
    %1743 = vmatprep.mubr.bf16.mxu0 0
    %1744 = vmatmul.mubr.bf16.gmra.mrb[0].mxu0 %v1694
    %v1745 = vpop.f32.mrb[0].mxu0
    %v1746 = vadd.f32 0.0, %v1745
    %v1747 = vpop.f32.mrb[0].mxu0
    %v1748 = vadd.f32 0.0, %v1747
    %v1749 = vpop.f32.mrb[0].mxu0
    %v1750 = vadd.f32 0.0, %v1749
    %v1751 = vpop.f32.mrb[0].mxu0
    %v1752 = vadd.f32 0.0, %v1751
    %1753 = vmatprep.mubr.bf16.mxu0 0
    %1754 = vmatmul.mubr.bf16.gmra.mrb[0].mxu0 %v1697
    %v1755 = vpop.f32.mrb[0].mxu0
    %v1756 = vadd.f32 0.0, %v1755
    %v1757 = vpop.f32.mrb[0].mxu0
    %v1758 = vadd.f32 0.0, %v1757
    %v1759 = vpop.f32.mrb[0].mxu0
    %v1760 = vadd.f32 0.0, %v1759
    %v1761 = vpop.f32.mrb[0].mxu0
    %v1762 = vadd.f32 0.0, %v1761
    %1763 = vdwg.mxu0
    %1764 = vmatprep.subr.bf16.mxu0 %v1709
    %1765 = vmatpush1.bf16.msra.mxu0 %v1706
    %1766 = vmatprep.subr.bf16.mxu0 0
    %1767 = vmatpush1.bf16.msra.mxu0 0
    %1768 = vmatprep.subr.bf16.mxu0 0
    %1769 = vmatpush1.bf16.msra.mxu0 0
    %1770 = vmatprep.subr.bf16.mxu0 0
    %1771 = vmatpush1.bf16.msra.mxu0 0
    %1772 = vmatprep.subr.bf16.mxu0 0
    %1773 = vmatpush1.bf16.msra.mxu0 0
    %1774 = vmatprep.subr.bf16.mxu0 0
    %1775 = vmatpush1.bf16.msra.mxu0 0
    %1776 = vmatprep.subr.bf16.mxu0 0
    %1777 = vmatpush1.bf16.msra.mxu0 0
    %1778 = vmatprep.subr.bf16.mxu0 0
    %1779 = vmatpush1.bf16.msra.mxu0 0
    %1780 = vmatprep.subr.bf16.mxu0 0
    %1781 = vmatpush1.bf16.msra.mxu0 0
    %1782 = vmatprep.subr.bf16.mxu0 0
    %1783 = vmatpush1.bf16.msra.mxu0 0
    %1784 = vmatprep.subr.bf16.mxu0 0
    %1785 = vmatpush1.bf16.msra.mxu0 0
    %1786 = vmatprep.subr.bf16.mxu0 0
    %1787 = vmatpush1.bf16.msra.mxu0 0
    %1788 = vmatprep.subr.bf16.mxu0 0
    %1789 = vmatpush1.bf16.msra.mxu0 0
    %1790 = vmatprep.subr.bf16.mxu0 0
    %1791 = vmatpush1.bf16.msra.mxu0 0
    %1792 = vmatprep.subr.bf16.mxu0 0
    %1793 = vmatpush1.bf16.msra.mxu0 0
    %1794 = vmatprep.subr.bf16.mxu0 0
    %1795 = vmatpush1.bf16.msra.mxu0 0
    %1796 = vmatprep.mubr.bf16.mxu0 0
    %1797 = vmatmul.mubr.bf16.gmra.mrb[0].mxu0 %v1694
    %v1798 = vpop.f32.mrb[0].mxu0
    %v1799 = vadd.f32 0.0, %v1798
    %v1800 = vpop.f32.mrb[0].mxu0
    %v1801 = vadd.f32 0.0, %v1800
    %v1802 = vpop.f32.mrb[0].mxu0
    %v1803 = vadd.f32 0.0, %v1802
    %v1804 = vpop.f32.mrb[0].mxu0
    %v1805 = vadd.f32 0.0, %v1804
    %1806 = vmatprep.mubr.bf16.mxu0 0
    %1807 = vmatmul.mubr.bf16.gmra.mrb[0].mxu0 %v1697
    %v1808 = vpop.f32.mrb[0].mxu0
    %v1809 = vadd.f32 0.0, %v1808
    %v1810 = vpop.f32.mrb[0].mxu0
    %v1811 = vadd.f32 0.0, %v1810
    %v1812 = vpop.f32.mrb[0].mxu0
    %v1813 = vadd.f32 0.0, %v1812
    %v1814 = vpop.f32.mrb[0].mxu0
    %v1815 = vadd.f32 0.0, %v1814
    %1816 = vdwg.mxu0
    %v1817 = vadd.f32 %v1619, %v1746
    %v1818 = vadd.f32 %v1620, %v1748
    %v1819 = vadd.f32 %v1621, %v1799
    %v1820 = vadd.f32 %v1622, %v1801
    %v1821 = vadd.f32 %v1623, %v1750
    %v1822 = vadd.f32 %v1624, %v1752
    %v1823 = vadd.f32 %v1625, %v1803
    %v1824 = vadd.f32 %v1626, %v1805
    %v1825 = vadd.f32 %v1627, %v1756
    %v1826 = vadd.f32 %v1628, %v1758
    %v1827 = vadd.f32 %v1629, %v1809
    %v1828 = vadd.f32 %v1630, %v1811
    %v1829 = vadd.f32 %v1631, %v1760
    %v1830 = vadd.f32 %v1632, %v1762
    %v1831 = vadd.f32 %v1633, %v1813
    %v1832 = vadd.f32 %v1634, %v1815
    %1833 = vst [vmem:[#allocation2] sm:$0xff] %v1817
    %1834 = vst [vmem:[#allocation2 + $0x8] sm:$0xff] %v1818
    %1835 = vst [vmem:[#allocation2 + $0x10] sm:$0xff] %v1819
    %1836 = vst [vmem:[#allocation2 + $0x18] sm:$0xff] %v1820
    %1837 = vst [vmem:[#allocation2 + $0x20] sm:$0xff] %v1821
    %1838 = vst [vmem:[#allocation2 + $0x28] sm:$0xff] %v1822
    %1839 = vst [vmem:[#allocation2 + $0x30] sm:$0xff] %v1823
    %1840 = vst [vmem:[#allocation2 + $0x38] sm:$0xff] %v1824
    %1841 = vst [vmem:[#allocation2 + $0x40] sm:$0xff] %v1825
    %1842 = vst [vmem:[#allocation2 + $0x48] sm:$0xff] %v1826
    %1843 = vst [vmem:[#allocation2 + $0x50] sm:$0xff] %v1827
    %1844 = vst [vmem:[#allocation2 + $0x58] sm:$0xff] %v1828
    %1845 = vst [vmem:[#allocation2 + $0x60] sm:$0xff] %v1829
    %1846 = vst [vmem:[#allocation2 + $0x68] sm:$0xff] %v1830
    %1847 = vst [vmem:[#allocation2 + $0x70] sm:$0xff] %v1831
    %1848 = vst [vmem:[#allocation2 + $0x78] sm:$0xff] %v1832
    %v1849 = vld [vmem:[#allocation2] sm:$0xff]
    %v1850 = vld [vmem:[#allocation2 + $0x8] sm:$0xff]
    %v1851 = vld [vmem:[#allocation2 + $0x10] sm:$0xff]
    %v1852 = vld [vmem:[#allocation2 + $0x18] sm:$0xff]
    %v1853 = vld [vmem:[#allocation2 + $0x20] sm:$0xff]
    %v1854 = vld [vmem:[#allocation2 + $0x28] sm:$0xff]
    %v1855 = vld [vmem:[#allocation2 + $0x30] sm:$0xff]
    %v1856 = vld [vmem:[#allocation2 + $0x38] sm:$0xff]
    %v1857 = vld [vmem:[#allocation2 + $0x40] sm:$0xff]
    %v1858 = vld [vmem:[#allocation2 + $0x48] sm:$0xff]
    %v1859 = vld [vmem:[#allocation2 + $0x50] sm:$0xff]
    %v1860 = vld [vmem:[#allocation2 + $0x58] sm:$0xff]
    %v1861 = vld [vmem:[#allocation2 + $0x60] sm:$0xff]
    %v1862 = vld [vmem:[#allocation2 + $0x68] sm:$0xff]
    %v1863 = vld [vmem:[#allocation2 + $0x70] sm:$0xff]
    %v1864 = vld [vmem:[#allocation2 + $0x78] sm:$0xff]
    %s1865 = scalar_lea.vmem %s0, 128
    %v1866 = vld [vmem:[%s1865] sm:$0xf]
    %v1867 = vld [vmem:[%s1865 + $0x4] sm:$0xf]
    %v1868 = vld [vmem:[%s1865 + $0x8] sm:$0xf]
    %v1869 = vld [vmem:[%s1865 + $0xc] sm:$0xf]
    %v1870 = vld [vmem:[%s2] sm:$0xff]
    %v1871 = vld [vmem:[%s2 + $0x8] sm:$0x3]
    %v1876 = vunpack.c.l.b16 %v1866
    %v1877 = vunpack.c.l.b16 %v1867
    %v1878 = vunpack.c.l.b16 %v1868
    %v1879 = vunpack.c.l.b16 %v1869
    %v1880 = vpack.c.b16 %v1877, %v1876
    %v1881 = vpack.c.b16 %v1879, %v1878
    %v1884 = vcombine.high %v1870, %v1870
    %v1886 = vunpack.c.l.s4 1983009808
    %v1887 = vunpack.c.0.s8 %v1886
    %v1888 = vlaneseq
    %v1889 = vshrl.u32 %v1888, 7
    %v1890 = vsub.s32 %v1887, %v1889
    %v1891 = vrot.slane %v1870, %v1890
    %v1893 = vunpack.c.l.s4 1983009808
    %v1894 = vunpack.c.0.s8 %v1893
    %v1895 = vlaneseq
    %v1896 = vshrl.u32 %v1895, 7
    %v1897 = vsub.s32 %v1894, %v1896
    %v1898 = vrot.slane %v1884, %v1897
    %v1899 = vcombine.high %v1891, %v1891
    %v1900 = vcombine.high %v1898, %v1898
    %v1902 = vunpack.c.l.s4 1983009808
    %v1903 = vunpack.c.0.s8 %v1902
    %v1904 = vlaneseq
    %v1905 = vshrl.u32 %v1904, 7
    %v1906 = vsub.s32 %v1903, %v1905
    %v1907 = vrot.slane %v1871, %v1906
    %1908 = vrot.lane.b32.xlu0 %v1891, 109
    %v1909 = vpop.permute.xlu0 %1908
    %1910 = vrot.lane.b32.xlu0 %v1899, 109
    %v1911 = vpop.permute.xlu0 %1910
    %1912 = vrot.lane.b32.xlu0 %v1898, 109
    %v1913 = vpop.permute.xlu0 %1912
    %1914 = vrot.lane.b32.xlu0 %v1900, 109
    %v1915 = vpop.permute.xlu0 %1914
    %1916 = vrot.lane.b32.xlu0 %v1907, 109
    %v1917 = vpop.permute.xlu0 %1916
    %vm1918 = vcmask 891904
    %v1919 = vsel %vm1918, %v1909, %v1911
    %v1920 = vsel %vm1918, %v1911, %v1913
    %v1921 = vsel %vm1918, %v1913, %v1915
    %v1922 = vsel %vm1918, %v1915, %v1917
    %v1924 = vsel %vm81, %v1880, 0
    %v1927 = vsel %vm81, %v1881, 0
    %v1930 = vsel %vm88, %v1919, 0
    %v1933 = vsel %vm88, %v1920, 0
    %v1936 = vsel %vm88, %v1921, 0
    %v1939 = vsel %vm88, %v1922, 0
    %1941 = vmatprep.subr.bf16.mxu0 %v1933
    %1942 = vmatpush1.bf16.msra.mxu0 %v1930
    %1943 = vmatprep.subr.bf16.mxu0 0
    %1944 = vmatpush1.bf16.msra.mxu0 0
    %1945 = vmatprep.subr.bf16.mxu0 0
    %1946 = vmatpush1.bf16.msra.mxu0 0
    %1947 = vmatprep.subr.bf16.mxu0 0
    %1948 = vmatpush1.bf16.msra.mxu0 0
    %1949 = vmatprep.subr.bf16.mxu0 0
    %1950 = vmatpush1.bf16.msra.mxu0 0
    %1951 = vmatprep.subr.bf16.mxu0 0
    %1952 = vmatpush1.bf16.msra.mxu0 0
    %1953 = vmatprep.subr.bf16.mxu0 0
    %1954 = vmatpush1.bf16.msra.mxu0 0
    %1955 = vmatprep.subr.bf16.mxu0 0
    %1956 = vmatpush1.bf16.msra.mxu0 0
    %1957 = vmatprep.subr.bf16.mxu0 0
    %1958 = vmatpush1.bf16.msra.mxu0 0
    %1959 = vmatprep.subr.bf16.mxu0 0
    %1960 = vmatpush1.bf16.msra.mxu0 0
    %1961 = vmatprep.subr.bf16.mxu0 0
    %1962 = vmatpush1.bf16.msra.mxu0 0
    %1963 = vmatprep.subr.bf16.mxu0 0
    %1964 = vmatpush1.bf16.msra.mxu0 0
    %1965 = vmatprep.subr.bf16.mxu0 0
    %1966 = vmatpush1.bf16.msra.mxu0 0
    %1967 = vmatprep.subr.bf16.mxu0 0
    %1968 = vmatpush1.bf16.msra.mxu0 0
    %1969 = vmatprep.subr.bf16.mxu0 0
    %1970 = vmatpush1.bf16.msra.mxu0 0
    %1971 = vmatprep.subr.bf16.mxu0 0
    %1972 = vmatpush1.bf16.msra.mxu0 0
    %1973 = vmatprep.mubr.bf16.mxu0 0
    %1974 = vmatmul.mubr.bf16.gmra.mrb[0].mxu0 %v1924
    %v1975 = vpop.f32.mrb[0].mxu0
    %v1976 = vadd.f32 0.0, %v1975
    %v1977 = vpop.f32.mrb[0].mxu0
    %v1978 = vadd.f32 0.0, %v1977
    %v1979 = vpop.f32.mrb[0].mxu0
    %v1980 = vadd.f32 0.0, %v1979
    %v1981 = vpop.f32.mrb[0].mxu0
    %v1982 = vadd.f32 0.0, %v1981
    %1983 = vmatprep.mubr.bf16.mxu0 0
    %1984 = vmatmul.mubr.bf16.gmra.mrb[0].mxu0 %v1927
    %v1985 = vpop.f32.mrb[0].mxu0
    %v1986 = vadd.f32 0.0, %v1985
    %v1987 = vpop.f32.mrb[0].mxu0
    %v1988 = vadd.f32 0.0, %v1987
    %v1989 = vpop.f32.mrb[0].mxu0
    %v1990 = vadd.f32 0.0, %v1989
    %v1991 = vpop.f32.mrb[0].mxu0
    %v1992 = vadd.f32 0.0, %v1991
    %1993 = vdwg.mxu0
    %1994 = vmatprep.subr.bf16.mxu0 %v1939
    %1995 = vmatpush1.bf16.msra.mxu0 %v1936
    %1996 = vmatprep.subr.bf16.mxu0 0
    %1997 = vmatpush1.bf16.msra.mxu0 0
    %1998 = vmatprep.subr.bf16.mxu0 0
    %1999 = vmatpush1.bf16.msra.mxu0 0
    %2000 = vmatprep.subr.bf16.mxu0 0
    %2001 = vmatpush1.bf16.msra.mxu0 0
    %2002 = vmatprep.subr.bf16.mxu0 0
    %2003 = vmatpush1.bf16.msra.mxu0 0
    %2004 = vmatprep.subr.bf16.mxu0 0
    %2005 = vmatpush1.bf16.msra.mxu0 0
    %2006 = vmatprep.subr.bf16.mxu0 0
    %2007 = vmatpush1.bf16.msra.mxu0 0
    %2008 = vmatprep.subr.bf16.mxu0 0
    %2009 = vmatpush1.bf16.msra.mxu0 0
    %2010 = vmatprep.subr.bf16.mxu0 0
    %2011 = vmatpush1.bf16.msra.mxu0 0
    %2012 = vmatprep.subr.bf16.mxu0 0
    %2013 = vmatpush1.bf16.msra.mxu0 0
    %2014 = vmatprep.subr.bf16.mxu0 0
    %2015 = vmatpush1.bf16.msra.mxu0 0
    %2016 = vmatprep.subr.bf16.mxu0 0
    %2017 = vmatpush1.bf16.msra.mxu0 0
    %2018 = vmatprep.subr.bf16.mxu0 0
    %2019 = vmatpush1.bf16.msra.mxu0 0
    %2020 = vmatprep.subr.bf16.mxu0 0
    %2021 = vmatpush1.bf16.msra.mxu0 0
    %2022 = vmatprep.subr.bf16.mxu0 0
    %2023 = vmatpush1.bf16.msra.mxu0 0
    %2024 = vmatprep.subr.bf16.mxu0 0
    %2025 = vmatpush1.bf16.msra.mxu0 0
    %2026 = vmatprep.mubr.bf16.mxu0 0
    %2027 = vmatmul.mubr.bf16.gmra.mrb[0].mxu0 %v1924
    %v2028 = vpop.f32.mrb[0].mxu0
    %v2029 = vadd.f32 0.0, %v2028
    %v2030 = vpop.f32.mrb[0].mxu0
    %v2031 = vadd.f32 0.0, %v2030
    %v2032 = vpop.f32.mrb[0].mxu0
    %v2033 = vadd.f32 0.0, %v2032
    %v2034 = vpop.f32.mrb[0].mxu0
    %v2035 = vadd.f32 0.0, %v2034
    %2036 = vmatprep.mubr.bf16.mxu0 0
    %2037 = vmatmul.mubr.bf16.gmra.mrb[0].mxu0 %v1927
    %v2038 = vpop.f32.mrb[0].mxu0
    %v2039 = vadd.f32 0.0, %v2038
    %v2040 = vpop.f32.mrb[0].mxu0
    %v2041 = vadd.f32 0.0, %v2040
    %v2042 = vpop.f32.mrb[0].mxu0
    %v2043 = vadd.f32 0.0, %v2042
    %v2044 = vpop.f32.mrb[0].mxu0
    %v2045 = vadd.f32 0.0, %v2044
    %2046 = vdwg.mxu0
    %v2047 = vadd.f32 %v1849, %v1976
    %v2048 = vadd.f32 %v1850, %v1978
    %v2049 = vadd.f32 %v1851, %v2029
    %v2050 = vadd.f32 %v1852, %v2031
    %v2051 = vadd.f32 %v1853, %v1980
    %v2052 = vadd.f32 %v1854, %v1982
    %v2053 = vadd.f32 %v1855, %v2033
    %v2054 = vadd.f32 %v1856, %v2035
    %v2055 = vadd.f32 %v1857, %v1986
    %v2056 = vadd.f32 %v1858, %v1988
    %v2057 = vadd.f32 %v1859, %v2039
    %v2058 = vadd.f32 %v1860, %v2041
    %v2059 = vadd.f32 %v1861, %v1990
    %v2060 = vadd.f32 %v1862, %v1992
    %v2061 = vadd.f32 %v1863, %v2043
    %v2062 = vadd.f32 %v1864, %v2045
    %2063 = vst [vmem:[#allocation2] sm:$0xff] %v2047
    %2064 = vst [vmem:[#allocation2 + $0x8] sm:$0xff] %v2048
    %2065 = vst [vmem:[#allocation2 + $0x10] sm:$0xff] %v2049
    %2066 = vst [vmem:[#allocation2 + $0x18] sm:$0xff] %v2050
    %2067 = vst [vmem:[#allocation2 + $0x20] sm:$0xff] %v2051
    %2068 = vst [vmem:[#allocation2 + $0x28] sm:$0xff] %v2052
    %2069 = vst [vmem:[#allocation2 + $0x30] sm:$0xff] %v2053
    %2070 = vst [vmem:[#allocation2 + $0x38] sm:$0xff] %v2054
    %2071 = vst [vmem:[#allocation2 + $0x40] sm:$0xff] %v2055
    %2072 = vst [vmem:[#allocation2 + $0x48] sm:$0xff] %v2056
    %2073 = vst [vmem:[#allocation2 + $0x50] sm:$0xff] %v2057
    %2074 = vst [vmem:[#allocation2 + $0x58] sm:$0xff] %v2058
    %2075 = vst [vmem:[#allocation2 + $0x60] sm:$0xff] %v2059
    %2076 = vst [vmem:[#allocation2 + $0x68] sm:$0xff] %v2060
    %2077 = vst [vmem:[#allocation2 + $0x70] sm:$0xff] %v2061
    %2078 = vst [vmem:[#allocation2 + $0x78] sm:$0xff] %v2062
    %v2079 = vld [vmem:[#allocation2] sm:$0xff]
    %v2080 = vld [vmem:[#allocation2 + $0x8] sm:$0xff]
    %v2081 = vld [vmem:[#allocation2 + $0x10] sm:$0xff]
    %v2082 = vld [vmem:[#allocation2 + $0x18] sm:$0xff]
    %v2083 = vld [vmem:[#allocation2 + $0x20] sm:$0xff]
    %v2084 = vld [vmem:[#allocation2 + $0x28] sm:$0xff]
    %v2085 = vld [vmem:[#allocation2 + $0x30] sm:$0xff]
    %v2086 = vld [vmem:[#allocation2 + $0x38] sm:$0xff]
    %v2087 = vld [vmem:[#allocation2 + $0x40] sm:$0xff]
    %v2088 = vld [vmem:[#allocation2 + $0x48] sm:$0xff]
    %v2089 = vld [vmem:[#allocation2 + $0x50] sm:$0xff]
    %v2090 = vld [vmem:[#allocation2 + $0x58] sm:$0xff]
    %v2091 = vld [vmem:[#allocation2 + $0x60] sm:$0xff]
    %v2092 = vld [vmem:[#allocation2 + $0x68] sm:$0xff]
    %v2093 = vld [vmem:[#allocation2 + $0x70] sm:$0xff]
    %v2094 = vld [vmem:[#allocation2 + $0x78] sm:$0xff]
    %s2095 = scalar_lea.vmem %s0, 144
    %v2096 = vld [vmem:[%s2095] sm:$0xf]
    %v2097 = vld [vmem:[%s2095 + $0x4] sm:$0xf]
    %v2098 = vld [vmem:[%s2095 + $0x8] sm:$0xf]
    %v2099 = vld [vmem:[%s2095 + $0xc] sm:$0xf]
    %v2100 = vld [vmem:[%s2] sm:$0xff]
    %v2101 = vld [vmem:[%s2 + $0x8] sm:$0x3]
    %v2106 = vunpack.c.l.b16 %v2096
    %v2107 = vunpack.c.l.b16 %v2097
    %v2108 = vunpack.c.l.b16 %v2098
    %v2109 = vunpack.c.l.b16 %v2099
    %v2110 = vpack.c.b16 %v2107, %v2106
    %v2111 = vpack.c.b16 %v2109, %v2108
    %v2114 = vcombine.high %v2100, %v2100
    %v2116 = vunpack.c.l.s4 1983009808
    %v2117 = vunpack.c.0.s8 %v2116
    %v2118 = vlaneseq
    %v2119 = vshrl.u32 %v2118, 7
    %v2120 = vsub.s32 %v2117, %v2119
    %v2121 = vrot.slane %v2100, %v2120
    %v2123 = vunpack.c.l.s4 1983009808
    %v2124 = vunpack.c.0.s8 %v2123
    %v2125 = vlaneseq
    %v2126 = vshrl.u32 %v2125, 7
    %v2127 = vsub.s32 %v2124, %v2126
    %v2128 = vrot.slane %v2114, %v2127
    %v2129 = vcombine.high %v2121, %v2121
    %v2130 = vcombine.high %v2128, %v2128
    %v2132 = vunpack.c.l.s4 1983009808
    %v2133 = vunpack.c.0.s8 %v2132
    %v2134 = vlaneseq
    %v2135 = vshrl.u32 %v2134, 7
    %v2136 = vsub.s32 %v2133, %v2135
    %v2137 = vrot.slane %v2101, %v2136
    %2138 = vrot.lane.b32.xlu0 %v2121, 108
    %v2139 = vpop.permute.xlu0 %2138
    %2140 = vrot.lane.b32.xlu0 %v2129, 108
    %v2141 = vpop.permute.xlu0 %2140
    %2142 = vrot.lane.b32.xlu0 %v2128, 108
    %v2143 = vpop.permute.xlu0 %2142
    %2144 = vrot.lane.b32.xlu0 %v2130, 108
    %v2145 = vpop.permute.xlu0 %2144
    %2146 = vrot.lane.b32.xlu0 %v2137, 108
    %v2147 = vpop.permute.xlu0 %2146
    %vm2148 = vcmask 883712
    %v2149 = vsel %vm2148, %v2139, %v2141
    %v2150 = vsel %vm2148, %v2141, %v2143
    %v2151 = vsel %vm2148, %v2143, %v2145
    %v2152 = vsel %vm2148, %v2145, %v2147
    %v2154 = vsel %vm81, %v2110, 0
    %v2157 = vsel %vm81, %v2111, 0
    %v2160 = vsel %vm88, %v2149, 0
    %v2163 = vsel %vm88, %v2150, 0
    %v2166 = vsel %vm88, %v2151, 0
    %v2169 = vsel %vm88, %v2152, 0
    %2171 = vmatprep.subr.bf16.mxu0 %v2163
    %2172 = vmatpush1.bf16.msra.mxu0 %v2160
    %2173 = vmatprep.subr.bf16.mxu0 0
    %2174 = vmatpush1.bf16.msra.mxu0 0
    %2175 = vmatprep.subr.bf16.mxu0 0
    %2176 = vmatpush1.bf16.msra.mxu0 0
    %2177 = vmatprep.subr.bf16.mxu0 0
    %2178 = vmatpush1.bf16.msra.mxu0 0
    %2179 = vmatprep.subr.bf16.mxu0 0
    %2180 = vmatpush1.bf16.msra.mxu0 0
    %2181 = vmatprep.subr.bf16.mxu0 0
    %2182 = vmatpush1.bf16.msra.mxu0 0
    %2183 = vmatprep.subr.bf16.mxu0 0
    %2184 = vmatpush1.bf16.msra.mxu0 0
    %2185 = vmatprep.subr.bf16.mxu0 0
    %2186 = vmatpush1.bf16.msra.mxu0 0
    %2187 = vmatprep.subr.bf16.mxu0 0
    %2188 = vmatpush1.bf16.msra.mxu0 0
    %2189 = vmatprep.subr.bf16.mxu0 0
    %2190 = vmatpush1.bf16.msra.mxu0 0
    %2191 = vmatprep.subr.bf16.mxu0 0
    %2192 = vmatpush1.bf16.msra.mxu0 0
    %2193 = vmatprep.subr.bf16.mxu0 0
    %2194 = vmatpush1.bf16.msra.mxu0 0
    %2195 = vmatprep.subr.bf16.mxu0 0
    %2196 = vmatpush1.bf16.msra.mxu0 0
    %2197 = vmatprep.subr.bf16.mxu0 0
    %2198 = vmatpush1.bf16.msra.mxu0 0
    %2199 = vmatprep.subr.bf16.mxu0 0
    %2200 = vmatpush1.bf16.msra.mxu0 0
    %2201 = vmatprep.subr.bf16.mxu0 0
    %2202 = vmatpush1.bf16.msra.mxu0 0
    %2203 = vmatprep.mubr.bf16.mxu0 0
    %2204 = vmatmul.mubr.bf16.gmra.mrb[0].mxu0 %v2154
    %v2205 = vpop.f32.mrb[0].mxu0
    %v2206 = vadd.f32 0.0, %v2205
    %v2207 = vpop.f32.mrb[0].mxu0
    %v2208 = vadd.f32 0.0, %v2207
    %v2209 = vpop.f32.mrb[0].mxu0
    %v2210 = vadd.f32 0.0, %v2209
    %v2211 = vpop.f32.mrb[0].mxu0
    %v2212 = vadd.f32 0.0, %v2211
    %2213 = vmatprep.mubr.bf16.mxu0 0
    %2214 = vmatmul.mubr.bf16.gmra.mrb[0].mxu0 %v2157
    %v2215 = vpop.f32.mrb[0].mxu0
    %v2216 = vadd.f32 0.0, %v2215
    %v2217 = vpop.f32.mrb[0].mxu0
    %v2218 = vadd.f32 0.0, %v2217
    %v2219 = vpop.f32.mrb[0].mxu0
    %v2220 = vadd.f32 0.0, %v2219
    %v2221 = vpop.f32.mrb[0].mxu0
    %v2222 = vadd.f32 0.0, %v2221
    %2223 = vdwg.mxu0
    %2224 = vmatprep.subr.bf16.mxu0 %v2169
    %2225 = vmatpush1.bf16.msra.mxu0 %v2166
    %2226 = vmatprep.subr.bf16.mxu0 0
    %2227 = vmatpush1.bf16.msra.mxu0 0
    %2228 = vmatprep.subr.bf16.mxu0 0
    %2229 = vmatpush1.bf16.msra.mxu0 0
    %2230 = vmatprep.subr.bf16.mxu0 0
    %2231 = vmatpush1.bf16.msra.mxu0 0
    %2232 = vmatprep.subr.bf16.mxu0 0
    %2233 = vmatpush1.bf16.msra.mxu0 0
    %2234 = vmatprep.subr.bf16.mxu0 0
    %2235 = vmatpush1.bf16.msra.mxu0 0
    %2236 = vmatprep.subr.bf16.mxu0 0
    %2237 = vmatpush1.bf16.msra.mxu0 0
    %2238 = vmatprep.subr.bf16.mxu0 0
    %2239 = vmatpush1.bf16.msra.mxu0 0
    %2240 = vmatprep.subr.bf16.mxu0 0
    %2241 = vmatpush1.bf16.msra.mxu0 0
    %2242 = vmatprep.subr.bf16.mxu0 0
    %2243 = vmatpush1.bf16.msra.mxu0 0
    %2244 = vmatprep.subr.bf16.mxu0 0
    %2245 = vmatpush1.bf16.msra.mxu0 0
    %2246 = vmatprep.subr.bf16.mxu0 0
    %2247 = vmatpush1.bf16.msra.mxu0 0
    %2248 = vmatprep.subr.bf16.mxu0 0
    %2249 = vmatpush1.bf16.msra.mxu0 0
    %2250 = vmatprep.subr.bf16.mxu0 0
    %2251 = vmatpush1.bf16.msra.mxu0 0
    %2252 = vmatprep.subr.bf16.mxu0 0
    %2253 = vmatpush1.bf16.msra.mxu0 0
    %2254 = vmatprep.subr.bf16.mxu0 0
    %2255 = vmatpush1.bf16.msra.mxu0 0
    %2256 = vmatprep.mubr.bf16.mxu0 0
    %2257 = vmatmul.mubr.bf16.gmra.mrb[0].mxu0 %v2154
    %v2258 = vpop.f32.mrb[0].mxu0
    %v2259 = vadd.f32 0.0, %v2258
    %v2260 = vpop.f32.mrb[0].mxu0
    %v2261 = vadd.f32 0.0, %v2260
    %v2262 = vpop.f32.mrb[0].mxu0
    %v2263 = vadd.f32 0.0, %v2262
    %v2264 = vpop.f32.mrb[0].mxu0
    %v2265 = vadd.f32 0.0, %v2264
    %2266 = vmatprep.mubr.bf16.mxu0 0
    %2267 = vmatmul.mubr.bf16.gmra.mrb[0].mxu0 %v2157
    %v2268 = vpop.f32.mrb[0].mxu0
    %v2269 = vadd.f32 0.0, %v2268
    %v2270 = vpop.f32.mrb[0].mxu0
    %v2271 = vadd.f32 0.0, %v2270
    %v2272 = vpop.f32.mrb[0].mxu0
    %v2273 = vadd.f32 0.0, %v2272
    %v2274 = vpop.f32.mrb[0].mxu0
    %v2275 = vadd.f32 0.0, %v2274
    %2276 = vdwg.mxu0
    %v2277 = vadd.f32 %v2079, %v2206
    %v2278 = vadd.f32 %v2080, %v2208
    %v2279 = vadd.f32 %v2081, %v2259
    %v2280 = vadd.f32 %v2082, %v2261
    %v2281 = vadd.f32 %v2083, %v2210
    %v2282 = vadd.f32 %v2084, %v2212
    %v2283 = vadd.f32 %v2085, %v2263
    %v2284 = vadd.f32 %v2086, %v2265
    %v2285 = vadd.f32 %v2087, %v2216
    %v2286 = vadd.f32 %v2088, %v2218
    %v2287 = vadd.f32 %v2089, %v2269
    %v2288 = vadd.f32 %v2090, %v2271
    %v2289 = vadd.f32 %v2091, %v2220
    %v2290 = vadd.f32 %v2092, %v2222
    %v2291 = vadd.f32 %v2093, %v2273
    %v2292 = vadd.f32 %v2094, %v2275
    %2293 = vst [vmem:[#allocation2] sm:$0xff] %v2277
    %2294 = vst [vmem:[#allocation2 + $0x8] sm:$0xff] %v2278
    %2295 = vst [vmem:[#allocation2 + $0x10] sm:$0xff] %v2279
    %2296 = vst [vmem:[#allocation2 + $0x18] sm:$0xff] %v2280
    %2297 = vst [vmem:[#allocation2 + $0x20] sm:$0xff] %v2281
    %2298 = vst [vmem:[#allocation2 + $0x28] sm:$0xff] %v2282
    %2299 = vst [vmem:[#allocation2 + $0x30] sm:$0xff] %v2283
    %2300 = vst [vmem:[#allocation2 + $0x38] sm:$0xff] %v2284
    %2301 = vst [vmem:[#allocation2 + $0x40] sm:$0xff] %v2285
    %2302 = vst [vmem:[#allocation2 + $0x48] sm:$0xff] %v2286
    %2303 = vst [vmem:[#allocation2 + $0x50] sm:$0xff] %v2287
    %2304 = vst [vmem:[#allocation2 + $0x58] sm:$0xff] %v2288
    %2305 = vst [vmem:[#allocation2 + $0x60] sm:$0xff] %v2289
    %2306 = vst [vmem:[#allocation2 + $0x68] sm:$0xff] %v2290
    %2307 = vst [vmem:[#allocation2 + $0x70] sm:$0xff] %v2291
    %2308 = vst [vmem:[#allocation2 + $0x78] sm:$0xff] %v2292
    %v2309 = vld [vmem:[#allocation2] sm:$0xff]
    %v2310 = vld [vmem:[#allocation2 + $0x8] sm:$0xff]
    %v2311 = vld [vmem:[#allocation2 + $0x10] sm:$0xff]
    %v2312 = vld [vmem:[#allocation2 + $0x18] sm:$0xff]
    %v2313 = vld [vmem:[#allocation2 + $0x20] sm:$0xff]
    %v2314 = vld [vmem:[#allocation2 + $0x28] sm:$0xff]
    %v2315 = vld [vmem:[#allocation2 + $0x30] sm:$0xff]
    %v2316 = vld [vmem:[#allocation2 + $0x38] sm:$0xff]
    %v2317 = vld [vmem:[#allocation2 + $0x40] sm:$0xff]
    %v2318 = vld [vmem:[#allocation2 + $0x48] sm:$0xff]
    %v2319 = vld [vmem:[#allocation2 + $0x50] sm:$0xff]
    %v2320 = vld [vmem:[#allocation2 + $0x58] sm:$0xff]
    %v2321 = vld [vmem:[#allocation2 + $0x60] sm:$0xff]
    %v2322 = vld [vmem:[#allocation2 + $0x68] sm:$0xff]
    %v2323 = vld [vmem:[#allocation2 + $0x70] sm:$0xff]
    %v2324 = vld [vmem:[#allocation2 + $0x78] sm:$0xff]
    %s2325 = scalar_lea.vmem %s0, 160
    %v2326 = vld [vmem:[%s2325] sm:$0xf]
    %v2327 = vld [vmem:[%s2325 + $0x4] sm:$0xf]
    %v2328 = vld [vmem:[%s2325 + $0x8] sm:$0xf]
    %v2329 = vld [vmem:[%s2325 + $0xc] sm:$0xf]
    %v2330 = vld [vmem:[%s2] sm:$0xff]
    %v2331 = vld [vmem:[%s2 + $0x8] sm:$0x3]
    %v2336 = vunpack.c.l.b16 %v2326
    %v2337 = vunpack.c.l.b16 %v2327
    %v2338 = vunpack.c.l.b16 %v2328
    %v2339 = vunpack.c.l.b16 %v2329
    %v2340 = vpack.c.b16 %v2337, %v2336
    %v2341 = vpack.c.b16 %v2339, %v2338
    %v2344 = vcombine.high %v2330, %v2330
    %v2346 = vunpack.c.l.s4 1983009808
    %v2347 = vunpack.c.0.s8 %v2346
    %v2348 = vlaneseq
    %v2349 = vshrl.u32 %v2348, 7
    %v2350 = vsub.s32 %v2347, %v2349
    %v2351 = vrot.slane %v2330, %v2350
    %v2353 = vunpack.c.l.s4 1983009808
    %v2354 = vunpack.c.0.s8 %v2353
    %v2355 = vlaneseq
    %v2356 = vshrl.u32 %v2355, 7
    %v2357 = vsub.s32 %v2354, %v2356
    %v2358 = vrot.slane %v2344, %v2357
    %v2359 = vcombine.high %v2351, %v2351
    %v2360 = vcombine.high %v2358, %v2358
    %v2362 = vunpack.c.l.s4 1983009808
    %v2363 = vunpack.c.0.s8 %v2362
    %v2364 = vlaneseq
    %v2365 = vshrl.u32 %v2364, 7
    %v2366 = vsub.s32 %v2363, %v2365
    %v2367 = vrot.slane %v2331, %v2366
    %2368 = vrot.lane.b32.xlu0 %v2351, 96
    %v2369 = vpop.permute.xlu0 %2368
    %2370 = vrot.lane.b32.xlu0 %v2359, 96
    %v2371 = vpop.permute.xlu0 %2370
    %2372 = vrot.lane.b32.xlu0 %v2358, 96
    %v2373 = vpop.permute.xlu0 %2372
    %2374 = vrot.lane.b32.xlu0 %v2360, 96
    %v2375 = vpop.permute.xlu0 %2374
    %2376 = vrot.lane.b32.xlu0 %v2367, 96
    %v2377 = vpop.permute.xlu0 %2376
    %vm2378 = vcmask 785408
    %v2379 = vsel %vm2378, %v2369, %v2371
    %v2380 = vsel %vm2378, %v2371, %v2373
    %v2381 = vsel %vm2378, %v2373, %v2375
    %v2382 = vsel %vm2378, %v2375, %v2377
    %v2384 = vsel %vm81, %v2340, 0
    %v2387 = vsel %vm81, %v2341, 0
    %v2390 = vsel %vm88, %v2379, 0
    %v2393 = vsel %vm88, %v2380, 0
    %v2396 = vsel %vm88, %v2381, 0
    %v2399 = vsel %vm88, %v2382, 0
    %2401 = vmatprep.subr.bf16.mxu0 %v2393
    %2402 = vmatpush1.bf16.msra.mxu0 %v2390
    %2403 = vmatprep.subr.bf16.mxu0 0
    %2404 = vmatpush1.bf16.msra.mxu0 0
    %2405 = vmatprep.subr.bf16.mxu0 0
    %2406 = vmatpush1.bf16.msra.mxu0 0
    %2407 = vmatprep.subr.bf16.mxu0 0
    %2408 = vmatpush1.bf16.msra.mxu0 0
    %2409 = vmatprep.subr.bf16.mxu0 0
    %2410 = vmatpush1.bf16.msra.mxu0 0
    %2411 = vmatprep.subr.bf16.mxu0 0
    %2412 = vmatpush1.bf16.msra.mxu0 0
    %2413 = vmatprep.subr.bf16.mxu0 0
    %2414 = vmatpush1.bf16.msra.mxu0 0
    %2415 = vmatprep.subr.bf16.mxu0 0
    %2416 = vmatpush1.bf16.msra.mxu0 0
    %2417 = vmatprep.subr.bf16.mxu0 0
    %2418 = vmatpush1.bf16.msra.mxu0 0
    %2419 = vmatprep.subr.bf16.mxu0 0
    %2420 = vmatpush1.bf16.msra.mxu0 0
    %2421 = vmatprep.subr.bf16.mxu0 0
    %2422 = vmatpush1.bf16.msra.mxu0 0
    %2423 = vmatprep.subr.bf16.mxu0 0
    %2424 = vmatpush1.bf16.msra.mxu0 0
    %2425 = vmatprep.subr.bf16.mxu0 0
    %2426 = vmatpush1.bf16.msra.mxu0 0
    %2427 = vmatprep.subr.bf16.mxu0 0
    %2428 = vmatpush1.bf16.msra.mxu0 0
    %2429 = vmatprep.subr.bf16.mxu0 0
    %2430 = vmatpush1.bf16.msra.mxu0 0
    %2431 = vmatprep.subr.bf16.mxu0 0
    %2432 = vmatpush1.bf16.msra.mxu0 0
    %2433 = vmatprep.mubr.bf16.mxu0 0
    %2434 = vmatmul.mubr.bf16.gmra.mrb[0].mxu0 %v2384
    %v2435 = vpop.f32.mrb[0].mxu0
    %v2436 = vadd.f32 0.0, %v2435
    %v2437 = vpop.f32.mrb[0].mxu0
    %v2438 = vadd.f32 0.0, %v2437
    %v2439 = vpop.f32.mrb[0].mxu0
    %v2440 = vadd.f32 0.0, %v2439
    %v2441 = vpop.f32.mrb[0].mxu0
    %v2442 = vadd.f32 0.0, %v2441
    %2443 = vmatprep.mubr.bf16.mxu0 0
    %2444 = vmatmul.mubr.bf16.gmra.mrb[0].mxu0 %v2387
    %v2445 = vpop.f32.mrb[0].mxu0
    %v2446 = vadd.f32 0.0, %v2445
    %v2447 = vpop.f32.mrb[0].mxu0
    %v2448 = vadd.f32 0.0, %v2447
    %v2449 = vpop.f32.mrb[0].mxu0
    %v2450 = vadd.f32 0.0, %v2449
    %v2451 = vpop.f32.mrb[0].mxu0
    %v2452 = vadd.f32 0.0, %v2451
    %2453 = vdwg.mxu0
    %2454 = vmatprep.subr.bf16.mxu0 %v2399
    %2455 = vmatpush1.bf16.msra.mxu0 %v2396
    %2456 = vmatprep.subr.bf16.mxu0 0
    %2457 = vmatpush1.bf16.msra.mxu0 0
    %2458 = vmatprep.subr.bf16.mxu0 0
    %2459 = vmatpush1.bf16.msra.mxu0 0
    %2460 = vmatprep.subr.bf16.mxu0 0
    %2461 = vmatpush1.bf16.msra.mxu0 0
    %2462 = vmatprep.subr.bf16.mxu0 0
    %2463 = vmatpush1.bf16.msra.mxu0 0
    %2464 = vmatprep.subr.bf16.mxu0 0
    %2465 = vmatpush1.bf16.msra.mxu0 0
    %2466 = vmatprep.subr.bf16.mxu0 0
    %2467 = vmatpush1.bf16.msra.mxu0 0
    %2468 = vmatprep.subr.bf16.mxu0 0
    %2469 = vmatpush1.bf16.msra.mxu0 0
    %2470 = vmatprep.subr.bf16.mxu0 0
    %2471 = vmatpush1.bf16.msra.mxu0 0
    %2472 = vmatprep.subr.bf16.mxu0 0
    %2473 = vmatpush1.bf16.msra.mxu0 0
    %2474 = vmatprep.subr.bf16.mxu0 0
    %2475 = vmatpush1.bf16.msra.mxu0 0
    %2476 = vmatprep.subr.bf16.mxu0 0
    %2477 = vmatpush1.bf16.msra.mxu0 0
    %2478 = vmatprep.subr.bf16.mxu0 0
    %2479 = vmatpush1.bf16.msra.mxu0 0
    %2480 = vmatprep.subr.bf16.mxu0 0
    %2481 = vmatpush1.bf16.msra.mxu0 0
    %2482 = vmatprep.subr.bf16.mxu0 0
    %2483 = vmatpush1.bf16.msra.mxu0 0
    %2484 = vmatprep.subr.bf16.mxu0 0
    %2485 = vmatpush1.bf16.msra.mxu0 0
    %2486 = vmatprep.mubr.bf16.mxu0 0
    %2487 = vmatmul.mubr.bf16.gmra.mrb[0].mxu0 %v2384
    %v2488 = vpop.f32.mrb[0].mxu0
    %v2489 = vadd.f32 0.0, %v2488
    %v2490 = vpop.f32.mrb[0].mxu0
    %v2491 = vadd.f32 0.0, %v2490
    %v2492 = vpop.f32.mrb[0].mxu0
    %v2493 = vadd.f32 0.0, %v2492
    %v2494 = vpop.f32.mrb[0].mxu0
    %v2495 = vadd.f32 0.0, %v2494
    %2496 = vmatprep.mubr.bf16.mxu0 0
    %2497 = vmatmul.mubr.bf16.gmra.mrb[0].mxu0 %v2387
    %v2498 = vpop.f32.mrb[0].mxu0
    %v2499 = vadd.f32 0.0, %v2498
    %v2500 = vpop.f32.mrb[0].mxu0
    %v2501 = vadd.f32 0.0, %v2500
    %v2502 = vpop.f32.mrb[0].mxu0
    %v2503 = vadd.f32 0.0, %v2502
    %v2504 = vpop.f32.mrb[0].mxu0
    %v2505 = vadd.f32 0.0, %v2504
    %2506 = vdwg.mxu0
    %v2507 = vadd.f32 %v2309, %v2436
    %v2508 = vadd.f32 %v2310, %v2438
    %v2509 = vadd.f32 %v2311, %v2489
    %v2510 = vadd.f32 %v2312, %v2491
    %v2511 = vadd.f32 %v2313, %v2440
    %v2512 = vadd.f32 %v2314, %v2442
    %v2513 = vadd.f32 %v2315, %v2493
    %v2514 = vadd.f32 %v2316, %v2495
    %v2515 = vadd.f32 %v2317, %v2446
    %v2516 = vadd.f32 %v2318, %v2448
    %v2517 = vadd.f32 %v2319, %v2499
    %v2518 = vadd.f32 %v2320, %v2501
    %v2519 = vadd.f32 %v2321, %v2450
    %v2520 = vadd.f32 %v2322, %v2452
    %v2521 = vadd.f32 %v2323, %v2503
    %v2522 = vadd.f32 %v2324, %v2505
    %2523 = vst [vmem:[#allocation2] sm:$0xff] %v2507
    %2524 = vst [vmem:[#allocation2 + $0x8] sm:$0xff] %v2508
    %2525 = vst [vmem:[#allocation2 + $0x10] sm:$0xff] %v2509
    %2526 = vst [vmem:[#allocation2 + $0x18] sm:$0xff] %v2510
    %2527 = vst [vmem:[#allocation2 + $0x20] sm:$0xff] %v2511
    %2528 = vst [vmem:[#allocation2 + $0x28] sm:$0xff] %v2512
    %2529 = vst [vmem:[#allocation2 + $0x30] sm:$0xff] %v2513
    %2530 = vst [vmem:[#allocation2 + $0x38] sm:$0xff] %v2514
    %2531 = vst [vmem:[#allocation2 + $0x40] sm:$0xff] %v2515
    %2532 = vst [vmem:[#allocation2 + $0x48] sm:$0xff] %v2516
    %2533 = vst [vmem:[#allocation2 + $0x50] sm:$0xff] %v2517
    %2534 = vst [vmem:[#allocation2 + $0x58] sm:$0xff] %v2518
    %2535 = vst [vmem:[#allocation2 + $0x60] sm:$0xff] %v2519
    %2536 = vst [vmem:[#allocation2 + $0x68] sm:$0xff] %v2520
    %2537 = vst [vmem:[#allocation2 + $0x70] sm:$0xff] %v2521
    %2538 = vst [vmem:[#allocation2 + $0x78] sm:$0xff] %v2522
    %v2539 = vld [vmem:[#allocation2] sm:$0xff]
    %v2540 = vld [vmem:[#allocation2 + $0x8] sm:$0xff]
    %v2541 = vld [vmem:[#allocation2 + $0x10] sm:$0xff]
    %v2542 = vld [vmem:[#allocation2 + $0x18] sm:$0xff]
    %v2543 = vld [vmem:[#allocation2 + $0x20] sm:$0xff]
    %v2544 = vld [vmem:[#allocation2 + $0x28] sm:$0xff]
    %v2545 = vld [vmem:[#allocation2 + $0x30] sm:$0xff]
    %v2546 = vld [vmem:[#allocation2 + $0x38] sm:$0xff]
    %v2547 = vld [vmem:[#allocation2 + $0x40] sm:$0xff]
    %v2548 = vld [vmem:[#allocation2 + $0x48] sm:$0xff]
    %v2549 = vld [vmem:[#allocation2 + $0x50] sm:$0xff]
    %v2550 = vld [vmem:[#allocation2 + $0x58] sm:$0xff]
    %v2551 = vld [vmem:[#allocation2 + $0x60] sm:$0xff]
    %v2552 = vld [vmem:[#allocation2 + $0x68] sm:$0xff]
    %v2553 = vld [vmem:[#allocation2 + $0x70] sm:$0xff]
    %v2554 = vld [vmem:[#allocation2 + $0x78] sm:$0xff]
    %s2555 = scalar_lea.vmem %s0, 176
    %v2556 = vld [vmem:[%s2555] sm:$0xf]
    %v2557 = vld [vmem:[%s2555 + $0x4] sm:$0xf]
    %v2558 = vld [vmem:[%s2555 + $0x8] sm:$0xf]
    %v2559 = vld [vmem:[%s2555 + $0xc] sm:$0xf]
    %v2560 = vld [vmem:[%s2] sm:$0xff]
    %v2561 = vld [vmem:[%s2 + $0x8] sm:$0x3]
    %v2566 = vunpack.c.l.b16 %v2556
    %v2567 = vunpack.c.l.b16 %v2557
    %v2568 = vunpack.c.l.b16 %v2558
    %v2569 = vunpack.c.l.b16 %v2559
    %v2570 = vpack.c.b16 %v2567, %v2566
    %v2571 = vpack.c.b16 %v2569, %v2568
    %v2574 = vcombine.high %v2560, %v2560
    %v2576 = vunpack.c.l.s4 1983009808
    %v2577 = vunpack.c.0.s8 %v2576
    %v2578 = vlaneseq
    %v2579 = vshrl.u32 %v2578, 7
    %v2580 = vsub.s32 %v2577, %v2579
    %v2581 = vrot.slane %v2560, %v2580
    %v2583 = vunpack.c.l.s4 1983009808
    %v2584 = vunpack.c.0.s8 %v2583
    %v2585 = vlaneseq
    %v2586 = vshrl.u32 %v2585, 7
    %v2587 = vsub.s32 %v2584, %v2586
    %v2588 = vrot.slane %v2574, %v2587
    %v2589 = vcombine.high %v2581, %v2581
    %v2590 = vcombine.high %v2588, %v2588
    %v2592 = vunpack.c.l.s4 1983009808
    %v2593 = vunpack.c.0.s8 %v2592
    %v2594 = vlaneseq
    %v2595 = vshrl.u32 %v2594, 7
    %v2596 = vsub.s32 %v2593, %v2595
    %v2597 = vrot.slane %v2561, %v2596
    %2598 = vrot.lane.b32.xlu0 %v2581, 95
    %v2599 = vpop.permute.xlu0 %2598
    %2600 = vrot.lane.b32.xlu0 %v2589, 95
    %v2601 = vpop.permute.xlu0 %2600
    %2602 = vrot.lane.b32.xlu0 %v2588, 95
    %v2603 = vpop.permute.xlu0 %2602
    %2604 = vrot.lane.b32.xlu0 %v2590, 95
    %v2605 = vpop.permute.xlu0 %2604
    %2606 = vrot.lane.b32.xlu0 %v2597, 95
    %v2607 = vpop.permute.xlu0 %2606
    %vm2608 = vcmask 777216
    %v2609 = vsel %vm2608, %v2599, %v2601
    %v2610 = vsel %vm2608, %v2601, %v2603
    %v2611 = vsel %vm2608, %v2603, %v2605
    %v2612 = vsel %vm2608, %v2605, %v2607
    %v2614 = vsel %vm81, %v2570, 0
    %v2617 = vsel %vm81, %v2571, 0
    %v2620 = vsel %vm88, %v2609, 0
    %v2623 = vsel %vm88, %v2610, 0
    %v2626 = vsel %vm88, %v2611, 0
    %v2629 = vsel %vm88, %v2612, 0
    %2631 = vmatprep.subr.bf16.mxu0 %v2623
    %2632 = vmatpush1.bf16.msra.mxu0 %v2620
    %2633 = vmatprep.subr.bf16.mxu0 0
    %2634 = vmatpush1.bf16.msra.mxu0 0
    %2635 = vmatprep.subr.bf16.mxu0 0
    %2636 = vmatpush1.bf16.msra.mxu0 0
    %2637 = vmatprep.subr.bf16.mxu0 0
    %2638 = vmatpush1.bf16.msra.mxu0 0
    %2639 = vmatprep.subr.bf16.mxu0 0
    %2640 = vmatpush1.bf16.msra.mxu0 0
    %2641 = vmatprep.subr.bf16.mxu0 0
    %2642 = vmatpush1.bf16.msra.mxu0 0
    %2643 = vmatprep.subr.bf16.mxu0 0
    %2644 = vmatpush1.bf16.msra.mxu0 0
    %2645 = vmatprep.subr.bf16.mxu0 0
    %2646 = vmatpush1.bf16.msra.mxu0 0
    %2647 = vmatprep.subr.bf16.mxu0 0
    %2648 = vmatpush1.bf16.msra.mxu0 0
    %2649 = vmatprep.subr.bf16.mxu0 0
    %2650 = vmatpush1.bf16.msra.mxu0 0
    %2651 = vmatprep.subr.bf16.mxu0 0
    %2652 = vmatpush1.bf16.msra.mxu0 0
    %2653 = vmatprep.subr.bf16.mxu0 0
    %2654 = vmatpush1.bf16.msra.mxu0 0
    %2655 = vmatprep.subr.bf16.mxu0 0
    %2656 = vmatpush1.bf16.msra.mxu0 0
    %2657 = vmatprep.subr.bf16.mxu0 0
    %2658 = vmatpush1.bf16.msra.mxu0 0
    %2659 = vmatprep.subr.bf16.mxu0 0
    %2660 = vmatpush1.bf16.msra.mxu0 0
    %2661 = vmatprep.subr.bf16.mxu0 0
    %2662 = vmatpush1.bf16.msra.mxu0 0
    %2663 = vmatprep.mubr.bf16.mxu0 0
    %2664 = vmatmul.mubr.bf16.gmra.mrb[0].mxu0 %v2614
    %v2665 = vpop.f32.mrb[0].mxu0
    %v2666 = vadd.f32 0.0, %v2665
    %v2667 = vpop.f32.mrb[0].mxu0
    %v2668 = vadd.f32 0.0, %v2667
    %v2669 = vpop.f32.mrb[0].mxu0
    %v2670 = vadd.f32 0.0, %v2669
    %v2671 = vpop.f32.mrb[0].mxu0
    %v2672 = vadd.f32 0.0, %v2671
    %2673 = vmatprep.mubr.bf16.mxu0 0
    %2674 = vmatmul.mubr.bf16.gmra.mrb[0].mxu0 %v2617
    %v2675 = vpop.f32.mrb[0].mxu0
    %v2676 = vadd.f32 0.0, %v2675
    %v2677 = vpop.f32.mrb[0].mxu0
    %v2678 = vadd.f32 0.0, %v2677
    %v2679 = vpop.f32.mrb[0].mxu0
    %v2680 = vadd.f32 0.0, %v2679
    %v2681 = vpop.f32.mrb[0].mxu0
    %v2682 = vadd.f32 0.0, %v2681
    %2683 = vdwg.mxu0
    %2684 = vmatprep.subr.bf16.mxu0 %v2629
    %2685 = vmatpush1.bf16.msra.mxu0 %v2626
    %2686 = vmatprep.subr.bf16.mxu0 0
    %2687 = vmatpush1.bf16.msra.mxu0 0
    %2688 = vmatprep.subr.bf16.mxu0 0
    %2689 = vmatpush1.bf16.msra.mxu0 0
    %2690 = vmatprep.subr.bf16.mxu0 0
    %2691 = vmatpush1.bf16.msra.mxu0 0
    %2692 = vmatprep.subr.bf16.mxu0 0
    %2693 = vmatpush1.bf16.msra.mxu0 0
    %2694 = vmatprep.subr.bf16.mxu0 0
    %2695 = vmatpush1.bf16.msra.mxu0 0
    %2696 = vmatprep.subr.bf16.mxu0 0
    %2697 = vmatpush1.bf16.msra.mxu0 0
    %2698 = vmatprep.subr.bf16.mxu0 0
    %2699 = vmatpush1.bf16.msra.mxu0 0
    %2700 = vmatprep.subr.bf16.mxu0 0
    %2701 = vmatpush1.bf16.msra.mxu0 0
    %2702 = vmatprep.subr.bf16.mxu0 0
    %2703 = vmatpush1.bf16.msra.mxu0 0
    %2704 = vmatprep.subr.bf16.mxu0 0
    %2705 = vmatpush1.bf16.msra.mxu0 0
    %2706 = vmatprep.subr.bf16.mxu0 0
    %2707 = vmatpush1.bf16.msra.mxu0 0
    %2708 = vmatprep.subr.bf16.mxu0 0
    %2709 = vmatpush1.bf16.msra.mxu0 0
    %2710 = vmatprep.subr.bf16.mxu0 0
    %2711 = vmatpush1.bf16.msra.mxu0 0
    %2712 = vmatprep.subr.bf16.mxu0 0
    %2713 = vmatpush1.bf16.msra.mxu0 0
    %2714 = vmatprep.subr.bf16.mxu0 0
    %2715 = vmatpush1.bf16.msra.mxu0 0
    %2716 = vmatprep.mubr.bf16.mxu0 0
    %2717 = vmatmul.mubr.bf16.gmra.mrb[0].mxu0 %v2614
    %v2718 = vpop.f32.mrb[0].mxu0
    %v2719 = vadd.f32 0.0, %v2718
    %v2720 = vpop.f32.mrb[0].mxu0
    %v2721 = vadd.f32 0.0, %v2720
    %v2722 = vpop.f32.mrb[0].mxu0
    %v2723 = vadd.f32 0.0, %v2722
    %v2724 = vpop.f32.mrb[0].mxu0
    %v2725 = vadd.f32 0.0, %v2724
    %2726 = vmatprep.mubr.bf16.mxu0 0
    %2727 = vmatmul.mubr.bf16.gmra.mrb[0].mxu0 %v2617
    %v2728 = vpop.f32.mrb[0].mxu0
    %v2729 = vadd.f32 0.0, %v2728
    %v2730 = vpop.f32.mrb[0].mxu0
    %v2731 = vadd.f32 0.0, %v2730
    %v2732 = vpop.f32.mrb[0].mxu0
    %v2733 = vadd.f32 0.0, %v2732
    %v2734 = vpop.f32.mrb[0].mxu0
    %v2735 = vadd.f32 0.0, %v2734
    %2736 = vdwg.mxu0
    %v2737 = vadd.f32 %v2539, %v2666
    %v2738 = vadd.f32 %v2540, %v2668
    %v2739 = vadd.f32 %v2541, %v2719
    %v2740 = vadd.f32 %v2542, %v2721
    %v2741 = vadd.f32 %v2543, %v2670
    %v2742 = vadd.f32 %v2544, %v2672
    %v2743 = vadd.f32 %v2545, %v2723
    %v2744 = vadd.f32 %v2546, %v2725
    %v2745 = vadd.f32 %v2547, %v2676
    %v2746 = vadd.f32 %v2548, %v2678
    %v2747 = vadd.f32 %v2549, %v2729
    %v2748 = vadd.f32 %v2550, %v2731
    %v2749 = vadd.f32 %v2551, %v2680
    %v2750 = vadd.f32 %v2552, %v2682
    %v2751 = vadd.f32 %v2553, %v2733
    %v2752 = vadd.f32 %v2554, %v2735
    %2753 = vst [vmem:[#allocation2] sm:$0xff] %v2737
    %2754 = vst [vmem:[#allocation2 + $0x8] sm:$0xff] %v2738
    %2755 = vst [vmem:[#allocation2 + $0x10] sm:$0xff] %v2739
    %2756 = vst [vmem:[#allocation2 + $0x18] sm:$0xff] %v2740
    %2757 = vst [vmem:[#allocation2 + $0x20] sm:$0xff] %v2741
    %2758 = vst [vmem:[#allocation2 + $0x28] sm:$0xff] %v2742
    %2759 = vst [vmem:[#allocation2 + $0x30] sm:$0xff] %v2743
    %2760 = vst [vmem:[#allocation2 + $0x38] sm:$0xff] %v2744
    %2761 = vst [vmem:[#allocation2 + $0x40] sm:$0xff] %v2745
    %2762 = vst [vmem:[#allocation2 + $0x48] sm:$0xff] %v2746
    %2763 = vst [vmem:[#allocation2 + $0x50] sm:$0xff] %v2747
    %2764 = vst [vmem:[#allocation2 + $0x58] sm:$0xff] %v2748
    %2765 = vst [vmem:[#allocation2 + $0x60] sm:$0xff] %v2749
    %2766 = vst [vmem:[#allocation2 + $0x68] sm:$0xff] %v2750
    %2767 = vst [vmem:[#allocation2 + $0x70] sm:$0xff] %v2751
    %2768 = vst [vmem:[#allocation2 + $0x78] sm:$0xff] %v2752
    %v2769 = vld [vmem:[#allocation2] sm:$0xff]
    %v2770 = vld [vmem:[#allocation2 + $0x8] sm:$0xff]
    %v2771 = vld [vmem:[#allocation2 + $0x10] sm:$0xff]
    %v2772 = vld [vmem:[#allocation2 + $0x18] sm:$0xff]
    %v2773 = vld [vmem:[#allocation2 + $0x20] sm:$0xff]
    %v2774 = vld [vmem:[#allocation2 + $0x28] sm:$0xff]
    %v2775 = vld [vmem:[#allocation2 + $0x30] sm:$0xff]
    %v2776 = vld [vmem:[#allocation2 + $0x38] sm:$0xff]
    %v2777 = vld [vmem:[#allocation2 + $0x40] sm:$0xff]
    %v2778 = vld [vmem:[#allocation2 + $0x48] sm:$0xff]
    %v2779 = vld [vmem:[#allocation2 + $0x50] sm:$0xff]
    %v2780 = vld [vmem:[#allocation2 + $0x58] sm:$0xff]
    %v2781 = vld [vmem:[#allocation2 + $0x60] sm:$0xff]
    %v2782 = vld [vmem:[#allocation2 + $0x68] sm:$0xff]
    %v2783 = vld [vmem:[#allocation2 + $0x70] sm:$0xff]
    %v2784 = vld [vmem:[#allocation2 + $0x78] sm:$0xff]
    %s2785 = scalar_lea.vmem %s0, 192
    %v2786 = vld [vmem:[%s2785] sm:$0xf]
    %v2787 = vld [vmem:[%s2785 + $0x4] sm:$0xf]
    %v2788 = vld [vmem:[%s2785 + $0x8] sm:$0xf]
    %v2789 = vld [vmem:[%s2785 + $0xc] sm:$0xf]
    %v2790 = vld [vmem:[%s2] sm:$0xff]
    %v2791 = vld [vmem:[%s2 + $0x8] sm:$0x3]
    %v2796 = vunpack.c.l.b16 %v2786
    %v2797 = vunpack.c.l.b16 %v2787
    %v2798 = vunpack.c.l.b16 %v2788
    %v2799 = vunpack.c.l.b16 %v2789
    %v2800 = vpack.c.b16 %v2797, %v2796
    %v2801 = vpack.c.b16 %v2799, %v2798
    %v2804 = vcombine.high %v2790, %v2790
    %v2806 = vunpack.c.l.s4 1983009808
    %v2807 = vunpack.c.0.s8 %v2806
    %v2808 = vlaneseq
    %v2809 = vshrl.u32 %v2808, 7
    %v2810 = vsub.s32 %v2807, %v2809
    %v2811 = vrot.slane %v2790, %v2810
    %v2813 = vunpack.c.l.s4 1983009808
    %v2814 = vunpack.c.0.s8 %v2813
    %v2815 = vlaneseq
    %v2816 = vshrl.u32 %v2815, 7
    %v2817 = vsub.s32 %v2814, %v2816
    %v2818 = vrot.slane %v2804, %v2817
    %v2819 = vcombine.high %v2811, %v2811
    %v2820 = vcombine.high %v2818, %v2818
    %v2822 = vunpack.c.l.s4 1983009808
    %v2823 = vunpack.c.0.s8 %v2822
    %v2824 = vlaneseq
    %v2825 = vshrl.u32 %v2824, 7
    %v2826 = vsub.s32 %v2823, %v2825
    %v2827 = vrot.slane %v2791, %v2826
    %2828 = vrot.lane.b32.xlu0 %v2811, 94
    %v2829 = vpop.permute.xlu0 %2828
    %2830 = vrot.lane.b32.xlu0 %v2819, 94
    %v2831 = vpop.permute.xlu0 %2830
    %2832 = vrot.lane.b32.xlu0 %v2818, 94
    %v2833 = vpop.permute.xlu0 %2832
    %2834 = vrot.lane.b32.xlu0 %v2820, 94
    %v2835 = vpop.permute.xlu0 %2834
    %2836 = vrot.lane.b32.xlu0 %v2827, 94
    %v2837 = vpop.permute.xlu0 %2836
    %vm2838 = vcmask 769024
    %v2839 = vsel %vm2838, %v2829, %v2831
    %v2840 = vsel %vm2838, %v2831, %v2833
    %v2841 = vsel %vm2838, %v2833, %v2835
    %v2842 = vsel %vm2838, %v2835, %v2837
    %v2844 = vsel %vm81, %v2800, 0
    %v2847 = vsel %vm81, %v2801, 0
    %v2850 = vsel %vm88, %v2839, 0
    %v2853 = vsel %vm88, %v2840, 0
    %v2856 = vsel %vm88, %v2841, 0
    %v2859 = vsel %vm88, %v2842, 0
    %2861 = vmatprep.subr.bf16.mxu0 %v2853
    %2862 = vmatpush1.bf16.msra.mxu0 %v2850
    %2863 = vmatprep.subr.bf16.mxu0 0
    %2864 = vmatpush1.bf16.msra.mxu0 0
    %2865 = vmatprep.subr.bf16.mxu0 0
    %2866 = vmatpush1.bf16.msra.mxu0 0
    %2867 = vmatprep.subr.bf16.mxu0 0
    %2868 = vmatpush1.bf16.msra.mxu0 0
    %2869 = vmatprep.subr.bf16.mxu0 0
    %2870 = vmatpush1.bf16.msra.mxu0 0
    %2871 = vmatprep.subr.bf16.mxu0 0
    %2872 = vmatpush1.bf16.msra.mxu0 0
    %2873 = vmatprep.subr.bf16.mxu0 0
    %2874 = vmatpush1.bf16.msra.mxu0 0
    %2875 = vmatprep.subr.bf16.mxu0 0
    %2876 = vmatpush1.bf16.msra.mxu0 0
    %2877 = vmatprep.subr.bf16.mxu0 0
    %2878 = vmatpush1.bf16.msra.mxu0 0
    %2879 = vmatprep.subr.bf16.mxu0 0
    %2880 = vmatpush1.bf16.msra.mxu0 0
    %2881 = vmatprep.subr.bf16.mxu0 0
    %2882 = vmatpush1.bf16.msra.mxu0 0
    %2883 = vmatprep.subr.bf16.mxu0 0
    %2884 = vmatpush1.bf16.msra.mxu0 0
    %2885 = vmatprep.subr.bf16.mxu0 0
    %2886 = vmatpush1.bf16.msra.mxu0 0
    %2887 = vmatprep.subr.bf16.mxu0 0
    %2888 = vmatpush1.bf16.msra.mxu0 0
    %2889 = vmatprep.subr.bf16.mxu0 0
    %2890 = vmatpush1.bf16.msra.mxu0 0
    %2891 = vmatprep.subr.bf16.mxu0 0
    %2892 = vmatpush1.bf16.msra.mxu0 0
    %2893 = vmatprep.mubr.bf16.mxu0 0
    %2894 = vmatmul.mubr.bf16.gmra.mrb[0].mxu0 %v2844
    %v2895 = vpop.f32.mrb[0].mxu0
    %v2896 = vadd.f32 0.0, %v2895
    %v2897 = vpop.f32.mrb[0].mxu0
    %v2898 = vadd.f32 0.0, %v2897
    %v2899 = vpop.f32.mrb[0].mxu0
    %v2900 = vadd.f32 0.0, %v2899
    %v2901 = vpop.f32.mrb[0].mxu0
    %v2902 = vadd.f32 0.0, %v2901
    %2903 = vmatprep.mubr.bf16.mxu0 0
    %2904 = vmatmul.mubr.bf16.gmra.mrb[0].mxu0 %v2847
    %v2905 = vpop.f32.mrb[0].mxu0
    %v2906 = vadd.f32 0.0, %v2905
    %v2907 = vpop.f32.mrb[0].mxu0
    %v2908 = vadd.f32 0.0, %v2907
    %v2909 = vpop.f32.mrb[0].mxu0
    %v2910 = vadd.f32 0.0, %v2909
    %v2911 = vpop.f32.mrb[0].mxu0
    %v2912 = vadd.f32 0.0, %v2911
    %2913 = vdwg.mxu0
    %2914 = vmatprep.subr.bf16.mxu0 %v2859
    %2915 = vmatpush1.bf16.msra.mxu0 %v2856
    %2916 = vmatprep.subr.bf16.mxu0 0
    %2917 = vmatpush1.bf16.msra.mxu0 0
    %2918 = vmatprep.subr.bf16.mxu0 0
    %2919 = vmatpush1.bf16.msra.mxu0 0
    %2920 = vmatprep.subr.bf16.mxu0 0
    %2921 = vmatpush1.bf16.msra.mxu0 0
    %2922 = vmatprep.subr.bf16.mxu0 0
    %2923 = vmatpush1.bf16.msra.mxu0 0
    %2924 = vmatprep.subr.bf16.mxu0 0
    %2925 = vmatpush1.bf16.msra.mxu0 0
    %2926 = vmatprep.subr.bf16.mxu0 0
    %2927 = vmatpush1.bf16.msra.mxu0 0
    %2928 = vmatprep.subr.bf16.mxu0 0
    %2929 = vmatpush1.bf16.msra.mxu0 0
    %2930 = vmatprep.subr.bf16.mxu0 0
    %2931 = vmatpush1.bf16.msra.mxu0 0
    %2932 = vmatprep.subr.bf16.mxu0 0
    %2933 = vmatpush1.bf16.msra.mxu0 0
    %2934 = vmatprep.subr.bf16.mxu0 0
    %2935 = vmatpush1.bf16.msra.mxu0 0
    %2936 = vmatprep.subr.bf16.mxu0 0
    %2937 = vmatpush1.bf16.msra.mxu0 0
    %2938 = vmatprep.subr.bf16.mxu0 0
    %2939 = vmatpush1.bf16.msra.mxu0 0
    %2940 = vmatprep.subr.bf16.mxu0 0
    %2941 = vmatpush1.bf16.msra.mxu0 0
    %2942 = vmatprep.subr.bf16.mxu0 0
    %2943 = vmatpush1.bf16.msra.mxu0 0
    %2944 = vmatprep.subr.bf16.mxu0 0
    %2945 = vmatpush1.bf16.msra.mxu0 0
    %2946 = vmatprep.mubr.bf16.mxu0 0
    %2947 = vmatmul.mubr.bf16.gmra.mrb[0].mxu0 %v2844
    %v2948 = vpop.f32.mrb[0].mxu0
    %v2949 = vadd.f32 0.0, %v2948
    %v2950 = vpop.f32.mrb[0].mxu0
    %v2951 = vadd.f32 0.0, %v2950
    %v2952 = vpop.f32.mrb[0].mxu0
    %v2953 = vadd.f32 0.0, %v2952
    %v2954 = vpop.f32.mrb[0].mxu0
    %v2955 = vadd.f32 0.0, %v2954
    %2956 = vmatprep.mubr.bf16.mxu0 0
    %2957 = vmatmul.mubr.bf16.gmra.mrb[0].mxu0 %v2847
    %v2958 = vpop.f32.mrb[0].mxu0
    %v2959 = vadd.f32 0.0, %v2958
    %v2960 = vpop.f32.mrb[0].mxu0
    %v2961 = vadd.f32 0.0, %v2960
    %v2962 = vpop.f32.mrb[0].mxu0
    %v2963 = vadd.f32 0.0, %v2962
    %v2964 = vpop.f32.mrb[0].mxu0
    %v2965 = vadd.f32 0.0, %v2964
    %2966 = vdwg.mxu0
    %v2967 = vadd.f32 %v2769, %v2896
    %v2968 = vadd.f32 %v2770, %v2898
    %v2969 = vadd.f32 %v2771, %v2949
    %v2970 = vadd.f32 %v2772, %v2951
    %v2971 = vadd.f32 %v2773, %v2900
    %v2972 = vadd.f32 %v2774, %v2902
    %v2973 = vadd.f32 %v2775, %v2953
    %v2974 = vadd.f32 %v2776, %v2955
    %v2975 = vadd.f32 %v2777, %v2906
    %v2976 = vadd.f32 %v2778, %v2908
    %v2977 = vadd.f32 %v2779, %v2959
    %v2978 = vadd.f32 %v2780, %v2961
    %v2979 = vadd.f32 %v2781, %v2910
    %v2980 = vadd.f32 %v2782, %v2912
    %v2981 = vadd.f32 %v2783, %v2963
    %v2982 = vadd.f32 %v2784, %v2965
    %2983 = vst [vmem:[#allocation2] sm:$0xff] %v2967
    %2984 = vst [vmem:[#allocation2 + $0x8] sm:$0xff] %v2968
    %2985 = vst [vmem:[#allocation2 + $0x10] sm:$0xff] %v2969
    %2986 = vst [vmem:[#allocation2 + $0x18] sm:$0xff] %v2970
    %2987 = vst [vmem:[#allocation2 + $0x20] sm:$0xff] %v2971
    %2988 = vst [vmem:[#allocation2 + $0x28] sm:$0xff] %v2972
    %2989 = vst [vmem:[#allocation2 + $0x30] sm:$0xff] %v2973
    %2990 = vst [vmem:[#allocation2 + $0x38] sm:$0xff] %v2974
    %2991 = vst [vmem:[#allocation2 + $0x40] sm:$0xff] %v2975
    %2992 = vst [vmem:[#allocation2 + $0x48] sm:$0xff] %v2976
    %2993 = vst [vmem:[#allocation2 + $0x50] sm:$0xff] %v2977
    %2994 = vst [vmem:[#allocation2 + $0x58] sm:$0xff] %v2978
    %2995 = vst [vmem:[#allocation2 + $0x60] sm:$0xff] %v2979
    %2996 = vst [vmem:[#allocation2 + $0x68] sm:$0xff] %v2980
    %2997 = vst [vmem:[#allocation2 + $0x70] sm:$0xff] %v2981
    %2998 = vst [vmem:[#allocation2 + $0x78] sm:$0xff] %v2982
    %v2999 = vld [vmem:[#allocation2] sm:$0xff]
    %v3000 = vld [vmem:[#allocation2 + $0x8] sm:$0xff]
    %v3001 = vld [vmem:[#allocation2 + $0x10] sm:$0xff]
    %v3002 = vld [vmem:[#allocation2 + $0x18] sm:$0xff]
    %v3003 = vld [vmem:[#allocation2 + $0x20] sm:$0xff]
    %v3004 = vld [vmem:[#allocation2 + $0x28] sm:$0xff]
    %v3005 = vld [vmem:[#allocation2 + $0x30] sm:$0xff]
    %v3006 = vld [vmem:[#allocation2 + $0x38] sm:$0xff]
    %v3007 = vld [vmem:[#allocation2 + $0x40] sm:$0xff]
    %v3008 = vld [vmem:[#allocation2 + $0x48] sm:$0xff]
    %v3009 = vld [vmem:[#allocation2 + $0x50] sm:$0xff]
    %v3010 = vld [vmem:[#allocation2 + $0x58] sm:$0xff]
    %v3011 = vld [vmem:[#allocation2 + $0x60] sm:$0xff]
    %v3012 = vld [vmem:[#allocation2 + $0x68] sm:$0xff]
    %v3013 = vld [vmem:[#allocation2 + $0x70] sm:$0xff]
    %v3014 = vld [vmem:[#allocation2 + $0x78] sm:$0xff]
    %s3015 = scalar_lea.vmem %s0, 208
    %v3016 = vld [vmem:[%s3015] sm:$0xf]
    %v3017 = vld [vmem:[%s3015 + $0x4] sm:$0xf]
    %v3018 = vld [vmem:[%s3015 + $0x8] sm:$0xf]
    %v3019 = vld [vmem:[%s3015 + $0xc] sm:$0xf]
    %v3020 = vld [vmem:[%s2] sm:$0xff]
    %v3021 = vld [vmem:[%s2 + $0x8] sm:$0x3]
    %v3026 = vunpack.c.l.b16 %v3016
    %v3027 = vunpack.c.l.b16 %v3017
    %v3028 = vunpack.c.l.b16 %v3018
    %v3029 = vunpack.c.l.b16 %v3019
    %v3030 = vpack.c.b16 %v3027, %v3026
    %v3031 = vpack.c.b16 %v3029, %v3028
    %v3034 = vcombine.high %v3020, %v3020
    %v3036 = vunpack.c.l.s4 1983009808
    %v3037 = vunpack.c.0.s8 %v3036
    %v3038 = vlaneseq
    %v3039 = vshrl.u32 %v3038, 7
    %v3040 = vsub.s32 %v3037, %v3039
    %v3041 = vrot.slane %v3020, %v3040
    %v3043 = vunpack.c.l.s4 1983009808
    %v3044 = vunpack.c.0.s8 %v3043
    %v3045 = vlaneseq
    %v3046 = vshrl.u32 %v3045, 7
    %v3047 = vsub.s32 %v3044, %v3046
    %v3048 = vrot.slane %v3034, %v3047
    %v3049 = vcombine.high %v3041, %v3041
    %v3050 = vcombine.high %v3048, %v3048
    %v3052 = vunpack.c.l.s4 1983009808
    %v3053 = vunpack.c.0.s8 %v3052
    %v3054 = vlaneseq
    %v3055 = vshrl.u32 %v3054, 7
    %v3056 = vsub.s32 %v3053, %v3055
    %v3057 = vrot.slane %v3021, %v3056
    %3058 = vrot.lane.b32.xlu0 %v3041, 93
    %v3059 = vpop.permute.xlu0 %3058
    %3060 = vrot.lane.b32.xlu0 %v3049, 93
    %v3061 = vpop.permute.xlu0 %3060
    %3062 = vrot.lane.b32.xlu0 %v3048, 93
    %v3063 = vpop.permute.xlu0 %3062
    %3064 = vrot.lane.b32.xlu0 %v3050, 93
    %v3065 = vpop.permute.xlu0 %3064
    %3066 = vrot.lane.b32.xlu0 %v3057, 93
    %v3067 = vpop.permute.xlu0 %3066
    %vm3068 = vcmask 760832
    %v3069 = vsel %vm3068, %v3059, %v3061
    %v3070 = vsel %vm3068, %v3061, %v3063
    %v3071 = vsel %vm3068, %v3063, %v3065
    %v3072 = vsel %vm3068, %v3065, %v3067
    %v3074 = vsel %vm81, %v3030, 0
    %v3077 = vsel %vm81, %v3031, 0
    %v3080 = vsel %vm88, %v3069, 0
    %v3083 = vsel %vm88, %v3070, 0
    %v3086 = vsel %vm88, %v3071, 0
    %v3089 = vsel %vm88, %v3072, 0
    %3091 = vmatprep.subr.bf16.mxu0 %v3083
    %3092 = vmatpush1.bf16.msra.mxu0 %v3080
    %3093 = vmatprep.subr.bf16.mxu0 0
    %3094 = vmatpush1.bf16.msra.mxu0 0
    %3095 = vmatprep.subr.bf16.mxu0 0
    %3096 = vmatpush1.bf16.msra.mxu0 0
    %3097 = vmatprep.subr.bf16.mxu0 0
    %3098 = vmatpush1.bf16.msra.mxu0 0
    %3099 = vmatprep.subr.bf16.mxu0 0
    %3100 = vmatpush1.bf16.msra.mxu0 0
    %3101 = vmatprep.subr.bf16.mxu0 0
    %3102 = vmatpush1.bf16.msra.mxu0 0
    %3103 = vmatprep.subr.bf16.mxu0 0
    %3104 = vmatpush1.bf16.msra.mxu0 0
    %3105 = vmatprep.subr.bf16.mxu0 0
    %3106 = vmatpush1.bf16.msra.mxu0 0
    %3107 = vmatprep.subr.bf16.mxu0 0
    %3108 = vmatpush1.bf16.msra.mxu0 0
    %3109 = vmatprep.subr.bf16.mxu0 0
    %3110 = vmatpush1.bf16.msra.mxu0 0
    %3111 = vmatprep.subr.bf16.mxu0 0
    %3112 = vmatpush1.bf16.msra.mxu0 0
    %3113 = vmatprep.subr.bf16.mxu0 0
    %3114 = vmatpush1.bf16.msra.mxu0 0
    %3115 = vmatprep.subr.bf16.mxu0 0
    %3116 = vmatpush1.bf16.msra.mxu0 0
    %3117 = vmatprep.subr.bf16.mxu0 0
    %3118 = vmatpush1.bf16.msra.mxu0 0
    %3119 = vmatprep.subr.bf16.mxu0 0
    %3120 = vmatpush1.bf16.msra.mxu0 0
    %3121 = vmatprep.subr.bf16.mxu0 0
    %3122 = vmatpush1.bf16.msra.mxu0 0
    %3123 = vmatprep.mubr.bf16.mxu0 0
    %3124 = vmatmul.mubr.bf16.gmra.mrb[0].mxu0 %v3074
    %v3125 = vpop.f32.mrb[0].mxu0
    %v3126 = vadd.f32 0.0, %v3125
    %v3127 = vpop.f32.mrb[0].mxu0
    %v3128 = vadd.f32 0.0, %v3127
    %v3129 = vpop.f32.mrb[0].mxu0
    %v3130 = vadd.f32 0.0, %v3129
    %v3131 = vpop.f32.mrb[0].mxu0
    %v3132 = vadd.f32 0.0, %v3131
    %3133 = vmatprep.mubr.bf16.mxu0 0
    %3134 = vmatmul.mubr.bf16.gmra.mrb[0].mxu0 %v3077
    %v3135 = vpop.f32.mrb[0].mxu0
    %v3136 = vadd.f32 0.0, %v3135
    %v3137 = vpop.f32.mrb[0].mxu0
    %v3138 = vadd.f32 0.0, %v3137
    %v3139 = vpop.f32.mrb[0].mxu0
    %v3140 = vadd.f32 0.0, %v3139
    %v3141 = vpop.f32.mrb[0].mxu0
    %v3142 = vadd.f32 0.0, %v3141
    %3143 = vdwg.mxu0
    %3144 = vmatprep.subr.bf16.mxu0 %v3089
    %3145 = vmatpush1.bf16.msra.mxu0 %v3086
    %3146 = vmatprep.subr.bf16.mxu0 0
    %3147 = vmatpush1.bf16.msra.mxu0 0
    %3148 = vmatprep.subr.bf16.mxu0 0
    %3149 = vmatpush1.bf16.msra.mxu0 0
    %3150 = vmatprep.subr.bf16.mxu0 0
    %3151 = vmatpush1.bf16.msra.mxu0 0
    %3152 = vmatprep.subr.bf16.mxu0 0
    %3153 = vmatpush1.bf16.msra.mxu0 0
    %3154 = vmatprep.subr.bf16.mxu0 0
    %3155 = vmatpush1.bf16.msra.mxu0 0
    %3156 = vmatprep.subr.bf16.mxu0 0
    %3157 = vmatpush1.bf16.msra.mxu0 0
    %3158 = vmatprep.subr.bf16.mxu0 0
    %3159 = vmatpush1.bf16.msra.mxu0 0
    %3160 = vmatprep.subr.bf16.mxu0 0
    %3161 = vmatpush1.bf16.msra.mxu0 0
    %3162 = vmatprep.subr.bf16.mxu0 0
    %3163 = vmatpush1.bf16.msra.mxu0 0
    %3164 = vmatprep.subr.bf16.mxu0 0
    %3165 = vmatpush1.bf16.msra.mxu0 0
    %3166 = vmatprep.subr.bf16.mxu0 0
    %3167 = vmatpush1.bf16.msra.mxu0 0
    %3168 = vmatprep.subr.bf16.mxu0 0
    %3169 = vmatpush1.bf16.msra.mxu0 0
    %3170 = vmatprep.subr.bf16.mxu0 0
    %3171 = vmatpush1.bf16.msra.mxu0 0
    %3172 = vmatprep.subr.bf16.mxu0 0
    %3173 = vmatpush1.bf16.msra.mxu0 0
    %3174 = vmatprep.subr.bf16.mxu0 0
    %3175 = vmatpush1.bf16.msra.mxu0 0
    %3176 = vmatprep.mubr.bf16.mxu0 0
    %3177 = vmatmul.mubr.bf16.gmra.mrb[0].mxu0 %v3074
    %v3178 = vpop.f32.mrb[0].mxu0
    %v3179 = vadd.f32 0.0, %v3178
    %v3180 = vpop.f32.mrb[0].mxu0
    %v3181 = vadd.f32 0.0, %v3180
    %v3182 = vpop.f32.mrb[0].mxu0
    %v3183 = vadd.f32 0.0, %v3182
    %v3184 = vpop.f32.mrb[0].mxu0
    %v3185 = vadd.f32 0.0, %v3184
    %3186 = vmatprep.mubr.bf16.mxu0 0
    %3187 = vmatmul.mubr.bf16.gmra.mrb[0].mxu0 %v3077
    %v3188 = vpop.f32.mrb[0].mxu0
    %v3189 = vadd.f32 0.0, %v3188
    %v3190 = vpop.f32.mrb[0].mxu0
    %v3191 = vadd.f32 0.0, %v3190
    %v3192 = vpop.f32.mrb[0].mxu0
    %v3193 = vadd.f32 0.0, %v3192
    %v3194 = vpop.f32.mrb[0].mxu0
    %v3195 = vadd.f32 0.0, %v3194
    %3196 = vdwg.mxu0
    %v3197 = vadd.f32 %v2999, %v3126
    %v3198 = vadd.f32 %v3000, %v3128
    %v3199 = vadd.f32 %v3001, %v3179
    %v3200 = vadd.f32 %v3002, %v3181
    %v3201 = vadd.f32 %v3003, %v3130
    %v3202 = vadd.f32 %v3004, %v3132
    %v3203 = vadd.f32 %v3005, %v3183
    %v3204 = vadd.f32 %v3006, %v3185
    %v3205 = vadd.f32 %v3007, %v3136
    %v3206 = vadd.f32 %v3008, %v3138
    %v3207 = vadd.f32 %v3009, %v3189
    %v3208 = vadd.f32 %v3010, %v3191
    %v3209 = vadd.f32 %v3011, %v3140
    %v3210 = vadd.f32 %v3012, %v3142
    %v3211 = vadd.f32 %v3013, %v3193
    %v3212 = vadd.f32 %v3014, %v3195
    %3213 = vst [vmem:[#allocation2] sm:$0xff] %v3197
    %3214 = vst [vmem:[#allocation2 + $0x8] sm:$0xff] %v3198
    %3215 = vst [vmem:[#allocation2 + $0x10] sm:$0xff] %v3199
    %3216 = vst [vmem:[#allocation2 + $0x18] sm:$0xff] %v3200
    %3217 = vst [vmem:[#allocation2 + $0x20] sm:$0xff] %v3201
    %3218 = vst [vmem:[#allocation2 + $0x28] sm:$0xff] %v3202
    %3219 = vst [vmem:[#allocation2 + $0x30] sm:$0xff] %v3203
    %3220 = vst [vmem:[#allocation2 + $0x38] sm:$0xff] %v3204
    %3221 = vst [vmem:[#allocation2 + $0x40] sm:$0xff] %v3205
    %3222 = vst [vmem:[#allocation2 + $0x48] sm:$0xff] %v3206
    %3223 = vst [vmem:[#allocation2 + $0x50] sm:$0xff] %v3207
    %3224 = vst [vmem:[#allocation2 + $0x58] sm:$0xff] %v3208
    %3225 = vst [vmem:[#allocation2 + $0x60] sm:$0xff] %v3209
    %3226 = vst [vmem:[#allocation2 + $0x68] sm:$0xff] %v3210
    %3227 = vst [vmem:[#allocation2 + $0x70] sm:$0xff] %v3211
    %3228 = vst [vmem:[#allocation2 + $0x78] sm:$0xff] %v3212
    %v3229 = vld [vmem:[#allocation2] sm:$0xff]
    %v3230 = vld [vmem:[#allocation2 + $0x8] sm:$0xff]
    %v3231 = vld [vmem:[#allocation2 + $0x10] sm:$0xff]
    %v3232 = vld [vmem:[#allocation2 + $0x18] sm:$0xff]
    %v3233 = vld [vmem:[#allocation2 + $0x20] sm:$0xff]
    %v3234 = vld [vmem:[#allocation2 + $0x28] sm:$0xff]
    %v3235 = vld [vmem:[#allocation2 + $0x30] sm:$0xff]
    %v3236 = vld [vmem:[#allocation2 + $0x38] sm:$0xff]
    %v3237 = vld [vmem:[#allocation2 + $0x40] sm:$0xff]
    %v3238 = vld [vmem:[#allocation2 + $0x48] sm:$0xff]
    %v3239 = vld [vmem:[#allocation2 + $0x50] sm:$0xff]
    %v3240 = vld [vmem:[#allocation2 + $0x58] sm:$0xff]
    %v3241 = vld [vmem:[#allocation2 + $0x60] sm:$0xff]
    %v3242 = vld [vmem:[#allocation2 + $0x68] sm:$0xff]
    %v3243 = vld [vmem:[#allocation2 + $0x70] sm:$0xff]
    %v3244 = vld [vmem:[#allocation2 + $0x78] sm:$0xff]
    %s3245 = scalar_lea.vmem %s0, 224
    %v3246 = vld [vmem:[%s3245] sm:$0xf]
    %v3247 = vld [vmem:[%s3245 + $0x4] sm:$0xf]
    %v3248 = vld [vmem:[%s3245 + $0x8] sm:$0xf]
    %v3249 = vld [vmem:[%s3245 + $0xc] sm:$0xf]
    %v3250 = vld [vmem:[%s2] sm:$0xff]
    %v3251 = vld [vmem:[%s2 + $0x8] sm:$0x3]
    %v3256 = vunpack.c.l.b16 %v3246
    %v3257 = vunpack.c.l.b16 %v3247
    %v3258 = vunpack.c.l.b16 %v3248
    %v3259 = vunpack.c.l.b16 %v3249
    %v3260 = vpack.c.b16 %v3257, %v3256
    %v3261 = vpack.c.b16 %v3259, %v3258
    %v3264 = vcombine.high %v3250, %v3250
    %v3266 = vunpack.c.l.s4 1983009808
    %v3267 = vunpack.c.0.s8 %v3266
    %v3268 = vlaneseq
    %v3269 = vshrl.u32 %v3268, 7
    %v3270 = vsub.s32 %v3267, %v3269
    %v3271 = vrot.slane %v3250, %v3270
    %v3273 = vunpack.c.l.s4 1983009808
    %v3274 = vunpack.c.0.s8 %v3273
    %v3275 = vlaneseq
    %v3276 = vshrl.u32 %v3275, 7
    %v3277 = vsub.s32 %v3274, %v3276
    %v3278 = vrot.slane %v3264, %v3277
    %v3279 = vcombine.high %v3271, %v3271
    %v3280 = vcombine.high %v3278, %v3278
    %v3282 = vunpack.c.l.s4 1983009808
    %v3283 = vunpack.c.0.s8 %v3282
    %v3284 = vlaneseq
    %v3285 = vshrl.u32 %v3284, 7
    %v3286 = vsub.s32 %v3283, %v3285
    %v3287 = vrot.slane %v3251, %v3286
    %3288 = vrot.lane.b32.xlu0 %v3271, 92
    %v3289 = vpop.permute.xlu0 %3288
    %3290 = vrot.lane.b32.xlu0 %v3279, 92
    %v3291 = vpop.permute.xlu0 %3290
    %3292 = vrot.lane.b32.xlu0 %v3278, 92
    %v3293 = vpop.permute.xlu0 %3292
    %3294 = vrot.lane.b32.xlu0 %v3280, 92
    %v3295 = vpop.permute.xlu0 %3294
    %3296 = vrot.lane.b32.xlu0 %v3287, 92
    %v3297 = vpop.permute.xlu0 %3296
    %vm3298 = vcmask 752640
    %v3299 = vsel %vm3298, %v3289, %v3291
    %v3300 = vsel %vm3298, %v3291, %v3293
    %v3301 = vsel %vm3298, %v3293, %v3295
    %v3302 = vsel %vm3298, %v3295, %v3297
    %v3304 = vsel %vm81, %v3260, 0
    %v3307 = vsel %vm81, %v3261, 0
    %v3310 = vsel %vm88, %v3299, 0
    %v3313 = vsel %vm88, %v3300, 0
    %v3316 = vsel %vm88, %v3301, 0
    %v3319 = vsel %vm88, %v3302, 0
    %3321 = vmatprep.subr.bf16.mxu0 %v3313
    %3322 = vmatpush1.bf16.msra.mxu0 %v3310
    %3323 = vmatprep.subr.bf16.mxu0 0
    %3324 = vmatpush1.bf16.msra.mxu0 0
    %3325 = vmatprep.subr.bf16.mxu0 0
    %3326 = vmatpush1.bf16.msra.mxu0 0
    %3327 = vmatprep.subr.bf16.mxu0 0
    %3328 = vmatpush1.bf16.msra.mxu0 0
    %3329 = vmatprep.subr.bf16.mxu0 0
    %3330 = vmatpush1.bf16.msra.mxu0 0
    %3331 = vmatprep.subr.bf16.mxu0 0
    %3332 = vmatpush1.bf16.msra.mxu0 0
    %3333 = vmatprep.subr.bf16.mxu0 0
    %3334 = vmatpush1.bf16.msra.mxu0 0
    %3335 = vmatprep.subr.bf16.mxu0 0
    %3336 = vmatpush1.bf16.msra.mxu0 0
    %3337 = vmatprep.subr.bf16.mxu0 0
    %3338 = vmatpush1.bf16.msra.mxu0 0
    %3339 = vmatprep.subr.bf16.mxu0 0
    %3340 = vmatpush1.bf16.msra.mxu0 0
    %3341 = vmatprep.subr.bf16.mxu0 0
    %3342 = vmatpush1.bf16.msra.mxu0 0
    %3343 = vmatprep.subr.bf16.mxu0 0
    %3344 = vmatpush1.bf16.msra.mxu0 0
    %3345 = vmatprep.subr.bf16.mxu0 0
    %3346 = vmatpush1.bf16.msra.mxu0 0
    %3347 = vmatprep.subr.bf16.mxu0 0
    %3348 = vmatpush1.bf16.msra.mxu0 0
    %3349 = vmatprep.subr.bf16.mxu0 0
    %3350 = vmatpush1.bf16.msra.mxu0 0
    %3351 = vmatprep.subr.bf16.mxu0 0
    %3352 = vmatpush1.bf16.msra.mxu0 0
    %3353 = vmatprep.mubr.bf16.mxu0 0
    %3354 = vmatmul.mubr.bf16.gmra.mrb[0].mxu0 %v3304
    %v3355 = vpop.f32.mrb[0].mxu0
    %v3356 = vadd.f32 0.0, %v3355
    %v3357 = vpop.f32.mrb[0].mxu0
    %v3358 = vadd.f32 0.0, %v3357
    %v3359 = vpop.f32.mrb[0].mxu0
    %v3360 = vadd.f32 0.0, %v3359
    %v3361 = vpop.f32.mrb[0].mxu0
    %v3362 = vadd.f32 0.0, %v3361
    %3363 = vmatprep.mubr.bf16.mxu0 0
    %3364 = vmatmul.mubr.bf16.gmra.mrb[0].mxu0 %v3307
    %v3365 = vpop.f32.mrb[0].mxu0
    %v3366 = vadd.f32 0.0, %v3365
    %v3367 = vpop.f32.mrb[0].mxu0
    %v3368 = vadd.f32 0.0, %v3367
    %v3369 = vpop.f32.mrb[0].mxu0
    %v3370 = vadd.f32 0.0, %v3369
    %v3371 = vpop.f32.mrb[0].mxu0
    %v3372 = vadd.f32 0.0, %v3371
    %3373 = vdwg.mxu0
    %3374 = vmatprep.subr.bf16.mxu0 %v3319
    %3375 = vmatpush1.bf16.msra.mxu0 %v3316
    %3376 = vmatprep.subr.bf16.mxu0 0
    %3377 = vmatpush1.bf16.msra.mxu0 0
    %3378 = vmatprep.subr.bf16.mxu0 0
    %3379 = vmatpush1.bf16.msra.mxu0 0
    %3380 = vmatprep.subr.bf16.mxu0 0
    %3381 = vmatpush1.bf16.msra.mxu0 0
    %3382 = vmatprep.subr.bf16.mxu0 0
    %3383 = vmatpush1.bf16.msra.mxu0 0
    %3384 = vmatprep.subr.bf16.mxu0 0
    %3385 = vmatpush1.bf16.msra.mxu0 0
    %3386 = vmatprep.subr.bf16.mxu0 0
    %3387 = vmatpush1.bf16.msra.mxu0 0
    %3388 = vmatprep.subr.bf16.mxu0 0
    %3389 = vmatpush1.bf16.msra.mxu0 0
    %3390 = vmatprep.subr.bf16.mxu0 0
    %3391 = vmatpush1.bf16.msra.mxu0 0
    %3392 = vmatprep.subr.bf16.mxu0 0
    %3393 = vmatpush1.bf16.msra.mxu0 0
    %3394 = vmatprep.subr.bf16.mxu0 0
    %3395 = vmatpush1.bf16.msra.mxu0 0
    %3396 = vmatprep.subr.bf16.mxu0 0
    %3397 = vmatpush1.bf16.msra.mxu0 0
    %3398 = vmatprep.subr.bf16.mxu0 0
    %3399 = vmatpush1.bf16.msra.mxu0 0
    %3400 = vmatprep.subr.bf16.mxu0 0
    %3401 = vmatpush1.bf16.msra.mxu0 0
    %3402 = vmatprep.subr.bf16.mxu0 0
    %3403 = vmatpush1.bf16.msra.mxu0 0
    %3404 = vmatprep.subr.bf16.mxu0 0
    %3405 = vmatpush1.bf16.msra.mxu0 0
    %3406 = vmatprep.mubr.bf16.mxu0 0
    %3407 = vmatmul.mubr.bf16.gmra.mrb[0].mxu0 %v3304
    %v3408 = vpop.f32.mrb[0].mxu0
    %v3409 = vadd.f32 0.0, %v3408
    %v3410 = vpop.f32.mrb[0].mxu0
    %v3411 = vadd.f32 0.0, %v3410
    %v3412 = vpop.f32.mrb[0].mxu0
    %v3413 = vadd.f32 0.0, %v3412
    %v3414 = vpop.f32.mrb[0].mxu0
    %v3415 = vadd.f32 0.0, %v3414
    %3416 = vmatprep.mubr.bf16.mxu0 0
    %3417 = vmatmul.mubr.bf16.gmra.mrb[0].mxu0 %v3307
    %v3418 = vpop.f32.mrb[0].mxu0
    %v3419 = vadd.f32 0.0, %v3418
    %v3420 = vpop.f32.mrb[0].mxu0
    %v3421 = vadd.f32 0.0, %v3420
    %v3422 = vpop.f32.mrb[0].mxu0
    %v3423 = vadd.f32 0.0, %v3422
    %v3424 = vpop.f32.mrb[0].mxu0
    %v3425 = vadd.f32 0.0, %v3424
    %3426 = vdwg.mxu0
    %v3427 = vadd.f32 %v3229, %v3356
    %v3428 = vadd.f32 %v3230, %v3358
    %v3429 = vadd.f32 %v3231, %v3409
    %v3430 = vadd.f32 %v3232, %v3411
    %v3431 = vadd.f32 %v3233, %v3360
    %v3432 = vadd.f32 %v3234, %v3362
    %v3433 = vadd.f32 %v3235, %v3413
    %v3434 = vadd.f32 %v3236, %v3415
    %v3435 = vadd.f32 %v3237, %v3366
    %v3436 = vadd.f32 %v3238, %v3368
    %v3437 = vadd.f32 %v3239, %v3419
    %v3438 = vadd.f32 %v3240, %v3421
    %v3439 = vadd.f32 %v3241, %v3370
    %v3440 = vadd.f32 %v3242, %v3372
    %v3441 = vadd.f32 %v3243, %v3423
    %v3442 = vadd.f32 %v3244, %v3425
    %3443 = vst [vmem:[#allocation2] sm:$0xff] %v3427
    %3444 = vst [vmem:[#allocation2 + $0x8] sm:$0xff] %v3428
    %3445 = vst [vmem:[#allocation2 + $0x10] sm:$0xff] %v3429
    %3446 = vst [vmem:[#allocation2 + $0x18] sm:$0xff] %v3430
    %3447 = vst [vmem:[#allocation2 + $0x20] sm:$0xff] %v3431
    %3448 = vst [vmem:[#allocation2 + $0x28] sm:$0xff] %v3432
    %3449 = vst [vmem:[#allocation2 + $0x30] sm:$0xff] %v3433
    %3450 = vst [vmem:[#allocation2 + $0x38] sm:$0xff] %v3434
    %3451 = vst [vmem:[#allocation2 + $0x40] sm:$0xff] %v3435
    %3452 = vst [vmem:[#allocation2 + $0x48] sm:$0xff] %v3436
    %3453 = vst [vmem:[#allocation2 + $0x50] sm:$0xff] %v3437
    %3454 = vst [vmem:[#allocation2 + $0x58] sm:$0xff] %v3438
    %3455 = vst [vmem:[#allocation2 + $0x60] sm:$0xff] %v3439
    %3456 = vst [vmem:[#allocation2 + $0x68] sm:$0xff] %v3440
    %3457 = vst [vmem:[#allocation2 + $0x70] sm:$0xff] %v3441
    %3458 = vst [vmem:[#allocation2 + $0x78] sm:$0xff] %v3442
    %v3459 = vld [vmem:[#allocation2] sm:$0xff]
    %v3460 = vld [vmem:[#allocation2 + $0x8] sm:$0xff]
    %v3461 = vld [vmem:[#allocation2 + $0x10] sm:$0xff]
    %v3462 = vld [vmem:[#allocation2 + $0x18] sm:$0xff]
    %v3463 = vld [vmem:[#allocation2 + $0x20] sm:$0xff]
    %v3464 = vld [vmem:[#allocation2 + $0x28] sm:$0xff]
    %v3465 = vld [vmem:[#allocation2 + $0x30] sm:$0xff]
    %v3466 = vld [vmem:[#allocation2 + $0x38] sm:$0xff]
    %v3467 = vld [vmem:[#allocation2 + $0x40] sm:$0xff]
    %v3468 = vld [vmem:[#allocation2 + $0x48] sm:$0xff]
    %v3469 = vld [vmem:[#allocation2 + $0x50] sm:$0xff]
    %v3470 = vld [vmem:[#allocation2 + $0x58] sm:$0xff]
    %v3471 = vld [vmem:[#allocation2 + $0x60] sm:$0xff]
    %v3472 = vld [vmem:[#allocation2 + $0x68] sm:$0xff]
    %v3473 = vld [vmem:[#allocation2 + $0x70] sm:$0xff]
    %v3474 = vld [vmem:[#allocation2 + $0x78] sm:$0xff]
    %s3475 = scalar_lea.vmem %s0, 240
    %v3476 = vld [vmem:[%s3475] sm:$0xf]
    %v3477 = vld [vmem:[%s3475 + $0x4] sm:$0xf]
    %v3478 = vld [vmem:[%s3475 + $0x8] sm:$0xf]
    %v3479 = vld [vmem:[%s3475 + $0xc] sm:$0xf]
    %v3480 = vld [vmem:[%s2] sm:$0xff]
    %v3481 = vld [vmem:[%s2 + $0x8] sm:$0x3]
    %v3486 = vunpack.c.l.b16 %v3476
    %v3487 = vunpack.c.l.b16 %v3477
    %v3488 = vunpack.c.l.b16 %v3478
    %v3489 = vunpack.c.l.b16 %v3479
    %v3490 = vpack.c.b16 %v3487, %v3486
    %v3491 = vpack.c.b16 %v3489, %v3488
    %v3494 = vcombine.high %v3480, %v3480
    %v3496 = vunpack.c.l.s4 1983009808
    %v3497 = vunpack.c.0.s8 %v3496
    %v3498 = vlaneseq
    %v3499 = vshrl.u32 %v3498, 7
    %v3500 = vsub.s32 %v3497, %v3499
    %v3501 = vrot.slane %v3480, %v3500
    %v3503 = vunpack.c.l.s4 1983009808
    %v3504 = vunpack.c.0.s8 %v3503
    %v3505 = vlaneseq
    %v3506 = vshrl.u32 %v3505, 7
    %v3507 = vsub.s32 %v3504, %v3506
    %v3508 = vrot.slane %v3494, %v3507
    %v3509 = vcombine.high %v3501, %v3501
    %v3510 = vcombine.high %v3508, %v3508
    %v3512 = vunpack.c.l.s4 1983009808
    %v3513 = vunpack.c.0.s8 %v3512
    %v3514 = vlaneseq
    %v3515 = vshrl.u32 %v3514, 7
    %v3516 = vsub.s32 %v3513, %v3515
    %v3517 = vrot.slane %v3481, %v3516
    %3518 = vrot.lane.b32.xlu0 %v3501, 80
    %v3519 = vpop.permute.xlu0 %3518
    %3520 = vrot.lane.b32.xlu0 %v3509, 80
    %v3521 = vpop.permute.xlu0 %3520
    %3522 = vrot.lane.b32.xlu0 %v3508, 80
    %v3523 = vpop.permute.xlu0 %3522
    %3524 = vrot.lane.b32.xlu0 %v3510, 80
    %v3525 = vpop.permute.xlu0 %3524
    %3526 = vrot.lane.b32.xlu0 %v3517, 80
    %v3527 = vpop.permute.xlu0 %3526
    %vm3528 = vcmask 654336
    %v3529 = vsel %vm3528, %v3519, %v3521
    %v3530 = vsel %vm3528, %v3521, %v3523
    %v3531 = vsel %vm3528, %v3523, %v3525
    %v3532 = vsel %vm3528, %v3525, %v3527
    %v3534 = vsel %vm81, %v3490, 0
    %v3537 = vsel %vm81, %v3491, 0
    %v3540 = vsel %vm88, %v3529, 0
    %v3543 = vsel %vm88, %v3530, 0
    %v3546 = vsel %vm88, %v3531, 0
    %v3549 = vsel %vm88, %v3532, 0
    %3551 = vmatprep.subr.bf16.mxu0 %v3543
    %3552 = vmatpush1.bf16.msra.mxu0 %v3540
    %3553 = vmatprep.subr.bf16.mxu0 0
    %3554 = vmatpush1.bf16.msra.mxu0 0
    %3555 = vmatprep.subr.bf16.mxu0 0
    %3556 = vmatpush1.bf16.msra.mxu0 0
    %3557 = vmatprep.subr.bf16.mxu0 0
    %3558 = vmatpush1.bf16.msra.mxu0 0
    %3559 = vmatprep.subr.bf16.mxu0 0
    %3560 = vmatpush1.bf16.msra.mxu0 0
    %3561 = vmatprep.subr.bf16.mxu0 0
    %3562 = vmatpush1.bf16.msra.mxu0 0
    %3563 = vmatprep.subr.bf16.mxu0 0
    %3564 = vmatpush1.bf16.msra.mxu0 0
    %3565 = vmatprep.subr.bf16.mxu0 0
    %3566 = vmatpush1.bf16.msra.mxu0 0
    %3567 = vmatprep.subr.bf16.mxu0 0
    %3568 = vmatpush1.bf16.msra.mxu0 0
    %3569 = vmatprep.subr.bf16.mxu0 0
    %3570 = vmatpush1.bf16.msra.mxu0 0
    %3571 = vmatprep.subr.bf16.mxu0 0
    %3572 = vmatpush1.bf16.msra.mxu0 0
    %3573 = vmatprep.subr.bf16.mxu0 0
    %3574 = vmatpush1.bf16.msra.mxu0 0
    %3575 = vmatprep.subr.bf16.mxu0 0
    %3576 = vmatpush1.bf16.msra.mxu0 0
    %3577 = vmatprep.subr.bf16.mxu0 0
    %3578 = vmatpush1.bf16.msra.mxu0 0
    %3579 = vmatprep.subr.bf16.mxu0 0
    %3580 = vmatpush1.bf16.msra.mxu0 0
    %3581 = vmatprep.subr.bf16.mxu0 0
    %3582 = vmatpush1.bf16.msra.mxu0 0
    %3583 = vmatprep.mubr.bf16.mxu0 0
    %3584 = vmatmul.mubr.bf16.gmra.mrb[0].mxu0 %v3534
    %v3585 = vpop.f32.mrb[0].mxu0
    %v3586 = vadd.f32 0.0, %v3585
    %v3587 = vpop.f32.mrb[0].mxu0
    %v3588 = vadd.f32 0.0, %v3587
    %v3589 = vpop.f32.mrb[0].mxu0
    %v3590 = vadd.f32 0.0, %v3589
    %v3591 = vpop.f32.mrb[0].mxu0
    %v3592 = vadd.f32 0.0, %v3591
    %3593 = vmatprep.mubr.bf16.mxu0 0
    %3594 = vmatmul.mubr.bf16.gmra.mrb[0].mxu0 %v3537
    %v3595 = vpop.f32.mrb[0].mxu0
    %v3596 = vadd.f32 0.0, %v3595
    %v3597 = vpop.f32.mrb[0].mxu0
    %v3598 = vadd.f32 0.0, %v3597
    %v3599 = vpop.f32.mrb[0].mxu0
    %v3600 = vadd.f32 0.0, %v3599
    %v3601 = vpop.f32.mrb[0].mxu0
    %v3602 = vadd.f32 0.0, %v3601
    %3603 = vdwg.mxu0
    %3604 = vmatprep.subr.bf16.mxu0 %v3549
    %3605 = vmatpush1.bf16.msra.mxu0 %v3546
    %3606 = vmatprep.subr.bf16.mxu0 0
    %3607 = vmatpush1.bf16.msra.mxu0 0
    %3608 = vmatprep.subr.bf16.mxu0 0
    %3609 = vmatpush1.bf16.msra.mxu0 0
    %3610 = vmatprep.subr.bf16.mxu0 0
    %3611 = vmatpush1.bf16.msra.mxu0 0
    %3612 = vmatprep.subr.bf16.mxu0 0
    %3613 = vmatpush1.bf16.msra.mxu0 0
    %3614 = vmatprep.subr.bf16.mxu0 0
    %3615 = vmatpush1.bf16.msra.mxu0 0
    %3616 = vmatprep.subr.bf16.mxu0 0
    %3617 = vmatpush1.bf16.msra.mxu0 0
    %3618 = vmatprep.subr.bf16.mxu0 0
    %3619 = vmatpush1.bf16.msra.mxu0 0
    %3620 = vmatprep.subr.bf16.mxu0 0
    %3621 = vmatpush1.bf16.msra.mxu0 0
    %3622 = vmatprep.subr.bf16.mxu0 0
    %3623 = vmatpush1.bf16.msra.mxu0 0
    %3624 = vmatprep.subr.bf16.mxu0 0
    %3625 = vmatpush1.bf16.msra.mxu0 0
    %3626 = vmatprep.subr.bf16.mxu0 0
    %3627 = vmatpush1.bf16.msra.mxu0 0
    %3628 = vmatprep.subr.bf16.mxu0 0
    %3629 = vmatpush1.bf16.msra.mxu0 0
    %3630 = vmatprep.subr.bf16.mxu0 0
    %3631 = vmatpush1.bf16.msra.mxu0 0
    %3632 = vmatprep.subr.bf16.mxu0 0
    %3633 = vmatpush1.bf16.msra.mxu0 0
    %3634 = vmatprep.subr.bf16.mxu0 0
    %3635 = vmatpush1.bf16.msra.mxu0 0
    %3636 = vmatprep.mubr.bf16.mxu0 0
    %3637 = vmatmul.mubr.bf16.gmra.mrb[0].mxu0 %v3534
    %v3638 = vpop.f32.mrb[0].mxu0
    %v3639 = vadd.f32 0.0, %v3638
    %v3640 = vpop.f32.mrb[0].mxu0
    %v3641 = vadd.f32 0.0, %v3640
    %v3642 = vpop.f32.mrb[0].mxu0
    %v3643 = vadd.f32 0.0, %v3642
    %v3644 = vpop.f32.mrb[0].mxu0
    %v3645 = vadd.f32 0.0, %v3644
    %3646 = vmatprep.mubr.bf16.mxu0 0
    %3647 = vmatmul.mubr.bf16.gmra.mrb[0].mxu0 %v3537
    %v3648 = vpop.f32.mrb[0].mxu0
    %v3649 = vadd.f32 0.0, %v3648
    %v3650 = vpop.f32.mrb[0].mxu0
    %v3651 = vadd.f32 0.0, %v3650
    %v3652 = vpop.f32.mrb[0].mxu0
    %v3653 = vadd.f32 0.0, %v3652
    %v3654 = vpop.f32.mrb[0].mxu0
    %v3655 = vadd.f32 0.0, %v3654
    %3656 = vdwg.mxu0
    %v3657 = vadd.f32 %v3459, %v3586
    %v3658 = vadd.f32 %v3460, %v3588
    %v3659 = vadd.f32 %v3461, %v3639
    %v3660 = vadd.f32 %v3462, %v3641
    %v3661 = vadd.f32 %v3463, %v3590
    %v3662 = vadd.f32 %v3464, %v3592
    %v3663 = vadd.f32 %v3465, %v3643
    %v3664 = vadd.f32 %v3466, %v3645
    %v3665 = vadd.f32 %v3467, %v3596
    %v3666 = vadd.f32 %v3468, %v3598
    %v3667 = vadd.f32 %v3469, %v3649
    %v3668 = vadd.f32 %v3470, %v3651
    %v3669 = vadd.f32 %v3471, %v3600
    %v3670 = vadd.f32 %v3472, %v3602
    %v3671 = vadd.f32 %v3473, %v3653
    %v3672 = vadd.f32 %v3474, %v3655
    %3673 = vst [vmem:[#allocation2] sm:$0xff] %v3657
    %3674 = vst [vmem:[#allocation2 + $0x8] sm:$0xff] %v3658
    %3675 = vst [vmem:[#allocation2 + $0x10] sm:$0xff] %v3659
    %3676 = vst [vmem:[#allocation2 + $0x18] sm:$0xff] %v3660
    %3677 = vst [vmem:[#allocation2 + $0x20] sm:$0xff] %v3661
    %3678 = vst [vmem:[#allocation2 + $0x28] sm:$0xff] %v3662
    %3679 = vst [vmem:[#allocation2 + $0x30] sm:$0xff] %v3663
    %3680 = vst [vmem:[#allocation2 + $0x38] sm:$0xff] %v3664
    %3681 = vst [vmem:[#allocation2 + $0x40] sm:$0xff] %v3665
    %3682 = vst [vmem:[#allocation2 + $0x48] sm:$0xff] %v3666
    %3683 = vst [vmem:[#allocation2 + $0x50] sm:$0xff] %v3667
    %3684 = vst [vmem:[#allocation2 + $0x58] sm:$0xff] %v3668
    %3685 = vst [vmem:[#allocation2 + $0x60] sm:$0xff] %v3669
    %3686 = vst [vmem:[#allocation2 + $0x68] sm:$0xff] %v3670
    %3687 = vst [vmem:[#allocation2 + $0x70] sm:$0xff] %v3671
    %3688 = vst [vmem:[#allocation2 + $0x78] sm:$0xff] %v3672
    %v3689 = vld [vmem:[#allocation2] sm:$0xff]
    %v3690 = vld [vmem:[#allocation2 + $0x8] sm:$0xff]
    %v3691 = vld [vmem:[#allocation2 + $0x10] sm:$0xff]
    %v3692 = vld [vmem:[#allocation2 + $0x18] sm:$0xff]
    %v3693 = vld [vmem:[#allocation2 + $0x20] sm:$0xff]
    %v3694 = vld [vmem:[#allocation2 + $0x28] sm:$0xff]
    %v3695 = vld [vmem:[#allocation2 + $0x30] sm:$0xff]
    %v3696 = vld [vmem:[#allocation2 + $0x38] sm:$0xff]
    %v3697 = vld [vmem:[#allocation2 + $0x40] sm:$0xff]
    %v3698 = vld [vmem:[#allocation2 + $0x48] sm:$0xff]
    %v3699 = vld [vmem:[#allocation2 + $0x50] sm:$0xff]
    %v3700 = vld [vmem:[#allocation2 + $0x58] sm:$0xff]
    %v3701 = vld [vmem:[#allocation2 + $0x60] sm:$0xff]
    %v3702 = vld [vmem:[#allocation2 + $0x68] sm:$0xff]
    %v3703 = vld [vmem:[#allocation2 + $0x70] sm:$0xff]
    %v3704 = vld [vmem:[#allocation2 + $0x78] sm:$0xff]
    %s3705 = scalar_lea.vmem %s0, 256
    %v3706 = vld [vmem:[%s3705] sm:$0xf]
    %v3707 = vld [vmem:[%s3705 + $0x4] sm:$0xf]
    %v3708 = vld [vmem:[%s3705 + $0x8] sm:$0xf]
    %v3709 = vld [vmem:[%s3705 + $0xc] sm:$0xf]
    %v3710 = vld [vmem:[%s2] sm:$0xff]
    %v3711 = vld [vmem:[%s2 + $0x8] sm:$0x3]
    %v3716 = vunpack.c.l.b16 %v3706
    %v3717 = vunpack.c.l.b16 %v3707
    %v3718 = vunpack.c.l.b16 %v3708
    %v3719 = vunpack.c.l.b16 %v3709
    %v3720 = vpack.c.b16 %v3717, %v3716
    %v3721 = vpack.c.b16 %v3719, %v3718
    %v3724 = vcombine.high %v3710, %v3710
    %v3726 = vunpack.c.l.s4 1983009808
    %v3727 = vunpack.c.0.s8 %v3726
    %v3728 = vlaneseq
    %v3729 = vshrl.u32 %v3728, 7
    %v3730 = vsub.s32 %v3727, %v3729
    %v3731 = vrot.slane %v3710, %v3730
    %v3733 = vunpack.c.l.s4 1983009808
    %v3734 = vunpack.c.0.s8 %v3733
    %v3735 = vlaneseq
    %v3736 = vshrl.u32 %v3735, 7
    %v3737 = vsub.s32 %v3734, %v3736
    %v3738 = vrot.slane %v3724, %v3737
    %v3739 = vcombine.high %v3731, %v3731
    %v3740 = vcombine.high %v3738, %v3738
    %v3742 = vunpack.c.l.s4 1983009808
    %v3743 = vunpack.c.0.s8 %v3742
    %v3744 = vlaneseq
    %v3745 = vshrl.u32 %v3744, 7
    %v3746 = vsub.s32 %v3743, %v3745
    %v3747 = vrot.slane %v3711, %v3746
    %3748 = vrot.lane.b32.xlu0 %v3731, 79
    %v3749 = vpop.permute.xlu0 %3748
    %3750 = vrot.lane.b32.xlu0 %v3739, 79
    %v3751 = vpop.permute.xlu0 %3750
    %3752 = vrot.lane.b32.xlu0 %v3738, 79
    %v3753 = vpop.permute.xlu0 %3752
    %3754 = vrot.lane.b32.xlu0 %v3740, 79
    %v3755 = vpop.permute.xlu0 %3754
    %3756 = vrot.lane.b32.xlu0 %v3747, 79
    %v3757 = vpop.permute.xlu0 %3756
    %vm3758 = vcmask 646144
    %v3759 = vsel %vm3758, %v3749, %v3751
    %v3760 = vsel %vm3758, %v3751, %v3753
    %v3761 = vsel %vm3758, %v3753, %v3755
    %v3762 = vsel %vm3758, %v3755, %v3757
    %v3764 = vsel %vm81, %v3720, 0
    %v3767 = vsel %vm81, %v3721, 0
    %v3770 = vsel %vm88, %v3759, 0
    %v3773 = vsel %vm88, %v3760, 0
    %v3776 = vsel %vm88, %v3761, 0
    %v3779 = vsel %vm88, %v3762, 0
    %3781 = vmatprep.subr.bf16.mxu0 %v3773
    %3782 = vmatpush1.bf16.msra.mxu0 %v3770
    %3783 = vmatprep.subr.bf16.mxu0 0
    %3784 = vmatpush1.bf16.msra.mxu0 0
    %3785 = vmatprep.subr.bf16.mxu0 0
    %3786 = vmatpush1.bf16.msra.mxu0 0
    %3787 = vmatprep.subr.bf16.mxu0 0
    %3788 = vmatpush1.bf16.msra.mxu0 0
    %3789 = vmatprep.subr.bf16.mxu0 0
    %3790 = vmatpush1.bf16.msra.mxu0 0
    %3791 = vmatprep.subr.bf16.mxu0 0
    %3792 = vmatpush1.bf16.msra.mxu0 0
    %3793 = vmatprep.subr.bf16.mxu0 0
    %3794 = vmatpush1.bf16.msra.mxu0 0
    %3795 = vmatprep.subr.bf16.mxu0 0
    %3796 = vmatpush1.bf16.msra.mxu0 0
    %3797 = vmatprep.subr.bf16.mxu0 0
    %3798 = vmatpush1.bf16.msra.mxu0 0
    %3799 = vmatprep.subr.bf16.mxu0 0
    %3800 = vmatpush1.bf16.msra.mxu0 0
    %3801 = vmatprep.subr.bf16.mxu0 0
    %3802 = vmatpush1.bf16.msra.mxu0 0
    %3803 = vmatprep.subr.bf16.mxu0 0
    %3804 = vmatpush1.bf16.msra.mxu0 0
    %3805 = vmatprep.subr.bf16.mxu0 0
    %3806 = vmatpush1.bf16.msra.mxu0 0
    %3807 = vmatprep.subr.bf16.mxu0 0
    %3808 = vmatpush1.bf16.msra.mxu0 0
    %3809 = vmatprep.subr.bf16.mxu0 0
    %3810 = vmatpush1.bf16.msra.mxu0 0
    %3811 = vmatprep.subr.bf16.mxu0 0
    %3812 = vmatpush1.bf16.msra.mxu0 0
    %3813 = vmatprep.mubr.bf16.mxu0 0
    %3814 = vmatmul.mubr.bf16.gmra.mrb[0].mxu0 %v3764
    %v3815 = vpop.f32.mrb[0].mxu0
    %v3816 = vadd.f32 0.0, %v3815
    %v3817 = vpop.f32.mrb[0].mxu0
    %v3818 = vadd.f32 0.0, %v3817
    %v3819 = vpop.f32.mrb[0].mxu0
    %v3820 = vadd.f32 0.0, %v3819
    %v3821 = vpop.f32.mrb[0].mxu0
    %v3822 = vadd.f32 0.0, %v3821
    %3823 = vmatprep.mubr.bf16.mxu0 0
    %3824 = vmatmul.mubr.bf16.gmra.mrb[0].mxu0 %v3767
    %v3825 = vpop.f32.mrb[0].mxu0
    %v3826 = vadd.f32 0.0, %v3825
    %v3827 = vpop.f32.mrb[0].mxu0
    %v3828 = vadd.f32 0.0, %v3827
    %v3829 = vpop.f32.mrb[0].mxu0
    %v3830 = vadd.f32 0.0, %v3829
    %v3831 = vpop.f32.mrb[0].mxu0
    %v3832 = vadd.f32 0.0, %v3831
    %3833 = vdwg.mxu0
    %3834 = vmatprep.subr.bf16.mxu0 %v3779
    %3835 = vmatpush1.bf16.msra.mxu0 %v3776
    %3836 = vmatprep.subr.bf16.mxu0 0
    %3837 = vmatpush1.bf16.msra.mxu0 0
    %3838 = vmatprep.subr.bf16.mxu0 0
    %3839 = vmatpush1.bf16.msra.mxu0 0
    %3840 = vmatprep.subr.bf16.mxu0 0
    %3841 = vmatpush1.bf16.msra.mxu0 0
    %3842 = vmatprep.subr.bf16.mxu0 0
    %3843 = vmatpush1.bf16.msra.mxu0 0
    %3844 = vmatprep.subr.bf16.mxu0 0
    %3845 = vmatpush1.bf16.msra.mxu0 0
    %3846 = vmatprep.subr.bf16.mxu0 0
    %3847 = vmatpush1.bf16.msra.mxu0 0
    %3848 = vmatprep.subr.bf16.mxu0 0
    %3849 = vmatpush1.bf16.msra.mxu0 0
    %3850 = vmatprep.subr.bf16.mxu0 0
    %3851 = vmatpush1.bf16.msra.mxu0 0
    %3852 = vmatprep.subr.bf16.mxu0 0
    %3853 = vmatpush1.bf16.msra.mxu0 0
    %3854 = vmatprep.subr.bf16.mxu0 0
    %3855 = vmatpush1.bf16.msra.mxu0 0
    %3856 = vmatprep.subr.bf16.mxu0 0
    %3857 = vmatpush1.bf16.msra.mxu0 0
    %3858 = vmatprep.subr.bf16.mxu0 0
    %3859 = vmatpush1.bf16.msra.mxu0 0
    %3860 = vmatprep.subr.bf16.mxu0 0
    %3861 = vmatpush1.bf16.msra.mxu0 0
    %3862 = vmatprep.subr.bf16.mxu0 0
    %3863 = vmatpush1.bf16.msra.mxu0 0
    %3864 = vmatprep.subr.bf16.mxu0 0
    %3865 = vmatpush1.bf16.msra.mxu0 0
    %3866 = vmatprep.mubr.bf16.mxu0 0
    %3867 = vmatmul.mubr.bf16.gmra.mrb[0].mxu0 %v3764
    %v3868 = vpop.f32.mrb[0].mxu0
    %v3869 = vadd.f32 0.0, %v3868
    %v3870 = vpop.f32.mrb[0].mxu0
    %v3871 = vadd.f32 0.0, %v3870
    %v3872 = vpop.f32.mrb[0].mxu0
    %v3873 = vadd.f32 0.0, %v3872
    %v3874 = vpop.f32.mrb[0].mxu0
    %v3875 = vadd.f32 0.0, %v3874
    %3876 = vmatprep.mubr.bf16.mxu0 0
    %3877 = vmatmul.mubr.bf16.gmra.mrb[0].mxu0 %v3767
    %v3878 = vpop.f32.mrb[0].mxu0
    %v3879 = vadd.f32 0.0, %v3878
    %v3880 = vpop.f32.mrb[0].mxu0
    %v3881 = vadd.f32 0.0, %v3880
    %v3882 = vpop.f32.mrb[0].mxu0
    %v3883 = vadd.f32 0.0, %v3882
    %v3884 = vpop.f32.mrb[0].mxu0
    %v3885 = vadd.f32 0.0, %v3884
    %3886 = vdwg.mxu0
    %v3887 = vadd.f32 %v3689, %v3816
    %v3888 = vadd.f32 %v3690, %v3818
    %v3889 = vadd.f32 %v3691, %v3869
    %v3890 = vadd.f32 %v3692, %v3871
    %v3891 = vadd.f32 %v3693, %v3820
    %v3892 = vadd.f32 %v3694, %v3822
    %v3893 = vadd.f32 %v3695, %v3873
    %v3894 = vadd.f32 %v3696, %v3875
    %v3895 = vadd.f32 %v3697, %v3826
    %v3896 = vadd.f32 %v3698, %v3828
    %v3897 = vadd.f32 %v3699, %v3879
    %v3898 = vadd.f32 %v3700, %v3881
    %v3899 = vadd.f32 %v3701, %v3830
    %v3900 = vadd.f32 %v3702, %v3832
    %v3901 = vadd.f32 %v3703, %v3883
    %v3902 = vadd.f32 %v3704, %v3885
    %3903 = vst [vmem:[#allocation2] sm:$0xff] %v3887
    %3904 = vst [vmem:[#allocation2 + $0x8] sm:$0xff] %v3888
    %3905 = vst [vmem:[#allocation2 + $0x10] sm:$0xff] %v3889
    %3906 = vst [vmem:[#allocation2 + $0x18] sm:$0xff] %v3890
    %3907 = vst [vmem:[#allocation2 + $0x20] sm:$0xff] %v3891
    %3908 = vst [vmem:[#allocation2 + $0x28] sm:$0xff] %v3892
    %3909 = vst [vmem:[#allocation2 + $0x30] sm:$0xff] %v3893
    %3910 = vst [vmem:[#allocation2 + $0x38] sm:$0xff] %v3894
    %3911 = vst [vmem:[#allocation2 + $0x40] sm:$0xff] %v3895
    %3912 = vst [vmem:[#allocation2 + $0x48] sm:$0xff] %v3896
    %3913 = vst [vmem:[#allocation2 + $0x50] sm:$0xff] %v3897
    %3914 = vst [vmem:[#allocation2 + $0x58] sm:$0xff] %v3898
    %3915 = vst [vmem:[#allocation2 + $0x60] sm:$0xff] %v3899
    %3916 = vst [vmem:[#allocation2 + $0x68] sm:$0xff] %v3900
    %3917 = vst [vmem:[#allocation2 + $0x70] sm:$0xff] %v3901
    %3918 = vst [vmem:[#allocation2 + $0x78] sm:$0xff] %v3902
    %v3919 = vld [vmem:[#allocation2] sm:$0xff]
    %v3920 = vld [vmem:[#allocation2 + $0x8] sm:$0xff]
    %v3921 = vld [vmem:[#allocation2 + $0x10] sm:$0xff]
    %v3922 = vld [vmem:[#allocation2 + $0x18] sm:$0xff]
    %v3923 = vld [vmem:[#allocation2 + $0x20] sm:$0xff]
    %v3924 = vld [vmem:[#allocation2 + $0x28] sm:$0xff]
    %v3925 = vld [vmem:[#allocation2 + $0x30] sm:$0xff]
    %v3926 = vld [vmem:[#allocation2 + $0x38] sm:$0xff]
    %v3927 = vld [vmem:[#allocation2 + $0x40] sm:$0xff]
    %v3928 = vld [vmem:[#allocation2 + $0x48] sm:$0xff]
    %v3929 = vld [vmem:[#allocation2 + $0x50] sm:$0xff]
    %v3930 = vld [vmem:[#allocation2 + $0x58] sm:$0xff]
    %v3931 = vld [vmem:[#allocation2 + $0x60] sm:$0xff]
    %v3932 = vld [vmem:[#allocation2 + $0x68] sm:$0xff]
    %v3933 = vld [vmem:[#allocation2 + $0x70] sm:$0xff]
    %v3934 = vld [vmem:[#allocation2 + $0x78] sm:$0xff]
    %s3935 = scalar_lea.vmem %s0, 272
    %v3936 = vld [vmem:[%s3935] sm:$0xf]
    %v3937 = vld [vmem:[%s3935 + $0x4] sm:$0xf]
    %v3938 = vld [vmem:[%s3935 + $0x8] sm:$0xf]
    %v3939 = vld [vmem:[%s3935 + $0xc] sm:$0xf]
    %v3940 = vld [vmem:[%s2] sm:$0xff]
    %v3941 = vld [vmem:[%s2 + $0x8] sm:$0x3]
    %v3946 = vunpack.c.l.b16 %v3936
    %v3947 = vunpack.c.l.b16 %v3937
    %v3948 = vunpack.c.l.b16 %v3938
    %v3949 = vunpack.c.l.b16 %v3939
    %v3950 = vpack.c.b16 %v3947, %v3946
    %v3951 = vpack.c.b16 %v3949, %v3948
    %v3954 = vcombine.high %v3940, %v3940
    %v3956 = vunpack.c.l.s4 1983009808
    %v3957 = vunpack.c.0.s8 %v3956
    %v3958 = vlaneseq
    %v3959 = vshrl.u32 %v3958, 7
    %v3960 = vsub.s32 %v3957, %v3959
    %v3961 = vrot.slane %v3940, %v3960
    %v3963 = vunpack.c.l.s4 1983009808
    %v3964 = vunpack.c.0.s8 %v3963
    %v3965 = vlaneseq
    %v3966 = vshrl.u32 %v3965, 7
    %v3967 = vsub.s32 %v3964, %v3966
    %v3968 = vrot.slane %v3954, %v3967
    %v3969 = vcombine.high %v3961, %v3961
    %v3970 = vcombine.high %v3968, %v3968
    %v3972 = vunpack.c.l.s4 1983009808
    %v3973 = vunpack.c.0.s8 %v3972
    %v3974 = vlaneseq
    %v3975 = vshrl.u32 %v3974, 7
    %v3976 = vsub.s32 %v3973, %v3975
    %v3977 = vrot.slane %v3941, %v3976
    %3978 = vrot.lane.b32.xlu0 %v3961, 78
    %v3979 = vpop.permute.xlu0 %3978
    %3980 = vrot.lane.b32.xlu0 %v3969, 78
    %v3981 = vpop.permute.xlu0 %3980
    %3982 = vrot.lane.b32.xlu0 %v3968, 78
    %v3983 = vpop.permute.xlu0 %3982
    %3984 = vrot.lane.b32.xlu0 %v3970, 78
    %v3985 = vpop.permute.xlu0 %3984
    %3986 = vrot.lane.b32.xlu0 %v3977, 78
    %v3987 = vpop.permute.xlu0 %3986
    %vm3988 = vcmask 637952
    %v3989 = vsel %vm3988, %v3979, %v3981
    %v3990 = vsel %vm3988, %v3981, %v3983
    %v3991 = vsel %vm3988, %v3983, %v3985
    %v3992 = vsel %vm3988, %v3985, %v3987
    %v3994 = vsel %vm81, %v3950, 0
    %v3997 = vsel %vm81, %v3951, 0
    %v4000 = vsel %vm88, %v3989, 0
    %v4003 = vsel %vm88, %v3990, 0
    %v4006 = vsel %vm88, %v3991, 0
    %v4009 = vsel %vm88, %v3992, 0
    %4011 = vmatprep.subr.bf16.mxu0 %v4003
    %4012 = vmatpush1.bf16.msra.mxu0 %v4000
    %4013 = vmatprep.subr.bf16.mxu0 0
    %4014 = vmatpush1.bf16.msra.mxu0 0
    %4015 = vmatprep.subr.bf16.mxu0 0
    %4016 = vmatpush1.bf16.msra.mxu0 0
    %4017 = vmatprep.subr.bf16.mxu0 0
    %4018 = vmatpush1.bf16.msra.mxu0 0
    %4019 = vmatprep.subr.bf16.mxu0 0
    %4020 = vmatpush1.bf16.msra.mxu0 0
    %4021 = vmatprep.subr.bf16.mxu0 0
    %4022 = vmatpush1.bf16.msra.mxu0 0
    %4023 = vmatprep.subr.bf16.mxu0 0
    %4024 = vmatpush1.bf16.msra.mxu0 0
    %4025 = vmatprep.subr.bf16.mxu0 0
    %4026 = vmatpush1.bf16.msra.mxu0 0
    %4027 = vmatprep.subr.bf16.mxu0 0
    %4028 = vmatpush1.bf16.msra.mxu0 0
    %4029 = vmatprep.subr.bf16.mxu0 0
    %4030 = vmatpush1.bf16.msra.mxu0 0
    %4031 = vmatprep.subr.bf16.mxu0 0
    %4032 = vmatpush1.bf16.msra.mxu0 0
    %4033 = vmatprep.subr.bf16.mxu0 0
    %4034 = vmatpush1.bf16.msra.mxu0 0
    %4035 = vmatprep.subr.bf16.mxu0 0
    %4036 = vmatpush1.bf16.msra.mxu0 0
    %4037 = vmatprep.subr.bf16.mxu0 0
    %4038 = vmatpush1.bf16.msra.mxu0 0
    %4039 = vmatprep.subr.bf16.mxu0 0
    %4040 = vmatpush1.bf16.msra.mxu0 0
    %4041 = vmatprep.subr.bf16.mxu0 0
    %4042 = vmatpush1.bf16.msra.mxu0 0
    %4043 = vmatprep.mubr.bf16.mxu0 0
    %4044 = vmatmul.mubr.bf16.gmra.mrb[0].mxu0 %v3994
    %v4045 = vpop.f32.mrb[0].mxu0
    %v4046 = vadd.f32 0.0, %v4045
    %v4047 = vpop.f32.mrb[0].mxu0
    %v4048 = vadd.f32 0.0, %v4047
    %v4049 = vpop.f32.mrb[0].mxu0
    %v4050 = vadd.f32 0.0, %v4049
    %v4051 = vpop.f32.mrb[0].mxu0
    %v4052 = vadd.f32 0.0, %v4051
    %4053 = vmatprep.mubr.bf16.mxu0 0
    %4054 = vmatmul.mubr.bf16.gmra.mrb[0].mxu0 %v3997
    %v4055 = vpop.f32.mrb[0].mxu0
    %v4056 = vadd.f32 0.0, %v4055
    %v4057 = vpop.f32.mrb[0].mxu0
    %v4058 = vadd.f32 0.0, %v4057
    %v4059 = vpop.f32.mrb[0].mxu0
    %v4060 = vadd.f32 0.0, %v4059
    %v4061 = vpop.f32.mrb[0].mxu0
    %v4062 = vadd.f32 0.0, %v4061
    %4063 = vdwg.mxu0
    %4064 = vmatprep.subr.bf16.mxu0 %v4009
    %4065 = vmatpush1.bf16.msra.mxu0 %v4006
    %4066 = vmatprep.subr.bf16.mxu0 0
    %4067 = vmatpush1.bf16.msra.mxu0 0
    %4068 = vmatprep.subr.bf16.mxu0 0
    %4069 = vmatpush1.bf16.msra.mxu0 0
    %4070 = vmatprep.subr.bf16.mxu0 0
    %4071 = vmatpush1.bf16.msra.mxu0 0
    %4072 = vmatprep.subr.bf16.mxu0 0
    %4073 = vmatpush1.bf16.msra.mxu0 0
    %4074 = vmatprep.subr.bf16.mxu0 0
    %4075 = vmatpush1.bf16.msra.mxu0 0
    %4076 = vmatprep.subr.bf16.mxu0 0
    %4077 = vmatpush1.bf16.msra.mxu0 0
    %4078 = vmatprep.subr.bf16.mxu0 0
    %4079 = vmatpush1.bf16.msra.mxu0 0
    %4080 = vmatprep.subr.bf16.mxu0 0
    %4081 = vmatpush1.bf16.msra.mxu0 0
    %4082 = vmatprep.subr.bf16.mxu0 0
    %4083 = vmatpush1.bf16.msra.mxu0 0
    %4084 = vmatprep.subr.bf16.mxu0 0
    %4085 = vmatpush1.bf16.msra.mxu0 0
    %4086 = vmatprep.subr.bf16.mxu0 0
    %4087 = vmatpush1.bf16.msra.mxu0 0
    %4088 = vmatprep.subr.bf16.mxu0 0
    %4089 = vmatpush1.bf16.msra.mxu0 0
    %4090 = vmatprep.subr.bf16.mxu0 0
    %4091 = vmatpush1.bf16.msra.mxu0 0
    %4092 = vmatprep.subr.bf16.mxu0 0
    %4093 = vmatpush1.bf16.msra.mxu0 0
    %4094 = vmatprep.subr.bf16.mxu0 0
    %4095 = vmatpush1.bf16.msra.mxu0 0
    %4096 = vmatprep.mubr.bf16.mxu0 0
    %4097 = vmatmul.mubr.bf16.gmra.mrb[0].mxu0 %v3994
    %v4098 = vpop.f32.mrb[0].mxu0
    %v4099 = vadd.f32 0.0, %v4098
    %v4100 = vpop.f32.mrb[0].mxu0
    %v4101 = vadd.f32 0.0, %v4100
    %v4102 = vpop.f32.mrb[0].mxu0
    %v4103 = vadd.f32 0.0, %v4102
    %v4104 = vpop.f32.mrb[0].mxu0
    %v4105 = vadd.f32 0.0, %v4104
    %4106 = vmatprep.mubr.bf16.mxu0 0
    %4107 = vmatmul.mubr.bf16.gmra.mrb[0].mxu0 %v3997
    %v4108 = vpop.f32.mrb[0].mxu0
    %v4109 = vadd.f32 0.0, %v4108
    %v4110 = vpop.f32.mrb[0].mxu0
    %v4111 = vadd.f32 0.0, %v4110
    %v4112 = vpop.f32.mrb[0].mxu0
    %v4113 = vadd.f32 0.0, %v4112
    %v4114 = vpop.f32.mrb[0].mxu0
    %v4115 = vadd.f32 0.0, %v4114
    %4116 = vdwg.mxu0
    %v4117 = vadd.f32 %v3919, %v4046
    %v4118 = vadd.f32 %v3920, %v4048
    %v4119 = vadd.f32 %v3921, %v4099
    %v4120 = vadd.f32 %v3922, %v4101
    %v4121 = vadd.f32 %v3923, %v4050
    %v4122 = vadd.f32 %v3924, %v4052
    %v4123 = vadd.f32 %v3925, %v4103
    %v4124 = vadd.f32 %v3926, %v4105
    %v4125 = vadd.f32 %v3927, %v4056
    %v4126 = vadd.f32 %v3928, %v4058
    %v4127 = vadd.f32 %v3929, %v4109
    %v4128 = vadd.f32 %v3930, %v4111
    %v4129 = vadd.f32 %v3931, %v4060
    %v4130 = vadd.f32 %v3932, %v4062
    %v4131 = vadd.f32 %v3933, %v4113
    %v4132 = vadd.f32 %v3934, %v4115
    %4133 = vst [vmem:[#allocation2] sm:$0xff] %v4117
    %4134 = vst [vmem:[#allocation2 + $0x8] sm:$0xff] %v4118
    %4135 = vst [vmem:[#allocation2 + $0x10] sm:$0xff] %v4119
    %4136 = vst [vmem:[#allocation2 + $0x18] sm:$0xff] %v4120
    %4137 = vst [vmem:[#allocation2 + $0x20] sm:$0xff] %v4121
    %4138 = vst [vmem:[#allocation2 + $0x28] sm:$0xff] %v4122
    %4139 = vst [vmem:[#allocation2 + $0x30] sm:$0xff] %v4123
    %4140 = vst [vmem:[#allocation2 + $0x38] sm:$0xff] %v4124
    %4141 = vst [vmem:[#allocation2 + $0x40] sm:$0xff] %v4125
    %4142 = vst [vmem:[#allocation2 + $0x48] sm:$0xff] %v4126
    %4143 = vst [vmem:[#allocation2 + $0x50] sm:$0xff] %v4127
    %4144 = vst [vmem:[#allocation2 + $0x58] sm:$0xff] %v4128
    %4145 = vst [vmem:[#allocation2 + $0x60] sm:$0xff] %v4129
    %4146 = vst [vmem:[#allocation2 + $0x68] sm:$0xff] %v4130
    %4147 = vst [vmem:[#allocation2 + $0x70] sm:$0xff] %v4131
    %4148 = vst [vmem:[#allocation2 + $0x78] sm:$0xff] %v4132
    %v4149 = vld [vmem:[#allocation2] sm:$0xff]
    %v4150 = vld [vmem:[#allocation2 + $0x8] sm:$0xff]
    %v4151 = vld [vmem:[#allocation2 + $0x10] sm:$0xff]
    %v4152 = vld [vmem:[#allocation2 + $0x18] sm:$0xff]
    %v4153 = vld [vmem:[#allocation2 + $0x20] sm:$0xff]
    %v4154 = vld [vmem:[#allocation2 + $0x28] sm:$0xff]
    %v4155 = vld [vmem:[#allocation2 + $0x30] sm:$0xff]
    %v4156 = vld [vmem:[#allocation2 + $0x38] sm:$0xff]
    %v4157 = vld [vmem:[#allocation2 + $0x40] sm:$0xff]
    %v4158 = vld [vmem:[#allocation2 + $0x48] sm:$0xff]
    %v4159 = vld [vmem:[#allocation2 + $0x50] sm:$0xff]
    %v4160 = vld [vmem:[#allocation2 + $0x58] sm:$0xff]
    %v4161 = vld [vmem:[#allocation2 + $0x60] sm:$0xff]
    %v4162 = vld [vmem:[#allocation2 + $0x68] sm:$0xff]
    %v4163 = vld [vmem:[#allocation2 + $0x70] sm:$0xff]
    %v4164 = vld [vmem:[#allocation2 + $0x78] sm:$0xff]
    %s4165 = scalar_lea.vmem %s0, 288
    %v4166 = vld [vmem:[%s4165] sm:$0xf]
    %v4167 = vld [vmem:[%s4165 + $0x4] sm:$0xf]
    %v4168 = vld [vmem:[%s4165 + $0x8] sm:$0xf]
    %v4169 = vld [vmem:[%s4165 + $0xc] sm:$0xf]
    %v4170 = vld [vmem:[%s2] sm:$0xff]
    %v4171 = vld [vmem:[%s2 + $0x8] sm:$0x3]
    %v4176 = vunpack.c.l.b16 %v4166
    %v4177 = vunpack.c.l.b16 %v4167
    %v4178 = vunpack.c.l.b16 %v4168
    %v4179 = vunpack.c.l.b16 %v4169
    %v4180 = vpack.c.b16 %v4177, %v4176
    %v4181 = vpack.c.b16 %v4179, %v4178
    %v4184 = vcombine.high %v4170, %v4170
    %v4186 = vunpack.c.l.s4 1983009808
    %v4187 = vunpack.c.0.s8 %v4186
    %v4188 = vlaneseq
    %v4189 = vshrl.u32 %v4188, 7
    %v4190 = vsub.s32 %v4187, %v4189
    %v4191 = vrot.slane %v4170, %v4190
    %v4193 = vunpack.c.l.s4 1983009808
    %v4194 = vunpack.c.0.s8 %v4193
    %v4195 = vlaneseq
    %v4196 = vshrl.u32 %v4195, 7
    %v4197 = vsub.s32 %v4194, %v4196
    %v4198 = vrot.slane %v4184, %v4197
    %v4199 = vcombine.high %v4191, %v4191
    %v4200 = vcombine.high %v4198, %v4198
    %v4202 = vunpack.c.l.s4 1983009808
    %v4203 = vunpack.c.0.s8 %v4202
    %v4204 = vlaneseq
    %v4205 = vshrl.u32 %v4204, 7
    %v4206 = vsub.s32 %v4203, %v4205
    %v4207 = vrot.slane %v4171, %v4206
    %4208 = vrot.lane.b32.xlu0 %v4191, 77
    %v4209 = vpop.permute.xlu0 %4208
    %4210 = vrot.lane.b32.xlu0 %v4199, 77
    %v4211 = vpop.permute.xlu0 %4210
    %4212 = vrot.lane.b32.xlu0 %v4198, 77
    %v4213 = vpop.permute.xlu0 %4212
    %4214 = vrot.lane.b32.xlu0 %v4200, 77
    %v4215 = vpop.permute.xlu0 %4214
    %4216 = vrot.lane.b32.xlu0 %v4207, 77
    %v4217 = vpop.permute.xlu0 %4216
    %vm4218 = vcmask 629760
    %v4219 = vsel %vm4218, %v4209, %v4211
    %v4220 = vsel %vm4218, %v4211, %v4213
    %v4221 = vsel %vm4218, %v4213, %v4215
    %v4222 = vsel %vm4218, %v4215, %v4217
    %v4224 = vsel %vm81, %v4180, 0
    %v4227 = vsel %vm81, %v4181, 0
    %v4230 = vsel %vm88, %v4219, 0
    %v4233 = vsel %vm88, %v4220, 0
    %v4236 = vsel %vm88, %v4221, 0
    %v4239 = vsel %vm88, %v4222, 0
    %4241 = vmatprep.subr.bf16.mxu0 %v4233
    %4242 = vmatpush1.bf16.msra.mxu0 %v4230
    %4243 = vmatprep.subr.bf16.mxu0 0
    %4244 = vmatpush1.bf16.msra.mxu0 0
    %4245 = vmatprep.subr.bf16.mxu0 0
    %4246 = vmatpush1.bf16.msra.mxu0 0
    %4247 = vmatprep.subr.bf16.mxu0 0
    %4248 = vmatpush1.bf16.msra.mxu0 0
    %4249 = vmatprep.subr.bf16.mxu0 0
    %4250 = vmatpush1.bf16.msra.mxu0 0
    %4251 = vmatprep.subr.bf16.mxu0 0
    %4252 = vmatpush1.bf16.msra.mxu0 0
    %4253 = vmatprep.subr.bf16.mxu0 0
    %4254 = vmatpush1.bf16.msra.mxu0 0
    %4255 = vmatprep.subr.bf16.mxu0 0
    %4256 = vmatpush1.bf16.msra.mxu0 0
    %4257 = vmatprep.subr.bf16.mxu0 0
    %4258 = vmatpush1.bf16.msra.mxu0 0
    %4259 = vmatprep.subr.bf16.mxu0 0
    %4260 = vmatpush1.bf16.msra.mxu0 0
    %4261 = vmatprep.subr.bf16.mxu0 0
    %4262 = vmatpush1.bf16.msra.mxu0 0
    %4263 = vmatprep.subr.bf16.mxu0 0
    %4264 = vmatpush1.bf16.msra.mxu0 0
    %4265 = vmatprep.subr.bf16.mxu0 0
    %4266 = vmatpush1.bf16.msra.mxu0 0
    %4267 = vmatprep.subr.bf16.mxu0 0
    %4268 = vmatpush1.bf16.msra.mxu0 0
    %4269 = vmatprep.subr.bf16.mxu0 0
    %4270 = vmatpush1.bf16.msra.mxu0 0
    %4271 = vmatprep.subr.bf16.mxu0 0
    %4272 = vmatpush1.bf16.msra.mxu0 0
    %4273 = vmatprep.mubr.bf16.mxu0 0
    %4274 = vmatmul.mubr.bf16.gmra.mrb[0].mxu0 %v4224
    %v4275 = vpop.f32.mrb[0].mxu0
    %v4276 = vadd.f32 0.0, %v4275
    %v4277 = vpop.f32.mrb[0].mxu0
    %v4278 = vadd.f32 0.0, %v4277
    %v4279 = vpop.f32.mrb[0].mxu0
    %v4280 = vadd.f32 0.0, %v4279
    %v4281 = vpop.f32.mrb[0].mxu0
    %v4282 = vadd.f32 0.0, %v4281
    %4283 = vmatprep.mubr.bf16.mxu0 0
    %4284 = vmatmul.mubr.bf16.gmra.mrb[0].mxu0 %v4227
    %v4285 = vpop.f32.mrb[0].mxu0
    %v4286 = vadd.f32 0.0, %v4285
    %v4287 = vpop.f32.mrb[0].mxu0
    %v4288 = vadd.f32 0.0, %v4287
    %v4289 = vpop.f32.mrb[0].mxu0
    %v4290 = vadd.f32 0.0, %v4289
    %v4291 = vpop.f32.mrb[0].mxu0
    %v4292 = vadd.f32 0.0, %v4291
    %4293 = vdwg.mxu0
    %4294 = vmatprep.subr.bf16.mxu0 %v4239
    %4295 = vmatpush1.bf16.msra.mxu0 %v4236
    %4296 = vmatprep.subr.bf16.mxu0 0
    %4297 = vmatpush1.bf16.msra.mxu0 0
    %4298 = vmatprep.subr.bf16.mxu0 0
    %4299 = vmatpush1.bf16.msra.mxu0 0
    %4300 = vmatprep.subr.bf16.mxu0 0
    %4301 = vmatpush1.bf16.msra.mxu0 0
    %4302 = vmatprep.subr.bf16.mxu0 0
    %4303 = vmatpush1.bf16.msra.mxu0 0
    %4304 = vmatprep.subr.bf16.mxu0 0
    %4305 = vmatpush1.bf16.msra.mxu0 0
    %4306 = vmatprep.subr.bf16.mxu0 0
    %4307 = vmatpush1.bf16.msra.mxu0 0
    %4308 = vmatprep.subr.bf16.mxu0 0
    %4309 = vmatpush1.bf16.msra.mxu0 0
    %4310 = vmatprep.subr.bf16.mxu0 0
    %4311 = vmatpush1.bf16.msra.mxu0 0
    %4312 = vmatprep.subr.bf16.mxu0 0
    %4313 = vmatpush1.bf16.msra.mxu0 0
    %4314 = vmatprep.subr.bf16.mxu0 0
    %4315 = vmatpush1.bf16.msra.mxu0 0
    %4316 = vmatprep.subr.bf16.mxu0 0
    %4317 = vmatpush1.bf16.msra.mxu0 0
    %4318 = vmatprep.subr.bf16.mxu0 0
    %4319 = vmatpush1.bf16.msra.mxu0 0
    %4320 = vmatprep.subr.bf16.mxu0 0
    %4321 = vmatpush1.bf16.msra.mxu0 0
    %4322 = vmatprep.subr.bf16.mxu0 0
    %4323 = vmatpush1.bf16.msra.mxu0 0
    %4324 = vmatprep.subr.bf16.mxu0 0
    %4325 = vmatpush1.bf16.msra.mxu0 0
    %4326 = vmatprep.mubr.bf16.mxu0 0
    %4327 = vmatmul.mubr.bf16.gmra.mrb[0].mxu0 %v4224
    %v4328 = vpop.f32.mrb[0].mxu0
    %v4329 = vadd.f32 0.0, %v4328
    %v4330 = vpop.f32.mrb[0].mxu0
    %v4331 = vadd.f32 0.0, %v4330
    %v4332 = vpop.f32.mrb[0].mxu0
    %v4333 = vadd.f32 0.0, %v4332
    %v4334 = vpop.f32.mrb[0].mxu0
    %v4335 = vadd.f32 0.0, %v4334
    %4336 = vmatprep.mubr.bf16.mxu0 0
    %4337 = vmatmul.mubr.bf16.gmra.mrb[0].mxu0 %v4227
    %v4338 = vpop.f32.mrb[0].mxu0
    %v4339 = vadd.f32 0.0, %v4338
    %v4340 = vpop.f32.mrb[0].mxu0
    %v4341 = vadd.f32 0.0, %v4340
    %v4342 = vpop.f32.mrb[0].mxu0
    %v4343 = vadd.f32 0.0, %v4342
    %v4344 = vpop.f32.mrb[0].mxu0
    %v4345 = vadd.f32 0.0, %v4344
    %4346 = vdwg.mxu0
    %v4347 = vadd.f32 %v4149, %v4276
    %v4348 = vadd.f32 %v4150, %v4278
    %v4349 = vadd.f32 %v4151, %v4329
    %v4350 = vadd.f32 %v4152, %v4331
    %v4351 = vadd.f32 %v4153, %v4280
    %v4352 = vadd.f32 %v4154, %v4282
    %v4353 = vadd.f32 %v4155, %v4333
    %v4354 = vadd.f32 %v4156, %v4335
    %v4355 = vadd.f32 %v4157, %v4286
    %v4356 = vadd.f32 %v4158, %v4288
    %v4357 = vadd.f32 %v4159, %v4339
    %v4358 = vadd.f32 %v4160, %v4341
    %v4359 = vadd.f32 %v4161, %v4290
    %v4360 = vadd.f32 %v4162, %v4292
    %v4361 = vadd.f32 %v4163, %v4343
    %v4362 = vadd.f32 %v4164, %v4345
    %4363 = vst [vmem:[#allocation2] sm:$0xff] %v4347
    %4364 = vst [vmem:[#allocation2 + $0x8] sm:$0xff] %v4348
    %4365 = vst [vmem:[#allocation2 + $0x10] sm:$0xff] %v4349
    %4366 = vst [vmem:[#allocation2 + $0x18] sm:$0xff] %v4350
    %4367 = vst [vmem:[#allocation2 + $0x20] sm:$0xff] %v4351
    %4368 = vst [vmem:[#allocation2 + $0x28] sm:$0xff] %v4352
    %4369 = vst [vmem:[#allocation2 + $0x30] sm:$0xff] %v4353
    %4370 = vst [vmem:[#allocation2 + $0x38] sm:$0xff] %v4354
    %4371 = vst [vmem:[#allocation2 + $0x40] sm:$0xff] %v4355
    %4372 = vst [vmem:[#allocation2 + $0x48] sm:$0xff] %v4356
    %4373 = vst [vmem:[#allocation2 + $0x50] sm:$0xff] %v4357
    %4374 = vst [vmem:[#allocation2 + $0x58] sm:$0xff] %v4358
    %4375 = vst [vmem:[#allocation2 + $0x60] sm:$0xff] %v4359
    %4376 = vst [vmem:[#allocation2 + $0x68] sm:$0xff] %v4360
    %4377 = vst [vmem:[#allocation2 + $0x70] sm:$0xff] %v4361
    %4378 = vst [vmem:[#allocation2 + $0x78] sm:$0xff] %v4362
    %v4379 = vld [vmem:[#allocation2] sm:$0xff]
    %v4380 = vld [vmem:[#allocation2 + $0x8] sm:$0xff]
    %v4381 = vld [vmem:[#allocation2 + $0x10] sm:$0xff]
    %v4382 = vld [vmem:[#allocation2 + $0x18] sm:$0xff]
    %v4383 = vld [vmem:[#allocation2 + $0x20] sm:$0xff]
    %v4384 = vld [vmem:[#allocation2 + $0x28] sm:$0xff]
    %v4385 = vld [vmem:[#allocation2 + $0x30] sm:$0xff]
    %v4386 = vld [vmem:[#allocation2 + $0x38] sm:$0xff]
    %v4387 = vld [vmem:[#allocation2 + $0x40] sm:$0xff]
    %v4388 = vld [vmem:[#allocation2 + $0x48] sm:$0xff]
    %v4389 = vld [vmem:[#allocation2 + $0x50] sm:$0xff]
    %v4390 = vld [vmem:[#allocation2 + $0x58] sm:$0xff]
    %v4391 = vld [vmem:[#allocation2 + $0x60] sm:$0xff]
    %v4392 = vld [vmem:[#allocation2 + $0x68] sm:$0xff]
    %v4393 = vld [vmem:[#allocation2 + $0x70] sm:$0xff]
    %v4394 = vld [vmem:[#allocation2 + $0x78] sm:$0xff]
    %s4395 = scalar_lea.vmem %s0, 304
    %v4396 = vld [vmem:[%s4395] sm:$0xf]
    %v4397 = vld [vmem:[%s4395 + $0x4] sm:$0xf]
    %v4398 = vld [vmem:[%s4395 + $0x8] sm:$0xf]
    %v4399 = vld [vmem:[%s4395 + $0xc] sm:$0xf]
    %v4400 = vld [vmem:[%s2] sm:$0xff]
    %v4401 = vld [vmem:[%s2 + $0x8] sm:$0x3]
    %v4406 = vunpack.c.l.b16 %v4396
    %v4407 = vunpack.c.l.b16 %v4397
    %v4408 = vunpack.c.l.b16 %v4398
    %v4409 = vunpack.c.l.b16 %v4399
    %v4410 = vpack.c.b16 %v4407, %v4406
    %v4411 = vpack.c.b16 %v4409, %v4408
    %v4414 = vcombine.high %v4400, %v4400
    %v4416 = vunpack.c.l.s4 1983009808
    %v4417 = vunpack.c.0.s8 %v4416
    %v4418 = vlaneseq
    %v4419 = vshrl.u32 %v4418, 7
    %v4420 = vsub.s32 %v4417, %v4419
    %v4421 = vrot.slane %v4400, %v4420
    %v4423 = vunpack.c.l.s4 1983009808
    %v4424 = vunpack.c.0.s8 %v4423
    %v4425 = vlaneseq
    %v4426 = vshrl.u32 %v4425, 7
    %v4427 = vsub.s32 %v4424, %v4426
    %v4428 = vrot.slane %v4414, %v4427
    %v4429 = vcombine.high %v4421, %v4421
    %v4430 = vcombine.high %v4428, %v4428
    %v4432 = vunpack.c.l.s4 1983009808
    %v4433 = vunpack.c.0.s8 %v4432
    %v4434 = vlaneseq
    %v4435 = vshrl.u32 %v4434, 7
    %v4436 = vsub.s32 %v4433, %v4435
    %v4437 = vrot.slane %v4401, %v4436
    %4438 = vrot.lane.b32.xlu0 %v4421, 76
    %v4439 = vpop.permute.xlu0 %4438
    %4440 = vrot.lane.b32.xlu0 %v4429, 76
    %v4441 = vpop.permute.xlu0 %4440
    %4442 = vrot.lane.b32.xlu0 %v4428, 76
    %v4443 = vpop.permute.xlu0 %4442
    %4444 = vrot.lane.b32.xlu0 %v4430, 76
    %v4445 = vpop.permute.xlu0 %4444
    %4446 = vrot.lane.b32.xlu0 %v4437, 76
    %v4447 = vpop.permute.xlu0 %4446
    %vm4448 = vcmask 621568
    %v4449 = vsel %vm4448, %v4439, %v4441
    %v4450 = vsel %vm4448, %v4441, %v4443
    %v4451 = vsel %vm4448, %v4443, %v4445
    %v4452 = vsel %vm4448, %v4445, %v4447
    %v4454 = vsel %vm81, %v4410, 0
    %v4457 = vsel %vm81, %v4411, 0
    %v4460 = vsel %vm88, %v4449, 0
    %v4463 = vsel %vm88, %v4450, 0
    %v4466 = vsel %vm88, %v4451, 0
    %v4469 = vsel %vm88, %v4452, 0
    %4471 = vmatprep.subr.bf16.mxu0 %v4463
    %4472 = vmatpush1.bf16.msra.mxu0 %v4460
    %4473 = vmatprep.subr.bf16.mxu0 0
    %4474 = vmatpush1.bf16.msra.mxu0 0
    %4475 = vmatprep.subr.bf16.mxu0 0
    %4476 = vmatpush1.bf16.msra.mxu0 0
    %4477 = vmatprep.subr.bf16.mxu0 0
    %4478 = vmatpush1.bf16.msra.mxu0 0
    %4479 = vmatprep.subr.bf16.mxu0 0
    %4480 = vmatpush1.bf16.msra.mxu0 0
    %4481 = vmatprep.subr.bf16.mxu0 0
    %4482 = vmatpush1.bf16.msra.mxu0 0
    %4483 = vmatprep.subr.bf16.mxu0 0
    %4484 = vmatpush1.bf16.msra.mxu0 0
    %4485 = vmatprep.subr.bf16.mxu0 0
    %4486 = vmatpush1.bf16.msra.mxu0 0
    %4487 = vmatprep.subr.bf16.mxu0 0
    %4488 = vmatpush1.bf16.msra.mxu0 0
    %4489 = vmatprep.subr.bf16.mxu0 0
    %4490 = vmatpush1.bf16.msra.mxu0 0
    %4491 = vmatprep.subr.bf16.mxu0 0
    %4492 = vmatpush1.bf16.msra.mxu0 0
    %4493 = vmatprep.subr.bf16.mxu0 0
    %4494 = vmatpush1.bf16.msra.mxu0 0
    %4495 = vmatprep.subr.bf16.mxu0 0
    %4496 = vmatpush1.bf16.msra.mxu0 0
    %4497 = vmatprep.subr.bf16.mxu0 0
    %4498 = vmatpush1.bf16.msra.mxu0 0
    %4499 = vmatprep.subr.bf16.mxu0 0
    %4500 = vmatpush1.bf16.msra.mxu0 0
    %4501 = vmatprep.subr.bf16.mxu0 0
    %4502 = vmatpush1.bf16.msra.mxu0 0
    %4503 = vmatprep.mubr.bf16.mxu0 0
    %4504 = vmatmul.mubr.bf16.gmra.mrb[0].mxu0 %v4454
    %v4505 = vpop.f32.mrb[0].mxu0
    %v4506 = vadd.f32 0.0, %v4505
    %v4507 = vpop.f32.mrb[0].mxu0
    %v4508 = vadd.f32 0.0, %v4507
    %v4509 = vpop.f32.mrb[0].mxu0
    %v4510 = vadd.f32 0.0, %v4509
    %v4511 = vpop.f32.mrb[0].mxu0
    %v4512 = vadd.f32 0.0, %v4511
    %4513 = vmatprep.mubr.bf16.mxu0 0
    %4514 = vmatmul.mubr.bf16.gmra.mrb[0].mxu0 %v4457
    %v4515 = vpop.f32.mrb[0].mxu0
    %v4516 = vadd.f32 0.0, %v4515
    %v4517 = vpop.f32.mrb[0].mxu0
    %v4518 = vadd.f32 0.0, %v4517
    %v4519 = vpop.f32.mrb[0].mxu0
    %v4520 = vadd.f32 0.0, %v4519
    %v4521 = vpop.f32.mrb[0].mxu0
    %v4522 = vadd.f32 0.0, %v4521
    %4523 = vdwg.mxu0
    %4524 = vmatprep.subr.bf16.mxu0 %v4469
    %4525 = vmatpush1.bf16.msra.mxu0 %v4466
    %4526 = vmatprep.subr.bf16.mxu0 0
    %4527 = vmatpush1.bf16.msra.mxu0 0
    %4528 = vmatprep.subr.bf16.mxu0 0
    %4529 = vmatpush1.bf16.msra.mxu0 0
    %4530 = vmatprep.subr.bf16.mxu0 0
    %4531 = vmatpush1.bf16.msra.mxu0 0
    %4532 = vmatprep.subr.bf16.mxu0 0
    %4533 = vmatpush1.bf16.msra.mxu0 0
    %4534 = vmatprep.subr.bf16.mxu0 0
    %4535 = vmatpush1.bf16.msra.mxu0 0
    %4536 = vmatprep.subr.bf16.mxu0 0
    %4537 = vmatpush1.bf16.msra.mxu0 0
    %4538 = vmatprep.subr.bf16.mxu0 0
    %4539 = vmatpush1.bf16.msra.mxu0 0
    %4540 = vmatprep.subr.bf16.mxu0 0
    %4541 = vmatpush1.bf16.msra.mxu0 0
    %4542 = vmatprep.subr.bf16.mxu0 0
    %4543 = vmatpush1.bf16.msra.mxu0 0
    %4544 = vmatprep.subr.bf16.mxu0 0
    %4545 = vmatpush1.bf16.msra.mxu0 0
    %4546 = vmatprep.subr.bf16.mxu0 0
    %4547 = vmatpush1.bf16.msra.mxu0 0
    %4548 = vmatprep.subr.bf16.mxu0 0
    %4549 = vmatpush1.bf16.msra.mxu0 0
    %4550 = vmatprep.subr.bf16.mxu0 0
    %4551 = vmatpush1.bf16.msra.mxu0 0
    %4552 = vmatprep.subr.bf16.mxu0 0
    %4553 = vmatpush1.bf16.msra.mxu0 0
    %4554 = vmatprep.subr.bf16.mxu0 0
    %4555 = vmatpush1.bf16.msra.mxu0 0
    %4556 = vmatprep.mubr.bf16.mxu0 0
    %4557 = vmatmul.mubr.bf16.gmra.mrb[0].mxu0 %v4454
    %v4558 = vpop.f32.mrb[0].mxu0
    %v4559 = vadd.f32 0.0, %v4558
    %v4560 = vpop.f32.mrb[0].mxu0
    %v4561 = vadd.f32 0.0, %v4560
    %v4562 = vpop.f32.mrb[0].mxu0
    %v4563 = vadd.f32 0.0, %v4562
    %v4564 = vpop.f32.mrb[0].mxu0
    %v4565 = vadd.f32 0.0, %v4564
    %4566 = vmatprep.mubr.bf16.mxu0 0
    %4567 = vmatmul.mubr.bf16.gmra.mrb[0].mxu0 %v4457
    %v4568 = vpop.f32.mrb[0].mxu0
    %v4569 = vadd.f32 0.0, %v4568
    %v4570 = vpop.f32.mrb[0].mxu0
    %v4571 = vadd.f32 0.0, %v4570
    %v4572 = vpop.f32.mrb[0].mxu0
    %v4573 = vadd.f32 0.0, %v4572
    %v4574 = vpop.f32.mrb[0].mxu0
    %v4575 = vadd.f32 0.0, %v4574
    %4576 = vdwg.mxu0
    %v4577 = vadd.f32 %v4379, %v4506
    %v4578 = vadd.f32 %v4380, %v4508
    %v4579 = vadd.f32 %v4381, %v4559
    %v4580 = vadd.f32 %v4382, %v4561
    %v4581 = vadd.f32 %v4383, %v4510
    %v4582 = vadd.f32 %v4384, %v4512
    %v4583 = vadd.f32 %v4385, %v4563
    %v4584 = vadd.f32 %v4386, %v4565
    %v4585 = vadd.f32 %v4387, %v4516
    %v4586 = vadd.f32 %v4388, %v4518
    %v4587 = vadd.f32 %v4389, %v4569
    %v4588 = vadd.f32 %v4390, %v4571
    %v4589 = vadd.f32 %v4391, %v4520
    %v4590 = vadd.f32 %v4392, %v4522
    %v4591 = vadd.f32 %v4393, %v4573
    %v4592 = vadd.f32 %v4394, %v4575
    %4593 = vst [vmem:[#allocation2] sm:$0xff] %v4577
    %4594 = vst [vmem:[#allocation2 + $0x8] sm:$0xff] %v4578
    %4595 = vst [vmem:[#allocation2 + $0x10] sm:$0xff] %v4579
    %4596 = vst [vmem:[#allocation2 + $0x18] sm:$0xff] %v4580
    %4597 = vst [vmem:[#allocation2 + $0x20] sm:$0xff] %v4581
    %4598 = vst [vmem:[#allocation2 + $0x28] sm:$0xff] %v4582
    %4599 = vst [vmem:[#allocation2 + $0x30] sm:$0xff] %v4583
    %4600 = vst [vmem:[#allocation2 + $0x38] sm:$0xff] %v4584
    %4601 = vst [vmem:[#allocation2 + $0x40] sm:$0xff] %v4585
    %4602 = vst [vmem:[#allocation2 + $0x48] sm:$0xff] %v4586
    %4603 = vst [vmem:[#allocation2 + $0x50] sm:$0xff] %v4587
    %4604 = vst [vmem:[#allocation2 + $0x58] sm:$0xff] %v4588
    %4605 = vst [vmem:[#allocation2 + $0x60] sm:$0xff] %v4589
    %4606 = vst [vmem:[#allocation2 + $0x68] sm:$0xff] %v4590
    %4607 = vst [vmem:[#allocation2 + $0x70] sm:$0xff] %v4591
    %4608 = vst [vmem:[#allocation2 + $0x78] sm:$0xff] %v4592
    %v4609 = vld [vmem:[#allocation2] sm:$0xff]
    %v4610 = vld [vmem:[#allocation2 + $0x8] sm:$0xff]
    %v4611 = vld [vmem:[#allocation2 + $0x10] sm:$0xff]
    %v4612 = vld [vmem:[#allocation2 + $0x18] sm:$0xff]
    %v4613 = vld [vmem:[#allocation2 + $0x20] sm:$0xff]
    %v4614 = vld [vmem:[#allocation2 + $0x28] sm:$0xff]
    %v4615 = vld [vmem:[#allocation2 + $0x30] sm:$0xff]
    %v4616 = vld [vmem:[#allocation2 + $0x38] sm:$0xff]
    %v4617 = vld [vmem:[#allocation2 + $0x40] sm:$0xff]
    %v4618 = vld [vmem:[#allocation2 + $0x48] sm:$0xff]
    %v4619 = vld [vmem:[#allocation2 + $0x50] sm:$0xff]
    %v4620 = vld [vmem:[#allocation2 + $0x58] sm:$0xff]
    %v4621 = vld [vmem:[#allocation2 + $0x60] sm:$0xff]
    %v4622 = vld [vmem:[#allocation2 + $0x68] sm:$0xff]
    %v4623 = vld [vmem:[#allocation2 + $0x70] sm:$0xff]
    %v4624 = vld [vmem:[#allocation2 + $0x78] sm:$0xff]
    %s4625 = scalar_lea.vmem %s0, 320
    %v4626 = vld [vmem:[%s4625] sm:$0xf]
    %v4627 = vld [vmem:[%s4625 + $0x4] sm:$0xf]
    %v4628 = vld [vmem:[%s4625 + $0x8] sm:$0xf]
    %v4629 = vld [vmem:[%s4625 + $0xc] sm:$0xf]
    %v4630 = vld [vmem:[%s2] sm:$0xff]
    %v4631 = vld [vmem:[%s2 + $0x8] sm:$0x3]
    %v4636 = vunpack.c.l.b16 %v4626
    %v4637 = vunpack.c.l.b16 %v4627
    %v4638 = vunpack.c.l.b16 %v4628
    %v4639 = vunpack.c.l.b16 %v4629
    %v4640 = vpack.c.b16 %v4637, %v4636
    %v4641 = vpack.c.b16 %v4639, %v4638
    %v4644 = vcombine.high %v4630, %v4630
    %v4646 = vunpack.c.l.s4 1983009808
    %v4647 = vunpack.c.0.s8 %v4646
    %v4648 = vlaneseq
    %v4649 = vshrl.u32 %v4648, 7
    %v4650 = vsub.s32 %v4647, %v4649
    %v4651 = vrot.slane %v4630, %v4650
    %v4653 = vunpack.c.l.s4 1983009808
    %v4654 = vunpack.c.0.s8 %v4653
    %v4655 = vlaneseq
    %v4656 = vshrl.u32 %v4655, 7
    %v4657 = vsub.s32 %v4654, %v4656
    %v4658 = vrot.slane %v4644, %v4657
    %v4659 = vcombine.high %v4651, %v4651
    %v4660 = vcombine.high %v4658, %v4658
    %v4662 = vunpack.c.l.s4 1983009808
    %v4663 = vunpack.c.0.s8 %v4662
    %v4664 = vlaneseq
    %v4665 = vshrl.u32 %v4664, 7
    %v4666 = vsub.s32 %v4663, %v4665
    %v4667 = vrot.slane %v4631, %v4666
    %4668 = vrot.lane.b32.xlu0 %v4651, 64
    %v4669 = vpop.permute.xlu0 %4668
    %4670 = vrot.lane.b32.xlu0 %v4659, 64
    %v4671 = vpop.permute.xlu0 %4670
    %4672 = vrot.lane.b32.xlu0 %v4658, 64
    %v4673 = vpop.permute.xlu0 %4672
    %4674 = vrot.lane.b32.xlu0 %v4660, 64
    %v4675 = vpop.permute.xlu0 %4674
    %4676 = vrot.lane.b32.xlu0 %v4667, 64
    %v4677 = vpop.permute.xlu0 %4676
    %vm4678 = vcmask 523264
    %v4679 = vsel %vm4678, %v4669, %v4671
    %v4680 = vsel %vm4678, %v4671, %v4673
    %v4681 = vsel %vm4678, %v4673, %v4675
    %v4682 = vsel %vm4678, %v4675, %v4677
    %v4684 = vsel %vm81, %v4640, 0
    %v4687 = vsel %vm81, %v4641, 0
    %v4690 = vsel %vm88, %v4679, 0
    %v4693 = vsel %vm88, %v4680, 0
    %v4696 = vsel %vm88, %v4681, 0
    %v4699 = vsel %vm88, %v4682, 0
    %4701 = vmatprep.subr.bf16.mxu0 %v4693
    %4702 = vmatpush1.bf16.msra.mxu0 %v4690
    %4703 = vmatprep.subr.bf16.mxu0 0
    %4704 = vmatpush1.bf16.msra.mxu0 0
    %4705 = vmatprep.subr.bf16.mxu0 0
    %4706 = vmatpush1.bf16.msra.mxu0 0
    %4707 = vmatprep.subr.bf16.mxu0 0
    %4708 = vmatpush1.bf16.msra.mxu0 0
    %4709 = vmatprep.subr.bf16.mxu0 0
    %4710 = vmatpush1.bf16.msra.mxu0 0
    %4711 = vmatprep.subr.bf16.mxu0 0
    %4712 = vmatpush1.bf16.msra.mxu0 0
    %4713 = vmatprep.subr.bf16.mxu0 0
    %4714 = vmatpush1.bf16.msra.mxu0 0
    %4715 = vmatprep.subr.bf16.mxu0 0
    %4716 = vmatpush1.bf16.msra.mxu0 0
    %4717 = vmatprep.subr.bf16.mxu0 0
    %4718 = vmatpush1.bf16.msra.mxu0 0
    %4719 = vmatprep.subr.bf16.mxu0 0
    %4720 = vmatpush1.bf16.msra.mxu0 0
    %4721 = vmatprep.subr.bf16.mxu0 0
    %4722 = vmatpush1.bf16.msra.mxu0 0
    %4723 = vmatprep.subr.bf16.mxu0 0
    %4724 = vmatpush1.bf16.msra.mxu0 0
    %4725 = vmatprep.subr.bf16.mxu0 0
    %4726 = vmatpush1.bf16.msra.mxu0 0
    %4727 = vmatprep.subr.bf16.mxu0 0
    %4728 = vmatpush1.bf16.msra.mxu0 0
    %4729 = vmatprep.subr.bf16.mxu0 0
    %4730 = vmatpush1.bf16.msra.mxu0 0
    %4731 = vmatprep.subr.bf16.mxu0 0
    %4732 = vmatpush1.bf16.msra.mxu0 0
    %4733 = vmatprep.mubr.bf16.mxu0 0
    %4734 = vmatmul.mubr.bf16.gmra.mrb[0].mxu0 %v4684
    %v4735 = vpop.f32.mrb[0].mxu0
    %v4736 = vadd.f32 0.0, %v4735
    %v4737 = vpop.f32.mrb[0].mxu0
    %v4738 = vadd.f32 0.0, %v4737
    %v4739 = vpop.f32.mrb[0].mxu0
    %v4740 = vadd.f32 0.0, %v4739
    %v4741 = vpop.f32.mrb[0].mxu0
    %v4742 = vadd.f32 0.0, %v4741
    %4743 = vmatprep.mubr.bf16.mxu0 0
    %4744 = vmatmul.mubr.bf16.gmra.mrb[0].mxu0 %v4687
    %v4745 = vpop.f32.mrb[0].mxu0
    %v4746 = vadd.f32 0.0, %v4745
    %v4747 = vpop.f32.mrb[0].mxu0
    %v4748 = vadd.f32 0.0, %v4747
    %v4749 = vpop.f32.mrb[0].mxu0
    %v4750 = vadd.f32 0.0, %v4749
    %v4751 = vpop.f32.mrb[0].mxu0
    %v4752 = vadd.f32 0.0, %v4751
    %4753 = vdwg.mxu0
    %4754 = vmatprep.subr.bf16.mxu0 %v4699
    %4755 = vmatpush1.bf16.msra.mxu0 %v4696
    %4756 = vmatprep.subr.bf16.mxu0 0
    %4757 = vmatpush1.bf16.msra.mxu0 0
    %4758 = vmatprep.subr.bf16.mxu0 0
    %4759 = vmatpush1.bf16.msra.mxu0 0
    %4760 = vmatprep.subr.bf16.mxu0 0
    %4761 = vmatpush1.bf16.msra.mxu0 0
    %4762 = vmatprep.subr.bf16.mxu0 0
    %4763 = vmatpush1.bf16.msra.mxu0 0
    %4764 = vmatprep.subr.bf16.mxu0 0
    %4765 = vmatpush1.bf16.msra.mxu0 0
    %4766 = vmatprep.subr.bf16.mxu0 0
    %4767 = vmatpush1.bf16.msra.mxu0 0
    %4768 = vmatprep.subr.bf16.mxu0 0
    %4769 = vmatpush1.bf16.msra.mxu0 0
    %4770 = vmatprep.subr.bf16.mxu0 0
    %4771 = vmatpush1.bf16.msra.mxu0 0
    %4772 = vmatprep.subr.bf16.mxu0 0
    %4773 = vmatpush1.bf16.msra.mxu0 0
    %4774 = vmatprep.subr.bf16.mxu0 0
    %4775 = vmatpush1.bf16.msra.mxu0 0
    %4776 = vmatprep.subr.bf16.mxu0 0
    %4777 = vmatpush1.bf16.msra.mxu0 0
    %4778 = vmatprep.subr.bf16.mxu0 0
    %4779 = vmatpush1.bf16.msra.mxu0 0
    %4780 = vmatprep.subr.bf16.mxu0 0
    %4781 = vmatpush1.bf16.msra.mxu0 0
    %4782 = vmatprep.subr.bf16.mxu0 0
    %4783 = vmatpush1.bf16.msra.mxu0 0
    %4784 = vmatprep.subr.bf16.mxu0 0
    %4785 = vmatpush1.bf16.msra.mxu0 0
    %4786 = vmatprep.mubr.bf16.mxu0 0
    %4787 = vmatmul.mubr.bf16.gmra.mrb[0].mxu0 %v4684
    %v4788 = vpop.f32.mrb[0].mxu0
    %v4789 = vadd.f32 0.0, %v4788
    %v4790 = vpop.f32.mrb[0].mxu0
    %v4791 = vadd.f32 0.0, %v4790
    %v4792 = vpop.f32.mrb[0].mxu0
    %v4793 = vadd.f32 0.0, %v4792
    %v4794 = vpop.f32.mrb[0].mxu0
    %v4795 = vadd.f32 0.0, %v4794
    %4796 = vmatprep.mubr.bf16.mxu0 0
    %4797 = vmatmul.mubr.bf16.gmra.mrb[0].mxu0 %v4687
    %v4798 = vpop.f32.mrb[0].mxu0
    %v4799 = vadd.f32 0.0, %v4798
    %v4800 = vpop.f32.mrb[0].mxu0
    %v4801 = vadd.f32 0.0, %v4800
    %v4802 = vpop.f32.mrb[0].mxu0
    %v4803 = vadd.f32 0.0, %v4802
    %v4804 = vpop.f32.mrb[0].mxu0
    %v4805 = vadd.f32 0.0, %v4804
    %4806 = vdwg.mxu0
    %v4807 = vadd.f32 %v4609, %v4736
    %v4808 = vadd.f32 %v4610, %v4738
    %v4809 = vadd.f32 %v4611, %v4789
    %v4810 = vadd.f32 %v4612, %v4791
    %v4811 = vadd.f32 %v4613, %v4740
    %v4812 = vadd.f32 %v4614, %v4742
    %v4813 = vadd.f32 %v4615, %v4793
    %v4814 = vadd.f32 %v4616, %v4795
    %v4815 = vadd.f32 %v4617, %v4746
    %v4816 = vadd.f32 %v4618, %v4748
    %v4817 = vadd.f32 %v4619, %v4799
    %v4818 = vadd.f32 %v4620, %v4801
    %v4819 = vadd.f32 %v4621, %v4750
    %v4820 = vadd.f32 %v4622, %v4752
    %v4821 = vadd.f32 %v4623, %v4803
    %v4822 = vadd.f32 %v4624, %v4805
    %4823 = vst [vmem:[#allocation2] sm:$0xff] %v4807
    %4824 = vst [vmem:[#allocation2 + $0x8] sm:$0xff] %v4808
    %4825 = vst [vmem:[#allocation2 + $0x10] sm:$0xff] %v4809
    %4826 = vst [vmem:[#allocation2 + $0x18] sm:$0xff] %v4810
    %4827 = vst [vmem:[#allocation2 + $0x20] sm:$0xff] %v4811
    %4828 = vst [vmem:[#allocation2 + $0x28] sm:$0xff] %v4812
    %4829 = vst [vmem:[#allocation2 + $0x30] sm:$0xff] %v4813
    %4830 = vst [vmem:[#allocation2 + $0x38] sm:$0xff] %v4814
    %4831 = vst [vmem:[#allocation2 + $0x40] sm:$0xff] %v4815
    %4832 = vst [vmem:[#allocation2 + $0x48] sm:$0xff] %v4816
    %4833 = vst [vmem:[#allocation2 + $0x50] sm:$0xff] %v4817
    %4834 = vst [vmem:[#allocation2 + $0x58] sm:$0xff] %v4818
    %4835 = vst [vmem:[#allocation2 + $0x60] sm:$0xff] %v4819
    %4836 = vst [vmem:[#allocation2 + $0x68] sm:$0xff] %v4820
    %4837 = vst [vmem:[#allocation2 + $0x70] sm:$0xff] %v4821
    %4838 = vst [vmem:[#allocation2 + $0x78] sm:$0xff] %v4822
    %v4839 = vld [vmem:[#allocation2] sm:$0xff]
    %v4840 = vld [vmem:[#allocation2 + $0x8] sm:$0xff]
    %v4841 = vld [vmem:[#allocation2 + $0x10] sm:$0xff]
    %v4842 = vld [vmem:[#allocation2 + $0x18] sm:$0xff]
    %v4843 = vld [vmem:[#allocation2 + $0x20] sm:$0xff]
    %v4844 = vld [vmem:[#allocation2 + $0x28] sm:$0xff]
    %v4845 = vld [vmem:[#allocation2 + $0x30] sm:$0xff]
    %v4846 = vld [vmem:[#allocation2 + $0x38] sm:$0xff]
    %v4847 = vld [vmem:[#allocation2 + $0x40] sm:$0xff]
    %v4848 = vld [vmem:[#allocation2 + $0x48] sm:$0xff]
    %v4849 = vld [vmem:[#allocation2 + $0x50] sm:$0xff]
    %v4850 = vld [vmem:[#allocation2 + $0x58] sm:$0xff]
    %v4851 = vld [vmem:[#allocation2 + $0x60] sm:$0xff]
    %v4852 = vld [vmem:[#allocation2 + $0x68] sm:$0xff]
    %v4853 = vld [vmem:[#allocation2 + $0x70] sm:$0xff]
    %v4854 = vld [vmem:[#allocation2 + $0x78] sm:$0xff]
    %s4855 = scalar_lea.vmem %s0, 336
    %v4856 = vld [vmem:[%s4855] sm:$0xf]
    %v4857 = vld [vmem:[%s4855 + $0x4] sm:$0xf]
    %v4858 = vld [vmem:[%s4855 + $0x8] sm:$0xf]
    %v4859 = vld [vmem:[%s4855 + $0xc] sm:$0xf]
    %v4860 = vld [vmem:[%s2] sm:$0xff]
    %v4861 = vld [vmem:[%s2 + $0x8] sm:$0x3]
    %v4866 = vunpack.c.l.b16 %v4856
    %v4867 = vunpack.c.l.b16 %v4857
    %v4868 = vunpack.c.l.b16 %v4858
    %v4869 = vunpack.c.l.b16 %v4859
    %v4870 = vpack.c.b16 %v4867, %v4866
    %v4871 = vpack.c.b16 %v4869, %v4868
    %v4874 = vcombine.high %v4860, %v4860
    %v4876 = vunpack.c.l.s4 1983009808
    %v4877 = vunpack.c.0.s8 %v4876
    %v4878 = vlaneseq
    %v4879 = vshrl.u32 %v4878, 7
    %v4880 = vsub.s32 %v4877, %v4879
    %v4881 = vrot.slane %v4860, %v4880
    %v4883 = vunpack.c.l.s4 1983009808
    %v4884 = vunpack.c.0.s8 %v4883
    %v4885 = vlaneseq
    %v4886 = vshrl.u32 %v4885, 7
    %v4887 = vsub.s32 %v4884, %v4886
    %v4888 = vrot.slane %v4874, %v4887
    %v4889 = vcombine.high %v4881, %v4881
    %v4890 = vcombine.high %v4888, %v4888
    %v4892 = vunpack.c.l.s4 1983009808
    %v4893 = vunpack.c.0.s8 %v4892
    %v4894 = vlaneseq
    %v4895 = vshrl.u32 %v4894, 7
    %v4896 = vsub.s32 %v4893, %v4895
    %v4897 = vrot.slane %v4861, %v4896
    %4898 = vrot.lane.b32.xlu0 %v4881, 63
    %v4899 = vpop.permute.xlu0 %4898
    %4900 = vrot.lane.b32.xlu0 %v4889, 63
    %v4901 = vpop.permute.xlu0 %4900
    %4902 = vrot.lane.b32.xlu0 %v4888, 63
    %v4903 = vpop.permute.xlu0 %4902
    %4904 = vrot.lane.b32.xlu0 %v4890, 63
    %v4905 = vpop.permute.xlu0 %4904
    %4906 = vrot.lane.b32.xlu0 %v4897, 63
    %v4907 = vpop.permute.xlu0 %4906
    %vm4908 = vcmask 515072
    %v4909 = vsel %vm4908, %v4899, %v4901
    %v4910 = vsel %vm4908, %v4901, %v4903
    %v4911 = vsel %vm4908, %v4903, %v4905
    %v4912 = vsel %vm4908, %v4905, %v4907
    %v4914 = vsel %vm81, %v4870, 0
    %v4917 = vsel %vm81, %v4871, 0
    %v4920 = vsel %vm88, %v4909, 0
    %v4923 = vsel %vm88, %v4910, 0
    %v4926 = vsel %vm88, %v4911, 0
    %v4929 = vsel %vm88, %v4912, 0
    %4931 = vmatprep.subr.bf16.mxu0 %v4923
    %4932 = vmatpush1.bf16.msra.mxu0 %v4920
    %4933 = vmatprep.subr.bf16.mxu0 0
    %4934 = vmatpush1.bf16.msra.mxu0 0
    %4935 = vmatprep.subr.bf16.mxu0 0
    %4936 = vmatpush1.bf16.msra.mxu0 0
    %4937 = vmatprep.subr.bf16.mxu0 0
    %4938 = vmatpush1.bf16.msra.mxu0 0
    %4939 = vmatprep.subr.bf16.mxu0 0
    %4940 = vmatpush1.bf16.msra.mxu0 0
    %4941 = vmatprep.subr.bf16.mxu0 0
    %4942 = vmatpush1.bf16.msra.mxu0 0
    %4943 = vmatprep.subr.bf16.mxu0 0
    %4944 = vmatpush1.bf16.msra.mxu0 0
    %4945 = vmatprep.subr.bf16.mxu0 0
    %4946 = vmatpush1.bf16.msra.mxu0 0
    %4947 = vmatprep.subr.bf16.mxu0 0
    %4948 = vmatpush1.bf16.msra.mxu0 0
    %4949 = vmatprep.subr.bf16.mxu0 0
    %4950 = vmatpush1.bf16.msra.mxu0 0
    %4951 = vmatprep.subr.bf16.mxu0 0
    %4952 = vmatpush1.bf16.msra.mxu0 0
    %4953 = vmatprep.subr.bf16.mxu0 0
    %4954 = vmatpush1.bf16.msra.mxu0 0
    %4955 = vmatprep.subr.bf16.mxu0 0
    %4956 = vmatpush1.bf16.msra.mxu0 0
    %4957 = vmatprep.subr.bf16.mxu0 0
    %4958 = vmatpush1.bf16.msra.mxu0 0
    %4959 = vmatprep.subr.bf16.mxu0 0
    %4960 = vmatpush1.bf16.msra.mxu0 0
    %4961 = vmatprep.subr.bf16.mxu0 0
    %4962 = vmatpush1.bf16.msra.mxu0 0
    %4963 = vmatprep.mubr.bf16.mxu0 0
    %4964 = vmatmul.mubr.bf16.gmra.mrb[0].mxu0 %v4914
    %v4965 = vpop.f32.mrb[0].mxu0
    %v4966 = vadd.f32 0.0, %v4965
    %v4967 = vpop.f32.mrb[0].mxu0
    %v4968 = vadd.f32 0.0, %v4967
    %v4969 = vpop.f32.mrb[0].mxu0
    %v4970 = vadd.f32 0.0, %v4969
    %v4971 = vpop.f32.mrb[0].mxu0
    %v4972 = vadd.f32 0.0, %v4971
    %4973 = vmatprep.mubr.bf16.mxu0 0
    %4974 = vmatmul.mubr.bf16.gmra.mrb[0].mxu0 %v4917
    %v4975 = vpop.f32.mrb[0].mxu0
    %v4976 = vadd.f32 0.0, %v4975
    %v4977 = vpop.f32.mrb[0].mxu0
    %v4978 = vadd.f32 0.0, %v4977
    %v4979 = vpop.f32.mrb[0].mxu0
    %v4980 = vadd.f32 0.0, %v4979
    %v4981 = vpop.f32.mrb[0].mxu0
    %v4982 = vadd.f32 0.0, %v4981
    %4983 = vdwg.mxu0
    %4984 = vmatprep.subr.bf16.mxu0 %v4929
    %4985 = vmatpush1.bf16.msra.mxu0 %v4926
    %4986 = vmatprep.subr.bf16.mxu0 0
    %4987 = vmatpush1.bf16.msra.mxu0 0
    %4988 = vmatprep.subr.bf16.mxu0 0
    %4989 = vmatpush1.bf16.msra.mxu0 0
    %4990 = vmatprep.subr.bf16.mxu0 0
    %4991 = vmatpush1.bf16.msra.mxu0 0
    %4992 = vmatprep.subr.bf16.mxu0 0
    %4993 = vmatpush1.bf16.msra.mxu0 0
    %4994 = vmatprep.subr.bf16.mxu0 0
    %4995 = vmatpush1.bf16.msra.mxu0 0
    %4996 = vmatprep.subr.bf16.mxu0 0
    %4997 = vmatpush1.bf16.msra.mxu0 0
    %4998 = vmatprep.subr.bf16.mxu0 0
    %4999 = vmatpush1.bf16.msra.mxu0 0
    %5000 = vmatprep.subr.bf16.mxu0 0
    %5001 = vmatpush1.bf16.msra.mxu0 0
    %5002 = vmatprep.subr.bf16.mxu0 0
    %5003 = vmatpush1.bf16.msra.mxu0 0
    %5004 = vmatprep.subr.bf16.mxu0 0
    %5005 = vmatpush1.bf16.msra.mxu0 0
    %5006 = vmatprep.subr.bf16.mxu0 0
    %5007 = vmatpush1.bf16.msra.mxu0 0
    %5008 = vmatprep.subr.bf16.mxu0 0
    %5009 = vmatpush1.bf16.msra.mxu0 0
    %5010 = vmatprep.subr.bf16.mxu0 0
    %5011 = vmatpush1.bf16.msra.mxu0 0
    %5012 = vmatprep.subr.bf16.mxu0 0
    %5013 = vmatpush1.bf16.msra.mxu0 0
    %5014 = vmatprep.subr.bf16.mxu0 0
    %5015 = vmatpush1.bf16.msra.mxu0 0
    %5016 = vmatprep.mubr.bf16.mxu0 0
    %5017 = vmatmul.mubr.bf16.gmra.mrb[0].mxu0 %v4914
    %v5018 = vpop.f32.mrb[0].mxu0
    %v5019 = vadd.f32 0.0, %v5018
    %v5020 = vpop.f32.mrb[0].mxu0
    %v5021 = vadd.f32 0.0, %v5020
    %v5022 = vpop.f32.mrb[0].mxu0
    %v5023 = vadd.f32 0.0, %v5022
    %v5024 = vpop.f32.mrb[0].mxu0
    %v5025 = vadd.f32 0.0, %v5024
    %5026 = vmatprep.mubr.bf16.mxu0 0
    %5027 = vmatmul.mubr.bf16.gmra.mrb[0].mxu0 %v4917
    %v5028 = vpop.f32.mrb[0].mxu0
    %v5029 = vadd.f32 0.0, %v5028
    %v5030 = vpop.f32.mrb[0].mxu0
    %v5031 = vadd.f32 0.0, %v5030
    %v5032 = vpop.f32.mrb[0].mxu0
    %v5033 = vadd.f32 0.0, %v5032
    %v5034 = vpop.f32.mrb[0].mxu0
    %v5035 = vadd.f32 0.0, %v5034
    %5036 = vdwg.mxu0
    %v5037 = vadd.f32 %v4839, %v4966
    %v5038 = vadd.f32 %v4840, %v4968
    %v5039 = vadd.f32 %v4841, %v5019
    %v5040 = vadd.f32 %v4842, %v5021
    %v5041 = vadd.f32 %v4843, %v4970
    %v5042 = vadd.f32 %v4844, %v4972
    %v5043 = vadd.f32 %v4845, %v5023
    %v5044 = vadd.f32 %v4846, %v5025
    %v5045 = vadd.f32 %v4847, %v4976
    %v5046 = vadd.f32 %v4848, %v4978
    %v5047 = vadd.f32 %v4849, %v5029
    %v5048 = vadd.f32 %v4850, %v5031
    %v5049 = vadd.f32 %v4851, %v4980
    %v5050 = vadd.f32 %v4852, %v4982
    %v5051 = vadd.f32 %v4853, %v5033
    %v5052 = vadd.f32 %v4854, %v5035
    %5053 = vst [vmem:[#allocation2] sm:$0xff] %v5037
    %5054 = vst [vmem:[#allocation2 + $0x8] sm:$0xff] %v5038
    %5055 = vst [vmem:[#allocation2 + $0x10] sm:$0xff] %v5039
    %5056 = vst [vmem:[#allocation2 + $0x18] sm:$0xff] %v5040
    %5057 = vst [vmem:[#allocation2 + $0x20] sm:$0xff] %v5041
    %5058 = vst [vmem:[#allocation2 + $0x28] sm:$0xff] %v5042
    %5059 = vst [vmem:[#allocation2 + $0x30] sm:$0xff] %v5043
    %5060 = vst [vmem:[#allocation2 + $0x38] sm:$0xff] %v5044
    %5061 = vst [vmem:[#allocation2 + $0x40] sm:$0xff] %v5045
    %5062 = vst [vmem:[#allocation2 + $0x48] sm:$0xff] %v5046
    %5063 = vst [vmem:[#allocation2 + $0x50] sm:$0xff] %v5047
    %5064 = vst [vmem:[#allocation2 + $0x58] sm:$0xff] %v5048
    %5065 = vst [vmem:[#allocation2 + $0x60] sm:$0xff] %v5049
    %5066 = vst [vmem:[#allocation2 + $0x68] sm:$0xff] %v5050
    %5067 = vst [vmem:[#allocation2 + $0x70] sm:$0xff] %v5051
    %5068 = vst [vmem:[#allocation2 + $0x78] sm:$0xff] %v5052
    %v5069 = vld [vmem:[#allocation2] sm:$0xff]
    %v5070 = vld [vmem:[#allocation2 + $0x8] sm:$0xff]
    %v5071 = vld [vmem:[#allocation2 + $0x10] sm:$0xff]
    %v5072 = vld [vmem:[#allocation2 + $0x18] sm:$0xff]
    %v5073 = vld [vmem:[#allocation2 + $0x20] sm:$0xff]
    %v5074 = vld [vmem:[#allocation2 + $0x28] sm:$0xff]
    %v5075 = vld [vmem:[#allocation2 + $0x30] sm:$0xff]
    %v5076 = vld [vmem:[#allocation2 + $0x38] sm:$0xff]
    %v5077 = vld [vmem:[#allocation2 + $0x40] sm:$0xff]
    %v5078 = vld [vmem:[#allocation2 + $0x48] sm:$0xff]
    %v5079 = vld [vmem:[#allocation2 + $0x50] sm:$0xff]
    %v5080 = vld [vmem:[#allocation2 + $0x58] sm:$0xff]
    %v5081 = vld [vmem:[#allocation2 + $0x60] sm:$0xff]
    %v5082 = vld [vmem:[#allocation2 + $0x68] sm:$0xff]
    %v5083 = vld [vmem:[#allocation2 + $0x70] sm:$0xff]
    %v5084 = vld [vmem:[#allocation2 + $0x78] sm:$0xff]
    %s5085 = scalar_lea.vmem %s0, 352
    %v5086 = vld [vmem:[%s5085] sm:$0xf]
    %v5087 = vld [vmem:[%s5085 + $0x4] sm:$0xf]
    %v5088 = vld [vmem:[%s5085 + $0x8] sm:$0xf]
    %v5089 = vld [vmem:[%s5085 + $0xc] sm:$0xf]
    %v5090 = vld [vmem:[%s2] sm:$0xff]
    %v5091 = vld [vmem:[%s2 + $0x8] sm:$0x3]
    %v5096 = vunpack.c.l.b16 %v5086
    %v5097 = vunpack.c.l.b16 %v5087
    %v5098 = vunpack.c.l.b16 %v5088
    %v5099 = vunpack.c.l.b16 %v5089
    %v5100 = vpack.c.b16 %v5097, %v5096
    %v5101 = vpack.c.b16 %v5099, %v5098
    %v5104 = vcombine.high %v5090, %v5090
    %v5106 = vunpack.c.l.s4 1983009808
    %v5107 = vunpack.c.0.s8 %v5106
    %v5108 = vlaneseq
    %v5109 = vshrl.u32 %v5108, 7
    %v5110 = vsub.s32 %v5107, %v5109
    %v5111 = vrot.slane %v5090, %v5110
    %v5113 = vunpack.c.l.s4 1983009808
    %v5114 = vunpack.c.0.s8 %v5113
    %v5115 = vlaneseq
    %v5116 = vshrl.u32 %v5115, 7
    %v5117 = vsub.s32 %v5114, %v5116
    %v5118 = vrot.slane %v5104, %v5117
    %v5119 = vcombine.high %v5111, %v5111
    %v5120 = vcombine.high %v5118, %v5118
    %v5122 = vunpack.c.l.s4 1983009808
    %v5123 = vunpack.c.0.s8 %v5122
    %v5124 = vlaneseq
    %v5125 = vshrl.u32 %v5124, 7
    %v5126 = vsub.s32 %v5123, %v5125
    %v5127 = vrot.slane %v5091, %v5126
    %5128 = vrot.lane.b32.xlu0 %v5111, 62
    %v5129 = vpop.permute.xlu0 %5128
    %5130 = vrot.lane.b32.xlu0 %v5119, 62
    %v5131 = vpop.permute.xlu0 %5130
    %5132 = vrot.lane.b32.xlu0 %v5118, 62
    %v5133 = vpop.permute.xlu0 %5132
    %5134 = vrot.lane.b32.xlu0 %v5120, 62
    %v5135 = vpop.permute.xlu0 %5134
    %5136 = vrot.lane.b32.xlu0 %v5127, 62
    %v5137 = vpop.permute.xlu0 %5136
    %vm5138 = vcmask 506880
    %v5139 = vsel %vm5138, %v5129, %v5131
    %v5140 = vsel %vm5138, %v5131, %v5133
    %v5141 = vsel %vm5138, %v5133, %v5135
    %v5142 = vsel %vm5138, %v5135, %v5137
    %v5144 = vsel %vm81, %v5100, 0
    %v5147 = vsel %vm81, %v5101, 0
    %v5150 = vsel %vm88, %v5139, 0
    %v5153 = vsel %vm88, %v5140, 0
    %v5156 = vsel %vm88, %v5141, 0
    %v5159 = vsel %vm88, %v5142, 0
    %5161 = vmatprep.subr.bf16.mxu0 %v5153
    %5162 = vmatpush1.bf16.msra.mxu0 %v5150
    %5163 = vmatprep.subr.bf16.mxu0 0
    %5164 = vmatpush1.bf16.msra.mxu0 0
    %5165 = vmatprep.subr.bf16.mxu0 0
    %5166 = vmatpush1.bf16.msra.mxu0 0
    %5167 = vmatprep.subr.bf16.mxu0 0
    %5168 = vmatpush1.bf16.msra.mxu0 0
    %5169 = vmatprep.subr.bf16.mxu0 0
    %5170 = vmatpush1.bf16.msra.mxu0 0
    %5171 = vmatprep.subr.bf16.mxu0 0
    %5172 = vmatpush1.bf16.msra.mxu0 0
    %5173 = vmatprep.subr.bf16.mxu0 0
    %5174 = vmatpush1.bf16.msra.mxu0 0
    %5175 = vmatprep.subr.bf16.mxu0 0
    %5176 = vmatpush1.bf16.msra.mxu0 0
    %5177 = vmatprep.subr.bf16.mxu0 0
    %5178 = vmatpush1.bf16.msra.mxu0 0
    %5179 = vmatprep.subr.bf16.mxu0 0
    %5180 = vmatpush1.bf16.msra.mxu0 0
    %5181 = vmatprep.subr.bf16.mxu0 0
    %5182 = vmatpush1.bf16.msra.mxu0 0
    %5183 = vmatprep.subr.bf16.mxu0 0
    %5184 = vmatpush1.bf16.msra.mxu0 0
    %5185 = vmatprep.subr.bf16.mxu0 0
    %5186 = vmatpush1.bf16.msra.mxu0 0
    %5187 = vmatprep.subr.bf16.mxu0 0
    %5188 = vmatpush1.bf16.msra.mxu0 0
    %5189 = vmatprep.subr.bf16.mxu0 0
    %5190 = vmatpush1.bf16.msra.mxu0 0
    %5191 = vmatprep.subr.bf16.mxu0 0
    %5192 = vmatpush1.bf16.msra.mxu0 0
    %5193 = vmatprep.mubr.bf16.mxu0 0
    %5194 = vmatmul.mubr.bf16.gmra.mrb[0].mxu0 %v5144
    %v5195 = vpop.f32.mrb[0].mxu0
    %v5196 = vadd.f32 0.0, %v5195
    %v5197 = vpop.f32.mrb[0].mxu0
    %v5198 = vadd.f32 0.0, %v5197
    %v5199 = vpop.f32.mrb[0].mxu0
    %v5200 = vadd.f32 0.0, %v5199
    %v5201 = vpop.f32.mrb[0].mxu0
    %v5202 = vadd.f32 0.0, %v5201
    %5203 = vmatprep.mubr.bf16.mxu0 0
    %5204 = vmatmul.mubr.bf16.gmra.mrb[0].mxu0 %v5147
    %v5205 = vpop.f32.mrb[0].mxu0
    %v5206 = vadd.f32 0.0, %v5205
    %v5207 = vpop.f32.mrb[0].mxu0
    %v5208 = vadd.f32 0.0, %v5207
    %v5209 = vpop.f32.mrb[0].mxu0
    %v5210 = vadd.f32 0.0, %v5209
    %v5211 = vpop.f32.mrb[0].mxu0
    %v5212 = vadd.f32 0.0, %v5211
    %5213 = vdwg.mxu0
    %5214 = vmatprep.subr.bf16.mxu0 %v5159
    %5215 = vmatpush1.bf16.msra.mxu0 %v5156
    %5216 = vmatprep.subr.bf16.mxu0 0
    %5217 = vmatpush1.bf16.msra.mxu0 0
    %5218 = vmatprep.subr.bf16.mxu0 0
    %5219 = vmatpush1.bf16.msra.mxu0 0
    %5220 = vmatprep.subr.bf16.mxu0 0
    %5221 = vmatpush1.bf16.msra.mxu0 0
    %5222 = vmatprep.subr.bf16.mxu0 0
    %5223 = vmatpush1.bf16.msra.mxu0 0
    %5224 = vmatprep.subr.bf16.mxu0 0
    %5225 = vmatpush1.bf16.msra.mxu0 0
    %5226 = vmatprep.subr.bf16.mxu0 0
    %5227 = vmatpush1.bf16.msra.mxu0 0
    %5228 = vmatprep.subr.bf16.mxu0 0
    %5229 = vmatpush1.bf16.msra.mxu0 0
    %5230 = vmatprep.subr.bf16.mxu0 0
    %5231 = vmatpush1.bf16.msra.mxu0 0
    %5232 = vmatprep.subr.bf16.mxu0 0
    %5233 = vmatpush1.bf16.msra.mxu0 0
    %5234 = vmatprep.subr.bf16.mxu0 0
    %5235 = vmatpush1.bf16.msra.mxu0 0
    %5236 = vmatprep.subr.bf16.mxu0 0
    %5237 = vmatpush1.bf16.msra.mxu0 0
    %5238 = vmatprep.subr.bf16.mxu0 0
    %5239 = vmatpush1.bf16.msra.mxu0 0
    %5240 = vmatprep.subr.bf16.mxu0 0
    %5241 = vmatpush1.bf16.msra.mxu0 0
    %5242 = vmatprep.subr.bf16.mxu0 0
    %5243 = vmatpush1.bf16.msra.mxu0 0
    %5244 = vmatprep.subr.bf16.mxu0 0
    %5245 = vmatpush1.bf16.msra.mxu0 0
    %5246 = vmatprep.mubr.bf16.mxu0 0
    %5247 = vmatmul.mubr.bf16.gmra.mrb[0].mxu0 %v5144
    %v5248 = vpop.f32.mrb[0].mxu0
    %v5249 = vadd.f32 0.0, %v5248
    %v5250 = vpop.f32.mrb[0].mxu0
    %v5251 = vadd.f32 0.0, %v5250
    %v5252 = vpop.f32.mrb[0].mxu0
    %v5253 = vadd.f32 0.0, %v5252
    %v5254 = vpop.f32.mrb[0].mxu0
    %v5255 = vadd.f32 0.0, %v5254
    %5256 = vmatprep.mubr.bf16.mxu0 0
    %5257 = vmatmul.mubr.bf16.gmra.mrb[0].mxu0 %v5147
    %v5258 = vpop.f32.mrb[0].mxu0
    %v5259 = vadd.f32 0.0, %v5258
    %v5260 = vpop.f32.mrb[0].mxu0
    %v5261 = vadd.f32 0.0, %v5260
    %v5262 = vpop.f32.mrb[0].mxu0
    %v5263 = vadd.f32 0.0, %v5262
    %v5264 = vpop.f32.mrb[0].mxu0
    %v5265 = vadd.f32 0.0, %v5264
    %5266 = vdwg.mxu0
    %v5267 = vadd.f32 %v5069, %v5196
    %v5268 = vadd.f32 %v5070, %v5198
    %v5269 = vadd.f32 %v5071, %v5249
    %v5270 = vadd.f32 %v5072, %v5251
    %v5271 = vadd.f32 %v5073, %v5200
    %v5272 = vadd.f32 %v5074, %v5202
    %v5273 = vadd.f32 %v5075, %v5253
    %v5274 = vadd.f32 %v5076, %v5255
    %v5275 = vadd.f32 %v5077, %v5206
    %v5276 = vadd.f32 %v5078, %v5208
    %v5277 = vadd.f32 %v5079, %v5259
    %v5278 = vadd.f32 %v5080, %v5261
    %v5279 = vadd.f32 %v5081, %v5210
    %v5280 = vadd.f32 %v5082, %v5212
    %v5281 = vadd.f32 %v5083, %v5263
    %v5282 = vadd.f32 %v5084, %v5265
    %5283 = vst [vmem:[#allocation2] sm:$0xff] %v5267
    %5284 = vst [vmem:[#allocation2 + $0x8] sm:$0xff] %v5268
    %5285 = vst [vmem:[#allocation2 + $0x10] sm:$0xff] %v5269
    %5286 = vst [vmem:[#allocation2 + $0x18] sm:$0xff] %v5270
    %5287 = vst [vmem:[#allocation2 + $0x20] sm:$0xff] %v5271
    %5288 = vst [vmem:[#allocation2 + $0x28] sm:$0xff] %v5272
    %5289 = vst [vmem:[#allocation2 + $0x30] sm:$0xff] %v5273
    %5290 = vst [vmem:[#allocation2 + $0x38] sm:$0xff] %v5274
    %5291 = vst [vmem:[#allocation2 + $0x40] sm:$0xff] %v5275
    %5292 = vst [vmem:[#allocation2 + $0x48] sm:$0xff] %v5276
    %5293 = vst [vmem:[#allocation2 + $0x50] sm:$0xff] %v5277
    %5294 = vst [vmem:[#allocation2 + $0x58] sm:$0xff] %v5278
    %5295 = vst [vmem:[#allocation2 + $0x60] sm:$0xff] %v5279
    %5296 = vst [vmem:[#allocation2 + $0x68] sm:$0xff] %v5280
    %5297 = vst [vmem:[#allocation2 + $0x70] sm:$0xff] %v5281
    %5298 = vst [vmem:[#allocation2 + $0x78] sm:$0xff] %v5282
    %v5299 = vld [vmem:[#allocation2] sm:$0xff]
    %v5300 = vld [vmem:[#allocation2 + $0x8] sm:$0xff]
    %v5301 = vld [vmem:[#allocation2 + $0x10] sm:$0xff]
    %v5302 = vld [vmem:[#allocation2 + $0x18] sm:$0xff]
    %v5303 = vld [vmem:[#allocation2 + $0x20] sm:$0xff]
    %v5304 = vld [vmem:[#allocation2 + $0x28] sm:$0xff]
    %v5305 = vld [vmem:[#allocation2 + $0x30] sm:$0xff]
    %v5306 = vld [vmem:[#allocation2 + $0x38] sm:$0xff]
    %v5307 = vld [vmem:[#allocation2 + $0x40] sm:$0xff]
    %v5308 = vld [vmem:[#allocation2 + $0x48] sm:$0xff]
    %v5309 = vld [vmem:[#allocation2 + $0x50] sm:$0xff]
    %v5310 = vld [vmem:[#allocation2 + $0x58] sm:$0xff]
    %v5311 = vld [vmem:[#allocation2 + $0x60] sm:$0xff]
    %v5312 = vld [vmem:[#allocation2 + $0x68] sm:$0xff]
    %v5313 = vld [vmem:[#allocation2 + $0x70] sm:$0xff]
    %v5314 = vld [vmem:[#allocation2 + $0x78] sm:$0xff]
    %s5315 = scalar_lea.vmem %s0, 368
    %v5316 = vld [vmem:[%s5315] sm:$0xf]
    %v5317 = vld [vmem:[%s5315 + $0x4] sm:$0xf]
    %v5318 = vld [vmem:[%s5315 + $0x8] sm:$0xf]
    %v5319 = vld [vmem:[%s5315 + $0xc] sm:$0xf]
    %v5320 = vld [vmem:[%s2] sm:$0xff]
    %v5321 = vld [vmem:[%s2 + $0x8] sm:$0x3]
    %v5326 = vunpack.c.l.b16 %v5316
    %v5327 = vunpack.c.l.b16 %v5317
    %v5328 = vunpack.c.l.b16 %v5318
    %v5329 = vunpack.c.l.b16 %v5319
    %v5330 = vpack.c.b16 %v5327, %v5326
    %v5331 = vpack.c.b16 %v5329, %v5328
    %v5334 = vcombine.high %v5320, %v5320
    %v5336 = vunpack.c.l.s4 1983009808
    %v5337 = vunpack.c.0.s8 %v5336
    %v5338 = vlaneseq
    %v5339 = vshrl.u32 %v5338, 7
    %v5340 = vsub.s32 %v5337, %v5339
    %v5341 = vrot.slane %v5320, %v5340
    %v5343 = vunpack.c.l.s4 1983009808
    %v5344 = vunpack.c.0.s8 %v5343
    %v5345 = vlaneseq
    %v5346 = vshrl.u32 %v5345, 7
    %v5347 = vsub.s32 %v5344, %v5346
    %v5348 = vrot.slane %v5334, %v5347
    %v5349 = vcombine.high %v5341, %v5341
    %v5350 = vcombine.high %v5348, %v5348
    %v5352 = vunpack.c.l.s4 1983009808
    %v5353 = vunpack.c.0.s8 %v5352
    %v5354 = vlaneseq
    %v5355 = vshrl.u32 %v5354, 7
    %v5356 = vsub.s32 %v5353, %v5355
    %v5357 = vrot.slane %v5321, %v5356
    %5358 = vrot.lane.b32.xlu0 %v5341, 61
    %v5359 = vpop.permute.xlu0 %5358
    %5360 = vrot.lane.b32.xlu0 %v5349, 61
    %v5361 = vpop.permute.xlu0 %5360
    %5362 = vrot.lane.b32.xlu0 %v5348, 61
    %v5363 = vpop.permute.xlu0 %5362
    %5364 = vrot.lane.b32.xlu0 %v5350, 61
    %v5365 = vpop.permute.xlu0 %5364
    %5366 = vrot.lane.b32.xlu0 %v5357, 61
    %v5367 = vpop.permute.xlu0 %5366
    %vm5368 = vcmask 498688
    %v5369 = vsel %vm5368, %v5359, %v5361
    %v5370 = vsel %vm5368, %v5361, %v5363
    %v5371 = vsel %vm5368, %v5363, %v5365
    %v5372 = vsel %vm5368, %v5365, %v5367
    %v5374 = vsel %vm81, %v5330, 0
    %v5377 = vsel %vm81, %v5331, 0
    %v5380 = vsel %vm88, %v5369, 0
    %v5383 = vsel %vm88, %v5370, 0
    %v5386 = vsel %vm88, %v5371, 0
    %v5389 = vsel %vm88, %v5372, 0
    %5391 = vmatprep.subr.bf16.mxu0 %v5383
    %5392 = vmatpush1.bf16.msra.mxu0 %v5380
    %5393 = vmatprep.subr.bf16.mxu0 0
    %5394 = vmatpush1.bf16.msra.mxu0 0
    %5395 = vmatprep.subr.bf16.mxu0 0
    %5396 = vmatpush1.bf16.msra.mxu0 0
    %5397 = vmatprep.subr.bf16.mxu0 0
    %5398 = vmatpush1.bf16.msra.mxu0 0
    %5399 = vmatprep.subr.bf16.mxu0 0
    %5400 = vmatpush1.bf16.msra.mxu0 0
    %5401 = vmatprep.subr.bf16.mxu0 0
    %5402 = vmatpush1.bf16.msra.mxu0 0
    %5403 = vmatprep.subr.bf16.mxu0 0
    %5404 = vmatpush1.bf16.msra.mxu0 0
    %5405 = vmatprep.subr.bf16.mxu0 0
    %5406 = vmatpush1.bf16.msra.mxu0 0
    %5407 = vmatprep.subr.bf16.mxu0 0
    %5408 = vmatpush1.bf16.msra.mxu0 0
    %5409 = vmatprep.subr.bf16.mxu0 0
    %5410 = vmatpush1.bf16.msra.mxu0 0
    %5411 = vmatprep.subr.bf16.mxu0 0
    %5412 = vmatpush1.bf16.msra.mxu0 0
    %5413 = vmatprep.subr.bf16.mxu0 0
    %5414 = vmatpush1.bf16.msra.mxu0 0
    %5415 = vmatprep.subr.bf16.mxu0 0
    %5416 = vmatpush1.bf16.msra.mxu0 0
    %5417 = vmatprep.subr.bf16.mxu0 0
    %5418 = vmatpush1.bf16.msra.mxu0 0
    %5419 = vmatprep.subr.bf16.mxu0 0
    %5420 = vmatpush1.bf16.msra.mxu0 0
    %5421 = vmatprep.subr.bf16.mxu0 0
    %5422 = vmatpush1.bf16.msra.mxu0 0
    %5423 = vmatprep.mubr.bf16.mxu0 0
    %5424 = vmatmul.mubr.bf16.gmra.mrb[0].mxu0 %v5374
    %v5425 = vpop.f32.mrb[0].mxu0
    %v5426 = vadd.f32 0.0, %v5425
    %v5427 = vpop.f32.mrb[0].mxu0
    %v5428 = vadd.f32 0.0, %v5427
    %v5429 = vpop.f32.mrb[0].mxu0
    %v5430 = vadd.f32 0.0, %v5429
    %v5431 = vpop.f32.mrb[0].mxu0
    %v5432 = vadd.f32 0.0, %v5431
    %5433 = vmatprep.mubr.bf16.mxu0 0
    %5434 = vmatmul.mubr.bf16.gmra.mrb[0].mxu0 %v5377
    %v5435 = vpop.f32.mrb[0].mxu0
    %v5436 = vadd.f32 0.0, %v5435
    %v5437 = vpop.f32.mrb[0].mxu0
    %v5438 = vadd.f32 0.0, %v5437
    %v5439 = vpop.f32.mrb[0].mxu0
    %v5440 = vadd.f32 0.0, %v5439
    %v5441 = vpop.f32.mrb[0].mxu0
    %v5442 = vadd.f32 0.0, %v5441
    %5443 = vdwg.mxu0
    %5444 = vmatprep.subr.bf16.mxu0 %v5389
    %5445 = vmatpush1.bf16.msra.mxu0 %v5386
    %5446 = vmatprep.subr.bf16.mxu0 0
    %5447 = vmatpush1.bf16.msra.mxu0 0
    %5448 = vmatprep.subr.bf16.mxu0 0
    %5449 = vmatpush1.bf16.msra.mxu0 0
    %5450 = vmatprep.subr.bf16.mxu0 0
    %5451 = vmatpush1.bf16.msra.mxu0 0
    %5452 = vmatprep.subr.bf16.mxu0 0
    %5453 = vmatpush1.bf16.msra.mxu0 0
    %5454 = vmatprep.subr.bf16.mxu0 0
    %5455 = vmatpush1.bf16.msra.mxu0 0
    %5456 = vmatprep.subr.bf16.mxu0 0
    %5457 = vmatpush1.bf16.msra.mxu0 0
    %5458 = vmatprep.subr.bf16.mxu0 0
    %5459 = vmatpush1.bf16.msra.mxu0 0
    %5460 = vmatprep.subr.bf16.mxu0 0
    %5461 = vmatpush1.bf16.msra.mxu0 0
    %5462 = vmatprep.subr.bf16.mxu0 0
    %5463 = vmatpush1.bf16.msra.mxu0 0
    %5464 = vmatprep.subr.bf16.mxu0 0
    %5465 = vmatpush1.bf16.msra.mxu0 0
    %5466 = vmatprep.subr.bf16.mxu0 0
    %5467 = vmatpush1.bf16.msra.mxu0 0
    %5468 = vmatprep.subr.bf16.mxu0 0
    %5469 = vmatpush1.bf16.msra.mxu0 0
    %5470 = vmatprep.subr.bf16.mxu0 0
    %5471 = vmatpush1.bf16.msra.mxu0 0
    %5472 = vmatprep.subr.bf16.mxu0 0
    %5473 = vmatpush1.bf16.msra.mxu0 0
    %5474 = vmatprep.subr.bf16.mxu0 0
    %5475 = vmatpush1.bf16.msra.mxu0 0
    %5476 = vmatprep.mubr.bf16.mxu0 0
    %5477 = vmatmul.mubr.bf16.gmra.mrb[0].mxu0 %v5374
    %v5478 = vpop.f32.mrb[0].mxu0
    %v5479 = vadd.f32 0.0, %v5478
    %v5480 = vpop.f32.mrb[0].mxu0
    %v5481 = vadd.f32 0.0, %v5480
    %v5482 = vpop.f32.mrb[0].mxu0
    %v5483 = vadd.f32 0.0, %v5482
    %v5484 = vpop.f32.mrb[0].mxu0
    %v5485 = vadd.f32 0.0, %v5484
    %5486 = vmatprep.mubr.bf16.mxu0 0
    %5487 = vmatmul.mubr.bf16.gmra.mrb[0].mxu0 %v5377
    %v5488 = vpop.f32.mrb[0].mxu0
    %v5489 = vadd.f32 0.0, %v5488
    %v5490 = vpop.f32.mrb[0].mxu0
    %v5491 = vadd.f32 0.0, %v5490
    %v5492 = vpop.f32.mrb[0].mxu0
    %v5493 = vadd.f32 0.0, %v5492
    %v5494 = vpop.f32.mrb[0].mxu0
    %v5495 = vadd.f32 0.0, %v5494
    %5496 = vdwg.mxu0
    %v5497 = vadd.f32 %v5299, %v5426
    %v5498 = vadd.f32 %v5300, %v5428
    %v5499 = vadd.f32 %v5301, %v5479
    %v5500 = vadd.f32 %v5302, %v5481
    %v5501 = vadd.f32 %v5303, %v5430
    %v5502 = vadd.f32 %v5304, %v5432
    %v5503 = vadd.f32 %v5305, %v5483
    %v5504 = vadd.f32 %v5306, %v5485
    %v5505 = vadd.f32 %v5307, %v5436
    %v5506 = vadd.f32 %v5308, %v5438
    %v5507 = vadd.f32 %v5309, %v5489
    %v5508 = vadd.f32 %v5310, %v5491
    %v5509 = vadd.f32 %v5311, %v5440
    %v5510 = vadd.f32 %v5312, %v5442
    %v5511 = vadd.f32 %v5313, %v5493
    %v5512 = vadd.f32 %v5314, %v5495
    %5513 = vst [vmem:[#allocation2] sm:$0xff] %v5497
    %5514 = vst [vmem:[#allocation2 + $0x8] sm:$0xff] %v5498
    %5515 = vst [vmem:[#allocation2 + $0x10] sm:$0xff] %v5499
    %5516 = vst [vmem:[#allocation2 + $0x18] sm:$0xff] %v5500
    %5517 = vst [vmem:[#allocation2 + $0x20] sm:$0xff] %v5501
    %5518 = vst [vmem:[#allocation2 + $0x28] sm:$0xff] %v5502
    %5519 = vst [vmem:[#allocation2 + $0x30] sm:$0xff] %v5503
    %5520 = vst [vmem:[#allocation2 + $0x38] sm:$0xff] %v5504
    %5521 = vst [vmem:[#allocation2 + $0x40] sm:$0xff] %v5505
    %5522 = vst [vmem:[#allocation2 + $0x48] sm:$0xff] %v5506
    %5523 = vst [vmem:[#allocation2 + $0x50] sm:$0xff] %v5507
    %5524 = vst [vmem:[#allocation2 + $0x58] sm:$0xff] %v5508
    %5525 = vst [vmem:[#allocation2 + $0x60] sm:$0xff] %v5509
    %5526 = vst [vmem:[#allocation2 + $0x68] sm:$0xff] %v5510
    %5527 = vst [vmem:[#allocation2 + $0x70] sm:$0xff] %v5511
    %5528 = vst [vmem:[#allocation2 + $0x78] sm:$0xff] %v5512
    %v5529 = vld [vmem:[#allocation2] sm:$0xff]
    %v5530 = vld [vmem:[#allocation2 + $0x8] sm:$0xff]
    %v5531 = vld [vmem:[#allocation2 + $0x10] sm:$0xff]
    %v5532 = vld [vmem:[#allocation2 + $0x18] sm:$0xff]
    %v5533 = vld [vmem:[#allocation2 + $0x20] sm:$0xff]
    %v5534 = vld [vmem:[#allocation2 + $0x28] sm:$0xff]
    %v5535 = vld [vmem:[#allocation2 + $0x30] sm:$0xff]
    %v5536 = vld [vmem:[#allocation2 + $0x38] sm:$0xff]
    %v5537 = vld [vmem:[#allocation2 + $0x40] sm:$0xff]
    %v5538 = vld [vmem:[#allocation2 + $0x48] sm:$0xff]
    %v5539 = vld [vmem:[#allocation2 + $0x50] sm:$0xff]
    %v5540 = vld [vmem:[#allocation2 + $0x58] sm:$0xff]
    %v5541 = vld [vmem:[#allocation2 + $0x60] sm:$0xff]
    %v5542 = vld [vmem:[#allocation2 + $0x68] sm:$0xff]
    %v5543 = vld [vmem:[#allocation2 + $0x70] sm:$0xff]
    %v5544 = vld [vmem:[#allocation2 + $0x78] sm:$0xff]
    %s5545 = scalar_lea.vmem %s0, 384
    %v5546 = vld [vmem:[%s5545] sm:$0xf]
    %v5547 = vld [vmem:[%s5545 + $0x4] sm:$0xf]
    %v5548 = vld [vmem:[%s5545 + $0x8] sm:$0xf]
    %v5549 = vld [vmem:[%s5545 + $0xc] sm:$0xf]
    %v5550 = vld [vmem:[%s2] sm:$0xff]
    %v5551 = vld [vmem:[%s2 + $0x8] sm:$0x3]
    %v5556 = vunpack.c.l.b16 %v5546
    %v5557 = vunpack.c.l.b16 %v5547
    %v5558 = vunpack.c.l.b16 %v5548
    %v5559 = vunpack.c.l.b16 %v5549
    %v5560 = vpack.c.b16 %v5557, %v5556
    %v5561 = vpack.c.b16 %v5559, %v5558
    %v5564 = vcombine.high %v5550, %v5550
    %v5566 = vunpack.c.l.s4 1983009808
    %v5567 = vunpack.c.0.s8 %v5566
    %v5568 = vlaneseq
    %v5569 = vshrl.u32 %v5568, 7
    %v5570 = vsub.s32 %v5567, %v5569
    %v5571 = vrot.slane %v5550, %v5570
    %v5573 = vunpack.c.l.s4 1983009808
    %v5574 = vunpack.c.0.s8 %v5573
    %v5575 = vlaneseq
    %v5576 = vshrl.u32 %v5575, 7
    %v5577 = vsub.s32 %v5574, %v5576
    %v5578 = vrot.slane %v5564, %v5577
    %v5579 = vcombine.high %v5571, %v5571
    %v5580 = vcombine.high %v5578, %v5578
    %v5582 = vunpack.c.l.s4 1983009808
    %v5583 = vunpack.c.0.s8 %v5582
    %v5584 = vlaneseq
    %v5585 = vshrl.u32 %v5584, 7
    %v5586 = vsub.s32 %v5583, %v5585
    %v5587 = vrot.slane %v5551, %v5586
    %5588 = vrot.lane.b32.xlu0 %v5571, 60
    %v5589 = vpop.permute.xlu0 %5588
    %5590 = vrot.lane.b32.xlu0 %v5579, 60
    %v5591 = vpop.permute.xlu0 %5590
    %5592 = vrot.lane.b32.xlu0 %v5578, 60
    %v5593 = vpop.permute.xlu0 %5592
    %5594 = vrot.lane.b32.xlu0 %v5580, 60
    %v5595 = vpop.permute.xlu0 %5594
    %5596 = vrot.lane.b32.xlu0 %v5587, 60
    %v5597 = vpop.permute.xlu0 %5596
    %vm5598 = vcmask 490496
    %v5599 = vsel %vm5598, %v5589, %v5591
    %v5600 = vsel %vm5598, %v5591, %v5593
    %v5601 = vsel %vm5598, %v5593, %v5595
    %v5602 = vsel %vm5598, %v5595, %v5597
    %v5604 = vsel %vm81, %v5560, 0
    %v5607 = vsel %vm81, %v5561, 0
    %v5610 = vsel %vm88, %v5599, 0
    %v5613 = vsel %vm88, %v5600, 0
    %v5616 = vsel %vm88, %v5601, 0
    %v5619 = vsel %vm88, %v5602, 0
    %5621 = vmatprep.subr.bf16.mxu0 %v5613
    %5622 = vmatpush1.bf16.msra.mxu0 %v5610
    %5623 = vmatprep.subr.bf16.mxu0 0
    %5624 = vmatpush1.bf16.msra.mxu0 0
    %5625 = vmatprep.subr.bf16.mxu0 0
    %5626 = vmatpush1.bf16.msra.mxu0 0
    %5627 = vmatprep.subr.bf16.mxu0 0
    %5628 = vmatpush1.bf16.msra.mxu0 0
    %5629 = vmatprep.subr.bf16.mxu0 0
    %5630 = vmatpush1.bf16.msra.mxu0 0
    %5631 = vmatprep.subr.bf16.mxu0 0
    %5632 = vmatpush1.bf16.msra.mxu0 0
    %5633 = vmatprep.subr.bf16.mxu0 0
    %5634 = vmatpush1.bf16.msra.mxu0 0
    %5635 = vmatprep.subr.bf16.mxu0 0
    %5636 = vmatpush1.bf16.msra.mxu0 0
    %5637 = vmatprep.subr.bf16.mxu0 0
    %5638 = vmatpush1.bf16.msra.mxu0 0
    %5639 = vmatprep.subr.bf16.mxu0 0
    %5640 = vmatpush1.bf16.msra.mxu0 0
    %5641 = vmatprep.subr.bf16.mxu0 0
    %5642 = vmatpush1.bf16.msra.mxu0 0
    %5643 = vmatprep.subr.bf16.mxu0 0
    %5644 = vmatpush1.bf16.msra.mxu0 0
    %5645 = vmatprep.subr.bf16.mxu0 0
    %5646 = vmatpush1.bf16.msra.mxu0 0
    %5647 = vmatprep.subr.bf16.mxu0 0
    %5648 = vmatpush1.bf16.msra.mxu0 0
    %5649 = vmatprep.subr.bf16.mxu0 0
    %5650 = vmatpush1.bf16.msra.mxu0 0
    %5651 = vmatprep.subr.bf16.mxu0 0
    %5652 = vmatpush1.bf16.msra.mxu0 0
    %5653 = vmatprep.mubr.bf16.mxu0 0
    %5654 = vmatmul.mubr.bf16.gmra.mrb[0].mxu0 %v5604
    %v5655 = vpop.f32.mrb[0].mxu0
    %v5656 = vadd.f32 0.0, %v5655
    %v5657 = vpop.f32.mrb[0].mxu0
    %v5658 = vadd.f32 0.0, %v5657
    %v5659 = vpop.f32.mrb[0].mxu0
    %v5660 = vadd.f32 0.0, %v5659
    %v5661 = vpop.f32.mrb[0].mxu0
    %v5662 = vadd.f32 0.0, %v5661
    %5663 = vmatprep.mubr.bf16.mxu0 0
    %5664 = vmatmul.mubr.bf16.gmra.mrb[0].mxu0 %v5607
    %v5665 = vpop.f32.mrb[0].mxu0
    %v5666 = vadd.f32 0.0, %v5665
    %v5667 = vpop.f32.mrb[0].mxu0
    %v5668 = vadd.f32 0.0, %v5667
    %v5669 = vpop.f32.mrb[0].mxu0
    %v5670 = vadd.f32 0.0, %v5669
    %v5671 = vpop.f32.mrb[0].mxu0
    %v5672 = vadd.f32 0.0, %v5671
    %5673 = vdwg.mxu0
    %5674 = vmatprep.subr.bf16.mxu0 %v5619
    %5675 = vmatpush1.bf16.msra.mxu0 %v5616
    %5676 = vmatprep.subr.bf16.mxu0 0
    %5677 = vmatpush1.bf16.msra.mxu0 0
    %5678 = vmatprep.subr.bf16.mxu0 0
    %5679 = vmatpush1.bf16.msra.mxu0 0
    %5680 = vmatprep.subr.bf16.mxu0 0
    %5681 = vmatpush1.bf16.msra.mxu0 0
    %5682 = vmatprep.subr.bf16.mxu0 0
    %5683 = vmatpush1.bf16.msra.mxu0 0
    %5684 = vmatprep.subr.bf16.mxu0 0
    %5685 = vmatpush1.bf16.msra.mxu0 0
    %5686 = vmatprep.subr.bf16.mxu0 0
    %5687 = vmatpush1.bf16.msra.mxu0 0
    %5688 = vmatprep.subr.bf16.mxu0 0
    %5689 = vmatpush1.bf16.msra.mxu0 0
    %5690 = vmatprep.subr.bf16.mxu0 0
    %5691 = vmatpush1.bf16.msra.mxu0 0
    %5692 = vmatprep.subr.bf16.mxu0 0
    %5693 = vmatpush1.bf16.msra.mxu0 0
    %5694 = vmatprep.subr.bf16.mxu0 0
    %5695 = vmatpush1.bf16.msra.mxu0 0
    %5696 = vmatprep.subr.bf16.mxu0 0
    %5697 = vmatpush1.bf16.msra.mxu0 0
    %5698 = vmatprep.subr.bf16.mxu0 0
    %5699 = vmatpush1.bf16.msra.mxu0 0
    %5700 = vmatprep.subr.bf16.mxu0 0
    %5701 = vmatpush1.bf16.msra.mxu0 0
    %5702 = vmatprep.subr.bf16.mxu0 0
    %5703 = vmatpush1.bf16.msra.mxu0 0
    %5704 = vmatprep.subr.bf16.mxu0 0
    %5705 = vmatpush1.bf16.msra.mxu0 0
    %5706 = vmatprep.mubr.bf16.mxu0 0
    %5707 = vmatmul.mubr.bf16.gmra.mrb[0].mxu0 %v5604
    %v5708 = vpop.f32.mrb[0].mxu0
    %v5709 = vadd.f32 0.0, %v5708
    %v5710 = vpop.f32.mrb[0].mxu0
    %v5711 = vadd.f32 0.0, %v5710
    %v5712 = vpop.f32.mrb[0].mxu0
    %v5713 = vadd.f32 0.0, %v5712
    %v5714 = vpop.f32.mrb[0].mxu0
    %v5715 = vadd.f32 0.0, %v5714
    %5716 = vmatprep.mubr.bf16.mxu0 0
    %5717 = vmatmul.mubr.bf16.gmra.mrb[0].mxu0 %v5607
    %v5718 = vpop.f32.mrb[0].mxu0
    %v5719 = vadd.f32 0.0, %v5718
    %v5720 = vpop.f32.mrb[0].mxu0
    %v5721 = vadd.f32 0.0, %v5720
    %v5722 = vpop.f32.mrb[0].mxu0
    %v5723 = vadd.f32 0.0, %v5722
    %v5724 = vpop.f32.mrb[0].mxu0
    %v5725 = vadd.f32 0.0, %v5724
    %5726 = vdwg.mxu0
    %v5727 = vadd.f32 %v5529, %v5656
    %v5728 = vadd.f32 %v5530, %v5658
    %v5729 = vadd.f32 %v5531, %v5709
    %v5730 = vadd.f32 %v5532, %v5711
    %v5731 = vadd.f32 %v5533, %v5660
    %v5732 = vadd.f32 %v5534, %v5662
    %v5733 = vadd.f32 %v5535, %v5713
    %v5734 = vadd.f32 %v5536, %v5715
    %v5735 = vadd.f32 %v5537, %v5666
    %v5736 = vadd.f32 %v5538, %v5668
    %v5737 = vadd.f32 %v5539, %v5719
    %v5738 = vadd.f32 %v5540, %v5721
    %v5739 = vadd.f32 %v5541, %v5670
    %v5740 = vadd.f32 %v5542, %v5672
    %v5741 = vadd.f32 %v5543, %v5723
    %v5742 = vadd.f32 %v5544, %v5725
    %5743 = vst [vmem:[#allocation2] sm:$0xff] %v5727
    %5744 = vst [vmem:[#allocation2 + $0x8] sm:$0xff] %v5728
    %5745 = vst [vmem:[#allocation2 + $0x10] sm:$0xff] %v5729
    %5746 = vst [vmem:[#allocation2 + $0x18] sm:$0xff] %v5730
    %5747 = vst [vmem:[#allocation2 + $0x20] sm:$0xff] %v5731
    %5748 = vst [vmem:[#allocation2 + $0x28] sm:$0xff] %v5732
    %5749 = vst [vmem:[#allocation2 + $0x30] sm:$0xff] %v5733
    %5750 = vst [vmem:[#allocation2 + $0x38] sm:$0xff] %v5734
    %5751 = vst [vmem:[#allocation2 + $0x40] sm:$0xff] %v5735
    %5752 = vst [vmem:[#allocation2 + $0x48] sm:$0xff] %v5736
    %5753 = vst [vmem:[#allocation2 + $0x50] sm:$0xff] %v5737
    %5754 = vst [vmem:[#allocation2 + $0x58] sm:$0xff] %v5738
    %5755 = vst [vmem:[#allocation2 + $0x60] sm:$0xff] %v5739
    %5756 = vst [vmem:[#allocation2 + $0x68] sm:$0xff] %v5740
    %5757 = vst [vmem:[#allocation2 + $0x70] sm:$0xff] %v5741
    %5758 = vst [vmem:[#allocation2 + $0x78] sm:$0xff] %v5742
    %v5759 = vld [vmem:[#allocation2] sm:$0xff]
    %v5760 = vld [vmem:[#allocation2 + $0x8] sm:$0xff]
    %v5761 = vld [vmem:[#allocation2 + $0x10] sm:$0xff]
    %v5762 = vld [vmem:[#allocation2 + $0x18] sm:$0xff]
    %v5763 = vld [vmem:[#allocation2 + $0x20] sm:$0xff]
    %v5764 = vld [vmem:[#allocation2 + $0x28] sm:$0xff]
    %v5765 = vld [vmem:[#allocation2 + $0x30] sm:$0xff]
    %v5766 = vld [vmem:[#allocation2 + $0x38] sm:$0xff]
    %v5767 = vld [vmem:[%s1] sm:$0xff]
    %v5768 = vld [vmem:[%s1 + $0x8] sm:$0xff]
    %5770 = vset.pattern.permute.xlu0 0
    %5771 = vperm.xlu0 %5770, %v5767
    %v5772 = vpop.permute.xlu0 %5771
    %5775 = vset.pattern.permute.xlu0 0
    %5776 = vperm.xlu0 %5775, %v5768
    %v5777 = vpop.permute.xlu0 %5776
    %v5779 = vadd.f32 %v5759, %v5772
    %v5780 = vadd.f32 %v5760, %v5772
    %v5781 = vadd.f32 %v5761, %v5772
    %v5782 = vadd.f32 %v5762, %v5772
    %v5783 = vadd.f32 %v5763, %v5777
    %v5784 = vadd.f32 %v5764, %v5777
    %v5785 = vadd.f32 %v5765, %v5777
    %v5786 = vadd.f32 %v5766, %v5777
    %v5787 = vld [vmem:[#allocation2 + $0x40] sm:$0xff]
    %v5788 = vld [vmem:[#allocation2 + $0x48] sm:$0xff]
    %v5789 = vld [vmem:[#allocation2 + $0x50] sm:$0xff]
    %v5790 = vld [vmem:[#allocation2 + $0x58] sm:$0xff]
    %v5791 = vld [vmem:[#allocation2 + $0x60] sm:$0xff]
    %v5792 = vld [vmem:[#allocation2 + $0x68] sm:$0xff]
    %v5793 = vld [vmem:[#allocation2 + $0x70] sm:$0xff]
    %v5794 = vld [vmem:[#allocation2 + $0x78] sm:$0xff]
    %v5795 = vld [vmem:[%s1 + $0x10] sm:$0xff]
    %v5796 = vld [vmem:[%s1 + $0x18] sm:$0xff]
    %5798 = vset.pattern.permute.xlu0 0
    %5799 = vperm.xlu0 %5798, %v5795
    %v5800 = vpop.permute.xlu0 %5799
    %5803 = vset.pattern.permute.xlu0 0
    %5804 = vperm.xlu0 %5803, %v5796
    %v5805 = vpop.permute.xlu0 %5804
    %v5807 = vadd.f32 %v5787, %v5800
    %v5808 = vadd.f32 %v5788, %v5800
    %v5809 = vadd.f32 %v5789, %v5800
    %v5810 = vadd.f32 %v5790, %v5800
    %v5811 = vadd.f32 %v5791, %v5805
    %v5812 = vadd.f32 %v5792, %v5805
    %v5813 = vadd.f32 %v5793, %v5805
    %v5814 = vadd.f32 %v5794, %v5805
    %vm5815 = vcmp.ge.f32.partialorder %v5779, 0.0
    %vm5816 = vcmp.ge.f32.partialorder %v5780, 0.0
    %vm5817 = vcmp.ge.f32.partialorder %v5781, 0.0
    %vm5818 = vcmp.ge.f32.partialorder %v5782, 0.0
    %vm5819 = vcmp.ge.f32.partialorder %v5783, 0.0
    %vm5820 = vcmp.ge.f32.partialorder %v5784, 0.0
    %vm5821 = vcmp.ge.f32.partialorder %v5785, 0.0
    %vm5822 = vcmp.ge.f32.partialorder %v5786, 0.0
    %v5823 = vmul.f32 %v5779, 0.2
    %v5824 = vmul.f32 %v5780, 0.2
    %v5825 = vmul.f32 %v5781, 0.2
    %v5826 = vmul.f32 %v5782, 0.2
    %v5827 = vmul.f32 %v5783, 0.2
    %v5828 = vmul.f32 %v5784, 0.2
    %v5829 = vmul.f32 %v5785, 0.2
    %v5830 = vmul.f32 %v5786, 0.2
    %v5831 = vsel %vm5815, %v5779, %v5823
    %v5832 = vsel %vm5816, %v5780, %v5824
    %v5833 = vsel %vm5817, %v5781, %v5825
    %v5834 = vsel %vm5818, %v5782, %v5826
    %v5835 = vsel %vm5819, %v5783, %v5827
    %v5836 = vsel %vm5820, %v5784, %v5828
    %v5837 = vsel %vm5821, %v5785, %v5829
    %v5838 = vsel %vm5822, %v5786, %v5830
    %v5839 = vsub.f32 0.0, %v5807
    %v5840 = vsub.f32 0.0, %v5808
    %v5841 = vsub.f32 0.0, %v5809
    %v5842 = vsub.f32 0.0, %v5810
    %v5843 = vsub.f32 0.0, %v5811
    %v5844 = vsub.f32 0.0, %v5812
    %v5845 = vsub.f32 0.0, %v5813
    %v5846 = vsub.f32 0.0, %v5814
    %v5847 = vmul.f32 %v5839, 1.442695
    %v5848 = vpow.pop %v5847
    %v5849 = vmul.f32 %v5840, 1.442695
    %v5850 = vpow.pop %v5849
    %v5851 = vmul.f32 %v5841, 1.442695
    %v5852 = vpow.pop %v5851
    %v5853 = vmul.f32 %v5842, 1.442695
    %v5854 = vpow.pop %v5853
    %v5855 = vmul.f32 %v5843, 1.442695
    %v5856 = vpow.pop %v5855
    %v5857 = vmul.f32 %v5844, 1.442695
    %v5858 = vpow.pop %v5857
    %v5859 = vmul.f32 %v5845, 1.442695
    %v5860 = vpow.pop %v5859
    %v5861 = vmul.f32 %v5846, 1.442695
    %v5862 = vpow.pop %v5861
    %v5863 = vadd.f32 %v5848, 1.0
    %v5864 = vadd.f32 %v5850, 1.0
    %v5865 = vadd.f32 %v5852, 1.0
    %v5866 = vadd.f32 %v5854, 1.0
    %v5867 = vadd.f32 %v5856, 1.0
    %v5868 = vadd.f32 %v5858, 1.0
    %v5869 = vadd.f32 %v5860, 1.0
    %v5870 = vadd.f32 %v5862, 1.0
    %v5871 = vrcp.pop %v5863
    %v5872 = vrcp.pop %v5864
    %v5873 = vrcp.pop %v5865
    %v5874 = vrcp.pop %v5866
    %v5875 = vrcp.pop %v5867
    %v5876 = vrcp.pop %v5868
    %v5877 = vrcp.pop %v5869
    %v5878 = vrcp.pop %v5870
    %v5879 = vmul.f32 %v5831, %v5871
    %v5880 = vmul.f32 %v5832, %v5872
    %v5881 = vmul.f32 %v5833, %v5873
    %v5882 = vmul.f32 %v5834, %v5874
    %v5883 = vmul.f32 %v5835, %v5875
    %v5884 = vmul.f32 %v5836, %v5876
    %v5885 = vmul.f32 %v5837, %v5877
    %v5886 = vmul.f32 %v5838, %v5878
    %v5887 = vpack.c.bf16 %v5883, %v5879
    %v5888 = vpack.c.bf16 %v5884, %v5880
    %v5889 = vpack.c.bf16 %v5885, %v5881
    %v5890 = vpack.c.bf16 %v5886, %v5882
    %v5895 = vunpack.c.l.b16 %v5887
    %v5896 = vunpack.c.l.b16 %v5888
    %v5897 = vunpack.c.l.b16 %v5889
    %v5898 = vunpack.c.l.b16 %v5890
    %v5899 = vunpack.c.h.b16 %v5887
    %v5900 = vunpack.c.h.b16 %v5888
    %v5901 = vunpack.c.h.b16 %v5889
    %v5902 = vunpack.c.h.b16 %v5890
    %v5903 = vpack.c.b16 %v5896, %v5895
    %v5904 = vpack.c.b16 %v5898, %v5897
    %v5905 = vpack.c.b16 %v5900, %v5899
    %v5906 = vpack.c.b16 %v5902, %v5901
    %5911 = vst [vmem:[#allocation3] sm:$0xff] %v5903
    %5912 = vst [vmem:[#allocation3 + $0x8] sm:$0xff] %v5904
    %5913 = vst [vmem:[#allocation3 + $0x10] sm:$0xff] %v5905
    %5914 = vst [vmem:[#allocation3 + $0x18] sm:$0xff] %v5906
    // Predicated region
    $region14: #{tpu_custom_call.1} parent=1 // pred_check
      _
    $region15: #{tpu_custom_call.1} parent=1 // pred_check_branch
      %5916 = sbr.rel (0) target = $region17
    $region16: #{tpu_custom_call.1} parent=1 // pred_region
      %s5918 = ssub.s32 512, 512
      %5919 = vsyncadd [#allocation4], %s5918
      %s5920 = sshll.u32 [#allocation3], 4
      %s5921 = int_to_ptr.vmem [resolvable:$true] %s5920
      %5926 = dma.vmem_to_hbm [thread:$0]  %s5921, 512, %s3, [#allocation4], 256, 256, 16
    $region17: #{tpu_custom_call.1} parent=1 // pred_fallthru
      _
    // Predicated region
    $region18: #{tpu_custom_call.1} parent=1 // pred_check
      _
    $region19: #{tpu_custom_call.1} parent=1 // pred_check_branch
      %5928 = sbr.rel (0) target = $region21
    $region20: #{tpu_custom_call.1} parent=1 // pred_region
      %5929 = dma.done [#allocation4], 512
    $region21: #{tpu_custom_call.1} parent=1 // pred_fallthru
      _
    %5930 = vsyncpa [#allocation4], 1

</llo_original>
